<compile_context>
chip_gen: v6e
topology: v6e:2x2x1
jax: 0.10.0
libtpu: 0.0.40
codegen_flags: <defaults>
</compile_context>

<pallas_src>
import jax
import jax.numpy as jnp
from jax import lax
from jax.experimental import pallas as pl
from jax.experimental.pallas import tpu as pltpu


# ----------------------------- stage 1: 3x3 s1 conv + ReLU ----------------------

def _conv3x3_s1_relu_kernel(xp_ref, wk_ref, b_ref, o_ref):
    """3x3 stride-1 conv + bias + ReLU on a pre-padded NHWC input (all VMEM).

    xp_ref: (N, H+2, W+2, Cin) padded input
    wk_ref: (9, Cin, Cout)     per-tap weights, tap t = kh*3 + kw
    b_ref : (1, Cout)
    o_ref : (N, H, W, Cout)
    """
    N, Hp, Wp, Cin = xp_ref.shape
    Cout = o_ref.shape[-1]
    H, W = Hp - 2, Wp - 2
    M = N * H * W

    acc = jnp.zeros((M, Cout), jnp.float32)
    for kh in range(3):
        for kw in range(3):
            # shifted window, read straight from the VMEM-resident padded input
            a = xp_ref[:, kh:kh + H, kw:kw + W, :].reshape(M, Cin)
            acc = acc + jnp.dot(a, wk_ref[kh * 3 + kw],
                                preferred_element_type=jnp.float32)
    out = jnp.maximum(acc + b_ref[...], 0.0)
    o_ref[...] = out.reshape(N, H, W, Cout).astype(o_ref.dtype)


# ------------------ stage 2 + head: 3x3 s2 conv + ReLU + GAP + Linear -----------

def _conv3x3_s2_relu_gap_fc_kernel(s2d_ref, wk_ref, b_ref, fcw_ref, fcb_ref, o_ref):
    """Fused: 3x3 stride-2 conv + bias + ReLU -> global average pool -> Linear.

    s2d_ref: (4, N, Ho+1, Wo+1, Cin) parity-split (space-to-depth) padded input:
             plane p = py*2 + px holds x_padded[:, py::2, px::2, :]
    wk_ref : (9, Cin, Cout)
    b_ref  : (1, Cout)
    fcw_ref: (Cout, num_classes)
    fcb_ref: (1, num_classes)
    o_ref  : (N, num_classes)
    """
    _, N, YB, XB, Cin = s2d_ref.shape
    Ho, Wo = YB - 1, XB - 1
    Cout = wk_ref.shape[-1]
    M = N * Ho * Wo

    acc = jnp.zeros((M, Cout), jnp.float32)
    for kh in range(3):
        for kw in range(3):
            # stride-2 window == contiguous window of one parity plane
            plane = (kh % 2) * 2 + (kw % 2)
            a = s2d_ref[plane, :, kh // 2:kh // 2 + Ho, kw // 2:kw // 2 + Wo, :]
            acc = acc + jnp.dot(a.reshape(M, Cin), wk_ref[kh * 3 + kw],
                                preferred_element_type=jnp.float32)
    feat = jnp.maximum(acc + b_ref[...], 0.0)                    # (M, Cout), f32

    # classifier head fused in the epilogue: GAP + Linear (f32 throughout)
    pooled = jnp.mean(feat.reshape(N, Ho * Wo, Cout), axis=1)    # (N, Cout)
    logits = jnp.dot(pooled, fcw_ref[...],
                     preferred_element_type=jnp.float32) + fcb_ref[...]
    o_ref[...] = logits.astype(o_ref.dtype)


# ----------------------------- wrappers ------------------------------------------

def _per_tap_weights(w):
    # PyTorch layout (Cout, Cin, 3, 3) -> (9, Cin, Cout), tap t = kh*3 + kw.
    return jnp.stack([w[:, :, kh, kw].T for kh in range(3) for kw in range(3)],
                     axis=0)


def conv1_pallas(x_nhwc, w, b):
    N, H, W, Cin = x_nhwc.shape
    Cout = w.shape[0]
    xp = jnp.pad(x_nhwc, ((0, 0), (1, 1), (1, 1), (0, 0)))   # 1x data, fused by jit
    vmem = pltpu.MemorySpace.VMEM
    return pl.pallas_call(
        _conv3x3_s1_relu_kernel,
        out_shape=jax.ShapeDtypeStruct((N, H, W, Cout), x_nhwc.dtype),
        in_specs=[pl.BlockSpec(memory_space=vmem) for _ in range(3)],
        out_specs=pl.BlockSpec(memory_space=vmem),
    )(xp, _per_tap_weights(w), b.reshape(1, Cout))


def conv2_head_pallas(h_nhwc, w, b, fc_w, fc_b):
    N, H, W, Cin = h_nhwc.shape
    Cout = w.shape[0]
    num_classes = fc_w.shape[1]
    Ho, Wo = H // 2, W // 2
    # pad + space-to-depth parity split: 1x-data XLA glue, fused under jit.
    hp = jnp.pad(h_nhwc, ((0, 0), (1, 1), (1, 1), (0, 0)))         # (N, H+2, W+2, C)
    s2d = (hp.reshape(N, Ho + 1, 2, Wo + 1, 2, Cin)
             .transpose(2, 4, 0, 1, 3, 5)
             .reshape(4, N, Ho + 1, Wo + 1, Cin))
    vmem = pltpu.MemorySpace.VMEM
    return pl.pallas_call(
        _conv3x3_s2_relu_gap_fc_kernel,
        out_shape=jax.ShapeDtypeStruct((N, num_classes), h_nhwc.dtype),
        in_specs=[pl.BlockSpec(memory_space=vmem) for _ in range(5)],
        out_specs=pl.BlockSpec(memory_space=vmem),
    )(s2d, _per_tap_weights(w), b.reshape(1, Cout),
      fc_w, fc_b.reshape(1, num_classes))


# ----------------------------- ClassifierFeature forward --------------------------

def init_params(key):
    k1, k2, k3, k4, k5, k6 = jax.random.split(key, 6)
    return {
        "conv1_w": 0.1 * jax.random.normal(k1, (8, 4, 3, 3), jnp.float32),
        "conv1_b": 0.1 * jax.random.normal(k2, (8,), jnp.float32),
        "conv2_w": 0.1 * jax.random.normal(k3, (16, 8, 3, 3), jnp.float32),
        "conv2_b": 0.1 * jax.random.normal(k4, (16,), jnp.float32),
        "fc_w": 0.1 * jax.random.normal(k5, (16, 10), jnp.float32),
        "fc_b": 0.1 * jax.random.normal(k6, (10,), jnp.float32),
    }


def classifier_feature_forward(params, x_nchw):
    """x = stages(x); x = classifier(x)  (NCHW input, PyTorch convention)."""
    x = jnp.transpose(x_nchw, (0, 2, 3, 1))                           # NCHW -> NHWC
    x = conv1_pallas(x, params["conv1_w"], params["conv1_b"])         # stage 1
    return conv2_head_pallas(x, params["conv2_w"], params["conv2_b"],
                             params["fc_w"], params["fc_b"])          # stage 2 + head


def reference_forward(params, x_nchw):
    def conv(x, w, b, stride):
        y = lax.conv_general_dilated(
            x, w, (stride, stride), ((1, 1), (1, 1)),
            dimension_numbers=("NCHW", "OIHW", "NCHW"))
        return jax.nn.relu(y + b[None, :, None, None])
    y = conv(x_nchw, params["conv1_w"], params["conv1_b"], 1)
    y = conv(y, params["conv2_w"], params["conv2_b"], 2)
    pooled = jnp.mean(y, axis=(2, 3))
    return pooled @ params["fc_w"] + params["fc_b"]


if __name__ == "__main__":
    key = jax.random.PRNGKey(0)
    kx, kp = jax.random.split(key)
    x = jax.random.normal(kx, (2, 4, 16, 16), jnp.float32)   # NCHW like PyTorch
    params = init_params(kp)

    fwd = jax.jit(classifier_feature_forward)                # one jit: glue fuses
    out = jax.block_until_ready(fwd(params, x))

    ref = reference_forward(params, x)
    assert out.shape == (2, 10), out.shape
    assert jnp.allclose(out, ref, atol=1e-3, rtol=1e-3), \
        float(jnp.max(jnp.abs(out - ref)))
    print("KERNEL_OK")
</pallas_src>

<mosaic_0001>
module attributes {stable_mosaic.version = 11 : i64} {
  func.func @_conv3x3_s1_relu_kernel(%arg0: memref<2x18x18x4xf32, #tpu.memory_space<vmem>>, %arg1: memref<9x4x8xf32, #tpu.memory_space<vmem>>, %arg2: memref<1x8xf32, #tpu.memory_space<vmem>>, %arg3: memref<2x16x16x8xf32, #tpu.memory_space<vmem>>) attributes {dimension_semantics = [], scalar_prefetch = 0 : i64, scratch_operands = 0 : i64, tpu.core_type = #tpu.core_type<tc>} {
    %cst = arith.constant 0.000000e+00 : f32
    %0 = vector.broadcast %cst : f32 to vector<512x8xf32>
    %c0 = arith.constant 0 : index
    %c0_0 = arith.constant 0 : index
    %c0_1 = arith.constant 0 : index
    %c0_2 = arith.constant 0 : index
    %1 = vector.load %arg0[%c0, %c0_0, %c0_1, %c0_2] : memref<2x18x18x4xf32, #tpu.memory_space<vmem>>, vector<2x16x16x4xf32>
    %2 = vector.shape_cast %1 : vector<2x16x16x4xf32> to vector<512x4xf32>
    %c0_3 = arith.constant 0 : index
    %c0_4 = arith.constant 0 : index
    %c0_5 = arith.constant 0 : index
    %3 = vector.load %arg1[%c0_3, %c0_4, %c0_5] : memref<9x4x8xf32, #tpu.memory_space<vmem>>, vector<1x4x8xf32>
    %4 = vector.shape_cast %3 : vector<1x4x8xf32> to vector<4x8xf32>
    %cst_6 = arith.constant dense<0.000000e+00> : vector<512x8xf32>
    %5 = tpu.matmul %2, %4, %cst_6 {dimension_numbers = #tpu.dot_dimension_numbers<[1], [0], [0], [1], [0, 0, 1, 1], [], []>} : vector<512x4xf32>, vector<4x8xf32>, vector<512x8xf32> -> vector<512x8xf32>
    %6 = arith.addf %0, %5 : vector<512x8xf32>
    %c0_7 = arith.constant 0 : index
    %c0_8 = arith.constant 0 : index
    %c1 = arith.constant 1 : index
    %c0_9 = arith.constant 0 : index
    %7 = vector.load %arg0[%c0_7, %c0_8, %c1, %c0_9] : memref<2x18x18x4xf32, #tpu.memory_space<vmem>>, vector<2x16x16x4xf32>
    %8 = vector.shape_cast %7 : vector<2x16x16x4xf32> to vector<512x4xf32>
    %c1_10 = arith.constant 1 : index
    %c0_11 = arith.constant 0 : index
    %c0_12 = arith.constant 0 : index
    %9 = vector.load %arg1[%c1_10, %c0_11, %c0_12] : memref<9x4x8xf32, #tpu.memory_space<vmem>>, vector<1x4x8xf32>
    %10 = vector.shape_cast %9 : vector<1x4x8xf32> to vector<4x8xf32>
    %cst_13 = arith.constant dense<0.000000e+00> : vector<512x8xf32>
    %11 = tpu.matmul %8, %10, %cst_13 {dimension_numbers = #tpu.dot_dimension_numbers<[1], [0], [0], [1], [0, 0, 1, 1], [], []>} : vector<512x4xf32>, vector<4x8xf32>, vector<512x8xf32> -> vector<512x8xf32>
    %12 = arith.addf %6, %11 : vector<512x8xf32>
    %c0_14 = arith.constant 0 : index
    %c0_15 = arith.constant 0 : index
    %c2 = arith.constant 2 : index
    %c0_16 = arith.constant 0 : index
    %13 = vector.load %arg0[%c0_14, %c0_15, %c2, %c0_16] : memref<2x18x18x4xf32, #tpu.memory_space<vmem>>, vector<2x16x16x4xf32>
    %14 = vector.shape_cast %13 : vector<2x16x16x4xf32> to vector<512x4xf32>
    %c2_17 = arith.constant 2 : index
    %c0_18 = arith.constant 0 : index
    %c0_19 = arith.constant 0 : index
    %15 = vector.load %arg1[%c2_17, %c0_18, %c0_19] : memref<9x4x8xf32, #tpu.memory_space<vmem>>, vector<1x4x8xf32>
    %16 = vector.shape_cast %15 : vector<1x4x8xf32> to vector<4x8xf32>
    %cst_20 = arith.constant dense<0.000000e+00> : vector<512x8xf32>
    %17 = tpu.matmul %14, %16, %cst_20 {dimension_numbers = #tpu.dot_dimension_numbers<[1], [0], [0], [1], [0, 0, 1, 1], [], []>} : vector<512x4xf32>, vector<4x8xf32>, vector<512x8xf32> -> vector<512x8xf32>
    %18 = arith.addf %12, %17 : vector<512x8xf32>
    %c0_21 = arith.constant 0 : index
    %c1_22 = arith.constant 1 : index
    %c0_23 = arith.constant 0 : index
    %c0_24 = arith.constant 0 : index
    %19 = vector.load %arg0[%c0_21, %c1_22, %c0_23, %c0_24] : memref<2x18x18x4xf32, #tpu.memory_space<vmem>>, vector<2x16x16x4xf32>
    %20 = vector.shape_cast %19 : vector<2x16x16x4xf32> to vector<512x4xf32>
    %c3 = arith.constant 3 : index
    %c0_25 = arith.constant 0 : index
    %c0_26 = arith.constant 0 : index
    %21 = vector.load %arg1[%c3, %c0_25, %c0_26] : memref<9x4x8xf32, #tpu.memory_space<vmem>>, vector<1x4x8xf32>
    %22 = vector.shape_cast %21 : vector<1x4x8xf32> to vector<4x8xf32>
    %cst_27 = arith.constant dense<0.000000e+00> : vector<512x8xf32>
    %23 = tpu.matmul %20, %22, %cst_27 {dimension_numbers = #tpu.dot_dimension_numbers<[1], [0], [0], [1], [0, 0, 1, 1], [], []>} : vector<512x4xf32>, vector<4x8xf32>, vector<512x8xf32> -> vector<512x8xf32>
    %24 = arith.addf %18, %23 : vector<512x8xf32>
    %c0_28 = arith.constant 0 : index
    %c1_29 = arith.constant 1 : index
    %c1_30 = arith.constant 1 : index
    %c0_31 = arith.constant 0 : index
    %25 = vector.load %arg0[%c0_28, %c1_29, %c1_30, %c0_31] : memref<2x18x18x4xf32, #tpu.memory_space<vmem>>, vector<2x16x16x4xf32>
    %26 = vector.shape_cast %25 : vector<2x16x16x4xf32> to vector<512x4xf32>
    %c4 = arith.constant 4 : index
    %c0_32 = arith.constant 0 : index
    %c0_33 = arith.constant 0 : index
    %27 = vector.load %arg1[%c4, %c0_32, %c0_33] : memref<9x4x8xf32, #tpu.memory_space<vmem>>, vector<1x4x8xf32>
    %28 = vector.shape_cast %27 : vector<1x4x8xf32> to vector<4x8xf32>
    %cst_34 = arith.constant dense<0.000000e+00> : vector<512x8xf32>
    %29 = tpu.matmul %26, %28, %cst_34 {dimension_numbers = #tpu.dot_dimension_numbers<[1], [0], [0], [1], [0, 0, 1, 1], [], []>} : vector<512x4xf32>, vector<4x8xf32>, vector<512x8xf32> -> vector<512x8xf32>
    %30 = arith.addf %24, %29 : vector<512x8xf32>
    %c0_35 = arith.constant 0 : index
    %c1_36 = arith.constant 1 : index
    %c2_37 = arith.constant 2 : index
    %c0_38 = arith.constant 0 : index
    %31 = vector.load %arg0[%c0_35, %c1_36, %c2_37, %c0_38] : memref<2x18x18x4xf32, #tpu.memory_space<vmem>>, vector<2x16x16x4xf32>
    %32 = vector.shape_cast %31 : vector<2x16x16x4xf32> to vector<512x4xf32>
    %c5 = arith.constant 5 : index
    %c0_39 = arith.constant 0 : index
    %c0_40 = arith.constant 0 : index
    %33 = vector.load %arg1[%c5, %c0_39, %c0_40] : memref<9x4x8xf32, #tpu.memory_space<vmem>>, vector<1x4x8xf32>
    %34 = vector.shape_cast %33 : vector<1x4x8xf32> to vector<4x8xf32>
    %cst_41 = arith.constant dense<0.000000e+00> : vector<512x8xf32>
    %35 = tpu.matmul %32, %34, %cst_41 {dimension_numbers = #tpu.dot_dimension_numbers<[1], [0], [0], [1], [0, 0, 1, 1], [], []>} : vector<512x4xf32>, vector<4x8xf32>, vector<512x8xf32> -> vector<512x8xf32>
    %36 = arith.addf %30, %35 : vector<512x8xf32>
    %c0_42 = arith.constant 0 : index
    %c2_43 = arith.constant 2 : index
    %c0_44 = arith.constant 0 : index
    %c0_45 = arith.constant 0 : index
    %37 = vector.load %arg0[%c0_42, %c2_43, %c0_44, %c0_45] : memref<2x18x18x4xf32, #tpu.memory_space<vmem>>, vector<2x16x16x4xf32>
    %38 = vector.shape_cast %37 : vector<2x16x16x4xf32> to vector<512x4xf32>
    %c6 = arith.constant 6 : index
    %c0_46 = arith.constant 0 : index
    %c0_47 = arith.constant 0 : index
    %39 = vector.load %arg1[%c6, %c0_46, %c0_47] : memref<9x4x8xf32, #tpu.memory_space<vmem>>, vector<1x4x8xf32>
    %40 = vector.shape_cast %39 : vector<1x4x8xf32> to vector<4x8xf32>
    %cst_48 = arith.constant dense<0.000000e+00> : vector<512x8xf32>
    %41 = tpu.matmul %38, %40, %cst_48 {dimension_numbers = #tpu.dot_dimension_numbers<[1], [0], [0], [1], [0, 0, 1, 1], [], []>} : vector<512x4xf32>, vector<4x8xf32>, vector<512x8xf32> -> vector<512x8xf32>
    %42 = arith.addf %36, %41 : vector<512x8xf32>
    %c0_49 = arith.constant 0 : index
    %c2_50 = arith.constant 2 : index
    %c1_51 = arith.constant 1 : index
    %c0_52 = arith.constant 0 : index
    %43 = vector.load %arg0[%c0_49, %c2_50, %c1_51, %c0_52] : memref<2x18x18x4xf32, #tpu.memory_space<vmem>>, vector<2x16x16x4xf32>
    %44 = vector.shape_cast %43 : vector<2x16x16x4xf32> to vector<512x4xf32>
    %c7 = arith.constant 7 : index
    %c0_53 = arith.constant 0 : index
    %c0_54 = arith.constant 0 : index
    %45 = vector.load %arg1[%c7, %c0_53, %c0_54] : memref<9x4x8xf32, #tpu.memory_space<vmem>>, vector<1x4x8xf32>
    %46 = vector.shape_cast %45 : vector<1x4x8xf32> to vector<4x8xf32>
    %cst_55 = arith.constant dense<0.000000e+00> : vector<512x8xf32>
    %47 = tpu.matmul %44, %46, %cst_55 {dimension_numbers = #tpu.dot_dimension_numbers<[1], [0], [0], [1], [0, 0, 1, 1], [], []>} : vector<512x4xf32>, vector<4x8xf32>, vector<512x8xf32> -> vector<512x8xf32>
    %48 = arith.addf %42, %47 : vector<512x8xf32>
    %c0_56 = arith.constant 0 : index
    %c2_57 = arith.constant 2 : index
    %c2_58 = arith.constant 2 : index
    %c0_59 = arith.constant 0 : index
    %49 = vector.load %arg0[%c0_56, %c2_57, %c2_58, %c0_59] : memref<2x18x18x4xf32, #tpu.memory_space<vmem>>, vector<2x16x16x4xf32>
    %50 = vector.shape_cast %49 : vector<2x16x16x4xf32> to vector<512x4xf32>
    %c8 = arith.constant 8 : index
    %c0_60 = arith.constant 0 : index
    %c0_61 = arith.constant 0 : index
    %51 = vector.load %arg1[%c8, %c0_60, %c0_61] : memref<9x4x8xf32, #tpu.memory_space<vmem>>, vector<1x4x8xf32>
    %52 = vector.shape_cast %51 : vector<1x4x8xf32> to vector<4x8xf32>
    %cst_62 = arith.constant dense<0.000000e+00> : vector<512x8xf32>
    %53 = tpu.matmul %50, %52, %cst_62 {dimension_numbers = #tpu.dot_dimension_numbers<[1], [0], [0], [1], [0, 0, 1, 1], [], []>} : vector<512x4xf32>, vector<4x8xf32>, vector<512x8xf32> -> vector<512x8xf32>
    %54 = arith.addf %48, %53 : vector<512x8xf32>
    %c0_63 = arith.constant 0 : index
    %c0_64 = arith.constant 0 : index
    %55 = vector.load %arg2[%c0_63, %c0_64] : memref<1x8xf32, #tpu.memory_space<vmem>>, vector<1x8xf32>
    %56 = vector.broadcast %55 : vector<1x8xf32> to vector<512x8xf32>
    %57 = arith.addf %54, %56 : vector<512x8xf32>
    %cst_65 = arith.constant 0.000000e+00 : f32
    %58 = vector.broadcast %cst_65 : f32 to vector<512x8xf32>
    %59 = arith.maximumf %57, %58 : vector<512x8xf32>
    %60 = vector.shape_cast %59 : vector<512x8xf32> to vector<2x16x16x8xf32>
    %c0_66 = arith.constant 0 : index
    %c0_67 = arith.constant 0 : index
    %c0_68 = arith.constant 0 : index
    %c0_69 = arith.constant 0 : index
    %61 = vector.load %arg3[%c0_66, %c0_67, %c0_68, %c0_69] : memref<2x16x16x8xf32, #tpu.memory_space<vmem>>, vector<2x16x16x8xf32>
    tpu.vector_store %arg3[%c0_66, %c0_67, %c0_68, %c0_69], %60 {strides = array<i32>} : memref<2x16x16x8xf32, #tpu.memory_space<vmem>>, vector<2x16x16x8xf32>,
    return
  }
}

module attributes {stable_mosaic.version = 11 : i64} {
  func.func @_conv3x3_s2_relu_gap_fc_kernel(%arg0: memref<4x2x9x9x8xf32, #tpu.memory_space<vmem>>, %arg1: memref<9x8x16xf32, #tpu.memory_space<vmem>>, %arg2: memref<1x16xf32, #tpu.memory_space<vmem>>, %arg3: memref<16x10xf32, #tpu.memory_space<vmem>>, %arg4: memref<1x10xf32, #tpu.memory_space<vmem>>, %arg5: memref<2x10xf32, #tpu.memory_space<vmem>>) attributes {dimension_semantics = [], scalar_prefetch = 0 : i64, scratch_operands = 0 : i64, tpu.core_type = #tpu.core_type<tc>} {
    %cst = arith.constant 0.000000e+00 : f32
    %0 = vector.broadcast %cst : f32 to vector<128x16xf32>
    %c0 = arith.constant 0 : index
    %c0_0 = arith.constant 0 : index
    %c0_1 = arith.constant 0 : index
    %c0_2 = arith.constant 0 : index
    %c0_3 = arith.constant 0 : index
    %1 = vector.load %arg0[%c0, %c0_0, %c0_1, %c0_2, %c0_3] : memref<4x2x9x9x8xf32, #tpu.memory_space<vmem>>, vector<1x2x8x8x8xf32>
    %2 = vector.shape_cast %1 : vector<1x2x8x8x8xf32> to vector<2x8x8x8xf32>
    %3 = vector.shape_cast %2 : vector<2x8x8x8xf32> to vector<128x8xf32>
    %c0_4 = arith.constant 0 : index
    %c0_5 = arith.constant 0 : index
    %c0_6 = arith.constant 0 : index
    %4 = vector.load %arg1[%c0_4, %c0_5, %c0_6] : memref<9x8x16xf32, #tpu.memory_space<vmem>>, vector<1x8x16xf32>
    %5 = vector.shape_cast %4 : vector<1x8x16xf32> to vector<8x16xf32>
    %cst_7 = arith.constant dense<0.000000e+00> : vector<128x16xf32>
    %6 = tpu.matmul %3, %5, %cst_7 {dimension_numbers = #tpu.dot_dimension_numbers<[1], [0], [0], [1], [0, 0, 1, 1], [], []>} : vector<128x8xf32>, vector<8x16xf32>, vector<128x16xf32> -> vector<128x16xf32>
    %7 = arith.addf %0, %6 : vector<128x16xf32>
    %c1 = arith.constant 1 : index
    %c0_8 = arith.constant 0 : index
    %c0_9 = arith.constant 0 : index
    %c0_10 = arith.constant 0 : index
    %c0_11 = arith.constant 0 : index
    %8 = vector.load %arg0[%c1, %c0_8, %c0_9, %c0_10, %c0_11] : memref<4x2x9x9x8xf32, #tpu.memory_space<vmem>>, vector<1x2x8x8x8xf32>
    %9 = vector.shape_cast %8 : vector<1x2x8x8x8xf32> to vector<2x8x8x8xf32>
    %10 = vector.shape_cast %9 : vector<2x8x8x8xf32> to vector<128x8xf32>
    %c1_12 = arith.constant 1 : index
    %c0_13 = arith.constant 0 : index
    %c0_14 = arith.constant 0 : index
    %11 = vector.load %arg1[%c1_12, %c0_13, %c0_14] : memref<9x8x16xf32, #tpu.memory_space<vmem>>, vector<1x8x16xf32>
    %12 = vector.shape_cast %11 : vector<1x8x16xf32> to vector<8x16xf32>
    %cst_15 = arith.constant dense<0.000000e+00> : vector<128x16xf32>
    %13 = tpu.matmul %10, %12, %cst_15 {dimension_numbers = #tpu.dot_dimension_numbers<[1], [0], [0], [1], [0, 0, 1, 1], [], []>} : vector<128x8xf32>, vector<8x16xf32>, vector<128x16xf32> -> vector<128x16xf32>
    %14 = arith.addf %7, %13 : vector<128x16xf32>
    %c0_16 = arith.constant 0 : index
    %c0_17 = arith.constant 0 : index
    %c0_18 = arith.constant 0 : index
    %c1_19 = arith.constant 1 : index
    %c0_20 = arith.constant 0 : index
    %15 = vector.load %arg0[%c0_16, %c0_17, %c0_18, %c1_19, %c0_20] : memref<4x2x9x9x8xf32, #tpu.memory_space<vmem>>, vector<1x2x8x8x8xf32>
    %16 = vector.shape_cast %15 : vector<1x2x8x8x8xf32> to vector<2x8x8x8xf32>
    %17 = vector.shape_cast %16 : vector<2x8x8x8xf32> to vector<128x8xf32>
    %c2 = arith.constant 2 : index
    %c0_21 = arith.constant 0 : index
    %c0_22 = arith.constant 0 : index
    %18 = vector.load %arg1[%c2, %c0_21, %c0_22] : memref<9x8x16xf32, #tpu.memory_space<vmem>>, vector<1x8x16xf32>
    %19 = vector.shape_cast %18 : vector<1x8x16xf32> to vector<8x16xf32>
    %cst_23 = arith.constant dense<0.000000e+00> : vector<128x16xf32>
    %20 = tpu.matmul %17, %19, %cst_23 {dimension_numbers = #tpu.dot_dimension_numbers<[1], [0], [0], [1], [0, 0, 1, 1], [], []>} : vector<128x8xf32>, vector<8x16xf32>, vector<128x16xf32> -> vector<128x16xf32>
    %21 = arith.addf %14, %20 : vector<128x16xf32>
    %c2_24 = arith.constant 2 : index
    %c0_25 = arith.constant 0 : index
    %c0_26 = arith.constant 0 : index
    %c0_27 = arith.constant 0 : index
    %c0_28 = arith.constant 0 : index
    %22 = vector.load %arg0[%c2_24, %c0_25, %c0_26, %c0_27, %c0_28] : memref<4x2x9x9x8xf32, #tpu.memory_space<vmem>>, vector<1x2x8x8x8xf32>
    %23 = vector.shape_cast %22 : vector<1x2x8x8x8xf32> to vector<2x8x8x8xf32>
    %24 = vector.shape_cast %23 : vector<2x8x8x8xf32> to vector<128x8xf32>
    %c3 = arith.constant 3 : index
    %c0_29 = arith.constant 0 : index
    %c0_30 = arith.constant 0 : index
    %25 = vector.load %arg1[%c3, %c0_29, %c0_30] : memref<9x8x16xf32, #tpu.memory_space<vmem>>, vector<1x8x16xf32>
    %26 = vector.shape_cast %25 : vector<1x8x16xf32> to vector<8x16xf32>
    %cst_31 = arith.constant dense<0.000000e+00> : vector<128x16xf32>
    %27 = tpu.matmul %24, %26, %cst_31 {dimension_numbers = #tpu.dot_dimension_numbers<[1], [0], [0], [1], [0, 0, 1, 1], [], []>} : vector<128x8xf32>, vector<8x16xf32>, vector<128x16xf32> -> vector<128x16xf32>
    %28 = arith.addf %21, %27 : vector<128x16xf32>
    %c3_32 = arith.constant 3 : index
    %c0_33 = arith.constant 0 : index
    %c0_34 = arith.constant 0 : index
    %c0_35 = arith.constant 0 : index
    %c0_36 = arith.constant 0 : index
    %29 = vector.load %arg0[%c3_32, %c0_33, %c0_34, %c0_35, %c0_36] : memref<4x2x9x9x8xf32, #tpu.memory_space<vmem>>, vector<1x2x8x8x8xf32>
    %30 = vector.shape_cast %29 : vector<1x2x8x8x8xf32> to vector<2x8x8x8xf32>
    %31 = vector.shape_cast %30 : vector<2x8x8x8xf32> to vector<128x8xf32>
    %c4 = arith.constant 4 : index
    %c0_37 = arith.constant 0 : index
    %c0_38 = arith.constant 0 : index
    %32 = vector.load %arg1[%c4, %c0_37, %c0_38] : memref<9x8x16xf32, #tpu.memory_space<vmem>>, vector<1x8x16xf32>
    %33 = vector.shape_cast %32 : vector<1x8x16xf32> to vector<8x16xf32>
    %cst_39 = arith.constant dense<0.000000e+00> : vector<128x16xf32>
    %34 = tpu.matmul %31, %33, %cst_39 {dimension_numbers = #tpu.dot_dimension_numbers<[1], [0], [0], [1], [0, 0, 1, 1], [], []>} : vector<128x8xf32>, vector<8x16xf32>, vector<128x16xf32> -> vector<128x16xf32>
    %35 = arith.addf %28, %34 : vector<128x16xf32>
    %c2_40 = arith.constant 2 : index
    %c0_41 = arith.constant 0 : index
    %c0_42 = arith.constant 0 : index
    %c1_43 = arith.constant 1 : index
    %c0_44 = arith.constant 0 : index
    %36 = vector.load %arg0[%c2_40, %c0_41, %c0_42, %c1_43, %c0_44] : memref<4x2x9x9x8xf32, #tpu.memory_space<vmem>>, vector<1x2x8x8x8xf32>
    %37 = vector.shape_cast %36 : vector<1x2x8x8x8xf32> to vector<2x8x8x8xf32>
    %38 = vector.shape_cast %37 : vector<2x8x8x8xf32> to vector<128x8xf32>
    %c5 = arith.constant 5 : index
    %c0_45 = arith.constant 0 : index
    %c0_46 = arith.constant 0 : index
    %39 = vector.load %arg1[%c5, %c0_45, %c0_46] : memref<9x8x16xf32, #tpu.memory_space<vmem>>, vector<1x8x16xf32>
    %40 = vector.shape_cast %39 : vector<1x8x16xf32> to vector<8x16xf32>
    %cst_47 = arith.constant dense<0.000000e+00> : vector<128x16xf32>
    %41 = tpu.matmul %38, %40, %cst_47 {dimension_numbers = #tpu.dot_dimension_numbers<[1], [0], [0], [1], [0, 0, 1, 1], [], []>} : vector<128x8xf32>, vector<8x16xf32>, vector<128x16xf32> -> vector<128x16xf32>
    %42 = arith.addf %35, %41 : vector<128x16xf32>
    %c0_48 = arith.constant 0 : index
    %c0_49 = arith.constant 0 : index
    %c1_50 = arith.constant 1 : index
    %c0_51 = arith.constant 0 : index
    %c0_52 = arith.constant 0 : index
    %43 = vector.load %arg0[%c0_48, %c0_49, %c1_50, %c0_51, %c0_52] : memref<4x2x9x9x8xf32, #tpu.memory_space<vmem>>, vector<1x2x8x8x8xf32>
    %44 = vector.shape_cast %43 : vector<1x2x8x8x8xf32> to vector<2x8x8x8xf32>
    %45 = vector.shape_cast %44 : vector<2x8x8x8xf32> to vector<128x8xf32>
    %c6 = arith.constant 6 : index
    %c0_53 = arith.constant 0 : index
    %c0_54 = arith.constant 0 : index
    %46 = vector.load %arg1[%c6, %c0_53, %c0_54] : memref<9x8x16xf32, #tpu.memory_space<vmem>>, vector<1x8x16xf32>
    %47 = vector.shape_cast %46 : vector<1x8x16xf32> to vector<8x16xf32>
    %cst_55 = arith.constant dense<0.000000e+00> : vector<128x16xf32>
    %48 = tpu.matmul %45, %47, %cst_55 {dimension_numbers = #tpu.dot_dimension_numbers<[1], [0], [0], [1], [0, 0, 1, 1], [], []>} : vector<128x8xf32>, vector<8x16xf32>, vector<128x16xf32> -> vector<128x16xf32>
    %49 = arith.addf %42, %48 : vector<128x16xf32>
    %c1_56 = arith.constant 1 : index
    %c0_57 = arith.constant 0 : index
    %c1_58 = arith.constant 1 : index
    %c0_59 = arith.constant 0 : index
    %c0_60 = arith.constant 0 : index
    %50 = vector.load %arg0[%c1_56, %c0_57, %c1_58, %c0_59, %c0_60] : memref<4x2x9x9x8xf32, #tpu.memory_space<vmem>>, vector<1x2x8x8x8xf32>
    %51 = vector.shape_cast %50 : vector<1x2x8x8x8xf32> to vector<2x8x8x8xf32>
    %52 = vector.shape_cast %51 : vector<2x8x8x8xf32> to vector<128x8xf32>
    %c7 = arith.constant 7 : index
    %c0_61 = arith.constant 0 : index
    %c0_62 = arith.constant 0 : index
    %53 = vector.load %arg1[%c7, %c0_61, %c0_62] : memref<9x8x16xf32, #tpu.memory_space<vmem>>, vector<1x8x16xf32>
    %54 = vector.shape_cast %53 : vector<1x8x16xf32> to vector<8x16xf32>
    %cst_63 = arith.constant dense<0.000000e+00> : vector<128x16xf32>
    %55 = tpu.matmul %52, %54, %cst_63 {dimension_numbers = #tpu.dot_dimension_numbers<[1], [0], [0], [1], [0, 0, 1, 1], [], []>} : vector<128x8xf32>, vector<8x16xf32>, vector<128x16xf32> -> vector<128x16xf32>
    %56 = arith.addf %49, %55 : vector<128x16xf32>
    %c0_64 = arith.constant 0 : index
    %c0_65 = arith.constant 0 : index
    %c1_66 = arith.constant 1 : index
    %c1_67 = arith.constant 1 : index
    %c0_68 = arith.constant 0 : index
    %57 = vector.load %arg0[%c0_64, %c0_65, %c1_66, %c1_67, %c0_68] : memref<4x2x9x9x8xf32, #tpu.memory_space<vmem>>, vector<1x2x8x8x8xf32>
    %58 = vector.shape_cast %57 : vector<1x2x8x8x8xf32> to vector<2x8x8x8xf32>
    %59 = vector.shape_cast %58 : vector<2x8x8x8xf32> to vector<128x8xf32>
    %c8 = arith.constant 8 : index
    %c0_69 = arith.constant 0 : index
    %c0_70 = arith.constant 0 : index
    %60 = vector.load %arg1[%c8, %c0_69, %c0_70] : memref<9x8x16xf32, #tpu.memory_space<vmem>>, vector<1x8x16xf32>
    %61 = vector.shape_cast %60 : vector<1x8x16xf32> to vector<8x16xf32>
    %cst_71 = arith.constant dense<0.000000e+00> : vector<128x16xf32>
    %62 = tpu.matmul %59, %61, %cst_71 {dimension_numbers = #tpu.dot_dimension_numbers<[1], [0], [0], [1], [0, 0, 1, 1], [], []>} : vector<128x8xf32>, vector<8x16xf32>, vector<128x16xf32> -> vector<128x16xf32>
    %63 = arith.addf %56, %62 : vector<128x16xf32>
    %c0_72 = arith.constant 0 : index
    %c0_73 = arith.constant 0 : index
    %64 = vector.load %arg2[%c0_72, %c0_73] : memref<1x16xf32, #tpu.memory_space<vmem>>, vector<1x16xf32>
    %65 = vector.broadcast %64 : vector<1x16xf32> to vector<128x16xf32>
    %66 = arith.addf %63, %65 : vector<128x16xf32>
    %cst_74 = arith.constant 0.000000e+00 : f32
    %67 = vector.broadcast %cst_74 : f32 to vector<128x16xf32>
    %68 = arith.maximumf %66, %67 : vector<128x16xf32>
    %69 = vector.shape_cast %68 : vector<128x16xf32> to vector<2x64x16xf32>
    %cst_75 = arith.constant dense<0.000000e+00> : vector<2x16xf32>
    %70 = vector.multi_reduction <add>, %69, %cst_75 [1] : vector<2x64x16xf32> to vector<2x16xf32>
    %cst_76 = arith.constant 6.400000e+01 : f32
    %71 = vector.broadcast %cst_76 : f32 to vector<2x16xf32>
    %72 = arith.divf %70, %71 : vector<2x16xf32>
    %c0_77 = arith.constant 0 : index
    %c0_78 = arith.constant 0 : index
    %73 = vector.load %arg3[%c0_77, %c0_78] : memref<16x10xf32, #tpu.memory_space<vmem>>, vector<16x10xf32>
    %cst_79 = arith.constant dense<0.000000e+00> : vector<2x10xf32>
    %74 = tpu.matmul %72, %73, %cst_79 {dimension_numbers = #tpu.dot_dimension_numbers<[1], [0], [0], [1], [0, 0, 1, 1], [], []>} : vector<2x16xf32>, vector<16x10xf32>, vector<2x10xf32> -> vector<2x10xf32>
    %c0_80 = arith.constant 0 : index
    %c0_81 = arith.constant 0 : index
    %75 = vector.load %arg4[%c0_80, %c0_81] : memref<1x10xf32, #tpu.memory_space<vmem>>, vector<1x10xf32>
    %76 = vector.broadcast %75 : vector<1x10xf32> to vector<2x10xf32>
    %77 = arith.addf %74, %76 : vector<2x10xf32>
    %c0_82 = arith.constant 0 : index
    %c0_83 = arith.constant 0 : index
    %78 = vector.load %arg5[%c0_82, %c0_83] : memref<2x10xf32, #tpu.memory_space<vmem>>, vector<2x10xf32>
    tpu.vector_store %arg5[%c0_82, %c0_83], %77 {strides = array<i32>} : memref<2x10xf32, #tpu.memory_space<vmem>>, vector<2x10xf32>,
    return
  }
}

</mosaic_0001>

<llo_original>
// kernel: classifier_feature_forward.3
$region0: #{classifier_feature_forward.3}
  #allocation0 [shape = 'u32[]', space=smem, size = 0x4, offset = 0x4, fixed_abs, tag = 'smem constant byte address 0x4 - core index']
  #allocation1 [shape = 'u32[144,128]{1,0:T(1,128)}', space=vmem, size = 0x12000, scoped, tag = 'internal scratch']
  %s0 = inlined_call_operand.vmem [shape: f32[4,2,9,9,8], index: 0, kind: input, shape index: {}]
  %s1 = inlined_call_operand.vmem [shape: f32[9,8,16], index: 1, kind: input, shape index: {}]
  %s2 = inlined_call_operand.vmem [shape: f32[1,16], index: 2, kind: input, shape index: {}]
  %s3 = inlined_call_operand.vmem [shape: f32[16,10], index: 3, kind: input, shape index: {}]
  %s4 = inlined_call_operand.vmem [shape: f32[1,10], index: 4, kind: input, shape index: {}]
  %s5 = inlined_call_operand.hbm [shape: f32[2,10], index: 5, kind: output, shape index: {}]
  %s6 = sld [smem:[#allocation0]]
  $region30: #{classifier_feature_forward.3} parent=0
    _
  %s8 = ssub.s32 1, %s6
  %s9 = scalar_select 0, %s8, %s6
  $region1: #{classifier_feature_forward.3} parent=0
    #allocation2 [shape = 'u8[1024]{0}', space=vmem, size = 0x400, scoped, tag = 'output window, operand 0, single buffered']
    #allocation3 [shape = 's32[1]{0}', space=sflag, size = 0x4, scoped, tag = 'scoped memory for classifier_feature_forward.3']
    %10 = vsyncpa [#allocation3], 0
    // Predicated region
    $region2: #{classifier_feature_forward.3} parent=1 // pred_check
      _
    $region3: #{classifier_feature_forward.3} parent=1 // pred_check_branch
      %12 = sbr.rel (0) target = $region5
    $region4: #{classifier_feature_forward.3} parent=1 // pred_region
      _
    $region5: #{classifier_feature_forward.3} parent=1 // pred_fallthru
      _
    // Predicated region
    $region6: #{classifier_feature_forward.3} parent=1 // pred_check
      _
    $region7: #{classifier_feature_forward.3} parent=1 // pred_check_branch
      %14 = sbr.rel (0) target = $region9
    $region8: #{classifier_feature_forward.3} parent=1 // pred_region
      _
    $region9: #{classifier_feature_forward.3} parent=1 // pred_fallthru
      _
    // Predicated region
    $region10: #{classifier_feature_forward.3} parent=1 // pred_check
      _
    $region11: #{classifier_feature_forward.3} parent=1 // pred_check_branch
      %16 = sbr.rel (0) target = $region13
    $region12: #{classifier_feature_forward.3} parent=1 // pred_region
      _
    $region13: #{classifier_feature_forward.3} parent=1 // pred_fallthru
      _
    // Predicated region
    $region14: #{classifier_feature_forward.3} parent=1 // pred_check
      _
    $region15: #{classifier_feature_forward.3} parent=1 // pred_check_branch
      %18 = sbr.rel (0) target = $region17
    $region16: #{classifier_feature_forward.3} parent=1 // pred_region
      _
    $region17: #{classifier_feature_forward.3} parent=1 // pred_fallthru
      _
    // Predicated region
    $region18: #{classifier_feature_forward.3} parent=1 // pred_check
      _
    $region19: #{classifier_feature_forward.3} parent=1 // pred_check_branch
      %20 = sbr.rel (0) target = $region21
    $region20: #{classifier_feature_forward.3} parent=1 // pred_region
      _
    $region21: #{classifier_feature_forward.3} parent=1 // pred_fallthru
      _
    %v21 = vld [vmem:[%s0] sm:$0xff]
    %v22 = vld [vmem:[%s0 + $0x10] sm:$0xff]
    %v23 = vld [vmem:[%s0 + $0x20] sm:$0xff]
    %v24 = vld [vmem:[%s0 + $0x30] sm:$0xff]
    %v25 = vld [vmem:[%s0 + $0x40] sm:$0xff]
    %v26 = vld [vmem:[%s0 + $0x50] sm:$0xff]
    %v27 = vld [vmem:[%s0 + $0x60] sm:$0xff]
    %v28 = vld [vmem:[%s0 + $0x70] sm:$0xff]
    %v29 = vld [vmem:[%s0 + $0x90] sm:$0xff]
    %v30 = vld [vmem:[%s0 + $0xa0] sm:$0xff]
    %v31 = vld [vmem:[%s0 + $0xb0] sm:$0xff]
    %v32 = vld [vmem:[%s0 + $0xc0] sm:$0xff]
    %v33 = vld [vmem:[%s0 + $0xd0] sm:$0xff]
    %v34 = vld [vmem:[%s0 + $0xe0] sm:$0xff]
    %v35 = vld [vmem:[%s0 + $0xf0] sm:$0xff]
    %v36 = vld [vmem:[%s0 + $0x100] sm:$0xff]
    %v37 = vld [vmem:[%s1] sm:$0xff]
    %s38 = scalar_lea.vmem %s0, 288
    %v39 = vld [vmem:[%s38] sm:$0xff]
    %v40 = vld [vmem:[%s38 + $0x10] sm:$0xff]
    %v41 = vld [vmem:[%s38 + $0x20] sm:$0xff]
    %v42 = vld [vmem:[%s38 + $0x30] sm:$0xff]
    %v43 = vld [vmem:[%s38 + $0x40] sm:$0xff]
    %v44 = vld [vmem:[%s38 + $0x50] sm:$0xff]
    %v45 = vld [vmem:[%s38 + $0x60] sm:$0xff]
    %v46 = vld [vmem:[%s38 + $0x70] sm:$0xff]
    %v47 = vld [vmem:[%s38 + $0x90] sm:$0xff]
    %v48 = vld [vmem:[%s38 + $0xa0] sm:$0xff]
    %v49 = vld [vmem:[%s38 + $0xb0] sm:$0xff]
    %v50 = vld [vmem:[%s38 + $0xc0] sm:$0xff]
    %v51 = vld [vmem:[%s38 + $0xd0] sm:$0xff]
    %v52 = vld [vmem:[%s38 + $0xe0] sm:$0xff]
    %v53 = vld [vmem:[%s38 + $0xf0] sm:$0xff]
    %v54 = vld [vmem:[%s38 + $0x100] sm:$0xff]
    %s55 = scalar_lea.vmem %s1, 8
    %v56 = vld [vmem:[%s55] sm:$0xff]
    %vm57 = vcmask 64512
    %v59 = vsel %vm57, %v39, 0
    %v62 = vsel %vm57, %v40, 0
    %v65 = vsel %vm57, %v41, 0
    %v68 = vsel %vm57, %v42, 0
    %v71 = vsel %vm57, %v43, 0
    %v74 = vsel %vm57, %v44, 0
    %v77 = vsel %vm57, %v45, 0
    %v80 = vsel %vm57, %v46, 0
    %v83 = vsel %vm57, %v47, 0
    %v86 = vsel %vm57, %v48, 0
    %v89 = vsel %vm57, %v49, 0
    %v92 = vsel %vm57, %v50, 0
    %v95 = vsel %vm57, %v51, 0
    %v98 = vsel %vm57, %v52, 0
    %v101 = vsel %vm57, %v53, 0
    %v104 = vsel %vm57, %v54, 0
    %106 = vmatprep.subr.mxu0 0.0
    %107 = vmatpush1.msra.mxu0 0.0
    %108 = vmatprep.subr.mxu0 0.0
    %109 = vmatpush1.msra.mxu0 0.0
    %110 = vmatprep.subr.mxu0 0.0
    %111 = vmatpush1.msra.mxu0 0.0
    %112 = vmatprep.subr.mxu0 0.0
    %113 = vmatpush1.msra.mxu0 0.0
    %114 = vmatprep.subr.mxu0 0.0
    %115 = vmatpush1.msra.mxu0 0.0
    %116 = vmatprep.subr.mxu0 0.0
    %117 = vmatpush1.msra.mxu0 0.0
    %118 = vmatprep.subr.mxu0 0.0
    %119 = vmatpush1.msra.mxu0 0.0
    %120 = vmatprep.subr.mxu0 0.0
    %121 = vmatpush1.msra.mxu0 0.0
    %122 = vmatprep.subr.mxu0 0.0
    %123 = vmatpush1.msra.mxu0 0.0
    %124 = vmatprep.subr.mxu0 0.0
    %125 = vmatpush1.msra.mxu0 0.0
    %126 = vmatprep.subr.mxu0 0.0
    %127 = vmatpush1.msra.mxu0 0.0
    %128 = vmatprep.subr.mxu0 0.0
    %129 = vmatpush1.msra.mxu0 0.0
    %130 = vmatprep.subr.mxu0 0.0
    %131 = vmatpush1.msra.mxu0 0.0
    %132 = vmatprep.subr.mxu0 0.0
    %133 = vmatpush1.msra.mxu0 0.0
    %134 = vmatprep.subr.mxu0 0.0
    %135 = vmatpush1.msra.mxu0 0.0
    %136 = vmatprep.subr.mxu0 0.0
    %137 = vmatpush1.msra.mxu0 %v56
    %138 = vmatprep.subr.mxu0 0.0
    %139 = vmatpush2.msra.mxu0 0.0
    %140 = vmatprep.subr.mxu0 0.0
    %141 = vmatpush2.msra.mxu0 0.0
    %142 = vmatprep.subr.mxu0 0.0
    %143 = vmatpush2.msra.mxu0 0.0
    %144 = vmatprep.subr.mxu0 0.0
    %145 = vmatpush2.msra.mxu0 0.0
    %146 = vmatprep.subr.mxu0 0.0
    %147 = vmatpush2.msra.mxu0 0.0
    %148 = vmatprep.subr.mxu0 0.0
    %149 = vmatpush2.msra.mxu0 0.0
    %150 = vmatprep.subr.mxu0 0.0
    %151 = vmatpush2.msra.mxu0 0.0
    %152 = vmatprep.subr.mxu0 0.0
    %153 = vmatpush2.msra.mxu0 0.0
    %154 = vmatprep.subr.mxu0 0.0
    %155 = vmatpush2.msra.mxu0 0.0
    %156 = vmatprep.subr.mxu0 0.0
    %157 = vmatpush2.msra.mxu0 0.0
    %158 = vmatprep.subr.mxu0 0.0
    %159 = vmatpush2.msra.mxu0 0.0
    %160 = vmatprep.subr.mxu0 0.0
    %161 = vmatpush2.msra.mxu0 0.0
    %162 = vmatprep.subr.mxu0 0.0
    %163 = vmatpush2.msra.mxu0 0.0
    %164 = vmatprep.subr.mxu0 0.0
    %165 = vmatpush2.msra.mxu0 0.0
    %166 = vmatprep.subr.mxu0 0.0
    %167 = vmatpush2.msra.mxu0 0.0
    %168 = vmatprep.subr.mxu0 0.0
    %169 = vmatpush2.msra.mxu0 0.0
    %170 = vmatprep.mubr.f32.mxu0 0.0
    %171 = vmatmul.mubr.f32.gmra.mxu0 %v59
    %v172 = vpop.f32.mrf.mxu0
    %v173 = vadd.f32 0.0, %v172
    %v174 = vpop.f32.mrf.mxu0
    %175 = vmatprep.mubr.f32.mxu0 0.0
    %176 = vmatmul.mubr.f32.gmra.mxu0 %v62
    %v177 = vpop.f32.mrf.mxu0
    %v178 = vadd.f32 0.0, %v177
    %v179 = vpop.f32.mrf.mxu0
    %180 = vmatprep.mubr.f32.mxu0 0.0
    %181 = vmatmul.mubr.f32.gmra.mxu0 %v65
    %v182 = vpop.f32.mrf.mxu0
    %v183 = vadd.f32 0.0, %v182
    %v184 = vpop.f32.mrf.mxu0
    %185 = vmatprep.mubr.f32.mxu0 0.0
    %186 = vmatmul.mubr.f32.gmra.mxu0 %v68
    %v187 = vpop.f32.mrf.mxu0
    %v188 = vadd.f32 0.0, %v187
    %v189 = vpop.f32.mrf.mxu0
    %190 = vmatprep.mubr.f32.mxu0 0.0
    %191 = vmatmul.mubr.f32.gmra.mxu0 %v71
    %v192 = vpop.f32.mrf.mxu0
    %v193 = vadd.f32 0.0, %v192
    %v194 = vpop.f32.mrf.mxu0
    %195 = vmatprep.mubr.f32.mxu0 0.0
    %196 = vmatmul.mubr.f32.gmra.mxu0 %v74
    %v197 = vpop.f32.mrf.mxu0
    %v198 = vadd.f32 0.0, %v197
    %v199 = vpop.f32.mrf.mxu0
    %200 = vmatprep.mubr.f32.mxu0 0.0
    %201 = vmatmul.mubr.f32.gmra.mxu0 %v77
    %v202 = vpop.f32.mrf.mxu0
    %v203 = vadd.f32 0.0, %v202
    %v204 = vpop.f32.mrf.mxu0
    %205 = vmatprep.mubr.f32.mxu0 0.0
    %206 = vmatmul.mubr.f32.gmra.mxu0 %v80
    %v207 = vpop.f32.mrf.mxu0
    %v208 = vadd.f32 0.0, %v207
    %v209 = vpop.f32.mrf.mxu0
    %210 = vmatprep.mubr.f32.mxu0 0.0
    %211 = vmatmul.mubr.f32.gmra.mxu0 %v83
    %v212 = vpop.f32.mrf.mxu0
    %v213 = vadd.f32 0.0, %v212
    %v214 = vpop.f32.mrf.mxu0
    %215 = vmatprep.mubr.f32.mxu0 0.0
    %216 = vmatmul.mubr.f32.gmra.mxu0 %v86
    %v217 = vpop.f32.mrf.mxu0
    %v218 = vadd.f32 0.0, %v217
    %v219 = vpop.f32.mrf.mxu0
    %220 = vmatprep.mubr.f32.mxu0 0.0
    %221 = vmatmul.mubr.f32.gmra.mxu0 %v89
    %v222 = vpop.f32.mrf.mxu0
    %v223 = vadd.f32 0.0, %v222
    %v224 = vpop.f32.mrf.mxu0
    %225 = vmatprep.mubr.f32.mxu0 0.0
    %226 = vmatmul.mubr.f32.gmra.mxu0 %v92
    %v227 = vpop.f32.mrf.mxu0
    %v228 = vadd.f32 0.0, %v227
    %v229 = vpop.f32.mrf.mxu0
    %230 = vmatprep.mubr.f32.mxu0 0.0
    %231 = vmatmul.mubr.f32.gmra.mxu0 %v95
    %v232 = vpop.f32.mrf.mxu0
    %v233 = vadd.f32 0.0, %v232
    %v234 = vpop.f32.mrf.mxu0
    %235 = vmatprep.mubr.f32.mxu0 0.0
    %236 = vmatmul.mubr.f32.gmra.mxu0 %v98
    %v237 = vpop.f32.mrf.mxu0
    %v238 = vadd.f32 0.0, %v237
    %v239 = vpop.f32.mrf.mxu0
    %240 = vmatprep.mubr.f32.mxu0 0.0
    %241 = vmatmul.mubr.f32.gmra.mxu0 %v101
    %v242 = vpop.f32.mrf.mxu0
    %v243 = vadd.f32 0.0, %v242
    %v244 = vpop.f32.mrf.mxu0
    %245 = vmatprep.mubr.f32.mxu0 0.0
    %246 = vmatmul.mubr.f32.gmra.mxu0 %v104
    %v247 = vpop.f32.mrf.mxu0
    %v248 = vadd.f32 0.0, %v247
    %v249 = vpop.f32.mrf.mxu0
    %250 = vdwg.mxu0
    %v252 = vsel %vm57, %v21, 0
    %v255 = vsel %vm57, %v22, 0
    %v258 = vsel %vm57, %v23, 0
    %v261 = vsel %vm57, %v24, 0
    %v264 = vsel %vm57, %v25, 0
    %v267 = vsel %vm57, %v26, 0
    %v270 = vsel %vm57, %v27, 0
    %v273 = vsel %vm57, %v28, 0
    %v276 = vsel %vm57, %v29, 0
    %v279 = vsel %vm57, %v30, 0
    %v282 = vsel %vm57, %v31, 0
    %v285 = vsel %vm57, %v32, 0
    %v288 = vsel %vm57, %v33, 0
    %v291 = vsel %vm57, %v34, 0
    %v294 = vsel %vm57, %v35, 0
    %v297 = vsel %vm57, %v36, 0
    %299 = vmatprep.subr.mxu0 0.0
    %300 = vmatpush1.msra.mxu0 0.0
    %301 = vmatprep.subr.mxu0 0.0
    %302 = vmatpush1.msra.mxu0 0.0
    %303 = vmatprep.subr.mxu0 0.0
    %304 = vmatpush1.msra.mxu0 0.0
    %305 = vmatprep.subr.mxu0 0.0
    %306 = vmatpush1.msra.mxu0 0.0
    %307 = vmatprep.subr.mxu0 0.0
    %308 = vmatpush1.msra.mxu0 0.0
    %309 = vmatprep.subr.mxu0 0.0
    %310 = vmatpush1.msra.mxu0 0.0
    %311 = vmatprep.subr.mxu0 0.0
    %312 = vmatpush1.msra.mxu0 0.0
    %313 = vmatprep.subr.mxu0 0.0
    %314 = vmatpush1.msra.mxu0 0.0
    %315 = vmatprep.subr.mxu0 0.0
    %316 = vmatpush1.msra.mxu0 0.0
    %317 = vmatprep.subr.mxu0 0.0
    %318 = vmatpush1.msra.mxu0 0.0
    %319 = vmatprep.subr.mxu0 0.0
    %320 = vmatpush1.msra.mxu0 0.0
    %321 = vmatprep.subr.mxu0 0.0
    %322 = vmatpush1.msra.mxu0 0.0
    %323 = vmatprep.subr.mxu0 0.0
    %324 = vmatpush1.msra.mxu0 0.0
    %325 = vmatprep.subr.mxu0 0.0
    %326 = vmatpush1.msra.mxu0 0.0
    %327 = vmatprep.subr.mxu0 0.0
    %328 = vmatpush1.msra.mxu0 0.0
    %329 = vmatprep.subr.mxu0 0.0
    %330 = vmatpush1.msra.mxu0 %v37
    %331 = vmatprep.subr.mxu0 0.0
    %332 = vmatpush2.msra.mxu0 0.0
    %333 = vmatprep.subr.mxu0 0.0
    %334 = vmatpush2.msra.mxu0 0.0
    %335 = vmatprep.subr.mxu0 0.0
    %336 = vmatpush2.msra.mxu0 0.0
    %337 = vmatprep.subr.mxu0 0.0
    %338 = vmatpush2.msra.mxu0 0.0
    %339 = vmatprep.subr.mxu0 0.0
    %340 = vmatpush2.msra.mxu0 0.0
    %341 = vmatprep.subr.mxu0 0.0
    %342 = vmatpush2.msra.mxu0 0.0
    %343 = vmatprep.subr.mxu0 0.0
    %344 = vmatpush2.msra.mxu0 0.0
    %345 = vmatprep.subr.mxu0 0.0
    %346 = vmatpush2.msra.mxu0 0.0
    %347 = vmatprep.subr.mxu0 0.0
    %348 = vmatpush2.msra.mxu0 0.0
    %349 = vmatprep.subr.mxu0 0.0
    %350 = vmatpush2.msra.mxu0 0.0
    %351 = vmatprep.subr.mxu0 0.0
    %352 = vmatpush2.msra.mxu0 0.0
    %353 = vmatprep.subr.mxu0 0.0
    %354 = vmatpush2.msra.mxu0 0.0
    %355 = vmatprep.subr.mxu0 0.0
    %356 = vmatpush2.msra.mxu0 0.0
    %357 = vmatprep.subr.mxu0 0.0
    %358 = vmatpush2.msra.mxu0 0.0
    %359 = vmatprep.subr.mxu0 0.0
    %360 = vmatpush2.msra.mxu0 0.0
    %361 = vmatprep.subr.mxu0 0.0
    %362 = vmatpush2.msra.mxu0 0.0
    %363 = vmatprep.mubr.f32.mxu0 0.0
    %364 = vmatmul.mubr.f32.gmra.mxu0 %v252
    %v365 = vpop.f32.mrf.mxu0
    %v366 = vadd.f32 %v173, %v365
    %v367 = vpop.f32.mrf.mxu0
    %368 = vmatprep.mubr.f32.mxu0 0.0
    %369 = vmatmul.mubr.f32.gmra.mxu0 %v255
    %v370 = vpop.f32.mrf.mxu0
    %v371 = vadd.f32 %v178, %v370
    %v372 = vpop.f32.mrf.mxu0
    %373 = vmatprep.mubr.f32.mxu0 0.0
    %374 = vmatmul.mubr.f32.gmra.mxu0 %v258
    %v375 = vpop.f32.mrf.mxu0
    %v376 = vadd.f32 %v183, %v375
    %v377 = vpop.f32.mrf.mxu0
    %378 = vmatprep.mubr.f32.mxu0 0.0
    %379 = vmatmul.mubr.f32.gmra.mxu0 %v261
    %v380 = vpop.f32.mrf.mxu0
    %v381 = vadd.f32 %v188, %v380
    %v382 = vpop.f32.mrf.mxu0
    %383 = vmatprep.mubr.f32.mxu0 0.0
    %384 = vmatmul.mubr.f32.gmra.mxu0 %v264
    %v385 = vpop.f32.mrf.mxu0
    %v386 = vadd.f32 %v193, %v385
    %v387 = vpop.f32.mrf.mxu0
    %388 = vmatprep.mubr.f32.mxu0 0.0
    %389 = vmatmul.mubr.f32.gmra.mxu0 %v267
    %v390 = vpop.f32.mrf.mxu0
    %v391 = vadd.f32 %v198, %v390
    %v392 = vpop.f32.mrf.mxu0
    %393 = vmatprep.mubr.f32.mxu0 0.0
    %394 = vmatmul.mubr.f32.gmra.mxu0 %v270
    %v395 = vpop.f32.mrf.mxu0
    %v396 = vadd.f32 %v203, %v395
    %v397 = vpop.f32.mrf.mxu0
    %398 = vmatprep.mubr.f32.mxu0 0.0
    %399 = vmatmul.mubr.f32.gmra.mxu0 %v273
    %v400 = vpop.f32.mrf.mxu0
    %v401 = vadd.f32 %v208, %v400
    %v402 = vpop.f32.mrf.mxu0
    %403 = vmatprep.mubr.f32.mxu0 0.0
    %404 = vmatmul.mubr.f32.gmra.mxu0 %v276
    %v405 = vpop.f32.mrf.mxu0
    %v406 = vadd.f32 %v213, %v405
    %v407 = vpop.f32.mrf.mxu0
    %408 = vmatprep.mubr.f32.mxu0 0.0
    %409 = vmatmul.mubr.f32.gmra.mxu0 %v279
    %v410 = vpop.f32.mrf.mxu0
    %v411 = vadd.f32 %v218, %v410
    %v412 = vpop.f32.mrf.mxu0
    %413 = vmatprep.mubr.f32.mxu0 0.0
    %414 = vmatmul.mubr.f32.gmra.mxu0 %v282
    %v415 = vpop.f32.mrf.mxu0
    %v416 = vadd.f32 %v223, %v415
    %v417 = vpop.f32.mrf.mxu0
    %418 = vmatprep.mubr.f32.mxu0 0.0
    %419 = vmatmul.mubr.f32.gmra.mxu0 %v285
    %v420 = vpop.f32.mrf.mxu0
    %v421 = vadd.f32 %v228, %v420
    %v422 = vpop.f32.mrf.mxu0
    %423 = vmatprep.mubr.f32.mxu0 0.0
    %424 = vmatmul.mubr.f32.gmra.mxu0 %v288
    %v425 = vpop.f32.mrf.mxu0
    %v426 = vadd.f32 %v233, %v425
    %v427 = vpop.f32.mrf.mxu0
    %428 = vmatprep.mubr.f32.mxu0 0.0
    %429 = vmatmul.mubr.f32.gmra.mxu0 %v291
    %v430 = vpop.f32.mrf.mxu0
    %v431 = vadd.f32 %v238, %v430
    %v432 = vpop.f32.mrf.mxu0
    %433 = vmatprep.mubr.f32.mxu0 0.0
    %434 = vmatmul.mubr.f32.gmra.mxu0 %v294
    %v435 = vpop.f32.mrf.mxu0
    %v436 = vadd.f32 %v243, %v435
    %v437 = vpop.f32.mrf.mxu0
    %438 = vmatprep.mubr.f32.mxu0 0.0
    %439 = vmatmul.mubr.f32.gmra.mxu0 %v297
    %v440 = vpop.f32.mrf.mxu0
    %v441 = vadd.f32 %v248, %v440
    %v442 = vpop.f32.mrf.mxu0
    %443 = vdwg.mxu0
    %v444 = vld [vmem:[%s0 + $0x1] sm:$0xff]
    %v445 = vld [vmem:[%s0 + $0x11] sm:$0xff]
    %v446 = vld [vmem:[%s0 + $0x21] sm:$0xff]
    %v447 = vld [vmem:[%s0 + $0x31] sm:$0xff]
    %v448 = vld [vmem:[%s0 + $0x41] sm:$0xff]
    %v449 = vld [vmem:[%s0 + $0x51] sm:$0xff]
    %v450 = vld [vmem:[%s0 + $0x61] sm:$0xff]
    %v451 = vld [vmem:[%s0 + $0x71] sm:$0xff]
    %v452 = vld [vmem:[%s0 + $0x91] sm:$0xff]
    %v453 = vld [vmem:[%s0 + $0xa1] sm:$0xff]
    %v454 = vld [vmem:[%s0 + $0xb1] sm:$0xff]
    %v455 = vld [vmem:[%s0 + $0xc1] sm:$0xff]
    %v456 = vld [vmem:[%s0 + $0xd1] sm:$0xff]
    %v457 = vld [vmem:[%s0 + $0xe1] sm:$0xff]
    %v458 = vld [vmem:[%s0 + $0xf1] sm:$0xff]
    %v459 = vld [vmem:[%s0 + $0x101] sm:$0xff]
    %s460 = scalar_lea.vmem %s1, 16
    %v461 = vld [vmem:[%s460] sm:$0xff]
    %v463 = vsel %vm57, %v444, 0
    %v466 = vsel %vm57, %v445, 0
    %v469 = vsel %vm57, %v446, 0
    %v472 = vsel %vm57, %v447, 0
    %v475 = vsel %vm57, %v448, 0
    %v478 = vsel %vm57, %v449, 0
    %v481 = vsel %vm57, %v450, 0
    %v484 = vsel %vm57, %v451, 0
    %v487 = vsel %vm57, %v452, 0
    %v490 = vsel %vm57, %v453, 0
    %v493 = vsel %vm57, %v454, 0
    %v496 = vsel %vm57, %v455, 0
    %v499 = vsel %vm57, %v456, 0
    %v502 = vsel %vm57, %v457, 0
    %v505 = vsel %vm57, %v458, 0
    %v508 = vsel %vm57, %v459, 0
    %510 = vmatprep.subr.mxu0 0.0
    %511 = vmatpush1.msra.mxu0 0.0
    %512 = vmatprep.subr.mxu0 0.0
    %513 = vmatpush1.msra.mxu0 0.0
    %514 = vmatprep.subr.mxu0 0.0
    %515 = vmatpush1.msra.mxu0 0.0
    %516 = vmatprep.subr.mxu0 0.0
    %517 = vmatpush1.msra.mxu0 0.0
    %518 = vmatprep.subr.mxu0 0.0
    %519 = vmatpush1.msra.mxu0 0.0
    %520 = vmatprep.subr.mxu0 0.0
    %521 = vmatpush1.msra.mxu0 0.0
    %522 = vmatprep.subr.mxu0 0.0
    %523 = vmatpush1.msra.mxu0 0.0
    %524 = vmatprep.subr.mxu0 0.0
    %525 = vmatpush1.msra.mxu0 0.0
    %526 = vmatprep.subr.mxu0 0.0
    %527 = vmatpush1.msra.mxu0 0.0
    %528 = vmatprep.subr.mxu0 0.0
    %529 = vmatpush1.msra.mxu0 0.0
    %530 = vmatprep.subr.mxu0 0.0
    %531 = vmatpush1.msra.mxu0 0.0
    %532 = vmatprep.subr.mxu0 0.0
    %533 = vmatpush1.msra.mxu0 0.0
    %534 = vmatprep.subr.mxu0 0.0
    %535 = vmatpush1.msra.mxu0 0.0
    %536 = vmatprep.subr.mxu0 0.0
    %537 = vmatpush1.msra.mxu0 0.0
    %538 = vmatprep.subr.mxu0 0.0
    %539 = vmatpush1.msra.mxu0 0.0
    %540 = vmatprep.subr.mxu0 0.0
    %541 = vmatpush1.msra.mxu0 %v461
    %542 = vmatprep.subr.mxu0 0.0
    %543 = vmatpush2.msra.mxu0 0.0
    %544 = vmatprep.subr.mxu0 0.0
    %545 = vmatpush2.msra.mxu0 0.0
    %546 = vmatprep.subr.mxu0 0.0
    %547 = vmatpush2.msra.mxu0 0.0
    %548 = vmatprep.subr.mxu0 0.0
    %549 = vmatpush2.msra.mxu0 0.0
    %550 = vmatprep.subr.mxu0 0.0
    %551 = vmatpush2.msra.mxu0 0.0
    %552 = vmatprep.subr.mxu0 0.0
    %553 = vmatpush2.msra.mxu0 0.0
    %554 = vmatprep.subr.mxu0 0.0
    %555 = vmatpush2.msra.mxu0 0.0
    %556 = vmatprep.subr.mxu0 0.0
    %557 = vmatpush2.msra.mxu0 0.0
    %558 = vmatprep.subr.mxu0 0.0
    %559 = vmatpush2.msra.mxu0 0.0
    %560 = vmatprep.subr.mxu0 0.0
    %561 = vmatpush2.msra.mxu0 0.0
    %562 = vmatprep.subr.mxu0 0.0
    %563 = vmatpush2.msra.mxu0 0.0
    %564 = vmatprep.subr.mxu0 0.0
    %565 = vmatpush2.msra.mxu0 0.0
    %566 = vmatprep.subr.mxu0 0.0
    %567 = vmatpush2.msra.mxu0 0.0
    %568 = vmatprep.subr.mxu0 0.0
    %569 = vmatpush2.msra.mxu0 0.0
    %570 = vmatprep.subr.mxu0 0.0
    %571 = vmatpush2.msra.mxu0 0.0
    %572 = vmatprep.subr.mxu0 0.0
    %573 = vmatpush2.msra.mxu0 0.0
    %574 = vmatprep.mubr.f32.mxu0 0.0
    %575 = vmatmul.mubr.f32.gmra.mxu0 %v463
    %v576 = vpop.f32.mrf.mxu0
    %v577 = vadd.f32 0.0, %v576
    %v578 = vpop.f32.mrf.mxu0
    %579 = vmatprep.mubr.f32.mxu0 0.0
    %580 = vmatmul.mubr.f32.gmra.mxu0 %v466
    %v581 = vpop.f32.mrf.mxu0
    %v582 = vadd.f32 0.0, %v581
    %v583 = vpop.f32.mrf.mxu0
    %584 = vmatprep.mubr.f32.mxu0 0.0
    %585 = vmatmul.mubr.f32.gmra.mxu0 %v469
    %v586 = vpop.f32.mrf.mxu0
    %v587 = vadd.f32 0.0, %v586
    %v588 = vpop.f32.mrf.mxu0
    %589 = vmatprep.mubr.f32.mxu0 0.0
    %590 = vmatmul.mubr.f32.gmra.mxu0 %v472
    %v591 = vpop.f32.mrf.mxu0
    %v592 = vadd.f32 0.0, %v591
    %v593 = vpop.f32.mrf.mxu0
    %594 = vmatprep.mubr.f32.mxu0 0.0
    %595 = vmatmul.mubr.f32.gmra.mxu0 %v475
    %v596 = vpop.f32.mrf.mxu0
    %v597 = vadd.f32 0.0, %v596
    %v598 = vpop.f32.mrf.mxu0
    %599 = vmatprep.mubr.f32.mxu0 0.0
    %600 = vmatmul.mubr.f32.gmra.mxu0 %v478
    %v601 = vpop.f32.mrf.mxu0
    %v602 = vadd.f32 0.0, %v601
    %v603 = vpop.f32.mrf.mxu0
    %604 = vmatprep.mubr.f32.mxu0 0.0
    %605 = vmatmul.mubr.f32.gmra.mxu0 %v481
    %v606 = vpop.f32.mrf.mxu0
    %v607 = vadd.f32 0.0, %v606
    %v608 = vpop.f32.mrf.mxu0
    %609 = vmatprep.mubr.f32.mxu0 0.0
    %610 = vmatmul.mubr.f32.gmra.mxu0 %v484
    %v611 = vpop.f32.mrf.mxu0
    %v612 = vadd.f32 0.0, %v611
    %v613 = vpop.f32.mrf.mxu0
    %614 = vmatprep.mubr.f32.mxu0 0.0
    %615 = vmatmul.mubr.f32.gmra.mxu0 %v487
    %v616 = vpop.f32.mrf.mxu0
    %v617 = vadd.f32 0.0, %v616
    %v618 = vpop.f32.mrf.mxu0
    %619 = vmatprep.mubr.f32.mxu0 0.0
    %620 = vmatmul.mubr.f32.gmra.mxu0 %v490
    %v621 = vpop.f32.mrf.mxu0
    %v622 = vadd.f32 0.0, %v621
    %v623 = vpop.f32.mrf.mxu0
    %624 = vmatprep.mubr.f32.mxu0 0.0
    %625 = vmatmul.mubr.f32.gmra.mxu0 %v493
    %v626 = vpop.f32.mrf.mxu0
    %v627 = vadd.f32 0.0, %v626
    %v628 = vpop.f32.mrf.mxu0
    %629 = vmatprep.mubr.f32.mxu0 0.0
    %630 = vmatmul.mubr.f32.gmra.mxu0 %v496
    %v631 = vpop.f32.mrf.mxu0
    %v632 = vadd.f32 0.0, %v631
    %v633 = vpop.f32.mrf.mxu0
    %634 = vmatprep.mubr.f32.mxu0 0.0
    %635 = vmatmul.mubr.f32.gmra.mxu0 %v499
    %v636 = vpop.f32.mrf.mxu0
    %v637 = vadd.f32 0.0, %v636
    %v638 = vpop.f32.mrf.mxu0
    %639 = vmatprep.mubr.f32.mxu0 0.0
    %640 = vmatmul.mubr.f32.gmra.mxu0 %v502
    %v641 = vpop.f32.mrf.mxu0
    %v642 = vadd.f32 0.0, %v641
    %v643 = vpop.f32.mrf.mxu0
    %644 = vmatprep.mubr.f32.mxu0 0.0
    %645 = vmatmul.mubr.f32.gmra.mxu0 %v505
    %v646 = vpop.f32.mrf.mxu0
    %v647 = vadd.f32 0.0, %v646
    %v648 = vpop.f32.mrf.mxu0
    %649 = vmatprep.mubr.f32.mxu0 0.0
    %650 = vmatmul.mubr.f32.gmra.mxu0 %v508
    %v651 = vpop.f32.mrf.mxu0
    %v652 = vadd.f32 0.0, %v651
    %v653 = vpop.f32.mrf.mxu0
    %654 = vdwg.mxu0
    %v655 = vadd.f32 %v366, %v577
    %v656 = vadd.f32 %v371, %v582
    %v657 = vadd.f32 %v376, %v587
    %v658 = vadd.f32 %v381, %v592
    %v659 = vadd.f32 %v386, %v597
    %v660 = vadd.f32 %v391, %v602
    %v661 = vadd.f32 %v396, %v607
    %v662 = vadd.f32 %v401, %v612
    %v663 = vadd.f32 %v406, %v617
    %v664 = vadd.f32 %v411, %v622
    %v665 = vadd.f32 %v416, %v627
    %v666 = vadd.f32 %v421, %v632
    %v667 = vadd.f32 %v426, %v637
    %v668 = vadd.f32 %v431, %v642
    %v669 = vadd.f32 %v436, %v647
    %v670 = vadd.f32 %v441, %v652
    %s671 = scalar_lea.vmem %s0, 576
    %v672 = vld [vmem:[%s671] sm:$0xff]
    %v673 = vld [vmem:[%s671 + $0x10] sm:$0xff]
    %v674 = vld [vmem:[%s671 + $0x20] sm:$0xff]
    %v675 = vld [vmem:[%s671 + $0x30] sm:$0xff]
    %v676 = vld [vmem:[%s671 + $0x40] sm:$0xff]
    %v677 = vld [vmem:[%s671 + $0x50] sm:$0xff]
    %v678 = vld [vmem:[%s671 + $0x60] sm:$0xff]
    %v679 = vld [vmem:[%s671 + $0x70] sm:$0xff]
    %v680 = vld [vmem:[%s671 + $0x90] sm:$0xff]
    %v681 = vld [vmem:[%s671 + $0xa0] sm:$0xff]
    %v682 = vld [vmem:[%s671 + $0xb0] sm:$0xff]
    %v683 = vld [vmem:[%s671 + $0xc0] sm:$0xff]
    %v684 = vld [vmem:[%s671 + $0xd0] sm:$0xff]
    %v685 = vld [vmem:[%s671 + $0xe0] sm:$0xff]
    %v686 = vld [vmem:[%s671 + $0xf0] sm:$0xff]
    %v687 = vld [vmem:[%s671 + $0x100] sm:$0xff]
    %s688 = scalar_lea.vmem %s1, 24
    %v689 = vld [vmem:[%s688] sm:$0xff]
    %v691 = vsel %vm57, %v672, 0
    %v694 = vsel %vm57, %v673, 0
    %v697 = vsel %vm57, %v674, 0
    %v700 = vsel %vm57, %v675, 0
    %v703 = vsel %vm57, %v676, 0
    %v706 = vsel %vm57, %v677, 0
    %v709 = vsel %vm57, %v678, 0
    %v712 = vsel %vm57, %v679, 0
    %v715 = vsel %vm57, %v680, 0
    %v718 = vsel %vm57, %v681, 0
    %v721 = vsel %vm57, %v682, 0
    %v724 = vsel %vm57, %v683, 0
    %v727 = vsel %vm57, %v684, 0
    %v730 = vsel %vm57, %v685, 0
    %v733 = vsel %vm57, %v686, 0
    %v736 = vsel %vm57, %v687, 0
    %738 = vmatprep.subr.mxu0 0.0
    %739 = vmatpush1.msra.mxu0 0.0
    %740 = vmatprep.subr.mxu0 0.0
    %741 = vmatpush1.msra.mxu0 0.0
    %742 = vmatprep.subr.mxu0 0.0
    %743 = vmatpush1.msra.mxu0 0.0
    %744 = vmatprep.subr.mxu0 0.0
    %745 = vmatpush1.msra.mxu0 0.0
    %746 = vmatprep.subr.mxu0 0.0
    %747 = vmatpush1.msra.mxu0 0.0
    %748 = vmatprep.subr.mxu0 0.0
    %749 = vmatpush1.msra.mxu0 0.0
    %750 = vmatprep.subr.mxu0 0.0
    %751 = vmatpush1.msra.mxu0 0.0
    %752 = vmatprep.subr.mxu0 0.0
    %753 = vmatpush1.msra.mxu0 0.0
    %754 = vmatprep.subr.mxu0 0.0
    %755 = vmatpush1.msra.mxu0 0.0
    %756 = vmatprep.subr.mxu0 0.0
    %757 = vmatpush1.msra.mxu0 0.0
    %758 = vmatprep.subr.mxu0 0.0
    %759 = vmatpush1.msra.mxu0 0.0
    %760 = vmatprep.subr.mxu0 0.0
    %761 = vmatpush1.msra.mxu0 0.0
    %762 = vmatprep.subr.mxu0 0.0
    %763 = vmatpush1.msra.mxu0 0.0
    %764 = vmatprep.subr.mxu0 0.0
    %765 = vmatpush1.msra.mxu0 0.0
    %766 = vmatprep.subr.mxu0 0.0
    %767 = vmatpush1.msra.mxu0 0.0
    %768 = vmatprep.subr.mxu0 0.0
    %769 = vmatpush1.msra.mxu0 %v689
    %770 = vmatprep.subr.mxu0 0.0
    %771 = vmatpush2.msra.mxu0 0.0
    %772 = vmatprep.subr.mxu0 0.0
    %773 = vmatpush2.msra.mxu0 0.0
    %774 = vmatprep.subr.mxu0 0.0
    %775 = vmatpush2.msra.mxu0 0.0
    %776 = vmatprep.subr.mxu0 0.0
    %777 = vmatpush2.msra.mxu0 0.0
    %778 = vmatprep.subr.mxu0 0.0
    %779 = vmatpush2.msra.mxu0 0.0
    %780 = vmatprep.subr.mxu0 0.0
    %781 = vmatpush2.msra.mxu0 0.0
    %782 = vmatprep.subr.mxu0 0.0
    %783 = vmatpush2.msra.mxu0 0.0
    %784 = vmatprep.subr.mxu0 0.0
    %785 = vmatpush2.msra.mxu0 0.0
    %786 = vmatprep.subr.mxu0 0.0
    %787 = vmatpush2.msra.mxu0 0.0
    %788 = vmatprep.subr.mxu0 0.0
    %789 = vmatpush2.msra.mxu0 0.0
    %790 = vmatprep.subr.mxu0 0.0
    %791 = vmatpush2.msra.mxu0 0.0
    %792 = vmatprep.subr.mxu0 0.0
    %793 = vmatpush2.msra.mxu0 0.0
    %794 = vmatprep.subr.mxu0 0.0
    %795 = vmatpush2.msra.mxu0 0.0
    %796 = vmatprep.subr.mxu0 0.0
    %797 = vmatpush2.msra.mxu0 0.0
    %798 = vmatprep.subr.mxu0 0.0
    %799 = vmatpush2.msra.mxu0 0.0
    %800 = vmatprep.subr.mxu0 0.0
    %801 = vmatpush2.msra.mxu0 0.0
    %802 = vmatprep.mubr.f32.mxu0 0.0
    %803 = vmatmul.mubr.f32.gmra.mxu0 %v691
    %v804 = vpop.f32.mrf.mxu0
    %v805 = vadd.f32 0.0, %v804
    %v806 = vpop.f32.mrf.mxu0
    %807 = vmatprep.mubr.f32.mxu0 0.0
    %808 = vmatmul.mubr.f32.gmra.mxu0 %v694
    %v809 = vpop.f32.mrf.mxu0
    %v810 = vadd.f32 0.0, %v809
    %v811 = vpop.f32.mrf.mxu0
    %812 = vmatprep.mubr.f32.mxu0 0.0
    %813 = vmatmul.mubr.f32.gmra.mxu0 %v697
    %v814 = vpop.f32.mrf.mxu0
    %v815 = vadd.f32 0.0, %v814
    %v816 = vpop.f32.mrf.mxu0
    %817 = vmatprep.mubr.f32.mxu0 0.0
    %818 = vmatmul.mubr.f32.gmra.mxu0 %v700
    %v819 = vpop.f32.mrf.mxu0
    %v820 = vadd.f32 0.0, %v819
    %v821 = vpop.f32.mrf.mxu0
    %822 = vmatprep.mubr.f32.mxu0 0.0
    %823 = vmatmul.mubr.f32.gmra.mxu0 %v703
    %v824 = vpop.f32.mrf.mxu0
    %v825 = vadd.f32 0.0, %v824
    %v826 = vpop.f32.mrf.mxu0
    %827 = vmatprep.mubr.f32.mxu0 0.0
    %828 = vmatmul.mubr.f32.gmra.mxu0 %v706
    %v829 = vpop.f32.mrf.mxu0
    %v830 = vadd.f32 0.0, %v829
    %v831 = vpop.f32.mrf.mxu0
    %832 = vmatprep.mubr.f32.mxu0 0.0
    %833 = vmatmul.mubr.f32.gmra.mxu0 %v709
    %v834 = vpop.f32.mrf.mxu0
    %v835 = vadd.f32 0.0, %v834
    %v836 = vpop.f32.mrf.mxu0
    %837 = vmatprep.mubr.f32.mxu0 0.0
    %838 = vmatmul.mubr.f32.gmra.mxu0 %v712
    %v839 = vpop.f32.mrf.mxu0
    %v840 = vadd.f32 0.0, %v839
    %v841 = vpop.f32.mrf.mxu0
    %842 = vmatprep.mubr.f32.mxu0 0.0
    %843 = vmatmul.mubr.f32.gmra.mxu0 %v715
    %v844 = vpop.f32.mrf.mxu0
    %v845 = vadd.f32 0.0, %v844
    %v846 = vpop.f32.mrf.mxu0
    %847 = vmatprep.mubr.f32.mxu0 0.0
    %848 = vmatmul.mubr.f32.gmra.mxu0 %v718
    %v849 = vpop.f32.mrf.mxu0
    %v850 = vadd.f32 0.0, %v849
    %v851 = vpop.f32.mrf.mxu0
    %852 = vmatprep.mubr.f32.mxu0 0.0
    %853 = vmatmul.mubr.f32.gmra.mxu0 %v721
    %v854 = vpop.f32.mrf.mxu0
    %v855 = vadd.f32 0.0, %v854
    %v856 = vpop.f32.mrf.mxu0
    %857 = vmatprep.mubr.f32.mxu0 0.0
    %858 = vmatmul.mubr.f32.gmra.mxu0 %v724
    %v859 = vpop.f32.mrf.mxu0
    %v860 = vadd.f32 0.0, %v859
    %v861 = vpop.f32.mrf.mxu0
    %862 = vmatprep.mubr.f32.mxu0 0.0
    %863 = vmatmul.mubr.f32.gmra.mxu0 %v727
    %v864 = vpop.f32.mrf.mxu0
    %v865 = vadd.f32 0.0, %v864
    %v866 = vpop.f32.mrf.mxu0
    %867 = vmatprep.mubr.f32.mxu0 0.0
    %868 = vmatmul.mubr.f32.gmra.mxu0 %v730
    %v869 = vpop.f32.mrf.mxu0
    %v870 = vadd.f32 0.0, %v869
    %v871 = vpop.f32.mrf.mxu0
    %872 = vmatprep.mubr.f32.mxu0 0.0
    %873 = vmatmul.mubr.f32.gmra.mxu0 %v733
    %v874 = vpop.f32.mrf.mxu0
    %v875 = vadd.f32 0.0, %v874
    %v876 = vpop.f32.mrf.mxu0
    %877 = vmatprep.mubr.f32.mxu0 0.0
    %878 = vmatmul.mubr.f32.gmra.mxu0 %v736
    %v879 = vpop.f32.mrf.mxu0
    %v880 = vadd.f32 0.0, %v879
    %v881 = vpop.f32.mrf.mxu0
    %882 = vdwg.mxu0
    %v883 = vadd.f32 %v655, %v805
    %v884 = vadd.f32 %v656, %v810
    %v885 = vadd.f32 %v657, %v815
    %v886 = vadd.f32 %v658, %v820
    %v887 = vadd.f32 %v659, %v825
    %v888 = vadd.f32 %v660, %v830
    %v889 = vadd.f32 %v661, %v835
    %v890 = vadd.f32 %v662, %v840
    %v891 = vadd.f32 %v663, %v845
    %v892 = vadd.f32 %v664, %v850
    %v893 = vadd.f32 %v665, %v855
    %v894 = vadd.f32 %v666, %v860
    %v895 = vadd.f32 %v667, %v865
    %v896 = vadd.f32 %v668, %v870
    %v897 = vadd.f32 %v669, %v875
    %v898 = vadd.f32 %v670, %v880
    %s899 = scalar_lea.vmem %s0, 864
    %v900 = vld [vmem:[%s899] sm:$0xff]
    %v901 = vld [vmem:[%s899 + $0x10] sm:$0xff]
    %v902 = vld [vmem:[%s899 + $0x20] sm:$0xff]
    %v903 = vld [vmem:[%s899 + $0x30] sm:$0xff]
    %v904 = vld [vmem:[%s899 + $0x40] sm:$0xff]
    %v905 = vld [vmem:[%s899 + $0x50] sm:$0xff]
    %v906 = vld [vmem:[%s899 + $0x60] sm:$0xff]
    %v907 = vld [vmem:[%s899 + $0x70] sm:$0xff]
    %v908 = vld [vmem:[%s899 + $0x90] sm:$0xff]
    %v909 = vld [vmem:[%s899 + $0xa0] sm:$0xff]
    %v910 = vld [vmem:[%s899 + $0xb0] sm:$0xff]
    %v911 = vld [vmem:[%s899 + $0xc0] sm:$0xff]
    %v912 = vld [vmem:[%s899 + $0xd0] sm:$0xff]
    %v913 = vld [vmem:[%s899 + $0xe0] sm:$0xff]
    %v914 = vld [vmem:[%s899 + $0xf0] sm:$0xff]
    %v915 = vld [vmem:[%s899 + $0x100] sm:$0xff]
    %s916 = scalar_lea.vmem %s1, 32
    %v917 = vld [vmem:[%s916] sm:$0xff]
    %v919 = vsel %vm57, %v900, 0
    %v922 = vsel %vm57, %v901, 0
    %v925 = vsel %vm57, %v902, 0
    %v928 = vsel %vm57, %v903, 0
    %v931 = vsel %vm57, %v904, 0
    %v934 = vsel %vm57, %v905, 0
    %v937 = vsel %vm57, %v906, 0
    %v940 = vsel %vm57, %v907, 0
    %v943 = vsel %vm57, %v908, 0
    %v946 = vsel %vm57, %v909, 0
    %v949 = vsel %vm57, %v910, 0
    %v952 = vsel %vm57, %v911, 0
    %v955 = vsel %vm57, %v912, 0
    %v958 = vsel %vm57, %v913, 0
    %v961 = vsel %vm57, %v914, 0
    %v964 = vsel %vm57, %v915, 0
    %966 = vmatprep.subr.mxu0 0.0
    %967 = vmatpush1.msra.mxu0 0.0
    %968 = vmatprep.subr.mxu0 0.0
    %969 = vmatpush1.msra.mxu0 0.0
    %970 = vmatprep.subr.mxu0 0.0
    %971 = vmatpush1.msra.mxu0 0.0
    %972 = vmatprep.subr.mxu0 0.0
    %973 = vmatpush1.msra.mxu0 0.0
    %974 = vmatprep.subr.mxu0 0.0
    %975 = vmatpush1.msra.mxu0 0.0
    %976 = vmatprep.subr.mxu0 0.0
    %977 = vmatpush1.msra.mxu0 0.0
    %978 = vmatprep.subr.mxu0 0.0
    %979 = vmatpush1.msra.mxu0 0.0
    %980 = vmatprep.subr.mxu0 0.0
    %981 = vmatpush1.msra.mxu0 0.0
    %982 = vmatprep.subr.mxu0 0.0
    %983 = vmatpush1.msra.mxu0 0.0
    %984 = vmatprep.subr.mxu0 0.0
    %985 = vmatpush1.msra.mxu0 0.0
    %986 = vmatprep.subr.mxu0 0.0
    %987 = vmatpush1.msra.mxu0 0.0
    %988 = vmatprep.subr.mxu0 0.0
    %989 = vmatpush1.msra.mxu0 0.0
    %990 = vmatprep.subr.mxu0 0.0
    %991 = vmatpush1.msra.mxu0 0.0
    %992 = vmatprep.subr.mxu0 0.0
    %993 = vmatpush1.msra.mxu0 0.0
    %994 = vmatprep.subr.mxu0 0.0
    %995 = vmatpush1.msra.mxu0 0.0
    %996 = vmatprep.subr.mxu0 0.0
    %997 = vmatpush1.msra.mxu0 %v917
    %998 = vmatprep.subr.mxu0 0.0
    %999 = vmatpush2.msra.mxu0 0.0
    %1000 = vmatprep.subr.mxu0 0.0
    %1001 = vmatpush2.msra.mxu0 0.0
    %1002 = vmatprep.subr.mxu0 0.0
    %1003 = vmatpush2.msra.mxu0 0.0
    %1004 = vmatprep.subr.mxu0 0.0
    %1005 = vmatpush2.msra.mxu0 0.0
    %1006 = vmatprep.subr.mxu0 0.0
    %1007 = vmatpush2.msra.mxu0 0.0
    %1008 = vmatprep.subr.mxu0 0.0
    %1009 = vmatpush2.msra.mxu0 0.0
    %1010 = vmatprep.subr.mxu0 0.0
    %1011 = vmatpush2.msra.mxu0 0.0
    %1012 = vmatprep.subr.mxu0 0.0
    %1013 = vmatpush2.msra.mxu0 0.0
    %1014 = vmatprep.subr.mxu0 0.0
    %1015 = vmatpush2.msra.mxu0 0.0
    %1016 = vmatprep.subr.mxu0 0.0
    %1017 = vmatpush2.msra.mxu0 0.0
    %1018 = vmatprep.subr.mxu0 0.0
    %1019 = vmatpush2.msra.mxu0 0.0
    %1020 = vmatprep.subr.mxu0 0.0
    %1021 = vmatpush2.msra.mxu0 0.0
    %1022 = vmatprep.subr.mxu0 0.0
    %1023 = vmatpush2.msra.mxu0 0.0
    %1024 = vmatprep.subr.mxu0 0.0
    %1025 = vmatpush2.msra.mxu0 0.0
    %1026 = vmatprep.subr.mxu0 0.0
    %1027 = vmatpush2.msra.mxu0 0.0
    %1028 = vmatprep.subr.mxu0 0.0
    %1029 = vmatpush2.msra.mxu0 0.0
    %1030 = vmatprep.mubr.f32.mxu0 0.0
    %1031 = vmatmul.mubr.f32.gmra.mxu0 %v919
    %v1032 = vpop.f32.mrf.mxu0
    %v1033 = vadd.f32 0.0, %v1032
    %v1034 = vpop.f32.mrf.mxu0
    %1035 = vmatprep.mubr.f32.mxu0 0.0
    %1036 = vmatmul.mubr.f32.gmra.mxu0 %v922
    %v1037 = vpop.f32.mrf.mxu0
    %v1038 = vadd.f32 0.0, %v1037
    %v1039 = vpop.f32.mrf.mxu0
    %1040 = vmatprep.mubr.f32.mxu0 0.0
    %1041 = vmatmul.mubr.f32.gmra.mxu0 %v925
    %v1042 = vpop.f32.mrf.mxu0
    %v1043 = vadd.f32 0.0, %v1042
    %v1044 = vpop.f32.mrf.mxu0
    %1045 = vmatprep.mubr.f32.mxu0 0.0
    %1046 = vmatmul.mubr.f32.gmra.mxu0 %v928
    %v1047 = vpop.f32.mrf.mxu0
    %v1048 = vadd.f32 0.0, %v1047
    %v1049 = vpop.f32.mrf.mxu0
    %1050 = vmatprep.mubr.f32.mxu0 0.0
    %1051 = vmatmul.mubr.f32.gmra.mxu0 %v931
    %v1052 = vpop.f32.mrf.mxu0
    %v1053 = vadd.f32 0.0, %v1052
    %v1054 = vpop.f32.mrf.mxu0
    %1055 = vmatprep.mubr.f32.mxu0 0.0
    %1056 = vmatmul.mubr.f32.gmra.mxu0 %v934
    %v1057 = vpop.f32.mrf.mxu0
    %v1058 = vadd.f32 0.0, %v1057
    %v1059 = vpop.f32.mrf.mxu0
    %1060 = vmatprep.mubr.f32.mxu0 0.0
    %1061 = vmatmul.mubr.f32.gmra.mxu0 %v937
    %v1062 = vpop.f32.mrf.mxu0
    %v1063 = vadd.f32 0.0, %v1062
    %v1064 = vpop.f32.mrf.mxu0
    %1065 = vmatprep.mubr.f32.mxu0 0.0
    %1066 = vmatmul.mubr.f32.gmra.mxu0 %v940
    %v1067 = vpop.f32.mrf.mxu0
    %v1068 = vadd.f32 0.0, %v1067
    %v1069 = vpop.f32.mrf.mxu0
    %1070 = vmatprep.mubr.f32.mxu0 0.0
    %1071 = vmatmul.mubr.f32.gmra.mxu0 %v943
    %v1072 = vpop.f32.mrf.mxu0
    %v1073 = vadd.f32 0.0, %v1072
    %v1074 = vpop.f32.mrf.mxu0
    %1075 = vmatprep.mubr.f32.mxu0 0.0
    %1076 = vmatmul.mubr.f32.gmra.mxu0 %v946
    %v1077 = vpop.f32.mrf.mxu0
    %v1078 = vadd.f32 0.0, %v1077
    %v1079 = vpop.f32.mrf.mxu0
    %1080 = vmatprep.mubr.f32.mxu0 0.0
    %1081 = vmatmul.mubr.f32.gmra.mxu0 %v949
    %v1082 = vpop.f32.mrf.mxu0
    %v1083 = vadd.f32 0.0, %v1082
    %v1084 = vpop.f32.mrf.mxu0
    %1085 = vmatprep.mubr.f32.mxu0 0.0
    %1086 = vmatmul.mubr.f32.gmra.mxu0 %v952
    %v1087 = vpop.f32.mrf.mxu0
    %v1088 = vadd.f32 0.0, %v1087
    %v1089 = vpop.f32.mrf.mxu0
    %1090 = vmatprep.mubr.f32.mxu0 0.0
    %1091 = vmatmul.mubr.f32.gmra.mxu0 %v955
    %v1092 = vpop.f32.mrf.mxu0
    %v1093 = vadd.f32 0.0, %v1092
    %v1094 = vpop.f32.mrf.mxu0
    %1095 = vmatprep.mubr.f32.mxu0 0.0
    %1096 = vmatmul.mubr.f32.gmra.mxu0 %v958
    %v1097 = vpop.f32.mrf.mxu0
    %v1098 = vadd.f32 0.0, %v1097
    %v1099 = vpop.f32.mrf.mxu0
    %1100 = vmatprep.mubr.f32.mxu0 0.0
    %1101 = vmatmul.mubr.f32.gmra.mxu0 %v961
    %v1102 = vpop.f32.mrf.mxu0
    %v1103 = vadd.f32 0.0, %v1102
    %v1104 = vpop.f32.mrf.mxu0
    %1105 = vmatprep.mubr.f32.mxu0 0.0
    %1106 = vmatmul.mubr.f32.gmra.mxu0 %v964
    %v1107 = vpop.f32.mrf.mxu0
    %v1108 = vadd.f32 0.0, %v1107
    %v1109 = vpop.f32.mrf.mxu0
    %1110 = vdwg.mxu0
    %v1111 = vadd.f32 %v883, %v1033
    %v1112 = vadd.f32 %v884, %v1038
    %v1113 = vadd.f32 %v885, %v1043
    %v1114 = vadd.f32 %v886, %v1048
    %v1115 = vadd.f32 %v887, %v1053
    %v1116 = vadd.f32 %v888, %v1058
    %v1117 = vadd.f32 %v889, %v1063
    %v1118 = vadd.f32 %v890, %v1068
    %v1119 = vadd.f32 %v891, %v1073
    %v1120 = vadd.f32 %v892, %v1078
    %v1121 = vadd.f32 %v893, %v1083
    %v1122 = vadd.f32 %v894, %v1088
    %v1123 = vadd.f32 %v895, %v1093
    %v1124 = vadd.f32 %v896, %v1098
    %v1125 = vadd.f32 %v897, %v1103
    %v1126 = vadd.f32 %v898, %v1108
    %v1127 = vld [vmem:[%s671 + $0x1] sm:$0xff]
    %v1128 = vld [vmem:[%s671 + $0x11] sm:$0xff]
    %v1129 = vld [vmem:[%s671 + $0x21] sm:$0xff]
    %v1130 = vld [vmem:[%s671 + $0x31] sm:$0xff]
    %v1131 = vld [vmem:[%s671 + $0x41] sm:$0xff]
    %v1132 = vld [vmem:[%s671 + $0x51] sm:$0xff]
    %v1133 = vld [vmem:[%s671 + $0x61] sm:$0xff]
    %v1134 = vld [vmem:[%s671 + $0x71] sm:$0xff]
    %v1135 = vld [vmem:[%s671 + $0x91] sm:$0xff]
    %v1136 = vld [vmem:[%s671 + $0xa1] sm:$0xff]
    %v1137 = vld [vmem:[%s671 + $0xb1] sm:$0xff]
    %v1138 = vld [vmem:[%s671 + $0xc1] sm:$0xff]
    %v1139 = vld [vmem:[%s671 + $0xd1] sm:$0xff]
    %v1140 = vld [vmem:[%s671 + $0xe1] sm:$0xff]
    %v1141 = vld [vmem:[%s671 + $0xf1] sm:$0xff]
    %v1142 = vld [vmem:[%s671 + $0x101] sm:$0xff]
    %s1143 = scalar_lea.vmem %s1, 40
    %v1144 = vld [vmem:[%s1143] sm:$0xff]
    %v1146 = vsel %vm57, %v1127, 0
    %v1149 = vsel %vm57, %v1128, 0
    %v1152 = vsel %vm57, %v1129, 0
    %v1155 = vsel %vm57, %v1130, 0
    %v1158 = vsel %vm57, %v1131, 0
    %v1161 = vsel %vm57, %v1132, 0
    %v1164 = vsel %vm57, %v1133, 0
    %v1167 = vsel %vm57, %v1134, 0
    %v1170 = vsel %vm57, %v1135, 0
    %v1173 = vsel %vm57, %v1136, 0
    %v1176 = vsel %vm57, %v1137, 0
    %v1179 = vsel %vm57, %v1138, 0
    %v1182 = vsel %vm57, %v1139, 0
    %v1185 = vsel %vm57, %v1140, 0
    %v1188 = vsel %vm57, %v1141, 0
    %v1191 = vsel %vm57, %v1142, 0
    %1193 = vmatprep.subr.mxu0 0.0
    %1194 = vmatpush1.msra.mxu0 0.0
    %1195 = vmatprep.subr.mxu0 0.0
    %1196 = vmatpush1.msra.mxu0 0.0
    %1197 = vmatprep.subr.mxu0 0.0
    %1198 = vmatpush1.msra.mxu0 0.0
    %1199 = vmatprep.subr.mxu0 0.0
    %1200 = vmatpush1.msra.mxu0 0.0
    %1201 = vmatprep.subr.mxu0 0.0
    %1202 = vmatpush1.msra.mxu0 0.0
    %1203 = vmatprep.subr.mxu0 0.0
    %1204 = vmatpush1.msra.mxu0 0.0
    %1205 = vmatprep.subr.mxu0 0.0
    %1206 = vmatpush1.msra.mxu0 0.0
    %1207 = vmatprep.subr.mxu0 0.0
    %1208 = vmatpush1.msra.mxu0 0.0
    %1209 = vmatprep.subr.mxu0 0.0
    %1210 = vmatpush1.msra.mxu0 0.0
    %1211 = vmatprep.subr.mxu0 0.0
    %1212 = vmatpush1.msra.mxu0 0.0
    %1213 = vmatprep.subr.mxu0 0.0
    %1214 = vmatpush1.msra.mxu0 0.0
    %1215 = vmatprep.subr.mxu0 0.0
    %1216 = vmatpush1.msra.mxu0 0.0
    %1217 = vmatprep.subr.mxu0 0.0
    %1218 = vmatpush1.msra.mxu0 0.0
    %1219 = vmatprep.subr.mxu0 0.0
    %1220 = vmatpush1.msra.mxu0 0.0
    %1221 = vmatprep.subr.mxu0 0.0
    %1222 = vmatpush1.msra.mxu0 0.0
    %1223 = vmatprep.subr.mxu0 0.0
    %1224 = vmatpush1.msra.mxu0 %v1144
    %1225 = vmatprep.subr.mxu0 0.0
    %1226 = vmatpush2.msra.mxu0 0.0
    %1227 = vmatprep.subr.mxu0 0.0
    %1228 = vmatpush2.msra.mxu0 0.0
    %1229 = vmatprep.subr.mxu0 0.0
    %1230 = vmatpush2.msra.mxu0 0.0
    %1231 = vmatprep.subr.mxu0 0.0
    %1232 = vmatpush2.msra.mxu0 0.0
    %1233 = vmatprep.subr.mxu0 0.0
    %1234 = vmatpush2.msra.mxu0 0.0
    %1235 = vmatprep.subr.mxu0 0.0
    %1236 = vmatpush2.msra.mxu0 0.0
    %1237 = vmatprep.subr.mxu0 0.0
    %1238 = vmatpush2.msra.mxu0 0.0
    %1239 = vmatprep.subr.mxu0 0.0
    %1240 = vmatpush2.msra.mxu0 0.0
    %1241 = vmatprep.subr.mxu0 0.0
    %1242 = vmatpush2.msra.mxu0 0.0
    %1243 = vmatprep.subr.mxu0 0.0
    %1244 = vmatpush2.msra.mxu0 0.0
    %1245 = vmatprep.subr.mxu0 0.0
    %1246 = vmatpush2.msra.mxu0 0.0
    %1247 = vmatprep.subr.mxu0 0.0
    %1248 = vmatpush2.msra.mxu0 0.0
    %1249 = vmatprep.subr.mxu0 0.0
    %1250 = vmatpush2.msra.mxu0 0.0
    %1251 = vmatprep.subr.mxu0 0.0
    %1252 = vmatpush2.msra.mxu0 0.0
    %1253 = vmatprep.subr.mxu0 0.0
    %1254 = vmatpush2.msra.mxu0 0.0
    %1255 = vmatprep.subr.mxu0 0.0
    %1256 = vmatpush2.msra.mxu0 0.0
    %1257 = vmatprep.mubr.f32.mxu0 0.0
    %1258 = vmatmul.mubr.f32.gmra.mxu0 %v1146
    %v1259 = vpop.f32.mrf.mxu0
    %v1260 = vadd.f32 0.0, %v1259
    %v1261 = vpop.f32.mrf.mxu0
    %1262 = vmatprep.mubr.f32.mxu0 0.0
    %1263 = vmatmul.mubr.f32.gmra.mxu0 %v1149
    %v1264 = vpop.f32.mrf.mxu0
    %v1265 = vadd.f32 0.0, %v1264
    %v1266 = vpop.f32.mrf.mxu0
    %1267 = vmatprep.mubr.f32.mxu0 0.0
    %1268 = vmatmul.mubr.f32.gmra.mxu0 %v1152
    %v1269 = vpop.f32.mrf.mxu0
    %v1270 = vadd.f32 0.0, %v1269
    %v1271 = vpop.f32.mrf.mxu0
    %1272 = vmatprep.mubr.f32.mxu0 0.0
    %1273 = vmatmul.mubr.f32.gmra.mxu0 %v1155
    %v1274 = vpop.f32.mrf.mxu0
    %v1275 = vadd.f32 0.0, %v1274
    %v1276 = vpop.f32.mrf.mxu0
    %1277 = vmatprep.mubr.f32.mxu0 0.0
    %1278 = vmatmul.mubr.f32.gmra.mxu0 %v1158
    %v1279 = vpop.f32.mrf.mxu0
    %v1280 = vadd.f32 0.0, %v1279
    %v1281 = vpop.f32.mrf.mxu0
    %1282 = vmatprep.mubr.f32.mxu0 0.0
    %1283 = vmatmul.mubr.f32.gmra.mxu0 %v1161
    %v1284 = vpop.f32.mrf.mxu0
    %v1285 = vadd.f32 0.0, %v1284
    %v1286 = vpop.f32.mrf.mxu0
    %1287 = vmatprep.mubr.f32.mxu0 0.0
    %1288 = vmatmul.mubr.f32.gmra.mxu0 %v1164
    %v1289 = vpop.f32.mrf.mxu0
    %v1290 = vadd.f32 0.0, %v1289
    %v1291 = vpop.f32.mrf.mxu0
    %1292 = vmatprep.mubr.f32.mxu0 0.0
    %1293 = vmatmul.mubr.f32.gmra.mxu0 %v1167
    %v1294 = vpop.f32.mrf.mxu0
    %v1295 = vadd.f32 0.0, %v1294
    %v1296 = vpop.f32.mrf.mxu0
    %1297 = vmatprep.mubr.f32.mxu0 0.0
    %1298 = vmatmul.mubr.f32.gmra.mxu0 %v1170
    %v1299 = vpop.f32.mrf.mxu0
    %v1300 = vadd.f32 0.0, %v1299
    %v1301 = vpop.f32.mrf.mxu0
    %1302 = vmatprep.mubr.f32.mxu0 0.0
    %1303 = vmatmul.mubr.f32.gmra.mxu0 %v1173
    %v1304 = vpop.f32.mrf.mxu0
    %v1305 = vadd.f32 0.0, %v1304
    %v1306 = vpop.f32.mrf.mxu0
    %1307 = vmatprep.mubr.f32.mxu0 0.0
    %1308 = vmatmul.mubr.f32.gmra.mxu0 %v1176
    %v1309 = vpop.f32.mrf.mxu0
    %v1310 = vadd.f32 0.0, %v1309
    %v1311 = vpop.f32.mrf.mxu0
    %1312 = vmatprep.mubr.f32.mxu0 0.0
    %1313 = vmatmul.mubr.f32.gmra.mxu0 %v1179
    %v1314 = vpop.f32.mrf.mxu0
    %v1315 = vadd.f32 0.0, %v1314
    %v1316 = vpop.f32.mrf.mxu0
    %1317 = vmatprep.mubr.f32.mxu0 0.0
    %1318 = vmatmul.mubr.f32.gmra.mxu0 %v1182
    %v1319 = vpop.f32.mrf.mxu0
    %v1320 = vadd.f32 0.0, %v1319
    %v1321 = vpop.f32.mrf.mxu0
    %1322 = vmatprep.mubr.f32.mxu0 0.0
    %1323 = vmatmul.mubr.f32.gmra.mxu0 %v1185
    %v1324 = vpop.f32.mrf.mxu0
    %v1325 = vadd.f32 0.0, %v1324
    %v1326 = vpop.f32.mrf.mxu0
    %1327 = vmatprep.mubr.f32.mxu0 0.0
    %1328 = vmatmul.mubr.f32.gmra.mxu0 %v1188
    %v1329 = vpop.f32.mrf.mxu0
    %v1330 = vadd.f32 0.0, %v1329
    %v1331 = vpop.f32.mrf.mxu0
    %1332 = vmatprep.mubr.f32.mxu0 0.0
    %1333 = vmatmul.mubr.f32.gmra.mxu0 %v1191
    %v1334 = vpop.f32.mrf.mxu0
    %v1335 = vadd.f32 0.0, %v1334
    %v1336 = vpop.f32.mrf.mxu0
    %1337 = vdwg.mxu0
    %v1338 = vadd.f32 %v1111, %v1260
    %v1339 = vadd.f32 %v1112, %v1265
    %v1340 = vadd.f32 %v1113, %v1270
    %v1341 = vadd.f32 %v1114, %v1275
    %v1342 = vadd.f32 %v1115, %v1280
    %v1343 = vadd.f32 %v1116, %v1285
    %v1344 = vadd.f32 %v1117, %v1290
    %v1345 = vadd.f32 %v1118, %v1295
    %v1346 = vadd.f32 %v1119, %v1300
    %v1347 = vadd.f32 %v1120, %v1305
    %v1348 = vadd.f32 %v1121, %v1310
    %v1349 = vadd.f32 %v1122, %v1315
    %v1350 = vadd.f32 %v1123, %v1320
    %v1351 = vadd.f32 %v1124, %v1325
    %v1352 = vadd.f32 %v1125, %v1330
    %v1353 = vadd.f32 %v1126, %v1335
    %s1354 = scalar_lea.vmem %s0, 16
    %v1355 = vld [vmem:[%s1354] sm:$0xff]
    %v1356 = vld [vmem:[%s1354 + $0x10] sm:$0xff]
    %v1357 = vld [vmem:[%s1354 + $0x20] sm:$0xff]
    %v1358 = vld [vmem:[%s1354 + $0x30] sm:$0xff]
    %v1359 = vld [vmem:[%s1354 + $0x40] sm:$0xff]
    %v1360 = vld [vmem:[%s1354 + $0x50] sm:$0xff]
    %v1361 = vld [vmem:[%s1354 + $0x60] sm:$0xff]
    %v1362 = vld [vmem:[%s1354 + $0x70] sm:$0xff]
    %v1363 = vld [vmem:[%s1354 + $0x90] sm:$0xff]
    %v1364 = vld [vmem:[%s1354 + $0xa0] sm:$0xff]
    %v1365 = vld [vmem:[%s1354 + $0xb0] sm:$0xff]
    %v1366 = vld [vmem:[%s1354 + $0xc0] sm:$0xff]
    %v1367 = vld [vmem:[%s1354 + $0xd0] sm:$0xff]
    %v1368 = vld [vmem:[%s1354 + $0xe0] sm:$0xff]
    %v1369 = vld [vmem:[%s1354 + $0xf0] sm:$0xff]
    %v1370 = vld [vmem:[%s1354 + $0x100] sm:$0xff]
    %s1371 = scalar_lea.vmem %s1, 48
    %v1372 = vld [vmem:[%s1371] sm:$0xff]
    %v1374 = vsel %vm57, %v1355, 0
    %v1377 = vsel %vm57, %v1356, 0
    %v1380 = vsel %vm57, %v1357, 0
    %v1383 = vsel %vm57, %v1358, 0
    %v1386 = vsel %vm57, %v1359, 0
    %v1389 = vsel %vm57, %v1360, 0
    %v1392 = vsel %vm57, %v1361, 0
    %v1395 = vsel %vm57, %v1362, 0
    %v1398 = vsel %vm57, %v1363, 0
    %v1401 = vsel %vm57, %v1364, 0
    %v1404 = vsel %vm57, %v1365, 0
    %v1407 = vsel %vm57, %v1366, 0
    %v1410 = vsel %vm57, %v1367, 0
    %v1413 = vsel %vm57, %v1368, 0
    %v1416 = vsel %vm57, %v1369, 0
    %v1419 = vsel %vm57, %v1370, 0
    %1421 = vmatprep.subr.mxu0 0.0
    %1422 = vmatpush1.msra.mxu0 0.0
    %1423 = vmatprep.subr.mxu0 0.0
    %1424 = vmatpush1.msra.mxu0 0.0
    %1425 = vmatprep.subr.mxu0 0.0
    %1426 = vmatpush1.msra.mxu0 0.0
    %1427 = vmatprep.subr.mxu0 0.0
    %1428 = vmatpush1.msra.mxu0 0.0
    %1429 = vmatprep.subr.mxu0 0.0
    %1430 = vmatpush1.msra.mxu0 0.0
    %1431 = vmatprep.subr.mxu0 0.0
    %1432 = vmatpush1.msra.mxu0 0.0
    %1433 = vmatprep.subr.mxu0 0.0
    %1434 = vmatpush1.msra.mxu0 0.0
    %1435 = vmatprep.subr.mxu0 0.0
    %1436 = vmatpush1.msra.mxu0 0.0
    %1437 = vmatprep.subr.mxu0 0.0
    %1438 = vmatpush1.msra.mxu0 0.0
    %1439 = vmatprep.subr.mxu0 0.0
    %1440 = vmatpush1.msra.mxu0 0.0
    %1441 = vmatprep.subr.mxu0 0.0
    %1442 = vmatpush1.msra.mxu0 0.0
    %1443 = vmatprep.subr.mxu0 0.0
    %1444 = vmatpush1.msra.mxu0 0.0
    %1445 = vmatprep.subr.mxu0 0.0
    %1446 = vmatpush1.msra.mxu0 0.0
    %1447 = vmatprep.subr.mxu0 0.0
    %1448 = vmatpush1.msra.mxu0 0.0
    %1449 = vmatprep.subr.mxu0 0.0
    %1450 = vmatpush1.msra.mxu0 0.0
    %1451 = vmatprep.subr.mxu0 0.0
    %1452 = vmatpush1.msra.mxu0 %v1372
    %1453 = vmatprep.subr.mxu0 0.0
    %1454 = vmatpush2.msra.mxu0 0.0
    %1455 = vmatprep.subr.mxu0 0.0
    %1456 = vmatpush2.msra.mxu0 0.0
    %1457 = vmatprep.subr.mxu0 0.0
    %1458 = vmatpush2.msra.mxu0 0.0
    %1459 = vmatprep.subr.mxu0 0.0
    %1460 = vmatpush2.msra.mxu0 0.0
    %1461 = vmatprep.subr.mxu0 0.0
    %1462 = vmatpush2.msra.mxu0 0.0
    %1463 = vmatprep.subr.mxu0 0.0
    %1464 = vmatpush2.msra.mxu0 0.0
    %1465 = vmatprep.subr.mxu0 0.0
    %1466 = vmatpush2.msra.mxu0 0.0
    %1467 = vmatprep.subr.mxu0 0.0
    %1468 = vmatpush2.msra.mxu0 0.0
    %1469 = vmatprep.subr.mxu0 0.0
    %1470 = vmatpush2.msra.mxu0 0.0
    %1471 = vmatprep.subr.mxu0 0.0
    %1472 = vmatpush2.msra.mxu0 0.0
    %1473 = vmatprep.subr.mxu0 0.0
    %1474 = vmatpush2.msra.mxu0 0.0
    %1475 = vmatprep.subr.mxu0 0.0
    %1476 = vmatpush2.msra.mxu0 0.0
    %1477 = vmatprep.subr.mxu0 0.0
    %1478 = vmatpush2.msra.mxu0 0.0
    %1479 = vmatprep.subr.mxu0 0.0
    %1480 = vmatpush2.msra.mxu0 0.0
    %1481 = vmatprep.subr.mxu0 0.0
    %1482 = vmatpush2.msra.mxu0 0.0
    %1483 = vmatprep.subr.mxu0 0.0
    %1484 = vmatpush2.msra.mxu0 0.0
    %1485 = vmatprep.mubr.f32.mxu0 0.0
    %1486 = vmatmul.mubr.f32.gmra.mxu0 %v1374
    %v1487 = vpop.f32.mrf.mxu0
    %v1488 = vadd.f32 0.0, %v1487
    %v1489 = vpop.f32.mrf.mxu0
    %1490 = vmatprep.mubr.f32.mxu0 0.0
    %1491 = vmatmul.mubr.f32.gmra.mxu0 %v1377
    %v1492 = vpop.f32.mrf.mxu0
    %v1493 = vadd.f32 0.0, %v1492
    %v1494 = vpop.f32.mrf.mxu0
    %1495 = vmatprep.mubr.f32.mxu0 0.0
    %1496 = vmatmul.mubr.f32.gmra.mxu0 %v1380
    %v1497 = vpop.f32.mrf.mxu0
    %v1498 = vadd.f32 0.0, %v1497
    %v1499 = vpop.f32.mrf.mxu0
    %1500 = vmatprep.mubr.f32.mxu0 0.0
    %1501 = vmatmul.mubr.f32.gmra.mxu0 %v1383
    %v1502 = vpop.f32.mrf.mxu0
    %v1503 = vadd.f32 0.0, %v1502
    %v1504 = vpop.f32.mrf.mxu0
    %1505 = vmatprep.mubr.f32.mxu0 0.0
    %1506 = vmatmul.mubr.f32.gmra.mxu0 %v1386
    %v1507 = vpop.f32.mrf.mxu0
    %v1508 = vadd.f32 0.0, %v1507
    %v1509 = vpop.f32.mrf.mxu0
    %1510 = vmatprep.mubr.f32.mxu0 0.0
    %1511 = vmatmul.mubr.f32.gmra.mxu0 %v1389
    %v1512 = vpop.f32.mrf.mxu0
    %v1513 = vadd.f32 0.0, %v1512
    %v1514 = vpop.f32.mrf.mxu0
    %1515 = vmatprep.mubr.f32.mxu0 0.0
    %1516 = vmatmul.mubr.f32.gmra.mxu0 %v1392
    %v1517 = vpop.f32.mrf.mxu0
    %v1518 = vadd.f32 0.0, %v1517
    %v1519 = vpop.f32.mrf.mxu0
    %1520 = vmatprep.mubr.f32.mxu0 0.0
    %1521 = vmatmul.mubr.f32.gmra.mxu0 %v1395
    %v1522 = vpop.f32.mrf.mxu0
    %v1523 = vadd.f32 0.0, %v1522
    %v1524 = vpop.f32.mrf.mxu0
    %1525 = vmatprep.mubr.f32.mxu0 0.0
    %1526 = vmatmul.mubr.f32.gmra.mxu0 %v1398
    %v1527 = vpop.f32.mrf.mxu0
    %v1528 = vadd.f32 0.0, %v1527
    %v1529 = vpop.f32.mrf.mxu0
    %1530 = vmatprep.mubr.f32.mxu0 0.0
    %1531 = vmatmul.mubr.f32.gmra.mxu0 %v1401
    %v1532 = vpop.f32.mrf.mxu0
    %v1533 = vadd.f32 0.0, %v1532
    %v1534 = vpop.f32.mrf.mxu0
    %1535 = vmatprep.mubr.f32.mxu0 0.0
    %1536 = vmatmul.mubr.f32.gmra.mxu0 %v1404
    %v1537 = vpop.f32.mrf.mxu0
    %v1538 = vadd.f32 0.0, %v1537
    %v1539 = vpop.f32.mrf.mxu0
    %1540 = vmatprep.mubr.f32.mxu0 0.0
    %1541 = vmatmul.mubr.f32.gmra.mxu0 %v1407
    %v1542 = vpop.f32.mrf.mxu0
    %v1543 = vadd.f32 0.0, %v1542
    %v1544 = vpop.f32.mrf.mxu0
    %1545 = vmatprep.mubr.f32.mxu0 0.0
    %1546 = vmatmul.mubr.f32.gmra.mxu0 %v1410
    %v1547 = vpop.f32.mrf.mxu0
    %v1548 = vadd.f32 0.0, %v1547
    %v1549 = vpop.f32.mrf.mxu0
    %1550 = vmatprep.mubr.f32.mxu0 0.0
    %1551 = vmatmul.mubr.f32.gmra.mxu0 %v1413
    %v1552 = vpop.f32.mrf.mxu0
    %v1553 = vadd.f32 0.0, %v1552
    %v1554 = vpop.f32.mrf.mxu0
    %1555 = vmatprep.mubr.f32.mxu0 0.0
    %1556 = vmatmul.mubr.f32.gmra.mxu0 %v1416
    %v1557 = vpop.f32.mrf.mxu0
    %v1558 = vadd.f32 0.0, %v1557
    %v1559 = vpop.f32.mrf.mxu0
    %1560 = vmatprep.mubr.f32.mxu0 0.0
    %1561 = vmatmul.mubr.f32.gmra.mxu0 %v1419
    %v1562 = vpop.f32.mrf.mxu0
    %v1563 = vadd.f32 0.0, %v1562
    %v1564 = vpop.f32.mrf.mxu0
    %1565 = vdwg.mxu0
    %v1566 = vadd.f32 %v1338, %v1488
    %v1567 = vadd.f32 %v1339, %v1493
    %v1568 = vadd.f32 %v1340, %v1498
    %v1569 = vadd.f32 %v1341, %v1503
    %v1570 = vadd.f32 %v1342, %v1508
    %v1571 = vadd.f32 %v1343, %v1513
    %v1572 = vadd.f32 %v1344, %v1518
    %v1573 = vadd.f32 %v1345, %v1523
    %v1574 = vadd.f32 %v1346, %v1528
    %v1575 = vadd.f32 %v1347, %v1533
    %v1576 = vadd.f32 %v1348, %v1538
    %v1577 = vadd.f32 %v1349, %v1543
    %v1578 = vadd.f32 %v1350, %v1548
    %v1579 = vadd.f32 %v1351, %v1553
    %v1580 = vadd.f32 %v1352, %v1558
    %v1581 = vadd.f32 %v1353, %v1563
    %s1582 = scalar_lea.vmem %s0, 304
    %v1583 = vld [vmem:[%s1582] sm:$0xff]
    %v1584 = vld [vmem:[%s1582 + $0x10] sm:$0xff]
    %v1585 = vld [vmem:[%s1582 + $0x20] sm:$0xff]
    %v1586 = vld [vmem:[%s1582 + $0x30] sm:$0xff]
    %v1587 = vld [vmem:[%s1582 + $0x40] sm:$0xff]
    %v1588 = vld [vmem:[%s1582 + $0x50] sm:$0xff]
    %v1589 = vld [vmem:[%s1582 + $0x60] sm:$0xff]
    %v1590 = vld [vmem:[%s1582 + $0x70] sm:$0xff]
    %v1591 = vld [vmem:[%s1582 + $0x90] sm:$0xff]
    %v1592 = vld [vmem:[%s1582 + $0xa0] sm:$0xff]
    %v1593 = vld [vmem:[%s1582 + $0xb0] sm:$0xff]
    %v1594 = vld [vmem:[%s1582 + $0xc0] sm:$0xff]
    %v1595 = vld [vmem:[%s1582 + $0xd0] sm:$0xff]
    %v1596 = vld [vmem:[%s1582 + $0xe0] sm:$0xff]
    %v1597 = vld [vmem:[%s1582 + $0xf0] sm:$0xff]
    %v1598 = vld [vmem:[%s1582 + $0x100] sm:$0xff]
    %s1599 = scalar_lea.vmem %s1, 56
    %v1600 = vld [vmem:[%s1599] sm:$0xff]
    %v1602 = vsel %vm57, %v1583, 0
    %v1605 = vsel %vm57, %v1584, 0
    %v1608 = vsel %vm57, %v1585, 0
    %v1611 = vsel %vm57, %v1586, 0
    %v1614 = vsel %vm57, %v1587, 0
    %v1617 = vsel %vm57, %v1588, 0
    %v1620 = vsel %vm57, %v1589, 0
    %v1623 = vsel %vm57, %v1590, 0
    %v1626 = vsel %vm57, %v1591, 0
    %v1629 = vsel %vm57, %v1592, 0
    %v1632 = vsel %vm57, %v1593, 0
    %v1635 = vsel %vm57, %v1594, 0
    %v1638 = vsel %vm57, %v1595, 0
    %v1641 = vsel %vm57, %v1596, 0
    %v1644 = vsel %vm57, %v1597, 0
    %v1647 = vsel %vm57, %v1598, 0
    %1649 = vmatprep.subr.mxu0 0.0
    %1650 = vmatpush1.msra.mxu0 0.0
    %1651 = vmatprep.subr.mxu0 0.0
    %1652 = vmatpush1.msra.mxu0 0.0
    %1653 = vmatprep.subr.mxu0 0.0
    %1654 = vmatpush1.msra.mxu0 0.0
    %1655 = vmatprep.subr.mxu0 0.0
    %1656 = vmatpush1.msra.mxu0 0.0
    %1657 = vmatprep.subr.mxu0 0.0
    %1658 = vmatpush1.msra.mxu0 0.0
    %1659 = vmatprep.subr.mxu0 0.0
    %1660 = vmatpush1.msra.mxu0 0.0
    %1661 = vmatprep.subr.mxu0 0.0
    %1662 = vmatpush1.msra.mxu0 0.0
    %1663 = vmatprep.subr.mxu0 0.0
    %1664 = vmatpush1.msra.mxu0 0.0
    %1665 = vmatprep.subr.mxu0 0.0
    %1666 = vmatpush1.msra.mxu0 0.0
    %1667 = vmatprep.subr.mxu0 0.0
    %1668 = vmatpush1.msra.mxu0 0.0
    %1669 = vmatprep.subr.mxu0 0.0
    %1670 = vmatpush1.msra.mxu0 0.0
    %1671 = vmatprep.subr.mxu0 0.0
    %1672 = vmatpush1.msra.mxu0 0.0
    %1673 = vmatprep.subr.mxu0 0.0
    %1674 = vmatpush1.msra.mxu0 0.0
    %1675 = vmatprep.subr.mxu0 0.0
    %1676 = vmatpush1.msra.mxu0 0.0
    %1677 = vmatprep.subr.mxu0 0.0
    %1678 = vmatpush1.msra.mxu0 0.0
    %1679 = vmatprep.subr.mxu0 0.0
    %1680 = vmatpush1.msra.mxu0 %v1600
    %1681 = vmatprep.subr.mxu0 0.0
    %1682 = vmatpush2.msra.mxu0 0.0
    %1683 = vmatprep.subr.mxu0 0.0
    %1684 = vmatpush2.msra.mxu0 0.0
    %1685 = vmatprep.subr.mxu0 0.0
    %1686 = vmatpush2.msra.mxu0 0.0
    %1687 = vmatprep.subr.mxu0 0.0
    %1688 = vmatpush2.msra.mxu0 0.0
    %1689 = vmatprep.subr.mxu0 0.0
    %1690 = vmatpush2.msra.mxu0 0.0
    %1691 = vmatprep.subr.mxu0 0.0
    %1692 = vmatpush2.msra.mxu0 0.0
    %1693 = vmatprep.subr.mxu0 0.0
    %1694 = vmatpush2.msra.mxu0 0.0
    %1695 = vmatprep.subr.mxu0 0.0
    %1696 = vmatpush2.msra.mxu0 0.0
    %1697 = vmatprep.subr.mxu0 0.0
    %1698 = vmatpush2.msra.mxu0 0.0
    %1699 = vmatprep.subr.mxu0 0.0
    %1700 = vmatpush2.msra.mxu0 0.0
    %1701 = vmatprep.subr.mxu0 0.0
    %1702 = vmatpush2.msra.mxu0 0.0
    %1703 = vmatprep.subr.mxu0 0.0
    %1704 = vmatpush2.msra.mxu0 0.0
    %1705 = vmatprep.subr.mxu0 0.0
    %1706 = vmatpush2.msra.mxu0 0.0
    %1707 = vmatprep.subr.mxu0 0.0
    %1708 = vmatpush2.msra.mxu0 0.0
    %1709 = vmatprep.subr.mxu0 0.0
    %1710 = vmatpush2.msra.mxu0 0.0
    %1711 = vmatprep.subr.mxu0 0.0
    %1712 = vmatpush2.msra.mxu0 0.0
    %1713 = vmatprep.mubr.f32.mxu0 0.0
    %1714 = vmatmul.mubr.f32.gmra.mxu0 %v1602
    %v1715 = vpop.f32.mrf.mxu0
    %v1716 = vadd.f32 0.0, %v1715
    %v1717 = vpop.f32.mrf.mxu0
    %1718 = vmatprep.mubr.f32.mxu0 0.0
    %1719 = vmatmul.mubr.f32.gmra.mxu0 %v1605
    %v1720 = vpop.f32.mrf.mxu0
    %v1721 = vadd.f32 0.0, %v1720
    %v1722 = vpop.f32.mrf.mxu0
    %1723 = vmatprep.mubr.f32.mxu0 0.0
    %1724 = vmatmul.mubr.f32.gmra.mxu0 %v1608
    %v1725 = vpop.f32.mrf.mxu0
    %v1726 = vadd.f32 0.0, %v1725
    %v1727 = vpop.f32.mrf.mxu0
    %1728 = vmatprep.mubr.f32.mxu0 0.0
    %1729 = vmatmul.mubr.f32.gmra.mxu0 %v1611
    %v1730 = vpop.f32.mrf.mxu0
    %v1731 = vadd.f32 0.0, %v1730
    %v1732 = vpop.f32.mrf.mxu0
    %1733 = vmatprep.mubr.f32.mxu0 0.0
    %1734 = vmatmul.mubr.f32.gmra.mxu0 %v1614
    %v1735 = vpop.f32.mrf.mxu0
    %v1736 = vadd.f32 0.0, %v1735
    %v1737 = vpop.f32.mrf.mxu0
    %1738 = vmatprep.mubr.f32.mxu0 0.0
    %1739 = vmatmul.mubr.f32.gmra.mxu0 %v1617
    %v1740 = vpop.f32.mrf.mxu0
    %v1741 = vadd.f32 0.0, %v1740
    %v1742 = vpop.f32.mrf.mxu0
    %1743 = vmatprep.mubr.f32.mxu0 0.0
    %1744 = vmatmul.mubr.f32.gmra.mxu0 %v1620
    %v1745 = vpop.f32.mrf.mxu0
    %v1746 = vadd.f32 0.0, %v1745
    %v1747 = vpop.f32.mrf.mxu0
    %1748 = vmatprep.mubr.f32.mxu0 0.0
    %1749 = vmatmul.mubr.f32.gmra.mxu0 %v1623
    %v1750 = vpop.f32.mrf.mxu0
    %v1751 = vadd.f32 0.0, %v1750
    %v1752 = vpop.f32.mrf.mxu0
    %1753 = vmatprep.mubr.f32.mxu0 0.0
    %1754 = vmatmul.mubr.f32.gmra.mxu0 %v1626
    %v1755 = vpop.f32.mrf.mxu0
    %v1756 = vadd.f32 0.0, %v1755
    %v1757 = vpop.f32.mrf.mxu0
    %1758 = vmatprep.mubr.f32.mxu0 0.0
    %1759 = vmatmul.mubr.f32.gmra.mxu0 %v1629
    %v1760 = vpop.f32.mrf.mxu0
    %v1761 = vadd.f32 0.0, %v1760
    %v1762 = vpop.f32.mrf.mxu0
    %1763 = vmatprep.mubr.f32.mxu0 0.0
    %1764 = vmatmul.mubr.f32.gmra.mxu0 %v1632
    %v1765 = vpop.f32.mrf.mxu0
    %v1766 = vadd.f32 0.0, %v1765
    %v1767 = vpop.f32.mrf.mxu0
    %1768 = vmatprep.mubr.f32.mxu0 0.0
    %1769 = vmatmul.mubr.f32.gmra.mxu0 %v1635
    %v1770 = vpop.f32.mrf.mxu0
    %v1771 = vadd.f32 0.0, %v1770
    %v1772 = vpop.f32.mrf.mxu0
    %1773 = vmatprep.mubr.f32.mxu0 0.0
    %1774 = vmatmul.mubr.f32.gmra.mxu0 %v1638
    %v1775 = vpop.f32.mrf.mxu0
    %v1776 = vadd.f32 0.0, %v1775
    %v1777 = vpop.f32.mrf.mxu0
    %1778 = vmatprep.mubr.f32.mxu0 0.0
    %1779 = vmatmul.mubr.f32.gmra.mxu0 %v1641
    %v1780 = vpop.f32.mrf.mxu0
    %v1781 = vadd.f32 0.0, %v1780
    %v1782 = vpop.f32.mrf.mxu0
    %1783 = vmatprep.mubr.f32.mxu0 0.0
    %1784 = vmatmul.mubr.f32.gmra.mxu0 %v1644
    %v1785 = vpop.f32.mrf.mxu0
    %v1786 = vadd.f32 0.0, %v1785
    %v1787 = vpop.f32.mrf.mxu0
    %1788 = vmatprep.mubr.f32.mxu0 0.0
    %1789 = vmatmul.mubr.f32.gmra.mxu0 %v1647
    %v1790 = vpop.f32.mrf.mxu0
    %v1791 = vadd.f32 0.0, %v1790
    %v1792 = vpop.f32.mrf.mxu0
    %1793 = vdwg.mxu0
    %v1794 = vadd.f32 %v1566, %v1716
    %v1795 = vadd.f32 %v1567, %v1721
    %v1796 = vadd.f32 %v1568, %v1726
    %v1797 = vadd.f32 %v1569, %v1731
    %v1798 = vadd.f32 %v1570, %v1736
    %v1799 = vadd.f32 %v1571, %v1741
    %v1800 = vadd.f32 %v1572, %v1746
    %v1801 = vadd.f32 %v1573, %v1751
    %v1802 = vadd.f32 %v1574, %v1756
    %v1803 = vadd.f32 %v1575, %v1761
    %v1804 = vadd.f32 %v1576, %v1766
    %v1805 = vadd.f32 %v1577, %v1771
    %v1806 = vadd.f32 %v1578, %v1776
    %v1807 = vadd.f32 %v1579, %v1781
    %v1808 = vadd.f32 %v1580, %v1786
    %v1809 = vadd.f32 %v1581, %v1791
    %v1810 = vld [vmem:[%s1354 + $0x1] sm:$0xff]
    %v1811 = vld [vmem:[%s1354 + $0x11] sm:$0xff]
    %v1812 = vld [vmem:[%s1354 + $0x21] sm:$0xff]
    %v1813 = vld [vmem:[%s1354 + $0x31] sm:$0xff]
    %v1814 = vld [vmem:[%s1354 + $0x41] sm:$0xff]
    %v1815 = vld [vmem:[%s1354 + $0x51] sm:$0xff]
    %v1816 = vld [vmem:[%s1354 + $0x61] sm:$0xff]
    %v1817 = vld [vmem:[%s1354 + $0x71] sm:$0xff]
    %v1818 = vld [vmem:[%s1354 + $0x91] sm:$0xff]
    %v1819 = vld [vmem:[%s1354 + $0xa1] sm:$0xff]
    %v1820 = vld [vmem:[%s1354 + $0xb1] sm:$0xff]
    %v1821 = vld [vmem:[%s1354 + $0xc1] sm:$0xff]
    %v1822 = vld [vmem:[%s1354 + $0xd1] sm:$0xff]
    %v1823 = vld [vmem:[%s1354 + $0xe1] sm:$0xff]
    %v1824 = vld [vmem:[%s1354 + $0xf1] sm:$0xff]
    %v1825 = vld [vmem:[%s1354 + $0x101] sm:$0xff]
    %s1826 = scalar_lea.vmem %s1, 64
    %v1827 = vld [vmem:[%s1826] sm:$0xff]
    %v1829 = vsel %vm57, %v1810, 0
    %v1832 = vsel %vm57, %v1811, 0
    %v1835 = vsel %vm57, %v1812, 0
    %v1838 = vsel %vm57, %v1813, 0
    %v1841 = vsel %vm57, %v1814, 0
    %v1844 = vsel %vm57, %v1815, 0
    %v1847 = vsel %vm57, %v1816, 0
    %v1850 = vsel %vm57, %v1817, 0
    %v1853 = vsel %vm57, %v1818, 0
    %v1856 = vsel %vm57, %v1819, 0
    %v1859 = vsel %vm57, %v1820, 0
    %v1862 = vsel %vm57, %v1821, 0
    %v1865 = vsel %vm57, %v1822, 0
    %v1868 = vsel %vm57, %v1823, 0
    %v1871 = vsel %vm57, %v1824, 0
    %v1874 = vsel %vm57, %v1825, 0
    %1876 = vmatprep.subr.mxu0 0.0
    %1877 = vmatpush1.msra.mxu0 0.0
    %1878 = vmatprep.subr.mxu0 0.0
    %1879 = vmatpush1.msra.mxu0 0.0
    %1880 = vmatprep.subr.mxu0 0.0
    %1881 = vmatpush1.msra.mxu0 0.0
    %1882 = vmatprep.subr.mxu0 0.0
    %1883 = vmatpush1.msra.mxu0 0.0
    %1884 = vmatprep.subr.mxu0 0.0
    %1885 = vmatpush1.msra.mxu0 0.0
    %1886 = vmatprep.subr.mxu0 0.0
    %1887 = vmatpush1.msra.mxu0 0.0
    %1888 = vmatprep.subr.mxu0 0.0
    %1889 = vmatpush1.msra.mxu0 0.0
    %1890 = vmatprep.subr.mxu0 0.0
    %1891 = vmatpush1.msra.mxu0 0.0
    %1892 = vmatprep.subr.mxu0 0.0
    %1893 = vmatpush1.msra.mxu0 0.0
    %1894 = vmatprep.subr.mxu0 0.0
    %1895 = vmatpush1.msra.mxu0 0.0
    %1896 = vmatprep.subr.mxu0 0.0
    %1897 = vmatpush1.msra.mxu0 0.0
    %1898 = vmatprep.subr.mxu0 0.0
    %1899 = vmatpush1.msra.mxu0 0.0
    %1900 = vmatprep.subr.mxu0 0.0
    %1901 = vmatpush1.msra.mxu0 0.0
    %1902 = vmatprep.subr.mxu0 0.0
    %1903 = vmatpush1.msra.mxu0 0.0
    %1904 = vmatprep.subr.mxu0 0.0
    %1905 = vmatpush1.msra.mxu0 0.0
    %1906 = vmatprep.subr.mxu0 0.0
    %1907 = vmatpush1.msra.mxu0 %v1827
    %1908 = vmatprep.subr.mxu0 0.0
    %1909 = vmatpush2.msra.mxu0 0.0
    %1910 = vmatprep.subr.mxu0 0.0
    %1911 = vmatpush2.msra.mxu0 0.0
    %1912 = vmatprep.subr.mxu0 0.0
    %1913 = vmatpush2.msra.mxu0 0.0
    %1914 = vmatprep.subr.mxu0 0.0
    %1915 = vmatpush2.msra.mxu0 0.0
    %1916 = vmatprep.subr.mxu0 0.0
    %1917 = vmatpush2.msra.mxu0 0.0
    %1918 = vmatprep.subr.mxu0 0.0
    %1919 = vmatpush2.msra.mxu0 0.0
    %1920 = vmatprep.subr.mxu0 0.0
    %1921 = vmatpush2.msra.mxu0 0.0
    %1922 = vmatprep.subr.mxu0 0.0
    %1923 = vmatpush2.msra.mxu0 0.0
    %1924 = vmatprep.subr.mxu0 0.0
    %1925 = vmatpush2.msra.mxu0 0.0
    %1926 = vmatprep.subr.mxu0 0.0
    %1927 = vmatpush2.msra.mxu0 0.0
    %1928 = vmatprep.subr.mxu0 0.0
    %1929 = vmatpush2.msra.mxu0 0.0
    %1930 = vmatprep.subr.mxu0 0.0
    %1931 = vmatpush2.msra.mxu0 0.0
    %1932 = vmatprep.subr.mxu0 0.0
    %1933 = vmatpush2.msra.mxu0 0.0
    %1934 = vmatprep.subr.mxu0 0.0
    %1935 = vmatpush2.msra.mxu0 0.0
    %1936 = vmatprep.subr.mxu0 0.0
    %1937 = vmatpush2.msra.mxu0 0.0
    %1938 = vmatprep.subr.mxu0 0.0
    %1939 = vmatpush2.msra.mxu0 0.0
    %1940 = vmatprep.mubr.f32.mxu0 0.0
    %1941 = vmatmul.mubr.f32.gmra.mxu0 %v1829
    %v1942 = vpop.f32.mrf.mxu0
    %v1943 = vadd.f32 0.0, %v1942
    %v1944 = vpop.f32.mrf.mxu0
    %1945 = vmatprep.mubr.f32.mxu0 0.0
    %1946 = vmatmul.mubr.f32.gmra.mxu0 %v1832
    %v1947 = vpop.f32.mrf.mxu0
    %v1948 = vadd.f32 0.0, %v1947
    %v1949 = vpop.f32.mrf.mxu0
    %1950 = vmatprep.mubr.f32.mxu0 0.0
    %1951 = vmatmul.mubr.f32.gmra.mxu0 %v1835
    %v1952 = vpop.f32.mrf.mxu0
    %v1953 = vadd.f32 0.0, %v1952
    %v1954 = vpop.f32.mrf.mxu0
    %1955 = vmatprep.mubr.f32.mxu0 0.0
    %1956 = vmatmul.mubr.f32.gmra.mxu0 %v1838
    %v1957 = vpop.f32.mrf.mxu0
    %v1958 = vadd.f32 0.0, %v1957
    %v1959 = vpop.f32.mrf.mxu0
    %1960 = vmatprep.mubr.f32.mxu0 0.0
    %1961 = vmatmul.mubr.f32.gmra.mxu0 %v1841
    %v1962 = vpop.f32.mrf.mxu0
    %v1963 = vadd.f32 0.0, %v1962
    %v1964 = vpop.f32.mrf.mxu0
    %1965 = vmatprep.mubr.f32.mxu0 0.0
    %1966 = vmatmul.mubr.f32.gmra.mxu0 %v1844
    %v1967 = vpop.f32.mrf.mxu0
    %v1968 = vadd.f32 0.0, %v1967
    %v1969 = vpop.f32.mrf.mxu0
    %1970 = vmatprep.mubr.f32.mxu0 0.0
    %1971 = vmatmul.mubr.f32.gmra.mxu0 %v1847
    %v1972 = vpop.f32.mrf.mxu0
    %v1973 = vadd.f32 0.0, %v1972
    %v1974 = vpop.f32.mrf.mxu0
    %1975 = vmatprep.mubr.f32.mxu0 0.0
    %1976 = vmatmul.mubr.f32.gmra.mxu0 %v1850
    %v1977 = vpop.f32.mrf.mxu0
    %v1978 = vadd.f32 0.0, %v1977
    %v1979 = vpop.f32.mrf.mxu0
    %1980 = vmatprep.mubr.f32.mxu0 0.0
    %1981 = vmatmul.mubr.f32.gmra.mxu0 %v1853
    %v1982 = vpop.f32.mrf.mxu0
    %v1983 = vadd.f32 0.0, %v1982
    %v1984 = vpop.f32.mrf.mxu0
    %1985 = vmatprep.mubr.f32.mxu0 0.0
    %1986 = vmatmul.mubr.f32.gmra.mxu0 %v1856
    %v1987 = vpop.f32.mrf.mxu0
    %v1988 = vadd.f32 0.0, %v1987
    %v1989 = vpop.f32.mrf.mxu0
    %1990 = vmatprep.mubr.f32.mxu0 0.0
    %1991 = vmatmul.mubr.f32.gmra.mxu0 %v1859
    %v1992 = vpop.f32.mrf.mxu0
    %v1993 = vadd.f32 0.0, %v1992
    %v1994 = vpop.f32.mrf.mxu0
    %1995 = vmatprep.mubr.f32.mxu0 0.0
    %1996 = vmatmul.mubr.f32.gmra.mxu0 %v1862
    %v1997 = vpop.f32.mrf.mxu0
    %v1998 = vadd.f32 0.0, %v1997
    %v1999 = vpop.f32.mrf.mxu0
    %2000 = vmatprep.mubr.f32.mxu0 0.0
    %2001 = vmatmul.mubr.f32.gmra.mxu0 %v1865
    %v2002 = vpop.f32.mrf.mxu0
    %v2003 = vadd.f32 0.0, %v2002
    %v2004 = vpop.f32.mrf.mxu0
    %2005 = vmatprep.mubr.f32.mxu0 0.0
    %2006 = vmatmul.mubr.f32.gmra.mxu0 %v1868
    %v2007 = vpop.f32.mrf.mxu0
    %v2008 = vadd.f32 0.0, %v2007
    %v2009 = vpop.f32.mrf.mxu0
    %2010 = vmatprep.mubr.f32.mxu0 0.0
    %2011 = vmatmul.mubr.f32.gmra.mxu0 %v1871
    %v2012 = vpop.f32.mrf.mxu0
    %v2013 = vadd.f32 0.0, %v2012
    %v2014 = vpop.f32.mrf.mxu0
    %2015 = vmatprep.mubr.f32.mxu0 0.0
    %2016 = vmatmul.mubr.f32.gmra.mxu0 %v1874
    %v2017 = vpop.f32.mrf.mxu0
    %v2018 = vadd.f32 0.0, %v2017
    %v2019 = vpop.f32.mrf.mxu0
    %2020 = vdwg.mxu0
    %v2021 = vadd.f32 %v1794, %v1943
    %v2022 = vadd.f32 %v1795, %v1948
    %v2023 = vadd.f32 %v1796, %v1953
    %v2024 = vadd.f32 %v1797, %v1958
    %v2025 = vadd.f32 %v1798, %v1963
    %v2026 = vadd.f32 %v1799, %v1968
    %v2027 = vadd.f32 %v1800, %v1973
    %v2028 = vadd.f32 %v1801, %v1978
    %v2029 = vadd.f32 %v1802, %v1983
    %v2030 = vadd.f32 %v1803, %v1988
    %v2031 = vadd.f32 %v1804, %v1993
    %v2032 = vadd.f32 %v1805, %v1998
    %v2033 = vadd.f32 %v1806, %v2003
    %v2034 = vadd.f32 %v1807, %v2008
    %v2035 = vadd.f32 %v1808, %v2013
    %v2036 = vadd.f32 %v1809, %v2018
    %v2037 = vld [vmem:[%s2] sm:$0x1]
    %v2039 = vlaneseq
    %v2040 = vshrl.u32 %v2039, 7
    %v2041 = vsub.s32 0, %v2040
    %v2042 = vrot.slane %v2037, %v2041
    %v2044 = vadd.f32 %v2021, %v2042
    %v2045 = vadd.f32 %v2022, %v2042
    %v2046 = vadd.f32 %v2023, %v2042
    %v2047 = vadd.f32 %v2024, %v2042
    %v2048 = vadd.f32 %v2025, %v2042
    %v2049 = vadd.f32 %v2026, %v2042
    %v2050 = vadd.f32 %v2027, %v2042
    %v2051 = vadd.f32 %v2028, %v2042
    %v2052 = vadd.f32 %v2029, %v2042
    %v2053 = vadd.f32 %v2030, %v2042
    %v2054 = vadd.f32 %v2031, %v2042
    %v2055 = vadd.f32 %v2032, %v2042
    %v2056 = vadd.f32 %v2033, %v2042
    %v2057 = vadd.f32 %v2034, %v2042
    %v2058 = vadd.f32 %v2035, %v2042
    %v2059 = vadd.f32 %v2036, %v2042
    %v2060 = vmax.f32 %v2044, 0.0
    %v2061 = vmax.f32 %v2045, 0.0
    %v2062 = vmax.f32 %v2046, 0.0
    %v2063 = vmax.f32 %v2047, 0.0
    %v2064 = vmax.f32 %v2048, 0.0
    %v2065 = vmax.f32 %v2049, 0.0
    %v2066 = vmax.f32 %v2050, 0.0
    %v2067 = vmax.f32 %v2051, 0.0
    %v2068 = vmax.f32 %v2052, 0.0
    %v2069 = vmax.f32 %v2053, 0.0
    %v2070 = vmax.f32 %v2054, 0.0
    %v2071 = vmax.f32 %v2055, 0.0
    %v2072 = vmax.f32 %v2056, 0.0
    %v2073 = vmax.f32 %v2057, 0.0
    %v2074 = vmax.f32 %v2058, 0.0
    %v2075 = vmax.f32 %v2059, 0.0
    %vm2076 = vcmask 130048
    %v2077 = vsel %vm2076, %v2060, 0.0
    %v2078 = vsel %vm2076, %v2061, 0.0
    %v2079 = vadd.f32 %v2077, %v2078
    %v2080 = vsel %vm2076, %v2062, 0.0
    %v2081 = vadd.f32 %v2079, %v2080
    %v2082 = vsel %vm2076, %v2063, 0.0
    %v2083 = vadd.f32 %v2081, %v2082
    %v2084 = vsel %vm2076, %v2064, 0.0
    %v2085 = vadd.f32 %v2083, %v2084
    %v2086 = vsel %vm2076, %v2065, 0.0
    %v2087 = vadd.f32 %v2085, %v2086
    %v2088 = vsel %vm2076, %v2066, 0.0
    %v2089 = vadd.f32 %v2087, %v2088
    %v2090 = vsel %vm2076, %v2067, 0.0
    %v2091 = vadd.f32 %v2089, %v2090
    %v2092 = vrot.slane %v2091, 4
    %v2093 = vadd.f32 %v2091, %v2092
    %v2094 = vrot.slane %v2093, 2
    %v2095 = vadd.f32 %v2093, %v2094
    %v2096 = vrot.slane %v2095, 1
    %v2097 = vadd.f32 %v2095, %v2096
    %v2098 = vsel %vm2076, %v2068, 0.0
    %v2099 = vsel %vm2076, %v2069, 0.0
    %v2100 = vadd.f32 %v2098, %v2099
    %v2101 = vsel %vm2076, %v2070, 0.0
    %v2102 = vadd.f32 %v2100, %v2101
    %v2103 = vsel %vm2076, %v2071, 0.0
    %v2104 = vadd.f32 %v2102, %v2103
    %v2105 = vsel %vm2076, %v2072, 0.0
    %v2106 = vadd.f32 %v2104, %v2105
    %v2107 = vsel %vm2076, %v2073, 0.0
    %v2108 = vadd.f32 %v2106, %v2107
    %v2109 = vsel %vm2076, %v2074, 0.0
    %v2110 = vadd.f32 %v2108, %v2109
    %v2111 = vsel %vm2076, %v2075, 0.0
    %v2112 = vadd.f32 %v2110, %v2111
    %v2113 = vrot.slane %v2112, 4
    %v2114 = vadd.f32 %v2112, %v2113
    %v2115 = vrot.slane %v2114, 2
    %v2116 = vadd.f32 %v2114, %v2115
    %v2117 = vrot.slane %v2116, 1
    %v2118 = vadd.f32 %v2116, %v2117
    %v2119 = vrcp.pop 64.0
    %v2120 = vmul.f32 %v2097, %v2119
    %v2121 = vmul.f32 %v2118, %v2119
    %v2122 = vld [vmem:[%s3] sm:$0xff]
    %v2123 = vld [vmem:[%s3 + $0x8] sm:$0xff]
    %v2124 = vld [vmem:[%s4] sm:$0x1]
    %v2126 = vlaneseq
    %v2127 = vshrl.u32 %v2126, 7
    %v2128 = vsub.s32 0, %v2127
    %v2129 = vrot.slane %v2124, %v2128
    %vm2133 = vcmask 1041409
    %v2134 = vsel %vm2133, %v2121, %v2120
    %v2135 = vsel %vm2076, %v2134, 0
    %2137 = vmatprep.subr.mxu0 0.0
    %2138 = vmatpush1.msra.mxu0 0.0
    %2139 = vmatprep.subr.mxu0 0.0
    %2140 = vmatpush1.msra.mxu0 0.0
    %2141 = vmatprep.subr.mxu0 0.0
    %2142 = vmatpush1.msra.mxu0 0.0
    %2143 = vmatprep.subr.mxu0 0.0
    %2144 = vmatpush1.msra.mxu0 0.0
    %2145 = vmatprep.subr.mxu0 0.0
    %2146 = vmatpush1.msra.mxu0 0.0
    %2147 = vmatprep.subr.mxu0 0.0
    %2148 = vmatpush1.msra.mxu0 0.0
    %2149 = vmatprep.subr.mxu0 0.0
    %2150 = vmatpush1.msra.mxu0 0.0
    %2151 = vmatprep.subr.mxu0 0.0
    %2152 = vmatpush1.msra.mxu0 0.0
    %2153 = vmatprep.subr.mxu0 0.0
    %2154 = vmatpush1.msra.mxu0 0.0
    %2155 = vmatprep.subr.mxu0 0.0
    %2156 = vmatpush1.msra.mxu0 0.0
    %2157 = vmatprep.subr.mxu0 0.0
    %2158 = vmatpush1.msra.mxu0 0.0
    %2159 = vmatprep.subr.mxu0 0.0
    %2160 = vmatpush1.msra.mxu0 0.0
    %2161 = vmatprep.subr.mxu0 0.0
    %2162 = vmatpush1.msra.mxu0 0.0
    %2163 = vmatprep.subr.mxu0 0.0
    %2164 = vmatpush1.msra.mxu0 0.0
    %2165 = vmatprep.subr.mxu0 0.0
    %2166 = vmatpush1.msra.mxu0 %v2123
    %2167 = vmatprep.subr.mxu0 0.0
    %2168 = vmatpush1.msra.mxu0 %v2122
    %2169 = vmatprep.subr.mxu0 0.0
    %2170 = vmatpush2.msra.mxu0 0.0
    %2171 = vmatprep.subr.mxu0 0.0
    %2172 = vmatpush2.msra.mxu0 0.0
    %2173 = vmatprep.subr.mxu0 0.0
    %2174 = vmatpush2.msra.mxu0 0.0
    %2175 = vmatprep.subr.mxu0 0.0
    %2176 = vmatpush2.msra.mxu0 0.0
    %2177 = vmatprep.subr.mxu0 0.0
    %2178 = vmatpush2.msra.mxu0 0.0
    %2179 = vmatprep.subr.mxu0 0.0
    %2180 = vmatpush2.msra.mxu0 0.0
    %2181 = vmatprep.subr.mxu0 0.0
    %2182 = vmatpush2.msra.mxu0 0.0
    %2183 = vmatprep.subr.mxu0 0.0
    %2184 = vmatpush2.msra.mxu0 0.0
    %2185 = vmatprep.subr.mxu0 0.0
    %2186 = vmatpush2.msra.mxu0 0.0
    %2187 = vmatprep.subr.mxu0 0.0
    %2188 = vmatpush2.msra.mxu0 0.0
    %2189 = vmatprep.subr.mxu0 0.0
    %2190 = vmatpush2.msra.mxu0 0.0
    %2191 = vmatprep.subr.mxu0 0.0
    %2192 = vmatpush2.msra.mxu0 0.0
    %2193 = vmatprep.subr.mxu0 0.0
    %2194 = vmatpush2.msra.mxu0 0.0
    %2195 = vmatprep.subr.mxu0 0.0
    %2196 = vmatpush2.msra.mxu0 0.0
    %2197 = vmatprep.subr.mxu0 0.0
    %2198 = vmatpush2.msra.mxu0 0.0
    %2199 = vmatprep.subr.mxu0 0.0
    %2200 = vmatpush2.msra.mxu0 0.0
    %2201 = vmatprep.mubr.f32.mxu0 0.0
    %2202 = vmatmul.mubr.f32.gmra.mxu0 %v2135
    %v2203 = vpop.f32.mrf.mxu0
    %v2204 = vadd.f32 %v2129, %v2203
    %v2205 = vpop.f32.mrf.mxu0
    %2206 = vdwg.mxu0
    %vm2207 = vcmask 74752
    %2208 = vst.msk [vmem:[#allocation2] sm:$0x3] %vm2207, %v2204
    // Predicated region
    $region22: #{classifier_feature_forward.3} parent=1 // pred_check
      _
    $region23: #{classifier_feature_forward.3} parent=1 // pred_check_branch
      %2210 = sbr.rel (0) target = $region25
    $region24: #{classifier_feature_forward.3} parent=1 // pred_region
      %s2212 = ssub.s32 32, 32
      %2213 = vsyncadd [#allocation3], %s2212
      %s2215 = sshll.u32 [#allocation2], 4
      %s2216 = int_to_ptr.vmem [resolvable:$true] %s2215
      %2218 = dma.vmem_to_hbm [thread:$0]  %s2216, 32, %s5, [#allocation3]
    $region25: #{classifier_feature_forward.3} parent=1 // pred_fallthru
      _
    // Predicated region
    $region26: #{classifier_feature_forward.3} parent=1 // pred_check
      _
    $region27: #{classifier_feature_forward.3} parent=1 // pred_check_branch
      %2220 = sbr.rel (0) target = $region29
    $region28: #{classifier_feature_forward.3} parent=1 // pred_region
      %2221 = dma.done [#allocation3], 32
    $region29: #{classifier_feature_forward.3} parent=1 // pred_fallthru
      _
    %2222 = vsyncpa [#allocation3], 1

// kernel: classifier_feature_forward.2
$region0: #{classifier_feature_forward.2}
  #allocation0 [shape = 'u32[]', space=smem, size = 0x4, offset = 0x4, fixed_abs, tag = 'smem constant byte address 0x4 - core index']
  #allocation1 [shape = 'u32[144,128]{1,0:T(1,128)}', space=vmem, size = 0x12000, scoped, tag = 'internal scratch']
  %s0 = inlined_call_operand.vmem [shape: f32[2,18,18,4], index: 0, kind: input, shape index: {}]
  %s1 = inlined_call_operand.vmem [shape: f32[9,4,8], index: 1, kind: input, shape index: {}]
  %s2 = inlined_call_operand.vmem [shape: f32[1,8], index: 2, kind: input, shape index: {}]
  %s3 = inlined_call_operand.vmem [shape: f32[2,16,16,8], index: 3, kind: output, shape index: {}]
  %s4 = sld [smem:[#allocation0]]
  $region22: #{classifier_feature_forward.2} parent=0
    _
  %s6 = ssub.s32 1, %s4
  %s7 = scalar_select 0, %s6, %s4
  // Predicated region
  $region2: #{classifier_feature_forward.2} parent=0 // pred_check
    _
  $region3: #{classifier_feature_forward.2} parent=0 // pred_check_branch
    %9 = sbr.rel (0) target = $region5
  $region4: #{classifier_feature_forward.2} parent=0 // pred_region
    _
  $region5: #{classifier_feature_forward.2} parent=0 // pred_fallthru
    _
  // Predicated region
  $region6: #{classifier_feature_forward.2} parent=0 // pred_check
    _
  $region7: #{classifier_feature_forward.2} parent=0 // pred_check_branch
    %11 = sbr.rel (0) target = $region9
  $region8: #{classifier_feature_forward.2} parent=0 // pred_region
    _
  $region9: #{classifier_feature_forward.2} parent=0 // pred_fallthru
    _
  // Predicated region
  $region10: #{classifier_feature_forward.2} parent=0 // pred_check
    _
  $region11: #{classifier_feature_forward.2} parent=0 // pred_check_branch
    %13 = sbr.rel (0) target = $region13
  $region12: #{classifier_feature_forward.2} parent=0 // pred_region
    _
  $region13: #{classifier_feature_forward.2} parent=0 // pred_fallthru
    _
  %v14 = vld [vmem:[%s0] sm:$0xff]
  %v15 = vld [vmem:[%s0 + $0x8] sm:$0xff]
  %v16 = vld [vmem:[%s0 + $0x18] sm:$0xff]
  %v17 = vld [vmem:[%s0 + $0x20] sm:$0xff]
  %v18 = vld [vmem:[%s0 + $0x30] sm:$0xff]
  %v19 = vld [vmem:[%s0 + $0x38] sm:$0xff]
  %v20 = vld [vmem:[%s0 + $0x48] sm:$0xff]
  %v21 = vld [vmem:[%s0 + $0x50] sm:$0xff]
  %v22 = vld [vmem:[%s0 + $0x60] sm:$0xff]
  %v23 = vld [vmem:[%s0 + $0x68] sm:$0xff]
  %v24 = vld [vmem:[%s0 + $0x78] sm:$0xff]
  %v25 = vld [vmem:[%s0 + $0x80] sm:$0xff]
  %v26 = vld [vmem:[%s0 + $0x90] sm:$0xff]
  %v27 = vld [vmem:[%s0 + $0x98] sm:$0xff]
  %v28 = vld [vmem:[%s0 + $0xa8] sm:$0xff]
  %v29 = vld [vmem:[%s0 + $0xb0] sm:$0xff]
  %v30 = vld [vmem:[%s0 + $0xc0] sm:$0xff]
  %v31 = vld [vmem:[%s0 + $0xc8] sm:$0xff]
  %v32 = vld [vmem:[%s0 + $0xd8] sm:$0xff]
  %v33 = vld [vmem:[%s0 + $0xe0] sm:$0xff]
  %v34 = vld [vmem:[%s0 + $0xf0] sm:$0xff]
  %v35 = vld [vmem:[%s0 + $0xf8] sm:$0xff]
  %v36 = vld [vmem:[%s0 + $0x108] sm:$0xff]
  %v37 = vld [vmem:[%s0 + $0x110] sm:$0xff]
  %v38 = vld [vmem:[%s0 + $0x120] sm:$0xff]
  %v39 = vld [vmem:[%s0 + $0x128] sm:$0xff]
  %v40 = vld [vmem:[%s0 + $0x138] sm:$0xff]
  %v41 = vld [vmem:[%s0 + $0x140] sm:$0xff]
  %v42 = vld [vmem:[%s0 + $0x150] sm:$0xff]
  %v43 = vld [vmem:[%s0 + $0x158] sm:$0xff]
  %v44 = vld [vmem:[%s0 + $0x168] sm:$0xff]
  %v45 = vld [vmem:[%s0 + $0x170] sm:$0xff]
  %v46 = vld [vmem:[%s0 + $0x1b0] sm:$0xff]
  %v47 = vld [vmem:[%s0 + $0x1b8] sm:$0xff]
  %v48 = vld [vmem:[%s0 + $0x1c8] sm:$0xff]
  %v49 = vld [vmem:[%s0 + $0x1d0] sm:$0xff]
  %v50 = vld [vmem:[%s0 + $0x1e0] sm:$0xff]
  %v51 = vld [vmem:[%s0 + $0x1e8] sm:$0xff]
  %v52 = vld [vmem:[%s0 + $0x1f8] sm:$0xff]
  %v53 = vld [vmem:[%s0 + $0x200] sm:$0xff]
  %v54 = vld [vmem:[%s0 + $0x210] sm:$0xff]
  %v55 = vld [vmem:[%s0 + $0x218] sm:$0xff]
  %v56 = vld [vmem:[%s0 + $0x228] sm:$0xff]
  %v57 = vld [vmem:[%s0 + $0x230] sm:$0xff]
  %v58 = vld [vmem:[%s0 + $0x240] sm:$0xff]
  %v59 = vld [vmem:[%s0 + $0x248] sm:$0xff]
  %v60 = vld [vmem:[%s0 + $0x258] sm:$0xff]
  %v61 = vld [vmem:[%s0 + $0x260] sm:$0xff]
  %v62 = vld [vmem:[%s0 + $0x270] sm:$0xff]
  %v63 = vld [vmem:[%s0 + $0x278] sm:$0xff]
  %v64 = vld [vmem:[%s0 + $0x288] sm:$0xff]
  %v65 = vld [vmem:[%s0 + $0x290] sm:$0xff]
  %v66 = vld [vmem:[%s0 + $0x2a0] sm:$0xff]
  %v67 = vld [vmem:[%s0 + $0x2a8] sm:$0xff]
  %v68 = vld [vmem:[%s0 + $0x2b8] sm:$0xff]
  %v69 = vld [vmem:[%s0 + $0x2c0] sm:$0xff]
  %v70 = vld [vmem:[%s0 + $0x2d0] sm:$0xff]
  %v71 = vld [vmem:[%s0 + $0x2d8] sm:$0xff]
  %v72 = vld [vmem:[%s0 + $0x2e8] sm:$0xff]
  %v73 = vld [vmem:[%s0 + $0x2f0] sm:$0xff]
  %v74 = vld [vmem:[%s0 + $0x300] sm:$0xff]
  %v75 = vld [vmem:[%s0 + $0x308] sm:$0xff]
  %v76 = vld [vmem:[%s0 + $0x318] sm:$0xff]
  %v77 = vld [vmem:[%s0 + $0x320] sm:$0xff]
  %v78 = vld [vmem:[%s1] sm:$0xf]
  %v79 = vld [vmem:[%s0 + $0x1] sm:$0xff]
  %v80 = vld [vmem:[%s0 + $0x9] sm:$0xff]
  %v81 = vld [vmem:[%s0 + $0x19] sm:$0xff]
  %v82 = vld [vmem:[%s0 + $0x21] sm:$0xff]
  %v83 = vld [vmem:[%s0 + $0x31] sm:$0xff]
  %v84 = vld [vmem:[%s0 + $0x39] sm:$0xff]
  %v85 = vld [vmem:[%s0 + $0x49] sm:$0xff]
  %v86 = vld [vmem:[%s0 + $0x51] sm:$0xff]
  %v87 = vld [vmem:[%s0 + $0x61] sm:$0xff]
  %v88 = vld [vmem:[%s0 + $0x69] sm:$0xff]
  %v89 = vld [vmem:[%s0 + $0x79] sm:$0xff]
  %v90 = vld [vmem:[%s0 + $0x81] sm:$0xff]
  %v91 = vld [vmem:[%s0 + $0x91] sm:$0xff]
  %v92 = vld [vmem:[%s0 + $0x99] sm:$0xff]
  %v93 = vld [vmem:[%s0 + $0xa9] sm:$0xff]
  %v94 = vld [vmem:[%s0 + $0xb1] sm:$0xff]
  %v95 = vld [vmem:[%s0 + $0xc1] sm:$0xff]
  %v96 = vld [vmem:[%s0 + $0xc9] sm:$0xff]
  %v97 = vld [vmem:[%s0 + $0xd9] sm:$0xff]
  %v98 = vld [vmem:[%s0 + $0xe1] sm:$0xff]
  %v99 = vld [vmem:[%s0 + $0xf1] sm:$0xff]
  %v100 = vld [vmem:[%s0 + $0xf9] sm:$0xff]
  %v101 = vld [vmem:[%s0 + $0x109] sm:$0xff]
  %v102 = vld [vmem:[%s0 + $0x111] sm:$0xff]
  %v103 = vld [vmem:[%s0 + $0x121] sm:$0xff]
  %v104 = vld [vmem:[%s0 + $0x129] sm:$0xff]
  %v105 = vld [vmem:[%s0 + $0x139] sm:$0xff]
  %v106 = vld [vmem:[%s0 + $0x141] sm:$0xff]
  %v107 = vld [vmem:[%s0 + $0x151] sm:$0xff]
  %v108 = vld [vmem:[%s0 + $0x159] sm:$0xff]
  %v109 = vld [vmem:[%s0 + $0x169] sm:$0xff]
  %v110 = vld [vmem:[%s0 + $0x171] sm:$0xff]
  %v111 = vld [vmem:[%s0 + $0x1b1] sm:$0xff]
  %v112 = vld [vmem:[%s0 + $0x1b9] sm:$0xff]
  %v113 = vld [vmem:[%s0 + $0x1c9] sm:$0xff]
  %v114 = vld [vmem:[%s0 + $0x1d1] sm:$0xff]
  %v115 = vld [vmem:[%s0 + $0x1e1] sm:$0xff]
  %v116 = vld [vmem:[%s0 + $0x1e9] sm:$0xff]
  %v117 = vld [vmem:[%s0 + $0x1f9] sm:$0xff]
  %v118 = vld [vmem:[%s0 + $0x201] sm:$0xff]
  %v119 = vld [vmem:[%s0 + $0x211] sm:$0xff]
  %v120 = vld [vmem:[%s0 + $0x219] sm:$0xff]
  %v121 = vld [vmem:[%s0 + $0x229] sm:$0xff]
  %v122 = vld [vmem:[%s0 + $0x231] sm:$0xff]
  %v123 = vld [vmem:[%s0 + $0x241] sm:$0xff]
  %v124 = vld [vmem:[%s0 + $0x249] sm:$0xff]
  %v125 = vld [vmem:[%s0 + $0x259] sm:$0xff]
  %v126 = vld [vmem:[%s0 + $0x261] sm:$0xff]
  %v127 = vld [vmem:[%s0 + $0x271] sm:$0xff]
  %v128 = vld [vmem:[%s0 + $0x279] sm:$0xff]
  %v129 = vld [vmem:[%s0 + $0x289] sm:$0xff]
  %v130 = vld [vmem:[%s0 + $0x291] sm:$0xff]
  %v131 = vld [vmem:[%s0 + $0x2a1] sm:$0xff]
  %v132 = vld [vmem:[%s0 + $0x2a9] sm:$0xff]
  %v133 = vld [vmem:[%s0 + $0x2b9] sm:$0xff]
  %v134 = vld [vmem:[%s0 + $0x2c1] sm:$0xff]
  %v135 = vld [vmem:[%s0 + $0x2d1] sm:$0xff]
  %v136 = vld [vmem:[%s0 + $0x2d9] sm:$0xff]
  %v137 = vld [vmem:[%s0 + $0x2e9] sm:$0xff]
  %v138 = vld [vmem:[%s0 + $0x2f1] sm:$0xff]
  %v139 = vld [vmem:[%s0 + $0x301] sm:$0xff]
  %v140 = vld [vmem:[%s0 + $0x309] sm:$0xff]
  %v141 = vld [vmem:[%s0 + $0x319] sm:$0xff]
  %v142 = vld [vmem:[%s0 + $0x321] sm:$0xff]
  %s143 = scalar_lea.vmem %s1, 4
  %v144 = vld [vmem:[%s143] sm:$0xf]
  %vm145 = vcmask 31744
  %v147 = vsel %vm145, %v79, 0
  %v150 = vsel %vm145, %v80, 0
  %v153 = vsel %vm145, %v81, 0
  %v156 = vsel %vm145, %v82, 0
  %v159 = vsel %vm145, %v83, 0
  %v162 = vsel %vm145, %v84, 0
  %v165 = vsel %vm145, %v85, 0
  %v168 = vsel %vm145, %v86, 0
  %v171 = vsel %vm145, %v87, 0
  %v174 = vsel %vm145, %v88, 0
  %v177 = vsel %vm145, %v89, 0
  %v180 = vsel %vm145, %v90, 0
  %v183 = vsel %vm145, %v91, 0
  %v186 = vsel %vm145, %v92, 0
  %v189 = vsel %vm145, %v93, 0
  %v192 = vsel %vm145, %v94, 0
  %v195 = vsel %vm145, %v95, 0
  %v198 = vsel %vm145, %v96, 0
  %v201 = vsel %vm145, %v97, 0
  %v204 = vsel %vm145, %v98, 0
  %v207 = vsel %vm145, %v99, 0
  %v210 = vsel %vm145, %v100, 0
  %v213 = vsel %vm145, %v101, 0
  %v216 = vsel %vm145, %v102, 0
  %v219 = vsel %vm145, %v103, 0
  %v222 = vsel %vm145, %v104, 0
  %v225 = vsel %vm145, %v105, 0
  %v228 = vsel %vm145, %v106, 0
  %v231 = vsel %vm145, %v107, 0
  %v234 = vsel %vm145, %v108, 0
  %v237 = vsel %vm145, %v109, 0
  %v240 = vsel %vm145, %v110, 0
  %v243 = vsel %vm145, %v111, 0
  %v246 = vsel %vm145, %v112, 0
  %v249 = vsel %vm145, %v113, 0
  %v252 = vsel %vm145, %v114, 0
  %v255 = vsel %vm145, %v115, 0
  %v258 = vsel %vm145, %v116, 0
  %v261 = vsel %vm145, %v117, 0
  %v264 = vsel %vm145, %v118, 0
  %v267 = vsel %vm145, %v119, 0
  %v270 = vsel %vm145, %v120, 0
  %v273 = vsel %vm145, %v121, 0
  %v276 = vsel %vm145, %v122, 0
  %v279 = vsel %vm145, %v123, 0
  %v282 = vsel %vm145, %v124, 0
  %v285 = vsel %vm145, %v125, 0
  %v288 = vsel %vm145, %v126, 0
  %v291 = vsel %vm145, %v127, 0
  %v294 = vsel %vm145, %v128, 0
  %v297 = vsel %vm145, %v129, 0
  %v300 = vsel %vm145, %v130, 0
  %v303 = vsel %vm145, %v131, 0
  %v306 = vsel %vm145, %v132, 0
  %v309 = vsel %vm145, %v133, 0
  %v312 = vsel %vm145, %v134, 0
  %v315 = vsel %vm145, %v135, 0
  %v318 = vsel %vm145, %v136, 0
  %v321 = vsel %vm145, %v137, 0
  %v324 = vsel %vm145, %v138, 0
  %v327 = vsel %vm145, %v139, 0
  %v330 = vsel %vm145, %v140, 0
  %v333 = vsel %vm145, %v141, 0
  %v336 = vsel %vm145, %v142, 0
  %vm338 = vcmask 1043456
  %v340 = vsel %vm338, %v144, 0
  %342 = vmatprep.subr.mxu0 0.0
  %343 = vmatpush1.msra.mxu0 0.0
  %344 = vmatprep.subr.mxu0 0.0
  %345 = vmatpush1.msra.mxu0 0.0
  %346 = vmatprep.subr.mxu0 0.0
  %347 = vmatpush1.msra.mxu0 0.0
  %348 = vmatprep.subr.mxu0 0.0
  %349 = vmatpush1.msra.mxu0 0.0
  %350 = vmatprep.subr.mxu0 0.0
  %351 = vmatpush1.msra.mxu0 0.0
  %352 = vmatprep.subr.mxu0 0.0
  %353 = vmatpush1.msra.mxu0 0.0
  %354 = vmatprep.subr.mxu0 0.0
  %355 = vmatpush1.msra.mxu0 0.0
  %356 = vmatprep.subr.mxu0 0.0
  %357 = vmatpush1.msra.mxu0 0.0
  %358 = vmatprep.subr.mxu0 0.0
  %359 = vmatpush1.msra.mxu0 0.0
  %360 = vmatprep.subr.mxu0 0.0
  %361 = vmatpush1.msra.mxu0 0.0
  %362 = vmatprep.subr.mxu0 0.0
  %363 = vmatpush1.msra.mxu0 0.0
  %364 = vmatprep.subr.mxu0 0.0
  %365 = vmatpush1.msra.mxu0 0.0
  %366 = vmatprep.subr.mxu0 0.0
  %367 = vmatpush1.msra.mxu0 0.0
  %368 = vmatprep.subr.mxu0 0.0
  %369 = vmatpush1.msra.mxu0 0.0
  %370 = vmatprep.subr.mxu0 0.0
  %371 = vmatpush1.msra.mxu0 0.0
  %372 = vmatprep.subr.mxu0 0.0
  %373 = vmatpush1.msra.mxu0 %v340
  %374 = vmatprep.subr.mxu0 0.0
  %375 = vmatpush2.msra.mxu0 0.0
  %376 = vmatprep.subr.mxu0 0.0
  %377 = vmatpush2.msra.mxu0 0.0
  %378 = vmatprep.subr.mxu0 0.0
  %379 = vmatpush2.msra.mxu0 0.0
  %380 = vmatprep.subr.mxu0 0.0
  %381 = vmatpush2.msra.mxu0 0.0
  %382 = vmatprep.subr.mxu0 0.0
  %383 = vmatpush2.msra.mxu0 0.0
  %384 = vmatprep.subr.mxu0 0.0
  %385 = vmatpush2.msra.mxu0 0.0
  %386 = vmatprep.subr.mxu0 0.0
  %387 = vmatpush2.msra.mxu0 0.0
  %388 = vmatprep.subr.mxu0 0.0
  %389 = vmatpush2.msra.mxu0 0.0
  %390 = vmatprep.subr.mxu0 0.0
  %391 = vmatpush2.msra.mxu0 0.0
  %392 = vmatprep.subr.mxu0 0.0
  %393 = vmatpush2.msra.mxu0 0.0
  %394 = vmatprep.subr.mxu0 0.0
  %395 = vmatpush2.msra.mxu0 0.0
  %396 = vmatprep.subr.mxu0 0.0
  %397 = vmatpush2.msra.mxu0 0.0
  %398 = vmatprep.subr.mxu0 0.0
  %399 = vmatpush2.msra.mxu0 0.0
  %400 = vmatprep.subr.mxu0 0.0
  %401 = vmatpush2.msra.mxu0 0.0
  %402 = vmatprep.subr.mxu0 0.0
  %403 = vmatpush2.msra.mxu0 0.0
  %404 = vmatprep.subr.mxu0 0.0
  %405 = vmatpush2.msra.mxu0 0.0
  %406 = vmatprep.mubr.f32.mxu0 0.0
  %407 = vmatmul.mubr.f32.gmra.mxu0 %v147
  %v408 = vpop.f32.mrf.mxu0
  %v409 = vadd.f32 0.0, %v408
  %v410 = vpop.f32.mrf.mxu0
  %411 = vmatprep.mubr.f32.mxu0 0.0
  %412 = vmatmul.mubr.f32.gmra.mxu0 %v150
  %v413 = vpop.f32.mrf.mxu0
  %v414 = vadd.f32 0.0, %v413
  %v415 = vpop.f32.mrf.mxu0
  %416 = vmatprep.mubr.f32.mxu0 0.0
  %417 = vmatmul.mubr.f32.gmra.mxu0 %v153
  %v418 = vpop.f32.mrf.mxu0
  %v419 = vadd.f32 0.0, %v418
  %v420 = vpop.f32.mrf.mxu0
  %421 = vmatprep.mubr.f32.mxu0 0.0
  %422 = vmatmul.mubr.f32.gmra.mxu0 %v156
  %v423 = vpop.f32.mrf.mxu0
  %v424 = vadd.f32 0.0, %v423
  %v425 = vpop.f32.mrf.mxu0
  %426 = vmatprep.mubr.f32.mxu0 0.0
  %427 = vmatmul.mubr.f32.gmra.mxu0 %v159
  %v428 = vpop.f32.mrf.mxu0
  %v429 = vadd.f32 0.0, %v428
  %v430 = vpop.f32.mrf.mxu0
  %431 = vmatprep.mubr.f32.mxu0 0.0
  %432 = vmatmul.mubr.f32.gmra.mxu0 %v162
  %v433 = vpop.f32.mrf.mxu0
  %v434 = vadd.f32 0.0, %v433
  %v435 = vpop.f32.mrf.mxu0
  %436 = vmatprep.mubr.f32.mxu0 0.0
  %437 = vmatmul.mubr.f32.gmra.mxu0 %v165
  %v438 = vpop.f32.mrf.mxu0
  %v439 = vadd.f32 0.0, %v438
  %v440 = vpop.f32.mrf.mxu0
  %441 = vmatprep.mubr.f32.mxu0 0.0
  %442 = vmatmul.mubr.f32.gmra.mxu0 %v168
  %v443 = vpop.f32.mrf.mxu0
  %v444 = vadd.f32 0.0, %v443
  %v445 = vpop.f32.mrf.mxu0
  %446 = vmatprep.mubr.f32.mxu0 0.0
  %447 = vmatmul.mubr.f32.gmra.mxu0 %v171
  %v448 = vpop.f32.mrf.mxu0
  %v449 = vadd.f32 0.0, %v448
  %v450 = vpop.f32.mrf.mxu0
  %451 = vmatprep.mubr.f32.mxu0 0.0
  %452 = vmatmul.mubr.f32.gmra.mxu0 %v174
  %v453 = vpop.f32.mrf.mxu0
  %v454 = vadd.f32 0.0, %v453
  %v455 = vpop.f32.mrf.mxu0
  %456 = vmatprep.mubr.f32.mxu0 0.0
  %457 = vmatmul.mubr.f32.gmra.mxu0 %v177
  %v458 = vpop.f32.mrf.mxu0
  %v459 = vadd.f32 0.0, %v458
  %v460 = vpop.f32.mrf.mxu0
  %461 = vmatprep.mubr.f32.mxu0 0.0
  %462 = vmatmul.mubr.f32.gmra.mxu0 %v180
  %v463 = vpop.f32.mrf.mxu0
  %v464 = vadd.f32 0.0, %v463
  %v465 = vpop.f32.mrf.mxu0
  %466 = vmatprep.mubr.f32.mxu0 0.0
  %467 = vmatmul.mubr.f32.gmra.mxu0 %v183
  %v468 = vpop.f32.mrf.mxu0
  %v469 = vadd.f32 0.0, %v468
  %v470 = vpop.f32.mrf.mxu0
  %471 = vmatprep.mubr.f32.mxu0 0.0
  %472 = vmatmul.mubr.f32.gmra.mxu0 %v186
  %v473 = vpop.f32.mrf.mxu0
  %v474 = vadd.f32 0.0, %v473
  %v475 = vpop.f32.mrf.mxu0
  %476 = vmatprep.mubr.f32.mxu0 0.0
  %477 = vmatmul.mubr.f32.gmra.mxu0 %v189
  %v478 = vpop.f32.mrf.mxu0
  %v479 = vadd.f32 0.0, %v478
  %v480 = vpop.f32.mrf.mxu0
  %481 = vmatprep.mubr.f32.mxu0 0.0
  %482 = vmatmul.mubr.f32.gmra.mxu0 %v192
  %v483 = vpop.f32.mrf.mxu0
  %v484 = vadd.f32 0.0, %v483
  %v485 = vpop.f32.mrf.mxu0
  %486 = vmatprep.mubr.f32.mxu0 0.0
  %487 = vmatmul.mubr.f32.gmra.mxu0 %v195
  %v488 = vpop.f32.mrf.mxu0
  %v489 = vadd.f32 0.0, %v488
  %v490 = vpop.f32.mrf.mxu0
  %491 = vmatprep.mubr.f32.mxu0 0.0
  %492 = vmatmul.mubr.f32.gmra.mxu0 %v198
  %v493 = vpop.f32.mrf.mxu0
  %v494 = vadd.f32 0.0, %v493
  %v495 = vpop.f32.mrf.mxu0
  %496 = vmatprep.mubr.f32.mxu0 0.0
  %497 = vmatmul.mubr.f32.gmra.mxu0 %v201
  %v498 = vpop.f32.mrf.mxu0
  %v499 = vadd.f32 0.0, %v498
  %v500 = vpop.f32.mrf.mxu0
  %501 = vmatprep.mubr.f32.mxu0 0.0
  %502 = vmatmul.mubr.f32.gmra.mxu0 %v204
  %v503 = vpop.f32.mrf.mxu0
  %v504 = vadd.f32 0.0, %v503
  %v505 = vpop.f32.mrf.mxu0
  %506 = vmatprep.mubr.f32.mxu0 0.0
  %507 = vmatmul.mubr.f32.gmra.mxu0 %v207
  %v508 = vpop.f32.mrf.mxu0
  %v509 = vadd.f32 0.0, %v508
  %v510 = vpop.f32.mrf.mxu0
  %511 = vmatprep.mubr.f32.mxu0 0.0
  %512 = vmatmul.mubr.f32.gmra.mxu0 %v210
  %v513 = vpop.f32.mrf.mxu0
  %v514 = vadd.f32 0.0, %v513
  %v515 = vpop.f32.mrf.mxu0
  %516 = vmatprep.mubr.f32.mxu0 0.0
  %517 = vmatmul.mubr.f32.gmra.mxu0 %v213
  %v518 = vpop.f32.mrf.mxu0
  %v519 = vadd.f32 0.0, %v518
  %v520 = vpop.f32.mrf.mxu0
  %521 = vmatprep.mubr.f32.mxu0 0.0
  %522 = vmatmul.mubr.f32.gmra.mxu0 %v216
  %v523 = vpop.f32.mrf.mxu0
  %v524 = vadd.f32 0.0, %v523
  %v525 = vpop.f32.mrf.mxu0
  %526 = vmatprep.mubr.f32.mxu0 0.0
  %527 = vmatmul.mubr.f32.gmra.mxu0 %v219
  %v528 = vpop.f32.mrf.mxu0
  %v529 = vadd.f32 0.0, %v528
  %v530 = vpop.f32.mrf.mxu0
  %531 = vmatprep.mubr.f32.mxu0 0.0
  %532 = vmatmul.mubr.f32.gmra.mxu0 %v222
  %v533 = vpop.f32.mrf.mxu0
  %v534 = vadd.f32 0.0, %v533
  %v535 = vpop.f32.mrf.mxu0
  %536 = vmatprep.mubr.f32.mxu0 0.0
  %537 = vmatmul.mubr.f32.gmra.mxu0 %v225
  %v538 = vpop.f32.mrf.mxu0
  %v539 = vadd.f32 0.0, %v538
  %v540 = vpop.f32.mrf.mxu0
  %541 = vmatprep.mubr.f32.mxu0 0.0
  %542 = vmatmul.mubr.f32.gmra.mxu0 %v228
  %v543 = vpop.f32.mrf.mxu0
  %v544 = vadd.f32 0.0, %v543
  %v545 = vpop.f32.mrf.mxu0
  %546 = vmatprep.mubr.f32.mxu0 0.0
  %547 = vmatmul.mubr.f32.gmra.mxu0 %v231
  %v548 = vpop.f32.mrf.mxu0
  %v549 = vadd.f32 0.0, %v548
  %v550 = vpop.f32.mrf.mxu0
  %551 = vmatprep.mubr.f32.mxu0 0.0
  %552 = vmatmul.mubr.f32.gmra.mxu0 %v234
  %v553 = vpop.f32.mrf.mxu0
  %v554 = vadd.f32 0.0, %v553
  %v555 = vpop.f32.mrf.mxu0
  %556 = vmatprep.mubr.f32.mxu0 0.0
  %557 = vmatmul.mubr.f32.gmra.mxu0 %v237
  %v558 = vpop.f32.mrf.mxu0
  %v559 = vadd.f32 0.0, %v558
  %v560 = vpop.f32.mrf.mxu0
  %561 = vmatprep.mubr.f32.mxu0 0.0
  %562 = vmatmul.mubr.f32.gmra.mxu0 %v240
  %v563 = vpop.f32.mrf.mxu0
  %v564 = vadd.f32 0.0, %v563
  %v565 = vpop.f32.mrf.mxu0
  %566 = vmatprep.mubr.f32.mxu0 0.0
  %567 = vmatmul.mubr.f32.gmra.mxu0 %v243
  %v568 = vpop.f32.mrf.mxu0
  %v569 = vadd.f32 0.0, %v568
  %v570 = vpop.f32.mrf.mxu0
  %571 = vmatprep.mubr.f32.mxu0 0.0
  %572 = vmatmul.mubr.f32.gmra.mxu0 %v246
  %v573 = vpop.f32.mrf.mxu0
  %v574 = vadd.f32 0.0, %v573
  %v575 = vpop.f32.mrf.mxu0
  %576 = vmatprep.mubr.f32.mxu0 0.0
  %577 = vmatmul.mubr.f32.gmra.mxu0 %v249
  %v578 = vpop.f32.mrf.mxu0
  %v579 = vadd.f32 0.0, %v578
  %v580 = vpop.f32.mrf.mxu0
  %581 = vmatprep.mubr.f32.mxu0 0.0
  %582 = vmatmul.mubr.f32.gmra.mxu0 %v252
  %v583 = vpop.f32.mrf.mxu0
  %v584 = vadd.f32 0.0, %v583
  %v585 = vpop.f32.mrf.mxu0
  %586 = vmatprep.mubr.f32.mxu0 0.0
  %587 = vmatmul.mubr.f32.gmra.mxu0 %v255
  %v588 = vpop.f32.mrf.mxu0
  %v589 = vadd.f32 0.0, %v588
  %v590 = vpop.f32.mrf.mxu0
  %591 = vmatprep.mubr.f32.mxu0 0.0
  %592 = vmatmul.mubr.f32.gmra.mxu0 %v258
  %v593 = vpop.f32.mrf.mxu0
  %v594 = vadd.f32 0.0, %v593
  %v595 = vpop.f32.mrf.mxu0
  %596 = vmatprep.mubr.f32.mxu0 0.0
  %597 = vmatmul.mubr.f32.gmra.mxu0 %v261
  %v598 = vpop.f32.mrf.mxu0
  %v599 = vadd.f32 0.0, %v598
  %v600 = vpop.f32.mrf.mxu0
  %601 = vmatprep.mubr.f32.mxu0 0.0
  %602 = vmatmul.mubr.f32.gmra.mxu0 %v264
  %v603 = vpop.f32.mrf.mxu0
  %v604 = vadd.f32 0.0, %v603
  %v605 = vpop.f32.mrf.mxu0
  %606 = vmatprep.mubr.f32.mxu0 0.0
  %607 = vmatmul.mubr.f32.gmra.mxu0 %v267
  %v608 = vpop.f32.mrf.mxu0
  %v609 = vadd.f32 0.0, %v608
  %v610 = vpop.f32.mrf.mxu0
  %611 = vmatprep.mubr.f32.mxu0 0.0
  %612 = vmatmul.mubr.f32.gmra.mxu0 %v270
  %v613 = vpop.f32.mrf.mxu0
  %v614 = vadd.f32 0.0, %v613
  %v615 = vpop.f32.mrf.mxu0
  %616 = vmatprep.mubr.f32.mxu0 0.0
  %617 = vmatmul.mubr.f32.gmra.mxu0 %v273
  %v618 = vpop.f32.mrf.mxu0
  %v619 = vadd.f32 0.0, %v618
  %v620 = vpop.f32.mrf.mxu0
  %621 = vmatprep.mubr.f32.mxu0 0.0
  %622 = vmatmul.mubr.f32.gmra.mxu0 %v276
  %v623 = vpop.f32.mrf.mxu0
  %v624 = vadd.f32 0.0, %v623
  %v625 = vpop.f32.mrf.mxu0
  %626 = vmatprep.mubr.f32.mxu0 0.0
  %627 = vmatmul.mubr.f32.gmra.mxu0 %v279
  %v628 = vpop.f32.mrf.mxu0
  %v629 = vadd.f32 0.0, %v628
  %v630 = vpop.f32.mrf.mxu0
  %631 = vmatprep.mubr.f32.mxu0 0.0
  %632 = vmatmul.mubr.f32.gmra.mxu0 %v282
  %v633 = vpop.f32.mrf.mxu0
  %v634 = vadd.f32 0.0, %v633
  %v635 = vpop.f32.mrf.mxu0
  %636 = vmatprep.mubr.f32.mxu0 0.0
  %637 = vmatmul.mubr.f32.gmra.mxu0 %v285
  %v638 = vpop.f32.mrf.mxu0
  %v639 = vadd.f32 0.0, %v638
  %v640 = vpop.f32.mrf.mxu0
  %641 = vmatprep.mubr.f32.mxu0 0.0
  %642 = vmatmul.mubr.f32.gmra.mxu0 %v288
  %v643 = vpop.f32.mrf.mxu0
  %v644 = vadd.f32 0.0, %v643
  %v645 = vpop.f32.mrf.mxu0
  %646 = vmatprep.mubr.f32.mxu0 0.0
  %647 = vmatmul.mubr.f32.gmra.mxu0 %v291
  %v648 = vpop.f32.mrf.mxu0
  %v649 = vadd.f32 0.0, %v648
  %v650 = vpop.f32.mrf.mxu0
  %651 = vmatprep.mubr.f32.mxu0 0.0
  %652 = vmatmul.mubr.f32.gmra.mxu0 %v294
  %v653 = vpop.f32.mrf.mxu0
  %v654 = vadd.f32 0.0, %v653
  %v655 = vpop.f32.mrf.mxu0
  %656 = vmatprep.mubr.f32.mxu0 0.0
  %657 = vmatmul.mubr.f32.gmra.mxu0 %v297
  %v658 = vpop.f32.mrf.mxu0
  %v659 = vadd.f32 0.0, %v658
  %v660 = vpop.f32.mrf.mxu0
  %661 = vmatprep.mubr.f32.mxu0 0.0
  %662 = vmatmul.mubr.f32.gmra.mxu0 %v300
  %v663 = vpop.f32.mrf.mxu0
  %v664 = vadd.f32 0.0, %v663
  %v665 = vpop.f32.mrf.mxu0
  %666 = vmatprep.mubr.f32.mxu0 0.0
  %667 = vmatmul.mubr.f32.gmra.mxu0 %v303
  %v668 = vpop.f32.mrf.mxu0
  %v669 = vadd.f32 0.0, %v668
  %v670 = vpop.f32.mrf.mxu0
  %671 = vmatprep.mubr.f32.mxu0 0.0
  %672 = vmatmul.mubr.f32.gmra.mxu0 %v306
  %v673 = vpop.f32.mrf.mxu0
  %v674 = vadd.f32 0.0, %v673
  %v675 = vpop.f32.mrf.mxu0
  %676 = vmatprep.mubr.f32.mxu0 0.0
  %677 = vmatmul.mubr.f32.gmra.mxu0 %v309
  %v678 = vpop.f32.mrf.mxu0
  %v679 = vadd.f32 0.0, %v678
  %v680 = vpop.f32.mrf.mxu0
  %681 = vmatprep.mubr.f32.mxu0 0.0
  %682 = vmatmul.mubr.f32.gmra.mxu0 %v312
  %v683 = vpop.f32.mrf.mxu0
  %v684 = vadd.f32 0.0, %v683
  %v685 = vpop.f32.mrf.mxu0
  %686 = vmatprep.mubr.f32.mxu0 0.0
  %687 = vmatmul.mubr.f32.gmra.mxu0 %v315
  %v688 = vpop.f32.mrf.mxu0
  %v689 = vadd.f32 0.0, %v688
  %v690 = vpop.f32.mrf.mxu0
  %691 = vmatprep.mubr.f32.mxu0 0.0
  %692 = vmatmul.mubr.f32.gmra.mxu0 %v318
  %v693 = vpop.f32.mrf.mxu0
  %v694 = vadd.f32 0.0, %v693
  %v695 = vpop.f32.mrf.mxu0
  %696 = vmatprep.mubr.f32.mxu0 0.0
  %697 = vmatmul.mubr.f32.gmra.mxu0 %v321
  %v698 = vpop.f32.mrf.mxu0
  %v699 = vadd.f32 0.0, %v698
  %v700 = vpop.f32.mrf.mxu0
  %701 = vmatprep.mubr.f32.mxu0 0.0
  %702 = vmatmul.mubr.f32.gmra.mxu0 %v324
  %v703 = vpop.f32.mrf.mxu0
  %v704 = vadd.f32 0.0, %v703
  %v705 = vpop.f32.mrf.mxu0
  %706 = vmatprep.mubr.f32.mxu0 0.0
  %707 = vmatmul.mubr.f32.gmra.mxu0 %v327
  %v708 = vpop.f32.mrf.mxu0
  %v709 = vadd.f32 0.0, %v708
  %v710 = vpop.f32.mrf.mxu0
  %711 = vmatprep.mubr.f32.mxu0 0.0
  %712 = vmatmul.mubr.f32.gmra.mxu0 %v330
  %v713 = vpop.f32.mrf.mxu0
  %v714 = vadd.f32 0.0, %v713
  %v715 = vpop.f32.mrf.mxu0
  %716 = vmatprep.mubr.f32.mxu0 0.0
  %717 = vmatmul.mubr.f32.gmra.mxu0 %v333
  %v718 = vpop.f32.mrf.mxu0
  %v719 = vadd.f32 0.0, %v718
  %v720 = vpop.f32.mrf.mxu0
  %721 = vmatprep.mubr.f32.mxu0 0.0
  %722 = vmatmul.mubr.f32.gmra.mxu0 %v336
  %v723 = vpop.f32.mrf.mxu0
  %v724 = vadd.f32 0.0, %v723
  %v725 = vpop.f32.mrf.mxu0
  %726 = vdwg.mxu0
  %v728 = vsel %vm145, %v14, 0
  %v731 = vsel %vm145, %v15, 0
  %v734 = vsel %vm145, %v16, 0
  %v737 = vsel %vm145, %v17, 0
  %v740 = vsel %vm145, %v18, 0
  %v743 = vsel %vm145, %v19, 0
  %v746 = vsel %vm145, %v20, 0
  %v749 = vsel %vm145, %v21, 0
  %v752 = vsel %vm145, %v22, 0
  %v755 = vsel %vm145, %v23, 0
  %v758 = vsel %vm145, %v24, 0
  %v761 = vsel %vm145, %v25, 0
  %v764 = vsel %vm145, %v26, 0
  %v767 = vsel %vm145, %v27, 0
  %v770 = vsel %vm145, %v28, 0
  %v773 = vsel %vm145, %v29, 0
  %v776 = vsel %vm145, %v30, 0
  %v779 = vsel %vm145, %v31, 0
  %v782 = vsel %vm145, %v32, 0
  %v785 = vsel %vm145, %v33, 0
  %v788 = vsel %vm145, %v34, 0
  %v791 = vsel %vm145, %v35, 0
  %v794 = vsel %vm145, %v36, 0
  %v797 = vsel %vm145, %v37, 0
  %v800 = vsel %vm145, %v38, 0
  %v803 = vsel %vm145, %v39, 0
  %v806 = vsel %vm145, %v40, 0
  %v809 = vsel %vm145, %v41, 0
  %v812 = vsel %vm145, %v42, 0
  %v815 = vsel %vm145, %v43, 0
  %v818 = vsel %vm145, %v44, 0
  %v821 = vsel %vm145, %v45, 0
  %v824 = vsel %vm145, %v46, 0
  %v827 = vsel %vm145, %v47, 0
  %v830 = vsel %vm145, %v48, 0
  %v833 = vsel %vm145, %v49, 0
  %v836 = vsel %vm145, %v50, 0
  %v839 = vsel %vm145, %v51, 0
  %v842 = vsel %vm145, %v52, 0
  %v845 = vsel %vm145, %v53, 0
  %v848 = vsel %vm145, %v54, 0
  %v851 = vsel %vm145, %v55, 0
  %v854 = vsel %vm145, %v56, 0
  %v857 = vsel %vm145, %v57, 0
  %v860 = vsel %vm145, %v58, 0
  %v863 = vsel %vm145, %v59, 0
  %v866 = vsel %vm145, %v60, 0
  %v869 = vsel %vm145, %v61, 0
  %v872 = vsel %vm145, %v62, 0
  %v875 = vsel %vm145, %v63, 0
  %v878 = vsel %vm145, %v64, 0
  %v881 = vsel %vm145, %v65, 0
  %v884 = vsel %vm145, %v66, 0
  %v887 = vsel %vm145, %v67, 0
  %v890 = vsel %vm145, %v68, 0
  %v893 = vsel %vm145, %v69, 0
  %v896 = vsel %vm145, %v70, 0
  %v899 = vsel %vm145, %v71, 0
  %v902 = vsel %vm145, %v72, 0
  %v905 = vsel %vm145, %v73, 0
  %v908 = vsel %vm145, %v74, 0
  %v911 = vsel %vm145, %v75, 0
  %v914 = vsel %vm145, %v76, 0
  %v917 = vsel %vm145, %v77, 0
  %v920 = vsel %vm338, %v78, 0
  %922 = vmatprep.subr.mxu0 0.0
  %923 = vmatpush1.msra.mxu0 0.0
  %924 = vmatprep.subr.mxu0 0.0
  %925 = vmatpush1.msra.mxu0 0.0
  %926 = vmatprep.subr.mxu0 0.0
  %927 = vmatpush1.msra.mxu0 0.0
  %928 = vmatprep.subr.mxu0 0.0
  %929 = vmatpush1.msra.mxu0 0.0
  %930 = vmatprep.subr.mxu0 0.0
  %931 = vmatpush1.msra.mxu0 0.0
  %932 = vmatprep.subr.mxu0 0.0
  %933 = vmatpush1.msra.mxu0 0.0
  %934 = vmatprep.subr.mxu0 0.0
  %935 = vmatpush1.msra.mxu0 0.0
  %936 = vmatprep.subr.mxu0 0.0
  %937 = vmatpush1.msra.mxu0 0.0
  %938 = vmatprep.subr.mxu0 0.0
  %939 = vmatpush1.msra.mxu0 0.0
  %940 = vmatprep.subr.mxu0 0.0
  %941 = vmatpush1.msra.mxu0 0.0
  %942 = vmatprep.subr.mxu0 0.0
  %943 = vmatpush1.msra.mxu0 0.0
  %944 = vmatprep.subr.mxu0 0.0
  %945 = vmatpush1.msra.mxu0 0.0
  %946 = vmatprep.subr.mxu0 0.0
  %947 = vmatpush1.msra.mxu0 0.0
  %948 = vmatprep.subr.mxu0 0.0
  %949 = vmatpush1.msra.mxu0 0.0
  %950 = vmatprep.subr.mxu0 0.0
  %951 = vmatpush1.msra.mxu0 0.0
  %952 = vmatprep.subr.mxu0 0.0
  %953 = vmatpush1.msra.mxu0 %v920
  %954 = vmatprep.subr.mxu0 0.0
  %955 = vmatpush2.msra.mxu0 0.0
  %956 = vmatprep.subr.mxu0 0.0
  %957 = vmatpush2.msra.mxu0 0.0
  %958 = vmatprep.subr.mxu0 0.0
  %959 = vmatpush2.msra.mxu0 0.0
  %960 = vmatprep.subr.mxu0 0.0
  %961 = vmatpush2.msra.mxu0 0.0
  %962 = vmatprep.subr.mxu0 0.0
  %963 = vmatpush2.msra.mxu0 0.0
  %964 = vmatprep.subr.mxu0 0.0
  %965 = vmatpush2.msra.mxu0 0.0
  %966 = vmatprep.subr.mxu0 0.0
  %967 = vmatpush2.msra.mxu0 0.0
  %968 = vmatprep.subr.mxu0 0.0
  %969 = vmatpush2.msra.mxu0 0.0
  %970 = vmatprep.subr.mxu0 0.0
  %971 = vmatpush2.msra.mxu0 0.0
  %972 = vmatprep.subr.mxu0 0.0
  %973 = vmatpush2.msra.mxu0 0.0
  %974 = vmatprep.subr.mxu0 0.0
  %975 = vmatpush2.msra.mxu0 0.0
  %976 = vmatprep.subr.mxu0 0.0
  %977 = vmatpush2.msra.mxu0 0.0
  %978 = vmatprep.subr.mxu0 0.0
  %979 = vmatpush2.msra.mxu0 0.0
  %980 = vmatprep.subr.mxu0 0.0
  %981 = vmatpush2.msra.mxu0 0.0
  %982 = vmatprep.subr.mxu0 0.0
  %983 = vmatpush2.msra.mxu0 0.0
  %984 = vmatprep.subr.mxu0 0.0
  %985 = vmatpush2.msra.mxu0 0.0
  %986 = vmatprep.mubr.f32.mxu0 0.0
  %987 = vmatmul.mubr.f32.gmra.mxu0 %v728
  %v988 = vpop.f32.mrf.mxu0
  %v989 = vadd.f32 %v409, %v988
  %v990 = vpop.f32.mrf.mxu0
  %991 = vmatprep.mubr.f32.mxu0 0.0
  %992 = vmatmul.mubr.f32.gmra.mxu0 %v731
  %v993 = vpop.f32.mrf.mxu0
  %v994 = vadd.f32 %v414, %v993
  %v995 = vpop.f32.mrf.mxu0
  %996 = vmatprep.mubr.f32.mxu0 0.0
  %997 = vmatmul.mubr.f32.gmra.mxu0 %v734
  %v998 = vpop.f32.mrf.mxu0
  %v999 = vadd.f32 %v419, %v998
  %v1000 = vpop.f32.mrf.mxu0
  %1001 = vmatprep.mubr.f32.mxu0 0.0
  %1002 = vmatmul.mubr.f32.gmra.mxu0 %v737
  %v1003 = vpop.f32.mrf.mxu0
  %v1004 = vadd.f32 %v424, %v1003
  %v1005 = vpop.f32.mrf.mxu0
  %1006 = vmatprep.mubr.f32.mxu0 0.0
  %1007 = vmatmul.mubr.f32.gmra.mxu0 %v740
  %v1008 = vpop.f32.mrf.mxu0
  %v1009 = vadd.f32 %v429, %v1008
  %v1010 = vpop.f32.mrf.mxu0
  %1011 = vmatprep.mubr.f32.mxu0 0.0
  %1012 = vmatmul.mubr.f32.gmra.mxu0 %v743
  %v1013 = vpop.f32.mrf.mxu0
  %v1014 = vadd.f32 %v434, %v1013
  %v1015 = vpop.f32.mrf.mxu0
  %1016 = vmatprep.mubr.f32.mxu0 0.0
  %1017 = vmatmul.mubr.f32.gmra.mxu0 %v746
  %v1018 = vpop.f32.mrf.mxu0
  %v1019 = vadd.f32 %v439, %v1018
  %v1020 = vpop.f32.mrf.mxu0
  %1021 = vmatprep.mubr.f32.mxu0 0.0
  %1022 = vmatmul.mubr.f32.gmra.mxu0 %v749
  %v1023 = vpop.f32.mrf.mxu0
  %v1024 = vadd.f32 %v444, %v1023
  %v1025 = vpop.f32.mrf.mxu0
  %1026 = vmatprep.mubr.f32.mxu0 0.0
  %1027 = vmatmul.mubr.f32.gmra.mxu0 %v752
  %v1028 = vpop.f32.mrf.mxu0
  %v1029 = vadd.f32 %v449, %v1028
  %v1030 = vpop.f32.mrf.mxu0
  %1031 = vmatprep.mubr.f32.mxu0 0.0
  %1032 = vmatmul.mubr.f32.gmra.mxu0 %v755
  %v1033 = vpop.f32.mrf.mxu0
  %v1034 = vadd.f32 %v454, %v1033
  %v1035 = vpop.f32.mrf.mxu0
  %1036 = vmatprep.mubr.f32.mxu0 0.0
  %1037 = vmatmul.mubr.f32.gmra.mxu0 %v758
  %v1038 = vpop.f32.mrf.mxu0
  %v1039 = vadd.f32 %v459, %v1038
  %v1040 = vpop.f32.mrf.mxu0
  %1041 = vmatprep.mubr.f32.mxu0 0.0
  %1042 = vmatmul.mubr.f32.gmra.mxu0 %v761
  %v1043 = vpop.f32.mrf.mxu0
  %v1044 = vadd.f32 %v464, %v1043
  %v1045 = vpop.f32.mrf.mxu0
  %1046 = vmatprep.mubr.f32.mxu0 0.0
  %1047 = vmatmul.mubr.f32.gmra.mxu0 %v764
  %v1048 = vpop.f32.mrf.mxu0
  %v1049 = vadd.f32 %v469, %v1048
  %v1050 = vpop.f32.mrf.mxu0
  %1051 = vmatprep.mubr.f32.mxu0 0.0
  %1052 = vmatmul.mubr.f32.gmra.mxu0 %v767
  %v1053 = vpop.f32.mrf.mxu0
  %v1054 = vadd.f32 %v474, %v1053
  %v1055 = vpop.f32.mrf.mxu0
  %1056 = vmatprep.mubr.f32.mxu0 0.0
  %1057 = vmatmul.mubr.f32.gmra.mxu0 %v770
  %v1058 = vpop.f32.mrf.mxu0
  %v1059 = vadd.f32 %v479, %v1058
  %v1060 = vpop.f32.mrf.mxu0
  %1061 = vmatprep.mubr.f32.mxu0 0.0
  %1062 = vmatmul.mubr.f32.gmra.mxu0 %v773
  %v1063 = vpop.f32.mrf.mxu0
  %v1064 = vadd.f32 %v484, %v1063
  %v1065 = vpop.f32.mrf.mxu0
  %1066 = vmatprep.mubr.f32.mxu0 0.0
  %1067 = vmatmul.mubr.f32.gmra.mxu0 %v776
  %v1068 = vpop.f32.mrf.mxu0
  %v1069 = vadd.f32 %v489, %v1068
  %v1070 = vpop.f32.mrf.mxu0
  %1071 = vmatprep.mubr.f32.mxu0 0.0
  %1072 = vmatmul.mubr.f32.gmra.mxu0 %v779
  %v1073 = vpop.f32.mrf.mxu0
  %v1074 = vadd.f32 %v494, %v1073
  %v1075 = vpop.f32.mrf.mxu0
  %1076 = vmatprep.mubr.f32.mxu0 0.0
  %1077 = vmatmul.mubr.f32.gmra.mxu0 %v782
  %v1078 = vpop.f32.mrf.mxu0
  %v1079 = vadd.f32 %v499, %v1078
  %v1080 = vpop.f32.mrf.mxu0
  %1081 = vmatprep.mubr.f32.mxu0 0.0
  %1082 = vmatmul.mubr.f32.gmra.mxu0 %v785
  %v1083 = vpop.f32.mrf.mxu0
  %v1084 = vadd.f32 %v504, %v1083
  %v1085 = vpop.f32.mrf.mxu0
  %1086 = vmatprep.mubr.f32.mxu0 0.0
  %1087 = vmatmul.mubr.f32.gmra.mxu0 %v788
  %v1088 = vpop.f32.mrf.mxu0
  %v1089 = vadd.f32 %v509, %v1088
  %v1090 = vpop.f32.mrf.mxu0
  %1091 = vmatprep.mubr.f32.mxu0 0.0
  %1092 = vmatmul.mubr.f32.gmra.mxu0 %v791
  %v1093 = vpop.f32.mrf.mxu0
  %v1094 = vadd.f32 %v514, %v1093
  %v1095 = vpop.f32.mrf.mxu0
  %1096 = vmatprep.mubr.f32.mxu0 0.0
  %1097 = vmatmul.mubr.f32.gmra.mxu0 %v794
  %v1098 = vpop.f32.mrf.mxu0
  %v1099 = vadd.f32 %v519, %v1098
  %v1100 = vpop.f32.mrf.mxu0
  %1101 = vmatprep.mubr.f32.mxu0 0.0
  %1102 = vmatmul.mubr.f32.gmra.mxu0 %v797
  %v1103 = vpop.f32.mrf.mxu0
  %v1104 = vadd.f32 %v524, %v1103
  %v1105 = vpop.f32.mrf.mxu0
  %1106 = vmatprep.mubr.f32.mxu0 0.0
  %1107 = vmatmul.mubr.f32.gmra.mxu0 %v800
  %v1108 = vpop.f32.mrf.mxu0
  %v1109 = vadd.f32 %v529, %v1108
  %v1110 = vpop.f32.mrf.mxu0
  %1111 = vmatprep.mubr.f32.mxu0 0.0
  %1112 = vmatmul.mubr.f32.gmra.mxu0 %v803
  %v1113 = vpop.f32.mrf.mxu0
  %v1114 = vadd.f32 %v534, %v1113
  %v1115 = vpop.f32.mrf.mxu0
  %1116 = vmatprep.mubr.f32.mxu0 0.0
  %1117 = vmatmul.mubr.f32.gmra.mxu0 %v806
  %v1118 = vpop.f32.mrf.mxu0
  %v1119 = vadd.f32 %v539, %v1118
  %v1120 = vpop.f32.mrf.mxu0
  %1121 = vmatprep.mubr.f32.mxu0 0.0
  %1122 = vmatmul.mubr.f32.gmra.mxu0 %v809
  %v1123 = vpop.f32.mrf.mxu0
  %v1124 = vadd.f32 %v544, %v1123
  %v1125 = vpop.f32.mrf.mxu0
  %1126 = vmatprep.mubr.f32.mxu0 0.0
  %1127 = vmatmul.mubr.f32.gmra.mxu0 %v812
  %v1128 = vpop.f32.mrf.mxu0
  %v1129 = vadd.f32 %v549, %v1128
  %v1130 = vpop.f32.mrf.mxu0
  %1131 = vmatprep.mubr.f32.mxu0 0.0
  %1132 = vmatmul.mubr.f32.gmra.mxu0 %v815
  %v1133 = vpop.f32.mrf.mxu0
  %v1134 = vadd.f32 %v554, %v1133
  %v1135 = vpop.f32.mrf.mxu0
  %1136 = vmatprep.mubr.f32.mxu0 0.0
  %1137 = vmatmul.mubr.f32.gmra.mxu0 %v818
  %v1138 = vpop.f32.mrf.mxu0
  %v1139 = vadd.f32 %v559, %v1138
  %v1140 = vpop.f32.mrf.mxu0
  %1141 = vmatprep.mubr.f32.mxu0 0.0
  %1142 = vmatmul.mubr.f32.gmra.mxu0 %v821
  %v1143 = vpop.f32.mrf.mxu0
  %v1144 = vadd.f32 %v564, %v1143
  %v1145 = vpop.f32.mrf.mxu0
  %1146 = vmatprep.mubr.f32.mxu0 0.0
  %1147 = vmatmul.mubr.f32.gmra.mxu0 %v824
  %v1148 = vpop.f32.mrf.mxu0
  %v1149 = vadd.f32 %v569, %v1148
  %v1150 = vpop.f32.mrf.mxu0
  %1151 = vmatprep.mubr.f32.mxu0 0.0
  %1152 = vmatmul.mubr.f32.gmra.mxu0 %v827
  %v1153 = vpop.f32.mrf.mxu0
  %v1154 = vadd.f32 %v574, %v1153
  %v1155 = vpop.f32.mrf.mxu0
  %1156 = vmatprep.mubr.f32.mxu0 0.0
  %1157 = vmatmul.mubr.f32.gmra.mxu0 %v830
  %v1158 = vpop.f32.mrf.mxu0
  %v1159 = vadd.f32 %v579, %v1158
  %v1160 = vpop.f32.mrf.mxu0
  %1161 = vmatprep.mubr.f32.mxu0 0.0
  %1162 = vmatmul.mubr.f32.gmra.mxu0 %v833
  %v1163 = vpop.f32.mrf.mxu0
  %v1164 = vadd.f32 %v584, %v1163
  %v1165 = vpop.f32.mrf.mxu0
  %1166 = vmatprep.mubr.f32.mxu0 0.0
  %1167 = vmatmul.mubr.f32.gmra.mxu0 %v836
  %v1168 = vpop.f32.mrf.mxu0
  %v1169 = vadd.f32 %v589, %v1168
  %v1170 = vpop.f32.mrf.mxu0
  %1171 = vmatprep.mubr.f32.mxu0 0.0
  %1172 = vmatmul.mubr.f32.gmra.mxu0 %v839
  %v1173 = vpop.f32.mrf.mxu0
  %v1174 = vadd.f32 %v594, %v1173
  %v1175 = vpop.f32.mrf.mxu0
  %1176 = vmatprep.mubr.f32.mxu0 0.0
  %1177 = vmatmul.mubr.f32.gmra.mxu0 %v842
  %v1178 = vpop.f32.mrf.mxu0
  %v1179 = vadd.f32 %v599, %v1178
  %v1180 = vpop.f32.mrf.mxu0
  %1181 = vmatprep.mubr.f32.mxu0 0.0
  %1182 = vmatmul.mubr.f32.gmra.mxu0 %v845
  %v1183 = vpop.f32.mrf.mxu0
  %v1184 = vadd.f32 %v604, %v1183
  %v1185 = vpop.f32.mrf.mxu0
  %1186 = vmatprep.mubr.f32.mxu0 0.0
  %1187 = vmatmul.mubr.f32.gmra.mxu0 %v848
  %v1188 = vpop.f32.mrf.mxu0
  %v1189 = vadd.f32 %v609, %v1188
  %v1190 = vpop.f32.mrf.mxu0
  %1191 = vmatprep.mubr.f32.mxu0 0.0
  %1192 = vmatmul.mubr.f32.gmra.mxu0 %v851
  %v1193 = vpop.f32.mrf.mxu0
  %v1194 = vadd.f32 %v614, %v1193
  %v1195 = vpop.f32.mrf.mxu0
  %1196 = vmatprep.mubr.f32.mxu0 0.0
  %1197 = vmatmul.mubr.f32.gmra.mxu0 %v854
  %v1198 = vpop.f32.mrf.mxu0
  %v1199 = vadd.f32 %v619, %v1198
  %v1200 = vpop.f32.mrf.mxu0
  %1201 = vmatprep.mubr.f32.mxu0 0.0
  %1202 = vmatmul.mubr.f32.gmra.mxu0 %v857
  %v1203 = vpop.f32.mrf.mxu0
  %v1204 = vadd.f32 %v624, %v1203
  %v1205 = vpop.f32.mrf.mxu0
  %1206 = vmatprep.mubr.f32.mxu0 0.0
  %1207 = vmatmul.mubr.f32.gmra.mxu0 %v860
  %v1208 = vpop.f32.mrf.mxu0
  %v1209 = vadd.f32 %v629, %v1208
  %v1210 = vpop.f32.mrf.mxu0
  %1211 = vmatprep.mubr.f32.mxu0 0.0
  %1212 = vmatmul.mubr.f32.gmra.mxu0 %v863
  %v1213 = vpop.f32.mrf.mxu0
  %v1214 = vadd.f32 %v634, %v1213
  %v1215 = vpop.f32.mrf.mxu0
  %1216 = vmatprep.mubr.f32.mxu0 0.0
  %1217 = vmatmul.mubr.f32.gmra.mxu0 %v866
  %v1218 = vpop.f32.mrf.mxu0
  %v1219 = vadd.f32 %v639, %v1218
  %v1220 = vpop.f32.mrf.mxu0
  %1221 = vmatprep.mubr.f32.mxu0 0.0
  %1222 = vmatmul.mubr.f32.gmra.mxu0 %v869
  %v1223 = vpop.f32.mrf.mxu0
  %v1224 = vadd.f32 %v644, %v1223
  %v1225 = vpop.f32.mrf.mxu0
  %1226 = vmatprep.mubr.f32.mxu0 0.0
  %1227 = vmatmul.mubr.f32.gmra.mxu0 %v872
  %v1228 = vpop.f32.mrf.mxu0
  %v1229 = vadd.f32 %v649, %v1228
  %v1230 = vpop.f32.mrf.mxu0
  %1231 = vmatprep.mubr.f32.mxu0 0.0
  %1232 = vmatmul.mubr.f32.gmra.mxu0 %v875
  %v1233 = vpop.f32.mrf.mxu0
  %v1234 = vadd.f32 %v654, %v1233
  %v1235 = vpop.f32.mrf.mxu0
  %1236 = vmatprep.mubr.f32.mxu0 0.0
  %1237 = vmatmul.mubr.f32.gmra.mxu0 %v878
  %v1238 = vpop.f32.mrf.mxu0
  %v1239 = vadd.f32 %v659, %v1238
  %v1240 = vpop.f32.mrf.mxu0
  %1241 = vmatprep.mubr.f32.mxu0 0.0
  %1242 = vmatmul.mubr.f32.gmra.mxu0 %v881
  %v1243 = vpop.f32.mrf.mxu0
  %v1244 = vadd.f32 %v664, %v1243
  %v1245 = vpop.f32.mrf.mxu0
  %1246 = vmatprep.mubr.f32.mxu0 0.0
  %1247 = vmatmul.mubr.f32.gmra.mxu0 %v884
  %v1248 = vpop.f32.mrf.mxu0
  %v1249 = vadd.f32 %v669, %v1248
  %v1250 = vpop.f32.mrf.mxu0
  %1251 = vmatprep.mubr.f32.mxu0 0.0
  %1252 = vmatmul.mubr.f32.gmra.mxu0 %v887
  %v1253 = vpop.f32.mrf.mxu0
  %v1254 = vadd.f32 %v674, %v1253
  %v1255 = vpop.f32.mrf.mxu0
  %1256 = vmatprep.mubr.f32.mxu0 0.0
  %1257 = vmatmul.mubr.f32.gmra.mxu0 %v890
  %v1258 = vpop.f32.mrf.mxu0
  %v1259 = vadd.f32 %v679, %v1258
  %v1260 = vpop.f32.mrf.mxu0
  %1261 = vmatprep.mubr.f32.mxu0 0.0
  %1262 = vmatmul.mubr.f32.gmra.mxu0 %v893
  %v1263 = vpop.f32.mrf.mxu0
  %v1264 = vadd.f32 %v684, %v1263
  %v1265 = vpop.f32.mrf.mxu0
  %1266 = vmatprep.mubr.f32.mxu0 0.0
  %1267 = vmatmul.mubr.f32.gmra.mxu0 %v896
  %v1268 = vpop.f32.mrf.mxu0
  %v1269 = vadd.f32 %v689, %v1268
  %v1270 = vpop.f32.mrf.mxu0
  %1271 = vmatprep.mubr.f32.mxu0 0.0
  %1272 = vmatmul.mubr.f32.gmra.mxu0 %v899
  %v1273 = vpop.f32.mrf.mxu0
  %v1274 = vadd.f32 %v694, %v1273
  %v1275 = vpop.f32.mrf.mxu0
  %1276 = vmatprep.mubr.f32.mxu0 0.0
  %1277 = vmatmul.mubr.f32.gmra.mxu0 %v902
  %v1278 = vpop.f32.mrf.mxu0
  %v1279 = vadd.f32 %v699, %v1278
  %v1280 = vpop.f32.mrf.mxu0
  %1281 = vmatprep.mubr.f32.mxu0 0.0
  %1282 = vmatmul.mubr.f32.gmra.mxu0 %v905
  %v1283 = vpop.f32.mrf.mxu0
  %v1284 = vadd.f32 %v704, %v1283
  %v1285 = vpop.f32.mrf.mxu0
  %1286 = vmatprep.mubr.f32.mxu0 0.0
  %1287 = vmatmul.mubr.f32.gmra.mxu0 %v908
  %v1288 = vpop.f32.mrf.mxu0
  %v1289 = vadd.f32 %v709, %v1288
  %v1290 = vpop.f32.mrf.mxu0
  %1291 = vmatprep.mubr.f32.mxu0 0.0
  %1292 = vmatmul.mubr.f32.gmra.mxu0 %v911
  %v1293 = vpop.f32.mrf.mxu0
  %v1294 = vadd.f32 %v714, %v1293
  %v1295 = vpop.f32.mrf.mxu0
  %1296 = vmatprep.mubr.f32.mxu0 0.0
  %1297 = vmatmul.mubr.f32.gmra.mxu0 %v914
  %v1298 = vpop.f32.mrf.mxu0
  %v1299 = vadd.f32 %v719, %v1298
  %v1300 = vpop.f32.mrf.mxu0
  %1301 = vmatprep.mubr.f32.mxu0 0.0
  %1302 = vmatmul.mubr.f32.gmra.mxu0 %v917
  %v1303 = vpop.f32.mrf.mxu0
  %v1304 = vadd.f32 %v724, %v1303
  %v1305 = vpop.f32.mrf.mxu0
  %1306 = vdwg.mxu0
  %v1307 = vld [vmem:[%s0 + $0x2] sm:$0xff]
  %v1308 = vld [vmem:[%s0 + $0xa] sm:$0xff]
  %v1309 = vld [vmem:[%s0 + $0x1a] sm:$0xff]
  %v1310 = vld [vmem:[%s0 + $0x22] sm:$0xff]
  %v1311 = vld [vmem:[%s0 + $0x32] sm:$0xff]
  %v1312 = vld [vmem:[%s0 + $0x3a] sm:$0xff]
  %v1313 = vld [vmem:[%s0 + $0x4a] sm:$0xff]
  %v1314 = vld [vmem:[%s0 + $0x52] sm:$0xff]
  %v1315 = vld [vmem:[%s0 + $0x62] sm:$0xff]
  %v1316 = vld [vmem:[%s0 + $0x6a] sm:$0xff]
  %v1317 = vld [vmem:[%s0 + $0x7a] sm:$0xff]
  %v1318 = vld [vmem:[%s0 + $0x82] sm:$0xff]
  %v1319 = vld [vmem:[%s0 + $0x92] sm:$0xff]
  %v1320 = vld [vmem:[%s0 + $0x9a] sm:$0xff]
  %v1321 = vld [vmem:[%s0 + $0xaa] sm:$0xff]
  %v1322 = vld [vmem:[%s0 + $0xb2] sm:$0xff]
  %v1323 = vld [vmem:[%s0 + $0xc2] sm:$0xff]
  %v1324 = vld [vmem:[%s0 + $0xca] sm:$0xff]
  %v1325 = vld [vmem:[%s0 + $0xda] sm:$0xff]
  %v1326 = vld [vmem:[%s0 + $0xe2] sm:$0xff]
  %v1327 = vld [vmem:[%s0 + $0xf2] sm:$0xff]
  %v1328 = vld [vmem:[%s0 + $0xfa] sm:$0xff]
  %v1329 = vld [vmem:[%s0 + $0x10a] sm:$0xff]
  %v1330 = vld [vmem:[%s0 + $0x112] sm:$0xff]
  %v1331 = vld [vmem:[%s0 + $0x122] sm:$0xff]
  %v1332 = vld [vmem:[%s0 + $0x12a] sm:$0xff]
  %v1333 = vld [vmem:[%s0 + $0x13a] sm:$0xff]
  %v1334 = vld [vmem:[%s0 + $0x142] sm:$0xff]
  %v1335 = vld [vmem:[%s0 + $0x152] sm:$0xff]
  %v1336 = vld [vmem:[%s0 + $0x15a] sm:$0xff]
  %v1337 = vld [vmem:[%s0 + $0x16a] sm:$0xff]
  %v1338 = vld [vmem:[%s0 + $0x172] sm:$0xff]
  %v1339 = vld [vmem:[%s0 + $0x1b2] sm:$0xff]
  %v1340 = vld [vmem:[%s0 + $0x1ba] sm:$0xff]
  %v1341 = vld [vmem:[%s0 + $0x1ca] sm:$0xff]
  %v1342 = vld [vmem:[%s0 + $0x1d2] sm:$0xff]
  %v1343 = vld [vmem:[%s0 + $0x1e2] sm:$0xff]
  %v1344 = vld [vmem:[%s0 + $0x1ea] sm:$0xff]
  %v1345 = vld [vmem:[%s0 + $0x1fa] sm:$0xff]
  %v1346 = vld [vmem:[%s0 + $0x202] sm:$0xff]
  %v1347 = vld [vmem:[%s0 + $0x212] sm:$0xff]
  %v1348 = vld [vmem:[%s0 + $0x21a] sm:$0xff]
  %v1349 = vld [vmem:[%s0 + $0x22a] sm:$0xff]
  %v1350 = vld [vmem:[%s0 + $0x232] sm:$0xff]
  %v1351 = vld [vmem:[%s0 + $0x242] sm:$0xff]
  %v1352 = vld [vmem:[%s0 + $0x24a] sm:$0xff]
  %v1353 = vld [vmem:[%s0 + $0x25a] sm:$0xff]
  %v1354 = vld [vmem:[%s0 + $0x262] sm:$0xff]
  %v1355 = vld [vmem:[%s0 + $0x272] sm:$0xff]
  %v1356 = vld [vmem:[%s0 + $0x27a] sm:$0xff]
  %v1357 = vld [vmem:[%s0 + $0x28a] sm:$0xff]
  %v1358 = vld [vmem:[%s0 + $0x292] sm:$0xff]
  %v1359 = vld [vmem:[%s0 + $0x2a2] sm:$0xff]
  %v1360 = vld [vmem:[%s0 + $0x2aa] sm:$0xff]
  %v1361 = vld [vmem:[%s0 + $0x2ba] sm:$0xff]
  %v1362 = vld [vmem:[%s0 + $0x2c2] sm:$0xff]
  %v1363 = vld [vmem:[%s0 + $0x2d2] sm:$0xff]
  %v1364 = vld [vmem:[%s0 + $0x2da] sm:$0xff]
  %v1365 = vld [vmem:[%s0 + $0x2ea] sm:$0xff]
  %v1366 = vld [vmem:[%s0 + $0x2f2] sm:$0xff]
  %v1367 = vld [vmem:[%s0 + $0x302] sm:$0xff]
  %v1368 = vld [vmem:[%s0 + $0x30a] sm:$0xff]
  %v1369 = vld [vmem:[%s0 + $0x31a] sm:$0xff]
  %v1370 = vld [vmem:[%s0 + $0x322] sm:$0xff]
  %s1371 = scalar_lea.vmem %s1, 8
  %v1372 = vld [vmem:[%s1371] sm:$0xf]
  %v1374 = vsel %vm145, %v1307, 0
  %v1377 = vsel %vm145, %v1308, 0
  %v1380 = vsel %vm145, %v1309, 0
  %v1383 = vsel %vm145, %v1310, 0
  %v1386 = vsel %vm145, %v1311, 0
  %v1389 = vsel %vm145, %v1312, 0
  %v1392 = vsel %vm145, %v1313, 0
  %v1395 = vsel %vm145, %v1314, 0
  %v1398 = vsel %vm145, %v1315, 0
  %v1401 = vsel %vm145, %v1316, 0
  %v1404 = vsel %vm145, %v1317, 0
  %v1407 = vsel %vm145, %v1318, 0
  %v1410 = vsel %vm145, %v1319, 0
  %v1413 = vsel %vm145, %v1320, 0
  %v1416 = vsel %vm145, %v1321, 0
  %v1419 = vsel %vm145, %v1322, 0
  %v1422 = vsel %vm145, %v1323, 0
  %v1425 = vsel %vm145, %v1324, 0
  %v1428 = vsel %vm145, %v1325, 0
  %v1431 = vsel %vm145, %v1326, 0
  %v1434 = vsel %vm145, %v1327, 0
  %v1437 = vsel %vm145, %v1328, 0
  %v1440 = vsel %vm145, %v1329, 0
  %v1443 = vsel %vm145, %v1330, 0
  %v1446 = vsel %vm145, %v1331, 0
  %v1449 = vsel %vm145, %v1332, 0
  %v1452 = vsel %vm145, %v1333, 0
  %v1455 = vsel %vm145, %v1334, 0
  %v1458 = vsel %vm145, %v1335, 0
  %v1461 = vsel %vm145, %v1336, 0
  %v1464 = vsel %vm145, %v1337, 0
  %v1467 = vsel %vm145, %v1338, 0
  %v1470 = vsel %vm145, %v1339, 0
  %v1473 = vsel %vm145, %v1340, 0
  %v1476 = vsel %vm145, %v1341, 0
  %v1479 = vsel %vm145, %v1342, 0
  %v1482 = vsel %vm145, %v1343, 0
  %v1485 = vsel %vm145, %v1344, 0
  %v1488 = vsel %vm145, %v1345, 0
  %v1491 = vsel %vm145, %v1346, 0
  %v1494 = vsel %vm145, %v1347, 0
  %v1497 = vsel %vm145, %v1348, 0
  %v1500 = vsel %vm145, %v1349, 0
  %v1503 = vsel %vm145, %v1350, 0
  %v1506 = vsel %vm145, %v1351, 0
  %v1509 = vsel %vm145, %v1352, 0
  %v1512 = vsel %vm145, %v1353, 0
  %v1515 = vsel %vm145, %v1354, 0
  %v1518 = vsel %vm145, %v1355, 0
  %v1521 = vsel %vm145, %v1356, 0
  %v1524 = vsel %vm145, %v1357, 0
  %v1527 = vsel %vm145, %v1358, 0
  %v1530 = vsel %vm145, %v1359, 0
  %v1533 = vsel %vm145, %v1360, 0
  %v1536 = vsel %vm145, %v1361, 0
  %v1539 = vsel %vm145, %v1362, 0
  %v1542 = vsel %vm145, %v1363, 0
  %v1545 = vsel %vm145, %v1364, 0
  %v1548 = vsel %vm145, %v1365, 0
  %v1551 = vsel %vm145, %v1366, 0
  %v1554 = vsel %vm145, %v1367, 0
  %v1557 = vsel %vm145, %v1368, 0
  %v1560 = vsel %vm145, %v1369, 0
  %v1563 = vsel %vm145, %v1370, 0
  %v1566 = vsel %vm338, %v1372, 0
  %1568 = vmatprep.subr.mxu0 0.0
  %1569 = vmatpush1.msra.mxu0 0.0
  %1570 = vmatprep.subr.mxu0 0.0
  %1571 = vmatpush1.msra.mxu0 0.0
  %1572 = vmatprep.subr.mxu0 0.0
  %1573 = vmatpush1.msra.mxu0 0.0
  %1574 = vmatprep.subr.mxu0 0.0
  %1575 = vmatpush1.msra.mxu0 0.0
  %1576 = vmatprep.subr.mxu0 0.0
  %1577 = vmatpush1.msra.mxu0 0.0
  %1578 = vmatprep.subr.mxu0 0.0
  %1579 = vmatpush1.msra.mxu0 0.0
  %1580 = vmatprep.subr.mxu0 0.0
  %1581 = vmatpush1.msra.mxu0 0.0
  %1582 = vmatprep.subr.mxu0 0.0
  %1583 = vmatpush1.msra.mxu0 0.0
  %1584 = vmatprep.subr.mxu0 0.0
  %1585 = vmatpush1.msra.mxu0 0.0
  %1586 = vmatprep.subr.mxu0 0.0
  %1587 = vmatpush1.msra.mxu0 0.0
  %1588 = vmatprep.subr.mxu0 0.0
  %1589 = vmatpush1.msra.mxu0 0.0
  %1590 = vmatprep.subr.mxu0 0.0
  %1591 = vmatpush1.msra.mxu0 0.0
  %1592 = vmatprep.subr.mxu0 0.0
  %1593 = vmatpush1.msra.mxu0 0.0
  %1594 = vmatprep.subr.mxu0 0.0
  %1595 = vmatpush1.msra.mxu0 0.0
  %1596 = vmatprep.subr.mxu0 0.0
  %1597 = vmatpush1.msra.mxu0 0.0
  %1598 = vmatprep.subr.mxu0 0.0
  %1599 = vmatpush1.msra.mxu0 %v1566
  %1600 = vmatprep.subr.mxu0 0.0
  %1601 = vmatpush2.msra.mxu0 0.0
  %1602 = vmatprep.subr.mxu0 0.0
  %1603 = vmatpush2.msra.mxu0 0.0
  %1604 = vmatprep.subr.mxu0 0.0
  %1605 = vmatpush2.msra.mxu0 0.0
  %1606 = vmatprep.subr.mxu0 0.0
  %1607 = vmatpush2.msra.mxu0 0.0
  %1608 = vmatprep.subr.mxu0 0.0
  %1609 = vmatpush2.msra.mxu0 0.0
  %1610 = vmatprep.subr.mxu0 0.0
  %1611 = vmatpush2.msra.mxu0 0.0
  %1612 = vmatprep.subr.mxu0 0.0
  %1613 = vmatpush2.msra.mxu0 0.0
  %1614 = vmatprep.subr.mxu0 0.0
  %1615 = vmatpush2.msra.mxu0 0.0
  %1616 = vmatprep.subr.mxu0 0.0
  %1617 = vmatpush2.msra.mxu0 0.0
  %1618 = vmatprep.subr.mxu0 0.0
  %1619 = vmatpush2.msra.mxu0 0.0
  %1620 = vmatprep.subr.mxu0 0.0
  %1621 = vmatpush2.msra.mxu0 0.0
  %1622 = vmatprep.subr.mxu0 0.0
  %1623 = vmatpush2.msra.mxu0 0.0
  %1624 = vmatprep.subr.mxu0 0.0
  %1625 = vmatpush2.msra.mxu0 0.0
  %1626 = vmatprep.subr.mxu0 0.0
  %1627 = vmatpush2.msra.mxu0 0.0
  %1628 = vmatprep.subr.mxu0 0.0
  %1629 = vmatpush2.msra.mxu0 0.0
  %1630 = vmatprep.subr.mxu0 0.0
  %1631 = vmatpush2.msra.mxu0 0.0
  %1632 = vmatprep.mubr.f32.mxu0 0.0
  %1633 = vmatmul.mubr.f32.gmra.mxu0 %v1374
  %v1634 = vpop.f32.mrf.mxu0
  %v1635 = vadd.f32 0.0, %v1634
  %v1636 = vpop.f32.mrf.mxu0
  %1637 = vmatprep.mubr.f32.mxu0 0.0
  %1638 = vmatmul.mubr.f32.gmra.mxu0 %v1377
  %v1639 = vpop.f32.mrf.mxu0
  %v1640 = vadd.f32 0.0, %v1639
  %v1641 = vpop.f32.mrf.mxu0
  %1642 = vmatprep.mubr.f32.mxu0 0.0
  %1643 = vmatmul.mubr.f32.gmra.mxu0 %v1380
  %v1644 = vpop.f32.mrf.mxu0
  %v1645 = vadd.f32 0.0, %v1644
  %v1646 = vpop.f32.mrf.mxu0
  %1647 = vmatprep.mubr.f32.mxu0 0.0
  %1648 = vmatmul.mubr.f32.gmra.mxu0 %v1383
  %v1649 = vpop.f32.mrf.mxu0
  %v1650 = vadd.f32 0.0, %v1649
  %v1651 = vpop.f32.mrf.mxu0
  %1652 = vmatprep.mubr.f32.mxu0 0.0
  %1653 = vmatmul.mubr.f32.gmra.mxu0 %v1386
  %v1654 = vpop.f32.mrf.mxu0
  %v1655 = vadd.f32 0.0, %v1654
  %v1656 = vpop.f32.mrf.mxu0
  %1657 = vmatprep.mubr.f32.mxu0 0.0
  %1658 = vmatmul.mubr.f32.gmra.mxu0 %v1389
  %v1659 = vpop.f32.mrf.mxu0
  %v1660 = vadd.f32 0.0, %v1659
  %v1661 = vpop.f32.mrf.mxu0
  %1662 = vmatprep.mubr.f32.mxu0 0.0
  %1663 = vmatmul.mubr.f32.gmra.mxu0 %v1392
  %v1664 = vpop.f32.mrf.mxu0
  %v1665 = vadd.f32 0.0, %v1664
  %v1666 = vpop.f32.mrf.mxu0
  %1667 = vmatprep.mubr.f32.mxu0 0.0
  %1668 = vmatmul.mubr.f32.gmra.mxu0 %v1395
  %v1669 = vpop.f32.mrf.mxu0
  %v1670 = vadd.f32 0.0, %v1669
  %v1671 = vpop.f32.mrf.mxu0
  %1672 = vmatprep.mubr.f32.mxu0 0.0
  %1673 = vmatmul.mubr.f32.gmra.mxu0 %v1398
  %v1674 = vpop.f32.mrf.mxu0
  %v1675 = vadd.f32 0.0, %v1674
  %v1676 = vpop.f32.mrf.mxu0
  %1677 = vmatprep.mubr.f32.mxu0 0.0
  %1678 = vmatmul.mubr.f32.gmra.mxu0 %v1401
  %v1679 = vpop.f32.mrf.mxu0
  %v1680 = vadd.f32 0.0, %v1679
  %v1681 = vpop.f32.mrf.mxu0
  %1682 = vmatprep.mubr.f32.mxu0 0.0
  %1683 = vmatmul.mubr.f32.gmra.mxu0 %v1404
  %v1684 = vpop.f32.mrf.mxu0
  %v1685 = vadd.f32 0.0, %v1684
  %v1686 = vpop.f32.mrf.mxu0
  %1687 = vmatprep.mubr.f32.mxu0 0.0
  %1688 = vmatmul.mubr.f32.gmra.mxu0 %v1407
  %v1689 = vpop.f32.mrf.mxu0
  %v1690 = vadd.f32 0.0, %v1689
  %v1691 = vpop.f32.mrf.mxu0
  %1692 = vmatprep.mubr.f32.mxu0 0.0
  %1693 = vmatmul.mubr.f32.gmra.mxu0 %v1410
  %v1694 = vpop.f32.mrf.mxu0
  %v1695 = vadd.f32 0.0, %v1694
  %v1696 = vpop.f32.mrf.mxu0
  %1697 = vmatprep.mubr.f32.mxu0 0.0
  %1698 = vmatmul.mubr.f32.gmra.mxu0 %v1413
  %v1699 = vpop.f32.mrf.mxu0
  %v1700 = vadd.f32 0.0, %v1699
  %v1701 = vpop.f32.mrf.mxu0
  %1702 = vmatprep.mubr.f32.mxu0 0.0
  %1703 = vmatmul.mubr.f32.gmra.mxu0 %v1416
  %v1704 = vpop.f32.mrf.mxu0
  %v1705 = vadd.f32 0.0, %v1704
  %v1706 = vpop.f32.mrf.mxu0
  %1707 = vmatprep.mubr.f32.mxu0 0.0
  %1708 = vmatmul.mubr.f32.gmra.mxu0 %v1419
  %v1709 = vpop.f32.mrf.mxu0
  %v1710 = vadd.f32 0.0, %v1709
  %v1711 = vpop.f32.mrf.mxu0
  %1712 = vmatprep.mubr.f32.mxu0 0.0
  %1713 = vmatmul.mubr.f32.gmra.mxu0 %v1422
  %v1714 = vpop.f32.mrf.mxu0
  %v1715 = vadd.f32 0.0, %v1714
  %v1716 = vpop.f32.mrf.mxu0
  %1717 = vmatprep.mubr.f32.mxu0 0.0
  %1718 = vmatmul.mubr.f32.gmra.mxu0 %v1425
  %v1719 = vpop.f32.mrf.mxu0
  %v1720 = vadd.f32 0.0, %v1719
  %v1721 = vpop.f32.mrf.mxu0
  %1722 = vmatprep.mubr.f32.mxu0 0.0
  %1723 = vmatmul.mubr.f32.gmra.mxu0 %v1428
  %v1724 = vpop.f32.mrf.mxu0
  %v1725 = vadd.f32 0.0, %v1724
  %v1726 = vpop.f32.mrf.mxu0
  %1727 = vmatprep.mubr.f32.mxu0 0.0
  %1728 = vmatmul.mubr.f32.gmra.mxu0 %v1431
  %v1729 = vpop.f32.mrf.mxu0
  %v1730 = vadd.f32 0.0, %v1729
  %v1731 = vpop.f32.mrf.mxu0
  %1732 = vmatprep.mubr.f32.mxu0 0.0
  %1733 = vmatmul.mubr.f32.gmra.mxu0 %v1434
  %v1734 = vpop.f32.mrf.mxu0
  %v1735 = vadd.f32 0.0, %v1734
  %v1736 = vpop.f32.mrf.mxu0
  %1737 = vmatprep.mubr.f32.mxu0 0.0
  %1738 = vmatmul.mubr.f32.gmra.mxu0 %v1437
  %v1739 = vpop.f32.mrf.mxu0
  %v1740 = vadd.f32 0.0, %v1739
  %v1741 = vpop.f32.mrf.mxu0
  %1742 = vmatprep.mubr.f32.mxu0 0.0
  %1743 = vmatmul.mubr.f32.gmra.mxu0 %v1440
  %v1744 = vpop.f32.mrf.mxu0
  %v1745 = vadd.f32 0.0, %v1744
  %v1746 = vpop.f32.mrf.mxu0
  %1747 = vmatprep.mubr.f32.mxu0 0.0
  %1748 = vmatmul.mubr.f32.gmra.mxu0 %v1443
  %v1749 = vpop.f32.mrf.mxu0
  %v1750 = vadd.f32 0.0, %v1749
  %v1751 = vpop.f32.mrf.mxu0
  %1752 = vmatprep.mubr.f32.mxu0 0.0
  %1753 = vmatmul.mubr.f32.gmra.mxu0 %v1446
  %v1754 = vpop.f32.mrf.mxu0
  %v1755 = vadd.f32 0.0, %v1754
  %v1756 = vpop.f32.mrf.mxu0
  %1757 = vmatprep.mubr.f32.mxu0 0.0
  %1758 = vmatmul.mubr.f32.gmra.mxu0 %v1449
  %v1759 = vpop.f32.mrf.mxu0
  %v1760 = vadd.f32 0.0, %v1759
  %v1761 = vpop.f32.mrf.mxu0
  %1762 = vmatprep.mubr.f32.mxu0 0.0
  %1763 = vmatmul.mubr.f32.gmra.mxu0 %v1452
  %v1764 = vpop.f32.mrf.mxu0
  %v1765 = vadd.f32 0.0, %v1764
  %v1766 = vpop.f32.mrf.mxu0
  %1767 = vmatprep.mubr.f32.mxu0 0.0
  %1768 = vmatmul.mubr.f32.gmra.mxu0 %v1455
  %v1769 = vpop.f32.mrf.mxu0
  %v1770 = vadd.f32 0.0, %v1769
  %v1771 = vpop.f32.mrf.mxu0
  %1772 = vmatprep.mubr.f32.mxu0 0.0
  %1773 = vmatmul.mubr.f32.gmra.mxu0 %v1458
  %v1774 = vpop.f32.mrf.mxu0
  %v1775 = vadd.f32 0.0, %v1774
  %v1776 = vpop.f32.mrf.mxu0
  %1777 = vmatprep.mubr.f32.mxu0 0.0
  %1778 = vmatmul.mubr.f32.gmra.mxu0 %v1461
  %v1779 = vpop.f32.mrf.mxu0
  %v1780 = vadd.f32 0.0, %v1779
  %v1781 = vpop.f32.mrf.mxu0
  %1782 = vmatprep.mubr.f32.mxu0 0.0
  %1783 = vmatmul.mubr.f32.gmra.mxu0 %v1464
  %v1784 = vpop.f32.mrf.mxu0
  %v1785 = vadd.f32 0.0, %v1784
  %v1786 = vpop.f32.mrf.mxu0
  %1787 = vmatprep.mubr.f32.mxu0 0.0
  %1788 = vmatmul.mubr.f32.gmra.mxu0 %v1467
  %v1789 = vpop.f32.mrf.mxu0
  %v1790 = vadd.f32 0.0, %v1789
  %v1791 = vpop.f32.mrf.mxu0
  %1792 = vmatprep.mubr.f32.mxu0 0.0
  %1793 = vmatmul.mubr.f32.gmra.mxu0 %v1470
  %v1794 = vpop.f32.mrf.mxu0
  %v1795 = vadd.f32 0.0, %v1794
  %v1796 = vpop.f32.mrf.mxu0
  %1797 = vmatprep.mubr.f32.mxu0 0.0
  %1798 = vmatmul.mubr.f32.gmra.mxu0 %v1473
  %v1799 = vpop.f32.mrf.mxu0
  %v1800 = vadd.f32 0.0, %v1799
  %v1801 = vpop.f32.mrf.mxu0
  %1802 = vmatprep.mubr.f32.mxu0 0.0
  %1803 = vmatmul.mubr.f32.gmra.mxu0 %v1476
  %v1804 = vpop.f32.mrf.mxu0
  %v1805 = vadd.f32 0.0, %v1804
  %v1806 = vpop.f32.mrf.mxu0
  %1807 = vmatprep.mubr.f32.mxu0 0.0
  %1808 = vmatmul.mubr.f32.gmra.mxu0 %v1479
  %v1809 = vpop.f32.mrf.mxu0
  %v1810 = vadd.f32 0.0, %v1809
  %v1811 = vpop.f32.mrf.mxu0
  %1812 = vmatprep.mubr.f32.mxu0 0.0
  %1813 = vmatmul.mubr.f32.gmra.mxu0 %v1482
  %v1814 = vpop.f32.mrf.mxu0
  %v1815 = vadd.f32 0.0, %v1814
  %v1816 = vpop.f32.mrf.mxu0
  %1817 = vmatprep.mubr.f32.mxu0 0.0
  %1818 = vmatmul.mubr.f32.gmra.mxu0 %v1485
  %v1819 = vpop.f32.mrf.mxu0
  %v1820 = vadd.f32 0.0, %v1819
  %v1821 = vpop.f32.mrf.mxu0
  %1822 = vmatprep.mubr.f32.mxu0 0.0
  %1823 = vmatmul.mubr.f32.gmra.mxu0 %v1488
  %v1824 = vpop.f32.mrf.mxu0
  %v1825 = vadd.f32 0.0, %v1824
  %v1826 = vpop.f32.mrf.mxu0
  %1827 = vmatprep.mubr.f32.mxu0 0.0
  %1828 = vmatmul.mubr.f32.gmra.mxu0 %v1491
  %v1829 = vpop.f32.mrf.mxu0
  %v1830 = vadd.f32 0.0, %v1829
  %v1831 = vpop.f32.mrf.mxu0
  %1832 = vmatprep.mubr.f32.mxu0 0.0
  %1833 = vmatmul.mubr.f32.gmra.mxu0 %v1494
  %v1834 = vpop.f32.mrf.mxu0
  %v1835 = vadd.f32 0.0, %v1834
  %v1836 = vpop.f32.mrf.mxu0
  %1837 = vmatprep.mubr.f32.mxu0 0.0
  %1838 = vmatmul.mubr.f32.gmra.mxu0 %v1497
  %v1839 = vpop.f32.mrf.mxu0
  %v1840 = vadd.f32 0.0, %v1839
  %v1841 = vpop.f32.mrf.mxu0
  %1842 = vmatprep.mubr.f32.mxu0 0.0
  %1843 = vmatmul.mubr.f32.gmra.mxu0 %v1500
  %v1844 = vpop.f32.mrf.mxu0
  %v1845 = vadd.f32 0.0, %v1844
  %v1846 = vpop.f32.mrf.mxu0
  %1847 = vmatprep.mubr.f32.mxu0 0.0
  %1848 = vmatmul.mubr.f32.gmra.mxu0 %v1503
  %v1849 = vpop.f32.mrf.mxu0
  %v1850 = vadd.f32 0.0, %v1849
  %v1851 = vpop.f32.mrf.mxu0
  %1852 = vmatprep.mubr.f32.mxu0 0.0
  %1853 = vmatmul.mubr.f32.gmra.mxu0 %v1506
  %v1854 = vpop.f32.mrf.mxu0
  %v1855 = vadd.f32 0.0, %v1854
  %v1856 = vpop.f32.mrf.mxu0
  %1857 = vmatprep.mubr.f32.mxu0 0.0
  %1858 = vmatmul.mubr.f32.gmra.mxu0 %v1509
  %v1859 = vpop.f32.mrf.mxu0
  %v1860 = vadd.f32 0.0, %v1859
  %v1861 = vpop.f32.mrf.mxu0
  %1862 = vmatprep.mubr.f32.mxu0 0.0
  %1863 = vmatmul.mubr.f32.gmra.mxu0 %v1512
  %v1864 = vpop.f32.mrf.mxu0
  %v1865 = vadd.f32 0.0, %v1864
  %v1866 = vpop.f32.mrf.mxu0
  %1867 = vmatprep.mubr.f32.mxu0 0.0
  %1868 = vmatmul.mubr.f32.gmra.mxu0 %v1515
  %v1869 = vpop.f32.mrf.mxu0
  %v1870 = vadd.f32 0.0, %v1869
  %v1871 = vpop.f32.mrf.mxu0
  %1872 = vmatprep.mubr.f32.mxu0 0.0
  %1873 = vmatmul.mubr.f32.gmra.mxu0 %v1518
  %v1874 = vpop.f32.mrf.mxu0
  %v1875 = vadd.f32 0.0, %v1874
  %v1876 = vpop.f32.mrf.mxu0
  %1877 = vmatprep.mubr.f32.mxu0 0.0
  %1878 = vmatmul.mubr.f32.gmra.mxu0 %v1521
  %v1879 = vpop.f32.mrf.mxu0
  %v1880 = vadd.f32 0.0, %v1879
  %v1881 = vpop.f32.mrf.mxu0
  %1882 = vmatprep.mubr.f32.mxu0 0.0
  %1883 = vmatmul.mubr.f32.gmra.mxu0 %v1524
  %v1884 = vpop.f32.mrf.mxu0
  %v1885 = vadd.f32 0.0, %v1884
  %v1886 = vpop.f32.mrf.mxu0
  %1887 = vmatprep.mubr.f32.mxu0 0.0
  %1888 = vmatmul.mubr.f32.gmra.mxu0 %v1527
  %v1889 = vpop.f32.mrf.mxu0
  %v1890 = vadd.f32 0.0, %v1889
  %v1891 = vpop.f32.mrf.mxu0
  %1892 = vmatprep.mubr.f32.mxu0 0.0
  %1893 = vmatmul.mubr.f32.gmra.mxu0 %v1530
  %v1894 = vpop.f32.mrf.mxu0
  %v1895 = vadd.f32 0.0, %v1894
  %v1896 = vpop.f32.mrf.mxu0
  %1897 = vmatprep.mubr.f32.mxu0 0.0
  %1898 = vmatmul.mubr.f32.gmra.mxu0 %v1533
  %v1899 = vpop.f32.mrf.mxu0
  %v1900 = vadd.f32 0.0, %v1899
  %v1901 = vpop.f32.mrf.mxu0
  %1902 = vmatprep.mubr.f32.mxu0 0.0
  %1903 = vmatmul.mubr.f32.gmra.mxu0 %v1536
  %v1904 = vpop.f32.mrf.mxu0
  %v1905 = vadd.f32 0.0, %v1904
  %v1906 = vpop.f32.mrf.mxu0
  %1907 = vmatprep.mubr.f32.mxu0 0.0
  %1908 = vmatmul.mubr.f32.gmra.mxu0 %v1539
  %v1909 = vpop.f32.mrf.mxu0
  %v1910 = vadd.f32 0.0, %v1909
  %v1911 = vpop.f32.mrf.mxu0
  %1912 = vmatprep.mubr.f32.mxu0 0.0
  %1913 = vmatmul.mubr.f32.gmra.mxu0 %v1542
  %v1914 = vpop.f32.mrf.mxu0
  %v1915 = vadd.f32 0.0, %v1914
  %v1916 = vpop.f32.mrf.mxu0
  %1917 = vmatprep.mubr.f32.mxu0 0.0
  %1918 = vmatmul.mubr.f32.gmra.mxu0 %v1545
  %v1919 = vpop.f32.mrf.mxu0
  %v1920 = vadd.f32 0.0, %v1919
  %v1921 = vpop.f32.mrf.mxu0
  %1922 = vmatprep.mubr.f32.mxu0 0.0
  %1923 = vmatmul.mubr.f32.gmra.mxu0 %v1548
  %v1924 = vpop.f32.mrf.mxu0
  %v1925 = vadd.f32 0.0, %v1924
  %v1926 = vpop.f32.mrf.mxu0
  %1927 = vmatprep.mubr.f32.mxu0 0.0
  %1928 = vmatmul.mubr.f32.gmra.mxu0 %v1551
  %v1929 = vpop.f32.mrf.mxu0
  %v1930 = vadd.f32 0.0, %v1929
  %v1931 = vpop.f32.mrf.mxu0
  %1932 = vmatprep.mubr.f32.mxu0 0.0
  %1933 = vmatmul.mubr.f32.gmra.mxu0 %v1554
  %v1934 = vpop.f32.mrf.mxu0
  %v1935 = vadd.f32 0.0, %v1934
  %v1936 = vpop.f32.mrf.mxu0
  %1937 = vmatprep.mubr.f32.mxu0 0.0
  %1938 = vmatmul.mubr.f32.gmra.mxu0 %v1557
  %v1939 = vpop.f32.mrf.mxu0
  %v1940 = vadd.f32 0.0, %v1939
  %v1941 = vpop.f32.mrf.mxu0
  %1942 = vmatprep.mubr.f32.mxu0 0.0
  %1943 = vmatmul.mubr.f32.gmra.mxu0 %v1560
  %v1944 = vpop.f32.mrf.mxu0
  %v1945 = vadd.f32 0.0, %v1944
  %v1946 = vpop.f32.mrf.mxu0
  %1947 = vmatprep.mubr.f32.mxu0 0.0
  %1948 = vmatmul.mubr.f32.gmra.mxu0 %v1563
  %v1949 = vpop.f32.mrf.mxu0
  %v1950 = vadd.f32 0.0, %v1949
  %v1951 = vpop.f32.mrf.mxu0
  %1952 = vdwg.mxu0
  %v1953 = vadd.f32 %v989, %v1635
  %v1954 = vadd.f32 %v994, %v1640
  %v1955 = vadd.f32 %v999, %v1645
  %v1956 = vadd.f32 %v1004, %v1650
  %v1957 = vadd.f32 %v1009, %v1655
  %v1958 = vadd.f32 %v1014, %v1660
  %v1959 = vadd.f32 %v1019, %v1665
  %v1960 = vadd.f32 %v1024, %v1670
  %v1961 = vadd.f32 %v1029, %v1675
  %v1962 = vadd.f32 %v1034, %v1680
  %v1963 = vadd.f32 %v1039, %v1685
  %v1964 = vadd.f32 %v1044, %v1690
  %v1965 = vadd.f32 %v1049, %v1695
  %v1966 = vadd.f32 %v1054, %v1700
  %v1967 = vadd.f32 %v1059, %v1705
  %v1968 = vadd.f32 %v1064, %v1710
  %v1969 = vadd.f32 %v1069, %v1715
  %v1970 = vadd.f32 %v1074, %v1720
  %v1971 = vadd.f32 %v1079, %v1725
  %v1972 = vadd.f32 %v1084, %v1730
  %v1973 = vadd.f32 %v1089, %v1735
  %v1974 = vadd.f32 %v1094, %v1740
  %v1975 = vadd.f32 %v1099, %v1745
  %v1976 = vadd.f32 %v1104, %v1750
  %v1977 = vadd.f32 %v1109, %v1755
  %v1978 = vadd.f32 %v1114, %v1760
  %v1979 = vadd.f32 %v1119, %v1765
  %v1980 = vadd.f32 %v1124, %v1770
  %v1981 = vadd.f32 %v1129, %v1775
  %v1982 = vadd.f32 %v1134, %v1780
  %v1983 = vadd.f32 %v1139, %v1785
  %v1984 = vadd.f32 %v1144, %v1790
  %v1985 = vadd.f32 %v1149, %v1795
  %v1986 = vadd.f32 %v1154, %v1800
  %v1987 = vadd.f32 %v1159, %v1805
  %v1988 = vadd.f32 %v1164, %v1810
  %v1989 = vadd.f32 %v1169, %v1815
  %v1990 = vadd.f32 %v1174, %v1820
  %v1991 = vadd.f32 %v1179, %v1825
  %v1992 = vadd.f32 %v1184, %v1830
  %v1993 = vadd.f32 %v1189, %v1835
  %v1994 = vadd.f32 %v1194, %v1840
  %v1995 = vadd.f32 %v1199, %v1845
  %v1996 = vadd.f32 %v1204, %v1850
  %v1997 = vadd.f32 %v1209, %v1855
  %v1998 = vadd.f32 %v1214, %v1860
  %v1999 = vadd.f32 %v1219, %v1865
  %v2000 = vadd.f32 %v1224, %v1870
  %v2001 = vadd.f32 %v1229, %v1875
  %v2002 = vadd.f32 %v1234, %v1880
  %v2003 = vadd.f32 %v1239, %v1885
  %v2004 = vadd.f32 %v1244, %v1890
  %v2005 = vadd.f32 %v1249, %v1895
  %v2006 = vadd.f32 %v1254, %v1900
  %v2007 = vadd.f32 %v1259, %v1905
  %v2008 = vadd.f32 %v1264, %v1910
  %v2009 = vadd.f32 %v1269, %v1915
  %v2010 = vadd.f32 %v1274, %v1920
  %v2011 = vadd.f32 %v1279, %v1925
  %v2012 = vadd.f32 %v1284, %v1930
  %v2013 = vadd.f32 %v1289, %v1935
  %v2014 = vadd.f32 %v1294, %v1940
  %v2015 = vadd.f32 %v1299, %v1945
  %v2016 = vadd.f32 %v1304, %v1950
  %s2017 = scalar_lea.vmem %s0, 24
  %v2018 = vld [vmem:[%s2017] sm:$0xff]
  %v2019 = vld [vmem:[%s2017 + $0x8] sm:$0xff]
  %v2020 = vld [vmem:[%s2017 + $0x18] sm:$0xff]
  %v2021 = vld [vmem:[%s2017 + $0x20] sm:$0xff]
  %v2022 = vld [vmem:[%s2017 + $0x30] sm:$0xff]
  %v2023 = vld [vmem:[%s2017 + $0x38] sm:$0xff]
  %v2024 = vld [vmem:[%s2017 + $0x48] sm:$0xff]
  %v2025 = vld [vmem:[%s2017 + $0x50] sm:$0xff]
  %v2026 = vld [vmem:[%s2017 + $0x60] sm:$0xff]
  %v2027 = vld [vmem:[%s2017 + $0x68] sm:$0xff]
  %v2028 = vld [vmem:[%s2017 + $0x78] sm:$0xff]
  %v2029 = vld [vmem:[%s2017 + $0x80] sm:$0xff]
  %v2030 = vld [vmem:[%s2017 + $0x90] sm:$0xff]
  %v2031 = vld [vmem:[%s2017 + $0x98] sm:$0xff]
  %v2032 = vld [vmem:[%s2017 + $0xa8] sm:$0xff]
  %v2033 = vld [vmem:[%s2017 + $0xb0] sm:$0xff]
  %v2034 = vld [vmem:[%s2017 + $0xc0] sm:$0xff]
  %v2035 = vld [vmem:[%s2017 + $0xc8] sm:$0xff]
  %v2036 = vld [vmem:[%s2017 + $0xd8] sm:$0xff]
  %v2037 = vld [vmem:[%s2017 + $0xe0] sm:$0xff]
  %v2038 = vld [vmem:[%s2017 + $0xf0] sm:$0xff]
  %v2039 = vld [vmem:[%s2017 + $0xf8] sm:$0xff]
  %v2040 = vld [vmem:[%s2017 + $0x108] sm:$0xff]
  %v2041 = vld [vmem:[%s2017 + $0x110] sm:$0xff]
  %v2042 = vld [vmem:[%s2017 + $0x120] sm:$0xff]
  %v2043 = vld [vmem:[%s2017 + $0x128] sm:$0xff]
  %v2044 = vld [vmem:[%s2017 + $0x138] sm:$0xff]
  %v2045 = vld [vmem:[%s2017 + $0x140] sm:$0xff]
  %v2046 = vld [vmem:[%s2017 + $0x150] sm:$0xff]
  %v2047 = vld [vmem:[%s2017 + $0x158] sm:$0xff]
  %v2048 = vld [vmem:[%s2017 + $0x168] sm:$0xff]
  %v2049 = vld [vmem:[%s2017 + $0x170] sm:$0xff]
  %v2050 = vld [vmem:[%s2017 + $0x1b0] sm:$0xff]
  %v2051 = vld [vmem:[%s2017 + $0x1b8] sm:$0xff]
  %v2052 = vld [vmem:[%s2017 + $0x1c8] sm:$0xff]
  %v2053 = vld [vmem:[%s2017 + $0x1d0] sm:$0xff]
  %v2054 = vld [vmem:[%s2017 + $0x1e0] sm:$0xff]
  %v2055 = vld [vmem:[%s2017 + $0x1e8] sm:$0xff]
  %v2056 = vld [vmem:[%s2017 + $0x1f8] sm:$0xff]
  %v2057 = vld [vmem:[%s2017 + $0x200] sm:$0xff]
  %v2058 = vld [vmem:[%s2017 + $0x210] sm:$0xff]
  %v2059 = vld [vmem:[%s2017 + $0x218] sm:$0xff]
  %v2060 = vld [vmem:[%s2017 + $0x228] sm:$0xff]
  %v2061 = vld [vmem:[%s2017 + $0x230] sm:$0xff]
  %v2062 = vld [vmem:[%s2017 + $0x240] sm:$0xff]
  %v2063 = vld [vmem:[%s2017 + $0x248] sm:$0xff]
  %v2064 = vld [vmem:[%s2017 + $0x258] sm:$0xff]
  %v2065 = vld [vmem:[%s2017 + $0x260] sm:$0xff]
  %v2066 = vld [vmem:[%s2017 + $0x270] sm:$0xff]
  %v2067 = vld [vmem:[%s2017 + $0x278] sm:$0xff]
  %v2068 = vld [vmem:[%s2017 + $0x288] sm:$0xff]
  %v2069 = vld [vmem:[%s2017 + $0x290] sm:$0xff]
  %v2070 = vld [vmem:[%s2017 + $0x2a0] sm:$0xff]
  %v2071 = vld [vmem:[%s2017 + $0x2a8] sm:$0xff]
  %v2072 = vld [vmem:[%s2017 + $0x2b8] sm:$0xff]
  %v2073 = vld [vmem:[%s2017 + $0x2c0] sm:$0xff]
  %v2074 = vld [vmem:[%s2017 + $0x2d0] sm:$0xff]
  %v2075 = vld [vmem:[%s2017 + $0x2d8] sm:$0xff]
  %v2076 = vld [vmem:[%s2017 + $0x2e8] sm:$0xff]
  %v2077 = vld [vmem:[%s2017 + $0x2f0] sm:$0xff]
  %v2078 = vld [vmem:[%s2017 + $0x300] sm:$0xff]
  %v2079 = vld [vmem:[%s2017 + $0x308] sm:$0xff]
  %v2080 = vld [vmem:[%s2017 + $0x318] sm:$0xff]
  %v2081 = vld [vmem:[%s2017 + $0x320] sm:$0xff]
  %s2082 = scalar_lea.vmem %s1, 12
  %v2083 = vld [vmem:[%s2082] sm:$0xf]
  %v2085 = vsel %vm145, %v2018, 0
  %v2088 = vsel %vm145, %v2019, 0
  %v2091 = vsel %vm145, %v2020, 0
  %v2094 = vsel %vm145, %v2021, 0
  %v2097 = vsel %vm145, %v2022, 0
  %v2100 = vsel %vm145, %v2023, 0
  %v2103 = vsel %vm145, %v2024, 0
  %v2106 = vsel %vm145, %v2025, 0
  %v2109 = vsel %vm145, %v2026, 0
  %v2112 = vsel %vm145, %v2027, 0
  %v2115 = vsel %vm145, %v2028, 0
  %v2118 = vsel %vm145, %v2029, 0
  %v2121 = vsel %vm145, %v2030, 0
  %v2124 = vsel %vm145, %v2031, 0
  %v2127 = vsel %vm145, %v2032, 0
  %v2130 = vsel %vm145, %v2033, 0
  %v2133 = vsel %vm145, %v2034, 0
  %v2136 = vsel %vm145, %v2035, 0
  %v2139 = vsel %vm145, %v2036, 0
  %v2142 = vsel %vm145, %v2037, 0
  %v2145 = vsel %vm145, %v2038, 0
  %v2148 = vsel %vm145, %v2039, 0
  %v2151 = vsel %vm145, %v2040, 0
  %v2154 = vsel %vm145, %v2041, 0
  %v2157 = vsel %vm145, %v2042, 0
  %v2160 = vsel %vm145, %v2043, 0
  %v2163 = vsel %vm145, %v2044, 0
  %v2166 = vsel %vm145, %v2045, 0
  %v2169 = vsel %vm145, %v2046, 0
  %v2172 = vsel %vm145, %v2047, 0
  %v2175 = vsel %vm145, %v2048, 0
  %v2178 = vsel %vm145, %v2049, 0
  %v2181 = vsel %vm145, %v2050, 0
  %v2184 = vsel %vm145, %v2051, 0
  %v2187 = vsel %vm145, %v2052, 0
  %v2190 = vsel %vm145, %v2053, 0
  %v2193 = vsel %vm145, %v2054, 0
  %v2196 = vsel %vm145, %v2055, 0
  %v2199 = vsel %vm145, %v2056, 0
  %v2202 = vsel %vm145, %v2057, 0
  %v2205 = vsel %vm145, %v2058, 0
  %v2208 = vsel %vm145, %v2059, 0
  %v2211 = vsel %vm145, %v2060, 0
  %v2214 = vsel %vm145, %v2061, 0
  %v2217 = vsel %vm145, %v2062, 0
  %v2220 = vsel %vm145, %v2063, 0
  %v2223 = vsel %vm145, %v2064, 0
  %v2226 = vsel %vm145, %v2065, 0
  %v2229 = vsel %vm145, %v2066, 0
  %v2232 = vsel %vm145, %v2067, 0
  %v2235 = vsel %vm145, %v2068, 0
  %v2238 = vsel %vm145, %v2069, 0
  %v2241 = vsel %vm145, %v2070, 0
  %v2244 = vsel %vm145, %v2071, 0
  %v2247 = vsel %vm145, %v2072, 0
  %v2250 = vsel %vm145, %v2073, 0
  %v2253 = vsel %vm145, %v2074, 0
  %v2256 = vsel %vm145, %v2075, 0
  %v2259 = vsel %vm145, %v2076, 0
  %v2262 = vsel %vm145, %v2077, 0
  %v2265 = vsel %vm145, %v2078, 0
  %v2268 = vsel %vm145, %v2079, 0
  %v2271 = vsel %vm145, %v2080, 0
  %v2274 = vsel %vm145, %v2081, 0
  %v2277 = vsel %vm338, %v2083, 0
  %2279 = vmatprep.subr.mxu0 0.0
  %2280 = vmatpush1.msra.mxu0 0.0
  %2281 = vmatprep.subr.mxu0 0.0
  %2282 = vmatpush1.msra.mxu0 0.0
  %2283 = vmatprep.subr.mxu0 0.0
  %2284 = vmatpush1.msra.mxu0 0.0
  %2285 = vmatprep.subr.mxu0 0.0
  %2286 = vmatpush1.msra.mxu0 0.0
  %2287 = vmatprep.subr.mxu0 0.0
  %2288 = vmatpush1.msra.mxu0 0.0
  %2289 = vmatprep.subr.mxu0 0.0
  %2290 = vmatpush1.msra.mxu0 0.0
  %2291 = vmatprep.subr.mxu0 0.0
  %2292 = vmatpush1.msra.mxu0 0.0
  %2293 = vmatprep.subr.mxu0 0.0
  %2294 = vmatpush1.msra.mxu0 0.0
  %2295 = vmatprep.subr.mxu0 0.0
  %2296 = vmatpush1.msra.mxu0 0.0
  %2297 = vmatprep.subr.mxu0 0.0
  %2298 = vmatpush1.msra.mxu0 0.0
  %2299 = vmatprep.subr.mxu0 0.0
  %2300 = vmatpush1.msra.mxu0 0.0
  %2301 = vmatprep.subr.mxu0 0.0
  %2302 = vmatpush1.msra.mxu0 0.0
  %2303 = vmatprep.subr.mxu0 0.0
  %2304 = vmatpush1.msra.mxu0 0.0
  %2305 = vmatprep.subr.mxu0 0.0
  %2306 = vmatpush1.msra.mxu0 0.0
  %2307 = vmatprep.subr.mxu0 0.0
  %2308 = vmatpush1.msra.mxu0 0.0
  %2309 = vmatprep.subr.mxu0 0.0
  %2310 = vmatpush1.msra.mxu0 %v2277
  %2311 = vmatprep.subr.mxu0 0.0
  %2312 = vmatpush2.msra.mxu0 0.0
  %2313 = vmatprep.subr.mxu0 0.0
  %2314 = vmatpush2.msra.mxu0 0.0
  %2315 = vmatprep.subr.mxu0 0.0
  %2316 = vmatpush2.msra.mxu0 0.0
  %2317 = vmatprep.subr.mxu0 0.0
  %2318 = vmatpush2.msra.mxu0 0.0
  %2319 = vmatprep.subr.mxu0 0.0
  %2320 = vmatpush2.msra.mxu0 0.0
  %2321 = vmatprep.subr.mxu0 0.0
  %2322 = vmatpush2.msra.mxu0 0.0
  %2323 = vmatprep.subr.mxu0 0.0
  %2324 = vmatpush2.msra.mxu0 0.0
  %2325 = vmatprep.subr.mxu0 0.0
  %2326 = vmatpush2.msra.mxu0 0.0
  %2327 = vmatprep.subr.mxu0 0.0
  %2328 = vmatpush2.msra.mxu0 0.0
  %2329 = vmatprep.subr.mxu0 0.0
  %2330 = vmatpush2.msra.mxu0 0.0
  %2331 = vmatprep.subr.mxu0 0.0
  %2332 = vmatpush2.msra.mxu0 0.0
  %2333 = vmatprep.subr.mxu0 0.0
  %2334 = vmatpush2.msra.mxu0 0.0
  %2335 = vmatprep.subr.mxu0 0.0
  %2336 = vmatpush2.msra.mxu0 0.0
  %2337 = vmatprep.subr.mxu0 0.0
  %2338 = vmatpush2.msra.mxu0 0.0
  %2339 = vmatprep.subr.mxu0 0.0
  %2340 = vmatpush2.msra.mxu0 0.0
  %2341 = vmatprep.subr.mxu0 0.0
  %2342 = vmatpush2.msra.mxu0 0.0
  %2343 = vmatprep.mubr.f32.mxu0 0.0
  %2344 = vmatmul.mubr.f32.gmra.mxu0 %v2085
  %v2345 = vpop.f32.mrf.mxu0
  %v2346 = vadd.f32 0.0, %v2345
  %v2347 = vpop.f32.mrf.mxu0
  %2348 = vmatprep.mubr.f32.mxu0 0.0
  %2349 = vmatmul.mubr.f32.gmra.mxu0 %v2088
  %v2350 = vpop.f32.mrf.mxu0
  %v2351 = vadd.f32 0.0, %v2350
  %v2352 = vpop.f32.mrf.mxu0
  %2353 = vmatprep.mubr.f32.mxu0 0.0
  %2354 = vmatmul.mubr.f32.gmra.mxu0 %v2091
  %v2355 = vpop.f32.mrf.mxu0
  %v2356 = vadd.f32 0.0, %v2355
  %v2357 = vpop.f32.mrf.mxu0
  %2358 = vmatprep.mubr.f32.mxu0 0.0
  %2359 = vmatmul.mubr.f32.gmra.mxu0 %v2094
  %v2360 = vpop.f32.mrf.mxu0
  %v2361 = vadd.f32 0.0, %v2360
  %v2362 = vpop.f32.mrf.mxu0
  %2363 = vmatprep.mubr.f32.mxu0 0.0
  %2364 = vmatmul.mubr.f32.gmra.mxu0 %v2097
  %v2365 = vpop.f32.mrf.mxu0
  %v2366 = vadd.f32 0.0, %v2365
  %v2367 = vpop.f32.mrf.mxu0
  %2368 = vmatprep.mubr.f32.mxu0 0.0
  %2369 = vmatmul.mubr.f32.gmra.mxu0 %v2100
  %v2370 = vpop.f32.mrf.mxu0
  %v2371 = vadd.f32 0.0, %v2370
  %v2372 = vpop.f32.mrf.mxu0
  %2373 = vmatprep.mubr.f32.mxu0 0.0
  %2374 = vmatmul.mubr.f32.gmra.mxu0 %v2103
  %v2375 = vpop.f32.mrf.mxu0
  %v2376 = vadd.f32 0.0, %v2375
  %v2377 = vpop.f32.mrf.mxu0
  %2378 = vmatprep.mubr.f32.mxu0 0.0
  %2379 = vmatmul.mubr.f32.gmra.mxu0 %v2106
  %v2380 = vpop.f32.mrf.mxu0
  %v2381 = vadd.f32 0.0, %v2380
  %v2382 = vpop.f32.mrf.mxu0
  %2383 = vmatprep.mubr.f32.mxu0 0.0
  %2384 = vmatmul.mubr.f32.gmra.mxu0 %v2109
  %v2385 = vpop.f32.mrf.mxu0
  %v2386 = vadd.f32 0.0, %v2385
  %v2387 = vpop.f32.mrf.mxu0
  %2388 = vmatprep.mubr.f32.mxu0 0.0
  %2389 = vmatmul.mubr.f32.gmra.mxu0 %v2112
  %v2390 = vpop.f32.mrf.mxu0
  %v2391 = vadd.f32 0.0, %v2390
  %v2392 = vpop.f32.mrf.mxu0
  %2393 = vmatprep.mubr.f32.mxu0 0.0
  %2394 = vmatmul.mubr.f32.gmra.mxu0 %v2115
  %v2395 = vpop.f32.mrf.mxu0
  %v2396 = vadd.f32 0.0, %v2395
  %v2397 = vpop.f32.mrf.mxu0
  %2398 = vmatprep.mubr.f32.mxu0 0.0
  %2399 = vmatmul.mubr.f32.gmra.mxu0 %v2118
  %v2400 = vpop.f32.mrf.mxu0
  %v2401 = vadd.f32 0.0, %v2400
  %v2402 = vpop.f32.mrf.mxu0
  %2403 = vmatprep.mubr.f32.mxu0 0.0
  %2404 = vmatmul.mubr.f32.gmra.mxu0 %v2121
  %v2405 = vpop.f32.mrf.mxu0
  %v2406 = vadd.f32 0.0, %v2405
  %v2407 = vpop.f32.mrf.mxu0
  %2408 = vmatprep.mubr.f32.mxu0 0.0
  %2409 = vmatmul.mubr.f32.gmra.mxu0 %v2124
  %v2410 = vpop.f32.mrf.mxu0
  %v2411 = vadd.f32 0.0, %v2410
  %v2412 = vpop.f32.mrf.mxu0
  %2413 = vmatprep.mubr.f32.mxu0 0.0
  %2414 = vmatmul.mubr.f32.gmra.mxu0 %v2127
  %v2415 = vpop.f32.mrf.mxu0
  %v2416 = vadd.f32 0.0, %v2415
  %v2417 = vpop.f32.mrf.mxu0
  %2418 = vmatprep.mubr.f32.mxu0 0.0
  %2419 = vmatmul.mubr.f32.gmra.mxu0 %v2130
  %v2420 = vpop.f32.mrf.mxu0
  %v2421 = vadd.f32 0.0, %v2420
  %v2422 = vpop.f32.mrf.mxu0
  %2423 = vmatprep.mubr.f32.mxu0 0.0
  %2424 = vmatmul.mubr.f32.gmra.mxu0 %v2133
  %v2425 = vpop.f32.mrf.mxu0
  %v2426 = vadd.f32 0.0, %v2425
  %v2427 = vpop.f32.mrf.mxu0
  %2428 = vmatprep.mubr.f32.mxu0 0.0
  %2429 = vmatmul.mubr.f32.gmra.mxu0 %v2136
  %v2430 = vpop.f32.mrf.mxu0
  %v2431 = vadd.f32 0.0, %v2430
  %v2432 = vpop.f32.mrf.mxu0
  %2433 = vmatprep.mubr.f32.mxu0 0.0
  %2434 = vmatmul.mubr.f32.gmra.mxu0 %v2139
  %v2435 = vpop.f32.mrf.mxu0
  %v2436 = vadd.f32 0.0, %v2435
  %v2437 = vpop.f32.mrf.mxu0
  %2438 = vmatprep.mubr.f32.mxu0 0.0
  %2439 = vmatmul.mubr.f32.gmra.mxu0 %v2142
  %v2440 = vpop.f32.mrf.mxu0
  %v2441 = vadd.f32 0.0, %v2440
  %v2442 = vpop.f32.mrf.mxu0
  %2443 = vmatprep.mubr.f32.mxu0 0.0
  %2444 = vmatmul.mubr.f32.gmra.mxu0 %v2145
  %v2445 = vpop.f32.mrf.mxu0
  %v2446 = vadd.f32 0.0, %v2445
  %v2447 = vpop.f32.mrf.mxu0
  %2448 = vmatprep.mubr.f32.mxu0 0.0
  %2449 = vmatmul.mubr.f32.gmra.mxu0 %v2148
  %v2450 = vpop.f32.mrf.mxu0
  %v2451 = vadd.f32 0.0, %v2450
  %v2452 = vpop.f32.mrf.mxu0
  %2453 = vmatprep.mubr.f32.mxu0 0.0
  %2454 = vmatmul.mubr.f32.gmra.mxu0 %v2151
  %v2455 = vpop.f32.mrf.mxu0
  %v2456 = vadd.f32 0.0, %v2455
  %v2457 = vpop.f32.mrf.mxu0
  %2458 = vmatprep.mubr.f32.mxu0 0.0
  %2459 = vmatmul.mubr.f32.gmra.mxu0 %v2154
  %v2460 = vpop.f32.mrf.mxu0
  %v2461 = vadd.f32 0.0, %v2460
  %v2462 = vpop.f32.mrf.mxu0
  %2463 = vmatprep.mubr.f32.mxu0 0.0
  %2464 = vmatmul.mubr.f32.gmra.mxu0 %v2157
  %v2465 = vpop.f32.mrf.mxu0
  %v2466 = vadd.f32 0.0, %v2465
  %v2467 = vpop.f32.mrf.mxu0
  %2468 = vmatprep.mubr.f32.mxu0 0.0
  %2469 = vmatmul.mubr.f32.gmra.mxu0 %v2160
  %v2470 = vpop.f32.mrf.mxu0
  %v2471 = vadd.f32 0.0, %v2470
  %v2472 = vpop.f32.mrf.mxu0
  %2473 = vmatprep.mubr.f32.mxu0 0.0
  %2474 = vmatmul.mubr.f32.gmra.mxu0 %v2163
  %v2475 = vpop.f32.mrf.mxu0
  %v2476 = vadd.f32 0.0, %v2475
  %v2477 = vpop.f32.mrf.mxu0
  %2478 = vmatprep.mubr.f32.mxu0 0.0
  %2479 = vmatmul.mubr.f32.gmra.mxu0 %v2166
  %v2480 = vpop.f32.mrf.mxu0
  %v2481 = vadd.f32 0.0, %v2480
  %v2482 = vpop.f32.mrf.mxu0
  %2483 = vmatprep.mubr.f32.mxu0 0.0
  %2484 = vmatmul.mubr.f32.gmra.mxu0 %v2169
  %v2485 = vpop.f32.mrf.mxu0
  %v2486 = vadd.f32 0.0, %v2485
  %v2487 = vpop.f32.mrf.mxu0
  %2488 = vmatprep.mubr.f32.mxu0 0.0
  %2489 = vmatmul.mubr.f32.gmra.mxu0 %v2172
  %v2490 = vpop.f32.mrf.mxu0
  %v2491 = vadd.f32 0.0, %v2490
  %v2492 = vpop.f32.mrf.mxu0
  %2493 = vmatprep.mubr.f32.mxu0 0.0
  %2494 = vmatmul.mubr.f32.gmra.mxu0 %v2175
  %v2495 = vpop.f32.mrf.mxu0
  %v2496 = vadd.f32 0.0, %v2495
  %v2497 = vpop.f32.mrf.mxu0
  %2498 = vmatprep.mubr.f32.mxu0 0.0
  %2499 = vmatmul.mubr.f32.gmra.mxu0 %v2178
  %v2500 = vpop.f32.mrf.mxu0
  %v2501 = vadd.f32 0.0, %v2500
  %v2502 = vpop.f32.mrf.mxu0
  %2503 = vmatprep.mubr.f32.mxu0 0.0
  %2504 = vmatmul.mubr.f32.gmra.mxu0 %v2181
  %v2505 = vpop.f32.mrf.mxu0
  %v2506 = vadd.f32 0.0, %v2505
  %v2507 = vpop.f32.mrf.mxu0
  %2508 = vmatprep.mubr.f32.mxu0 0.0
  %2509 = vmatmul.mubr.f32.gmra.mxu0 %v2184
  %v2510 = vpop.f32.mrf.mxu0
  %v2511 = vadd.f32 0.0, %v2510
  %v2512 = vpop.f32.mrf.mxu0
  %2513 = vmatprep.mubr.f32.mxu0 0.0
  %2514 = vmatmul.mubr.f32.gmra.mxu0 %v2187
  %v2515 = vpop.f32.mrf.mxu0
  %v2516 = vadd.f32 0.0, %v2515
  %v2517 = vpop.f32.mrf.mxu0
  %2518 = vmatprep.mubr.f32.mxu0 0.0
  %2519 = vmatmul.mubr.f32.gmra.mxu0 %v2190
  %v2520 = vpop.f32.mrf.mxu0
  %v2521 = vadd.f32 0.0, %v2520
  %v2522 = vpop.f32.mrf.mxu0
  %2523 = vmatprep.mubr.f32.mxu0 0.0
  %2524 = vmatmul.mubr.f32.gmra.mxu0 %v2193
  %v2525 = vpop.f32.mrf.mxu0
  %v2526 = vadd.f32 0.0, %v2525
  %v2527 = vpop.f32.mrf.mxu0
  %2528 = vmatprep.mubr.f32.mxu0 0.0
  %2529 = vmatmul.mubr.f32.gmra.mxu0 %v2196
  %v2530 = vpop.f32.mrf.mxu0
  %v2531 = vadd.f32 0.0, %v2530
  %v2532 = vpop.f32.mrf.mxu0
  %2533 = vmatprep.mubr.f32.mxu0 0.0
  %2534 = vmatmul.mubr.f32.gmra.mxu0 %v2199
  %v2535 = vpop.f32.mrf.mxu0
  %v2536 = vadd.f32 0.0, %v2535
  %v2537 = vpop.f32.mrf.mxu0
  %2538 = vmatprep.mubr.f32.mxu0 0.0
  %2539 = vmatmul.mubr.f32.gmra.mxu0 %v2202
  %v2540 = vpop.f32.mrf.mxu0
  %v2541 = vadd.f32 0.0, %v2540
  %v2542 = vpop.f32.mrf.mxu0
  %2543 = vmatprep.mubr.f32.mxu0 0.0
  %2544 = vmatmul.mubr.f32.gmra.mxu0 %v2205
  %v2545 = vpop.f32.mrf.mxu0
  %v2546 = vadd.f32 0.0, %v2545
  %v2547 = vpop.f32.mrf.mxu0
  %2548 = vmatprep.mubr.f32.mxu0 0.0
  %2549 = vmatmul.mubr.f32.gmra.mxu0 %v2208
  %v2550 = vpop.f32.mrf.mxu0
  %v2551 = vadd.f32 0.0, %v2550
  %v2552 = vpop.f32.mrf.mxu0
  %2553 = vmatprep.mubr.f32.mxu0 0.0
  %2554 = vmatmul.mubr.f32.gmra.mxu0 %v2211
  %v2555 = vpop.f32.mrf.mxu0
  %v2556 = vadd.f32 0.0, %v2555
  %v2557 = vpop.f32.mrf.mxu0
  %2558 = vmatprep.mubr.f32.mxu0 0.0
  %2559 = vmatmul.mubr.f32.gmra.mxu0 %v2214
  %v2560 = vpop.f32.mrf.mxu0
  %v2561 = vadd.f32 0.0, %v2560
  %v2562 = vpop.f32.mrf.mxu0
  %2563 = vmatprep.mubr.f32.mxu0 0.0
  %2564 = vmatmul.mubr.f32.gmra.mxu0 %v2217
  %v2565 = vpop.f32.mrf.mxu0
  %v2566 = vadd.f32 0.0, %v2565
  %v2567 = vpop.f32.mrf.mxu0
  %2568 = vmatprep.mubr.f32.mxu0 0.0
  %2569 = vmatmul.mubr.f32.gmra.mxu0 %v2220
  %v2570 = vpop.f32.mrf.mxu0
  %v2571 = vadd.f32 0.0, %v2570
  %v2572 = vpop.f32.mrf.mxu0
  %2573 = vmatprep.mubr.f32.mxu0 0.0
  %2574 = vmatmul.mubr.f32.gmra.mxu0 %v2223
  %v2575 = vpop.f32.mrf.mxu0
  %v2576 = vadd.f32 0.0, %v2575
  %v2577 = vpop.f32.mrf.mxu0
  %2578 = vmatprep.mubr.f32.mxu0 0.0
  %2579 = vmatmul.mubr.f32.gmra.mxu0 %v2226
  %v2580 = vpop.f32.mrf.mxu0
  %v2581 = vadd.f32 0.0, %v2580
  %v2582 = vpop.f32.mrf.mxu0
  %2583 = vmatprep.mubr.f32.mxu0 0.0
  %2584 = vmatmul.mubr.f32.gmra.mxu0 %v2229
  %v2585 = vpop.f32.mrf.mxu0
  %v2586 = vadd.f32 0.0, %v2585
  %v2587 = vpop.f32.mrf.mxu0
  %2588 = vmatprep.mubr.f32.mxu0 0.0
  %2589 = vmatmul.mubr.f32.gmra.mxu0 %v2232
  %v2590 = vpop.f32.mrf.mxu0
  %v2591 = vadd.f32 0.0, %v2590
  %v2592 = vpop.f32.mrf.mxu0
  %2593 = vmatprep.mubr.f32.mxu0 0.0
  %2594 = vmatmul.mubr.f32.gmra.mxu0 %v2235
  %v2595 = vpop.f32.mrf.mxu0
  %v2596 = vadd.f32 0.0, %v2595
  %v2597 = vpop.f32.mrf.mxu0
  %2598 = vmatprep.mubr.f32.mxu0 0.0
  %2599 = vmatmul.mubr.f32.gmra.mxu0 %v2238
  %v2600 = vpop.f32.mrf.mxu0
  %v2601 = vadd.f32 0.0, %v2600
  %v2602 = vpop.f32.mrf.mxu0
  %2603 = vmatprep.mubr.f32.mxu0 0.0
  %2604 = vmatmul.mubr.f32.gmra.mxu0 %v2241
  %v2605 = vpop.f32.mrf.mxu0
  %v2606 = vadd.f32 0.0, %v2605
  %v2607 = vpop.f32.mrf.mxu0
  %2608 = vmatprep.mubr.f32.mxu0 0.0
  %2609 = vmatmul.mubr.f32.gmra.mxu0 %v2244
  %v2610 = vpop.f32.mrf.mxu0
  %v2611 = vadd.f32 0.0, %v2610
  %v2612 = vpop.f32.mrf.mxu0
  %2613 = vmatprep.mubr.f32.mxu0 0.0
  %2614 = vmatmul.mubr.f32.gmra.mxu0 %v2247
  %v2615 = vpop.f32.mrf.mxu0
  %v2616 = vadd.f32 0.0, %v2615
  %v2617 = vpop.f32.mrf.mxu0
  %2618 = vmatprep.mubr.f32.mxu0 0.0
  %2619 = vmatmul.mubr.f32.gmra.mxu0 %v2250
  %v2620 = vpop.f32.mrf.mxu0
  %v2621 = vadd.f32 0.0, %v2620
  %v2622 = vpop.f32.mrf.mxu0
  %2623 = vmatprep.mubr.f32.mxu0 0.0
  %2624 = vmatmul.mubr.f32.gmra.mxu0 %v2253
  %v2625 = vpop.f32.mrf.mxu0
  %v2626 = vadd.f32 0.0, %v2625
  %v2627 = vpop.f32.mrf.mxu0
  %2628 = vmatprep.mubr.f32.mxu0 0.0
  %2629 = vmatmul.mubr.f32.gmra.mxu0 %v2256
  %v2630 = vpop.f32.mrf.mxu0
  %v2631 = vadd.f32 0.0, %v2630
  %v2632 = vpop.f32.mrf.mxu0
  %2633 = vmatprep.mubr.f32.mxu0 0.0
  %2634 = vmatmul.mubr.f32.gmra.mxu0 %v2259
  %v2635 = vpop.f32.mrf.mxu0
  %v2636 = vadd.f32 0.0, %v2635
  %v2637 = vpop.f32.mrf.mxu0
  %2638 = vmatprep.mubr.f32.mxu0 0.0
  %2639 = vmatmul.mubr.f32.gmra.mxu0 %v2262
  %v2640 = vpop.f32.mrf.mxu0
  %v2641 = vadd.f32 0.0, %v2640
  %v2642 = vpop.f32.mrf.mxu0
  %2643 = vmatprep.mubr.f32.mxu0 0.0
  %2644 = vmatmul.mubr.f32.gmra.mxu0 %v2265
  %v2645 = vpop.f32.mrf.mxu0
  %v2646 = vadd.f32 0.0, %v2645
  %v2647 = vpop.f32.mrf.mxu0
  %2648 = vmatprep.mubr.f32.mxu0 0.0
  %2649 = vmatmul.mubr.f32.gmra.mxu0 %v2268
  %v2650 = vpop.f32.mrf.mxu0
  %v2651 = vadd.f32 0.0, %v2650
  %v2652 = vpop.f32.mrf.mxu0
  %2653 = vmatprep.mubr.f32.mxu0 0.0
  %2654 = vmatmul.mubr.f32.gmra.mxu0 %v2271
  %v2655 = vpop.f32.mrf.mxu0
  %v2656 = vadd.f32 0.0, %v2655
  %v2657 = vpop.f32.mrf.mxu0
  %2658 = vmatprep.mubr.f32.mxu0 0.0
  %2659 = vmatmul.mubr.f32.gmra.mxu0 %v2274
  %v2660 = vpop.f32.mrf.mxu0
  %v2661 = vadd.f32 0.0, %v2660
  %v2662 = vpop.f32.mrf.mxu0
  %2663 = vdwg.mxu0
  %v2664 = vadd.f32 %v1953, %v2346
  %v2665 = vadd.f32 %v1954, %v2351
  %v2666 = vadd.f32 %v1955, %v2356
  %v2667 = vadd.f32 %v1956, %v2361
  %v2668 = vadd.f32 %v1957, %v2366
  %v2669 = vadd.f32 %v1958, %v2371
  %v2670 = vadd.f32 %v1959, %v2376
  %v2671 = vadd.f32 %v1960, %v2381
  %v2672 = vadd.f32 %v1961, %v2386
  %v2673 = vadd.f32 %v1962, %v2391
  %v2674 = vadd.f32 %v1963, %v2396
  %v2675 = vadd.f32 %v1964, %v2401
  %v2676 = vadd.f32 %v1965, %v2406
  %v2677 = vadd.f32 %v1966, %v2411
  %v2678 = vadd.f32 %v1967, %v2416
  %v2679 = vadd.f32 %v1968, %v2421
  %v2680 = vadd.f32 %v1969, %v2426
  %v2681 = vadd.f32 %v1970, %v2431
  %v2682 = vadd.f32 %v1971, %v2436
  %v2683 = vadd.f32 %v1972, %v2441
  %v2684 = vadd.f32 %v1973, %v2446
  %v2685 = vadd.f32 %v1974, %v2451
  %v2686 = vadd.f32 %v1975, %v2456
  %v2687 = vadd.f32 %v1976, %v2461
  %v2688 = vadd.f32 %v1977, %v2466
  %v2689 = vadd.f32 %v1978, %v2471
  %v2690 = vadd.f32 %v1979, %v2476
  %v2691 = vadd.f32 %v1980, %v2481
  %v2692 = vadd.f32 %v1981, %v2486
  %v2693 = vadd.f32 %v1982, %v2491
  %v2694 = vadd.f32 %v1983, %v2496
  %v2695 = vadd.f32 %v1984, %v2501
  %v2696 = vadd.f32 %v1985, %v2506
  %v2697 = vadd.f32 %v1986, %v2511
  %v2698 = vadd.f32 %v1987, %v2516
  %v2699 = vadd.f32 %v1988, %v2521
  %v2700 = vadd.f32 %v1989, %v2526
  %v2701 = vadd.f32 %v1990, %v2531
  %v2702 = vadd.f32 %v1991, %v2536
  %v2703 = vadd.f32 %v1992, %v2541
  %v2704 = vadd.f32 %v1993, %v2546
  %v2705 = vadd.f32 %v1994, %v2551
  %v2706 = vadd.f32 %v1995, %v2556
  %v2707 = vadd.f32 %v1996, %v2561
  %v2708 = vadd.f32 %v1997, %v2566
  %v2709 = vadd.f32 %v1998, %v2571
  %v2710 = vadd.f32 %v1999, %v2576
  %v2711 = vadd.f32 %v2000, %v2581
  %v2712 = vadd.f32 %v2001, %v2586
  %v2713 = vadd.f32 %v2002, %v2591
  %v2714 = vadd.f32 %v2003, %v2596
  %v2715 = vadd.f32 %v2004, %v2601
  %v2716 = vadd.f32 %v2005, %v2606
  %v2717 = vadd.f32 %v2006, %v2611
  %v2718 = vadd.f32 %v2007, %v2616
  %v2719 = vadd.f32 %v2008, %v2621
  %v2720 = vadd.f32 %v2009, %v2626
  %v2721 = vadd.f32 %v2010, %v2631
  %v2722 = vadd.f32 %v2011, %v2636
  %v2723 = vadd.f32 %v2012, %v2641
  %v2724 = vadd.f32 %v2013, %v2646
  %v2725 = vadd.f32 %v2014, %v2651
  %v2726 = vadd.f32 %v2015, %v2656
  %v2727 = vadd.f32 %v2016, %v2661
  %v2728 = vld [vmem:[%s2017 + $0x1] sm:$0xff]
  %v2729 = vld [vmem:[%s2017 + $0x9] sm:$0xff]
  %v2730 = vld [vmem:[%s2017 + $0x19] sm:$0xff]
  %v2731 = vld [vmem:[%s2017 + $0x21] sm:$0xff]
  %v2732 = vld [vmem:[%s2017 + $0x31] sm:$0xff]
  %v2733 = vld [vmem:[%s2017 + $0x39] sm:$0xff]
  %v2734 = vld [vmem:[%s2017 + $0x49] sm:$0xff]
  %v2735 = vld [vmem:[%s2017 + $0x51] sm:$0xff]
  %v2736 = vld [vmem:[%s2017 + $0x61] sm:$0xff]
  %v2737 = vld [vmem:[%s2017 + $0x69] sm:$0xff]
  %v2738 = vld [vmem:[%s2017 + $0x79] sm:$0xff]
  %v2739 = vld [vmem:[%s2017 + $0x81] sm:$0xff]
  %v2740 = vld [vmem:[%s2017 + $0x91] sm:$0xff]
  %v2741 = vld [vmem:[%s2017 + $0x99] sm:$0xff]
  %v2742 = vld [vmem:[%s2017 + $0xa9] sm:$0xff]
  %v2743 = vld [vmem:[%s2017 + $0xb1] sm:$0xff]
  %v2744 = vld [vmem:[%s2017 + $0xc1] sm:$0xff]
  %v2745 = vld [vmem:[%s2017 + $0xc9] sm:$0xff]
  %v2746 = vld [vmem:[%s2017 + $0xd9] sm:$0xff]
  %v2747 = vld [vmem:[%s2017 + $0xe1] sm:$0xff]
  %v2748 = vld [vmem:[%s2017 + $0xf1] sm:$0xff]
  %v2749 = vld [vmem:[%s2017 + $0xf9] sm:$0xff]
  %v2750 = vld [vmem:[%s2017 + $0x109] sm:$0xff]
  %v2751 = vld [vmem:[%s2017 + $0x111] sm:$0xff]
  %v2752 = vld [vmem:[%s2017 + $0x121] sm:$0xff]
  %v2753 = vld [vmem:[%s2017 + $0x129] sm:$0xff]
  %v2754 = vld [vmem:[%s2017 + $0x139] sm:$0xff]
  %v2755 = vld [vmem:[%s2017 + $0x141] sm:$0xff]
  %v2756 = vld [vmem:[%s2017 + $0x151] sm:$0xff]
  %v2757 = vld [vmem:[%s2017 + $0x159] sm:$0xff]
  %v2758 = vld [vmem:[%s2017 + $0x169] sm:$0xff]
  %v2759 = vld [vmem:[%s2017 + $0x171] sm:$0xff]
  %v2760 = vld [vmem:[%s2017 + $0x1b1] sm:$0xff]
  %v2761 = vld [vmem:[%s2017 + $0x1b9] sm:$0xff]
  %v2762 = vld [vmem:[%s2017 + $0x1c9] sm:$0xff]
  %v2763 = vld [vmem:[%s2017 + $0x1d1] sm:$0xff]
  %v2764 = vld [vmem:[%s2017 + $0x1e1] sm:$0xff]
  %v2765 = vld [vmem:[%s2017 + $0x1e9] sm:$0xff]
  %v2766 = vld [vmem:[%s2017 + $0x1f9] sm:$0xff]
  %v2767 = vld [vmem:[%s2017 + $0x201] sm:$0xff]
  %v2768 = vld [vmem:[%s2017 + $0x211] sm:$0xff]
  %v2769 = vld [vmem:[%s2017 + $0x219] sm:$0xff]
  %v2770 = vld [vmem:[%s2017 + $0x229] sm:$0xff]
  %v2771 = vld [vmem:[%s2017 + $0x231] sm:$0xff]
  %v2772 = vld [vmem:[%s2017 + $0x241] sm:$0xff]
  %v2773 = vld [vmem:[%s2017 + $0x249] sm:$0xff]
  %v2774 = vld [vmem:[%s2017 + $0x259] sm:$0xff]
  %v2775 = vld [vmem:[%s2017 + $0x261] sm:$0xff]
  %v2776 = vld [vmem:[%s2017 + $0x271] sm:$0xff]
  %v2777 = vld [vmem:[%s2017 + $0x279] sm:$0xff]
  %v2778 = vld [vmem:[%s2017 + $0x289] sm:$0xff]
  %v2779 = vld [vmem:[%s2017 + $0x291] sm:$0xff]
  %v2780 = vld [vmem:[%s2017 + $0x2a1] sm:$0xff]
  %v2781 = vld [vmem:[%s2017 + $0x2a9] sm:$0xff]
  %v2782 = vld [vmem:[%s2017 + $0x2b9] sm:$0xff]
  %v2783 = vld [vmem:[%s2017 + $0x2c1] sm:$0xff]
  %v2784 = vld [vmem:[%s2017 + $0x2d1] sm:$0xff]
  %v2785 = vld [vmem:[%s2017 + $0x2d9] sm:$0xff]
  %v2786 = vld [vmem:[%s2017 + $0x2e9] sm:$0xff]
  %v2787 = vld [vmem:[%s2017 + $0x2f1] sm:$0xff]
  %v2788 = vld [vmem:[%s2017 + $0x301] sm:$0xff]
  %v2789 = vld [vmem:[%s2017 + $0x309] sm:$0xff]
  %v2790 = vld [vmem:[%s2017 + $0x319] sm:$0xff]
  %v2791 = vld [vmem:[%s2017 + $0x321] sm:$0xff]
  %s2792 = scalar_lea.vmem %s1, 16
  %v2793 = vld [vmem:[%s2792] sm:$0xf]
  %v2795 = vsel %vm145, %v2728, 0
  %v2798 = vsel %vm145, %v2729, 0
  %v2801 = vsel %vm145, %v2730, 0
  %v2804 = vsel %vm145, %v2731, 0
  %v2807 = vsel %vm145, %v2732, 0
  %v2810 = vsel %vm145, %v2733, 0
  %v2813 = vsel %vm145, %v2734, 0
  %v2816 = vsel %vm145, %v2735, 0
  %v2819 = vsel %vm145, %v2736, 0
  %v2822 = vsel %vm145, %v2737, 0
  %v2825 = vsel %vm145, %v2738, 0
  %v2828 = vsel %vm145, %v2739, 0
  %v2831 = vsel %vm145, %v2740, 0
  %v2834 = vsel %vm145, %v2741, 0
  %v2837 = vsel %vm145, %v2742, 0
  %v2840 = vsel %vm145, %v2743, 0
  %v2843 = vsel %vm145, %v2744, 0
  %v2846 = vsel %vm145, %v2745, 0
  %v2849 = vsel %vm145, %v2746, 0
  %v2852 = vsel %vm145, %v2747, 0
  %v2855 = vsel %vm145, %v2748, 0
  %v2858 = vsel %vm145, %v2749, 0
  %v2861 = vsel %vm145, %v2750, 0
  %v2864 = vsel %vm145, %v2751, 0
  %v2867 = vsel %vm145, %v2752, 0
  %v2870 = vsel %vm145, %v2753, 0
  %v2873 = vsel %vm145, %v2754, 0
  %v2876 = vsel %vm145, %v2755, 0
  %v2879 = vsel %vm145, %v2756, 0
  %v2882 = vsel %vm145, %v2757, 0
  %v2885 = vsel %vm145, %v2758, 0
  %v2888 = vsel %vm145, %v2759, 0
  %v2891 = vsel %vm145, %v2760, 0
  %v2894 = vsel %vm145, %v2761, 0
  %v2897 = vsel %vm145, %v2762, 0
  %v2900 = vsel %vm145, %v2763, 0
  %v2903 = vsel %vm145, %v2764, 0
  %v2906 = vsel %vm145, %v2765, 0
  %v2909 = vsel %vm145, %v2766, 0
  %v2912 = vsel %vm145, %v2767, 0
  %v2915 = vsel %vm145, %v2768, 0
  %v2918 = vsel %vm145, %v2769, 0
  %v2921 = vsel %vm145, %v2770, 0
  %v2924 = vsel %vm145, %v2771, 0
  %v2927 = vsel %vm145, %v2772, 0
  %v2930 = vsel %vm145, %v2773, 0
  %v2933 = vsel %vm145, %v2774, 0
  %v2936 = vsel %vm145, %v2775, 0
  %v2939 = vsel %vm145, %v2776, 0
  %v2942 = vsel %vm145, %v2777, 0
  %v2945 = vsel %vm145, %v2778, 0
  %v2948 = vsel %vm145, %v2779, 0
  %v2951 = vsel %vm145, %v2780, 0
  %v2954 = vsel %vm145, %v2781, 0
  %v2957 = vsel %vm145, %v2782, 0
  %v2960 = vsel %vm145, %v2783, 0
  %v2963 = vsel %vm145, %v2784, 0
  %v2966 = vsel %vm145, %v2785, 0
  %v2969 = vsel %vm145, %v2786, 0
  %v2972 = vsel %vm145, %v2787, 0
  %v2975 = vsel %vm145, %v2788, 0
  %v2978 = vsel %vm145, %v2789, 0
  %v2981 = vsel %vm145, %v2790, 0
  %v2984 = vsel %vm145, %v2791, 0
  %v2987 = vsel %vm338, %v2793, 0
  %2989 = vmatprep.subr.mxu0 0.0
  %2990 = vmatpush1.msra.mxu0 0.0
  %2991 = vmatprep.subr.mxu0 0.0
  %2992 = vmatpush1.msra.mxu0 0.0
  %2993 = vmatprep.subr.mxu0 0.0
  %2994 = vmatpush1.msra.mxu0 0.0
  %2995 = vmatprep.subr.mxu0 0.0
  %2996 = vmatpush1.msra.mxu0 0.0
  %2997 = vmatprep.subr.mxu0 0.0
  %2998 = vmatpush1.msra.mxu0 0.0
  %2999 = vmatprep.subr.mxu0 0.0
  %3000 = vmatpush1.msra.mxu0 0.0
  %3001 = vmatprep.subr.mxu0 0.0
  %3002 = vmatpush1.msra.mxu0 0.0
  %3003 = vmatprep.subr.mxu0 0.0
  %3004 = vmatpush1.msra.mxu0 0.0
  %3005 = vmatprep.subr.mxu0 0.0
  %3006 = vmatpush1.msra.mxu0 0.0
  %3007 = vmatprep.subr.mxu0 0.0
  %3008 = vmatpush1.msra.mxu0 0.0
  %3009 = vmatprep.subr.mxu0 0.0
  %3010 = vmatpush1.msra.mxu0 0.0
  %3011 = vmatprep.subr.mxu0 0.0
  %3012 = vmatpush1.msra.mxu0 0.0
  %3013 = vmatprep.subr.mxu0 0.0
  %3014 = vmatpush1.msra.mxu0 0.0
  %3015 = vmatprep.subr.mxu0 0.0
  %3016 = vmatpush1.msra.mxu0 0.0
  %3017 = vmatprep.subr.mxu0 0.0
  %3018 = vmatpush1.msra.mxu0 0.0
  %3019 = vmatprep.subr.mxu0 0.0
  %3020 = vmatpush1.msra.mxu0 %v2987
  %3021 = vmatprep.subr.mxu0 0.0
  %3022 = vmatpush2.msra.mxu0 0.0
  %3023 = vmatprep.subr.mxu0 0.0
  %3024 = vmatpush2.msra.mxu0 0.0
  %3025 = vmatprep.subr.mxu0 0.0
  %3026 = vmatpush2.msra.mxu0 0.0
  %3027 = vmatprep.subr.mxu0 0.0
  %3028 = vmatpush2.msra.mxu0 0.0
  %3029 = vmatprep.subr.mxu0 0.0
  %3030 = vmatpush2.msra.mxu0 0.0
  %3031 = vmatprep.subr.mxu0 0.0
  %3032 = vmatpush2.msra.mxu0 0.0
  %3033 = vmatprep.subr.mxu0 0.0
  %3034 = vmatpush2.msra.mxu0 0.0
  %3035 = vmatprep.subr.mxu0 0.0
  %3036 = vmatpush2.msra.mxu0 0.0
  %3037 = vmatprep.subr.mxu0 0.0
  %3038 = vmatpush2.msra.mxu0 0.0
  %3039 = vmatprep.subr.mxu0 0.0
  %3040 = vmatpush2.msra.mxu0 0.0
  %3041 = vmatprep.subr.mxu0 0.0
  %3042 = vmatpush2.msra.mxu0 0.0
  %3043 = vmatprep.subr.mxu0 0.0
  %3044 = vmatpush2.msra.mxu0 0.0
  %3045 = vmatprep.subr.mxu0 0.0
  %3046 = vmatpush2.msra.mxu0 0.0
  %3047 = vmatprep.subr.mxu0 0.0
  %3048 = vmatpush2.msra.mxu0 0.0
  %3049 = vmatprep.subr.mxu0 0.0
  %3050 = vmatpush2.msra.mxu0 0.0
  %3051 = vmatprep.subr.mxu0 0.0
  %3052 = vmatpush2.msra.mxu0 0.0
  %3053 = vmatprep.mubr.f32.mxu0 0.0
  %3054 = vmatmul.mubr.f32.gmra.mxu0 %v2795
  %v3055 = vpop.f32.mrf.mxu0
  %v3056 = vadd.f32 0.0, %v3055
  %v3057 = vpop.f32.mrf.mxu0
  %3058 = vmatprep.mubr.f32.mxu0 0.0
  %3059 = vmatmul.mubr.f32.gmra.mxu0 %v2798
  %v3060 = vpop.f32.mrf.mxu0
  %v3061 = vadd.f32 0.0, %v3060
  %v3062 = vpop.f32.mrf.mxu0
  %3063 = vmatprep.mubr.f32.mxu0 0.0
  %3064 = vmatmul.mubr.f32.gmra.mxu0 %v2801
  %v3065 = vpop.f32.mrf.mxu0
  %v3066 = vadd.f32 0.0, %v3065
  %v3067 = vpop.f32.mrf.mxu0
  %3068 = vmatprep.mubr.f32.mxu0 0.0
  %3069 = vmatmul.mubr.f32.gmra.mxu0 %v2804
  %v3070 = vpop.f32.mrf.mxu0
  %v3071 = vadd.f32 0.0, %v3070
  %v3072 = vpop.f32.mrf.mxu0
  %3073 = vmatprep.mubr.f32.mxu0 0.0
  %3074 = vmatmul.mubr.f32.gmra.mxu0 %v2807
  %v3075 = vpop.f32.mrf.mxu0
  %v3076 = vadd.f32 0.0, %v3075
  %v3077 = vpop.f32.mrf.mxu0
  %3078 = vmatprep.mubr.f32.mxu0 0.0
  %3079 = vmatmul.mubr.f32.gmra.mxu0 %v2810
  %v3080 = vpop.f32.mrf.mxu0
  %v3081 = vadd.f32 0.0, %v3080
  %v3082 = vpop.f32.mrf.mxu0
  %3083 = vmatprep.mubr.f32.mxu0 0.0
  %3084 = vmatmul.mubr.f32.gmra.mxu0 %v2813
  %v3085 = vpop.f32.mrf.mxu0
  %v3086 = vadd.f32 0.0, %v3085
  %v3087 = vpop.f32.mrf.mxu0
  %3088 = vmatprep.mubr.f32.mxu0 0.0
  %3089 = vmatmul.mubr.f32.gmra.mxu0 %v2816
  %v3090 = vpop.f32.mrf.mxu0
  %v3091 = vadd.f32 0.0, %v3090
  %v3092 = vpop.f32.mrf.mxu0
  %3093 = vmatprep.mubr.f32.mxu0 0.0
  %3094 = vmatmul.mubr.f32.gmra.mxu0 %v2819
  %v3095 = vpop.f32.mrf.mxu0
  %v3096 = vadd.f32 0.0, %v3095
  %v3097 = vpop.f32.mrf.mxu0
  %3098 = vmatprep.mubr.f32.mxu0 0.0
  %3099 = vmatmul.mubr.f32.gmra.mxu0 %v2822
  %v3100 = vpop.f32.mrf.mxu0
  %v3101 = vadd.f32 0.0, %v3100
  %v3102 = vpop.f32.mrf.mxu0
  %3103 = vmatprep.mubr.f32.mxu0 0.0
  %3104 = vmatmul.mubr.f32.gmra.mxu0 %v2825
  %v3105 = vpop.f32.mrf.mxu0
  %v3106 = vadd.f32 0.0, %v3105
  %v3107 = vpop.f32.mrf.mxu0
  %3108 = vmatprep.mubr.f32.mxu0 0.0
  %3109 = vmatmul.mubr.f32.gmra.mxu0 %v2828
  %v3110 = vpop.f32.mrf.mxu0
  %v3111 = vadd.f32 0.0, %v3110
  %v3112 = vpop.f32.mrf.mxu0
  %3113 = vmatprep.mubr.f32.mxu0 0.0
  %3114 = vmatmul.mubr.f32.gmra.mxu0 %v2831
  %v3115 = vpop.f32.mrf.mxu0
  %v3116 = vadd.f32 0.0, %v3115
  %v3117 = vpop.f32.mrf.mxu0
  %3118 = vmatprep.mubr.f32.mxu0 0.0
  %3119 = vmatmul.mubr.f32.gmra.mxu0 %v2834
  %v3120 = vpop.f32.mrf.mxu0
  %v3121 = vadd.f32 0.0, %v3120
  %v3122 = vpop.f32.mrf.mxu0
  %3123 = vmatprep.mubr.f32.mxu0 0.0
  %3124 = vmatmul.mubr.f32.gmra.mxu0 %v2837
  %v3125 = vpop.f32.mrf.mxu0
  %v3126 = vadd.f32 0.0, %v3125
  %v3127 = vpop.f32.mrf.mxu0
  %3128 = vmatprep.mubr.f32.mxu0 0.0
  %3129 = vmatmul.mubr.f32.gmra.mxu0 %v2840
  %v3130 = vpop.f32.mrf.mxu0
  %v3131 = vadd.f32 0.0, %v3130
  %v3132 = vpop.f32.mrf.mxu0
  %3133 = vmatprep.mubr.f32.mxu0 0.0
  %3134 = vmatmul.mubr.f32.gmra.mxu0 %v2843
  %v3135 = vpop.f32.mrf.mxu0
  %v3136 = vadd.f32 0.0, %v3135
  %v3137 = vpop.f32.mrf.mxu0
  %3138 = vmatprep.mubr.f32.mxu0 0.0
  %3139 = vmatmul.mubr.f32.gmra.mxu0 %v2846
  %v3140 = vpop.f32.mrf.mxu0
  %v3141 = vadd.f32 0.0, %v3140
  %v3142 = vpop.f32.mrf.mxu0
  %3143 = vmatprep.mubr.f32.mxu0 0.0
  %3144 = vmatmul.mubr.f32.gmra.mxu0 %v2849
  %v3145 = vpop.f32.mrf.mxu0
  %v3146 = vadd.f32 0.0, %v3145
  %v3147 = vpop.f32.mrf.mxu0
  %3148 = vmatprep.mubr.f32.mxu0 0.0
  %3149 = vmatmul.mubr.f32.gmra.mxu0 %v2852
  %v3150 = vpop.f32.mrf.mxu0
  %v3151 = vadd.f32 0.0, %v3150
  %v3152 = vpop.f32.mrf.mxu0
  %3153 = vmatprep.mubr.f32.mxu0 0.0
  %3154 = vmatmul.mubr.f32.gmra.mxu0 %v2855
  %v3155 = vpop.f32.mrf.mxu0
  %v3156 = vadd.f32 0.0, %v3155
  %v3157 = vpop.f32.mrf.mxu0
  %3158 = vmatprep.mubr.f32.mxu0 0.0
  %3159 = vmatmul.mubr.f32.gmra.mxu0 %v2858
  %v3160 = vpop.f32.mrf.mxu0
  %v3161 = vadd.f32 0.0, %v3160
  %v3162 = vpop.f32.mrf.mxu0
  %3163 = vmatprep.mubr.f32.mxu0 0.0
  %3164 = vmatmul.mubr.f32.gmra.mxu0 %v2861
  %v3165 = vpop.f32.mrf.mxu0
  %v3166 = vadd.f32 0.0, %v3165
  %v3167 = vpop.f32.mrf.mxu0
  %3168 = vmatprep.mubr.f32.mxu0 0.0
  %3169 = vmatmul.mubr.f32.gmra.mxu0 %v2864
  %v3170 = vpop.f32.mrf.mxu0
  %v3171 = vadd.f32 0.0, %v3170
  %v3172 = vpop.f32.mrf.mxu0
  %3173 = vmatprep.mubr.f32.mxu0 0.0
  %3174 = vmatmul.mubr.f32.gmra.mxu0 %v2867
  %v3175 = vpop.f32.mrf.mxu0
  %v3176 = vadd.f32 0.0, %v3175
  %v3177 = vpop.f32.mrf.mxu0
  %3178 = vmatprep.mubr.f32.mxu0 0.0
  %3179 = vmatmul.mubr.f32.gmra.mxu0 %v2870
  %v3180 = vpop.f32.mrf.mxu0
  %v3181 = vadd.f32 0.0, %v3180
  %v3182 = vpop.f32.mrf.mxu0
  %3183 = vmatprep.mubr.f32.mxu0 0.0
  %3184 = vmatmul.mubr.f32.gmra.mxu0 %v2873
  %v3185 = vpop.f32.mrf.mxu0
  %v3186 = vadd.f32 0.0, %v3185
  %v3187 = vpop.f32.mrf.mxu0
  %3188 = vmatprep.mubr.f32.mxu0 0.0
  %3189 = vmatmul.mubr.f32.gmra.mxu0 %v2876
  %v3190 = vpop.f32.mrf.mxu0
  %v3191 = vadd.f32 0.0, %v3190
  %v3192 = vpop.f32.mrf.mxu0
  %3193 = vmatprep.mubr.f32.mxu0 0.0
  %3194 = vmatmul.mubr.f32.gmra.mxu0 %v2879
  %v3195 = vpop.f32.mrf.mxu0
  %v3196 = vadd.f32 0.0, %v3195
  %v3197 = vpop.f32.mrf.mxu0
  %3198 = vmatprep.mubr.f32.mxu0 0.0
  %3199 = vmatmul.mubr.f32.gmra.mxu0 %v2882
  %v3200 = vpop.f32.mrf.mxu0
  %v3201 = vadd.f32 0.0, %v3200
  %v3202 = vpop.f32.mrf.mxu0
  %3203 = vmatprep.mubr.f32.mxu0 0.0
  %3204 = vmatmul.mubr.f32.gmra.mxu0 %v2885
  %v3205 = vpop.f32.mrf.mxu0
  %v3206 = vadd.f32 0.0, %v3205
  %v3207 = vpop.f32.mrf.mxu0
  %3208 = vmatprep.mubr.f32.mxu0 0.0
  %3209 = vmatmul.mubr.f32.gmra.mxu0 %v2888
  %v3210 = vpop.f32.mrf.mxu0
  %v3211 = vadd.f32 0.0, %v3210
  %v3212 = vpop.f32.mrf.mxu0
  %3213 = vmatprep.mubr.f32.mxu0 0.0
  %3214 = vmatmul.mubr.f32.gmra.mxu0 %v2891
  %v3215 = vpop.f32.mrf.mxu0
  %v3216 = vadd.f32 0.0, %v3215
  %v3217 = vpop.f32.mrf.mxu0
  %3218 = vmatprep.mubr.f32.mxu0 0.0
  %3219 = vmatmul.mubr.f32.gmra.mxu0 %v2894
  %v3220 = vpop.f32.mrf.mxu0
  %v3221 = vadd.f32 0.0, %v3220
  %v3222 = vpop.f32.mrf.mxu0
  %3223 = vmatprep.mubr.f32.mxu0 0.0
  %3224 = vmatmul.mubr.f32.gmra.mxu0 %v2897
  %v3225 = vpop.f32.mrf.mxu0
  %v3226 = vadd.f32 0.0, %v3225
  %v3227 = vpop.f32.mrf.mxu0
  %3228 = vmatprep.mubr.f32.mxu0 0.0
  %3229 = vmatmul.mubr.f32.gmra.mxu0 %v2900
  %v3230 = vpop.f32.mrf.mxu0
  %v3231 = vadd.f32 0.0, %v3230
  %v3232 = vpop.f32.mrf.mxu0
  %3233 = vmatprep.mubr.f32.mxu0 0.0
  %3234 = vmatmul.mubr.f32.gmra.mxu0 %v2903
  %v3235 = vpop.f32.mrf.mxu0
  %v3236 = vadd.f32 0.0, %v3235
  %v3237 = vpop.f32.mrf.mxu0
  %3238 = vmatprep.mubr.f32.mxu0 0.0
  %3239 = vmatmul.mubr.f32.gmra.mxu0 %v2906
  %v3240 = vpop.f32.mrf.mxu0
  %v3241 = vadd.f32 0.0, %v3240
  %v3242 = vpop.f32.mrf.mxu0
  %3243 = vmatprep.mubr.f32.mxu0 0.0
  %3244 = vmatmul.mubr.f32.gmra.mxu0 %v2909
  %v3245 = vpop.f32.mrf.mxu0
  %v3246 = vadd.f32 0.0, %v3245
  %v3247 = vpop.f32.mrf.mxu0
  %3248 = vmatprep.mubr.f32.mxu0 0.0
  %3249 = vmatmul.mubr.f32.gmra.mxu0 %v2912
  %v3250 = vpop.f32.mrf.mxu0
  %v3251 = vadd.f32 0.0, %v3250
  %v3252 = vpop.f32.mrf.mxu0
  %3253 = vmatprep.mubr.f32.mxu0 0.0
  %3254 = vmatmul.mubr.f32.gmra.mxu0 %v2915
  %v3255 = vpop.f32.mrf.mxu0
  %v3256 = vadd.f32 0.0, %v3255
  %v3257 = vpop.f32.mrf.mxu0
  %3258 = vmatprep.mubr.f32.mxu0 0.0
  %3259 = vmatmul.mubr.f32.gmra.mxu0 %v2918
  %v3260 = vpop.f32.mrf.mxu0
  %v3261 = vadd.f32 0.0, %v3260
  %v3262 = vpop.f32.mrf.mxu0
  %3263 = vmatprep.mubr.f32.mxu0 0.0
  %3264 = vmatmul.mubr.f32.gmra.mxu0 %v2921
  %v3265 = vpop.f32.mrf.mxu0
  %v3266 = vadd.f32 0.0, %v3265
  %v3267 = vpop.f32.mrf.mxu0
  %3268 = vmatprep.mubr.f32.mxu0 0.0
  %3269 = vmatmul.mubr.f32.gmra.mxu0 %v2924
  %v3270 = vpop.f32.mrf.mxu0
  %v3271 = vadd.f32 0.0, %v3270
  %v3272 = vpop.f32.mrf.mxu0
  %3273 = vmatprep.mubr.f32.mxu0 0.0
  %3274 = vmatmul.mubr.f32.gmra.mxu0 %v2927
  %v3275 = vpop.f32.mrf.mxu0
  %v3276 = vadd.f32 0.0, %v3275
  %v3277 = vpop.f32.mrf.mxu0
  %3278 = vmatprep.mubr.f32.mxu0 0.0
  %3279 = vmatmul.mubr.f32.gmra.mxu0 %v2930
  %v3280 = vpop.f32.mrf.mxu0
  %v3281 = vadd.f32 0.0, %v3280
  %v3282 = vpop.f32.mrf.mxu0
  %3283 = vmatprep.mubr.f32.mxu0 0.0
  %3284 = vmatmul.mubr.f32.gmra.mxu0 %v2933
  %v3285 = vpop.f32.mrf.mxu0
  %v3286 = vadd.f32 0.0, %v3285
  %v3287 = vpop.f32.mrf.mxu0
  %3288 = vmatprep.mubr.f32.mxu0 0.0
  %3289 = vmatmul.mubr.f32.gmra.mxu0 %v2936
  %v3290 = vpop.f32.mrf.mxu0
  %v3291 = vadd.f32 0.0, %v3290
  %v3292 = vpop.f32.mrf.mxu0
  %3293 = vmatprep.mubr.f32.mxu0 0.0
  %3294 = vmatmul.mubr.f32.gmra.mxu0 %v2939
  %v3295 = vpop.f32.mrf.mxu0
  %v3296 = vadd.f32 0.0, %v3295
  %v3297 = vpop.f32.mrf.mxu0
  %3298 = vmatprep.mubr.f32.mxu0 0.0
  %3299 = vmatmul.mubr.f32.gmra.mxu0 %v2942
  %v3300 = vpop.f32.mrf.mxu0
  %v3301 = vadd.f32 0.0, %v3300
  %v3302 = vpop.f32.mrf.mxu0
  %3303 = vmatprep.mubr.f32.mxu0 0.0
  %3304 = vmatmul.mubr.f32.gmra.mxu0 %v2945
  %v3305 = vpop.f32.mrf.mxu0
  %v3306 = vadd.f32 0.0, %v3305
  %v3307 = vpop.f32.mrf.mxu0
  %3308 = vmatprep.mubr.f32.mxu0 0.0
  %3309 = vmatmul.mubr.f32.gmra.mxu0 %v2948
  %v3310 = vpop.f32.mrf.mxu0
  %v3311 = vadd.f32 0.0, %v3310
  %v3312 = vpop.f32.mrf.mxu0
  %3313 = vmatprep.mubr.f32.mxu0 0.0
  %3314 = vmatmul.mubr.f32.gmra.mxu0 %v2951
  %v3315 = vpop.f32.mrf.mxu0
  %v3316 = vadd.f32 0.0, %v3315
  %v3317 = vpop.f32.mrf.mxu0
  %3318 = vmatprep.mubr.f32.mxu0 0.0
  %3319 = vmatmul.mubr.f32.gmra.mxu0 %v2954
  %v3320 = vpop.f32.mrf.mxu0
  %v3321 = vadd.f32 0.0, %v3320
  %v3322 = vpop.f32.mrf.mxu0
  %3323 = vmatprep.mubr.f32.mxu0 0.0
  %3324 = vmatmul.mubr.f32.gmra.mxu0 %v2957
  %v3325 = vpop.f32.mrf.mxu0
  %v3326 = vadd.f32 0.0, %v3325
  %v3327 = vpop.f32.mrf.mxu0
  %3328 = vmatprep.mubr.f32.mxu0 0.0
  %3329 = vmatmul.mubr.f32.gmra.mxu0 %v2960
  %v3330 = vpop.f32.mrf.mxu0
  %v3331 = vadd.f32 0.0, %v3330
  %v3332 = vpop.f32.mrf.mxu0
  %3333 = vmatprep.mubr.f32.mxu0 0.0
  %3334 = vmatmul.mubr.f32.gmra.mxu0 %v2963
  %v3335 = vpop.f32.mrf.mxu0
  %v3336 = vadd.f32 0.0, %v3335
  %v3337 = vpop.f32.mrf.mxu0
  %3338 = vmatprep.mubr.f32.mxu0 0.0
  %3339 = vmatmul.mubr.f32.gmra.mxu0 %v2966
  %v3340 = vpop.f32.mrf.mxu0
  %v3341 = vadd.f32 0.0, %v3340
  %v3342 = vpop.f32.mrf.mxu0
  %3343 = vmatprep.mubr.f32.mxu0 0.0
  %3344 = vmatmul.mubr.f32.gmra.mxu0 %v2969
  %v3345 = vpop.f32.mrf.mxu0
  %v3346 = vadd.f32 0.0, %v3345
  %v3347 = vpop.f32.mrf.mxu0
  %3348 = vmatprep.mubr.f32.mxu0 0.0
  %3349 = vmatmul.mubr.f32.gmra.mxu0 %v2972
  %v3350 = vpop.f32.mrf.mxu0
  %v3351 = vadd.f32 0.0, %v3350
  %v3352 = vpop.f32.mrf.mxu0
  %3353 = vmatprep.mubr.f32.mxu0 0.0
  %3354 = vmatmul.mubr.f32.gmra.mxu0 %v2975
  %v3355 = vpop.f32.mrf.mxu0
  %v3356 = vadd.f32 0.0, %v3355
  %v3357 = vpop.f32.mrf.mxu0
  %3358 = vmatprep.mubr.f32.mxu0 0.0
  %3359 = vmatmul.mubr.f32.gmra.mxu0 %v2978
  %v3360 = vpop.f32.mrf.mxu0
  %v3361 = vadd.f32 0.0, %v3360
  %v3362 = vpop.f32.mrf.mxu0
  %3363 = vmatprep.mubr.f32.mxu0 0.0
  %3364 = vmatmul.mubr.f32.gmra.mxu0 %v2981
  %v3365 = vpop.f32.mrf.mxu0
  %v3366 = vadd.f32 0.0, %v3365
  %v3367 = vpop.f32.mrf.mxu0
  %3368 = vmatprep.mubr.f32.mxu0 0.0
  %3369 = vmatmul.mubr.f32.gmra.mxu0 %v2984
  %v3370 = vpop.f32.mrf.mxu0
  %v3371 = vadd.f32 0.0, %v3370
  %v3372 = vpop.f32.mrf.mxu0
  %3373 = vdwg.mxu0
  %v3374 = vadd.f32 %v2664, %v3056
  %v3375 = vadd.f32 %v2665, %v3061
  %v3376 = vadd.f32 %v2666, %v3066
  %v3377 = vadd.f32 %v2667, %v3071
  %v3378 = vadd.f32 %v2668, %v3076
  %v3379 = vadd.f32 %v2669, %v3081
  %v3380 = vadd.f32 %v2670, %v3086
  %v3381 = vadd.f32 %v2671, %v3091
  %v3382 = vadd.f32 %v2672, %v3096
  %v3383 = vadd.f32 %v2673, %v3101
  %v3384 = vadd.f32 %v2674, %v3106
  %v3385 = vadd.f32 %v2675, %v3111
  %v3386 = vadd.f32 %v2676, %v3116
  %v3387 = vadd.f32 %v2677, %v3121
  %v3388 = vadd.f32 %v2678, %v3126
  %v3389 = vadd.f32 %v2679, %v3131
  %v3390 = vadd.f32 %v2680, %v3136
  %v3391 = vadd.f32 %v2681, %v3141
  %v3392 = vadd.f32 %v2682, %v3146
  %v3393 = vadd.f32 %v2683, %v3151
  %v3394 = vadd.f32 %v2684, %v3156
  %v3395 = vadd.f32 %v2685, %v3161
  %v3396 = vadd.f32 %v2686, %v3166
  %v3397 = vadd.f32 %v2687, %v3171
  %v3398 = vadd.f32 %v2688, %v3176
  %v3399 = vadd.f32 %v2689, %v3181
  %v3400 = vadd.f32 %v2690, %v3186
  %v3401 = vadd.f32 %v2691, %v3191
  %v3402 = vadd.f32 %v2692, %v3196
  %v3403 = vadd.f32 %v2693, %v3201
  %v3404 = vadd.f32 %v2694, %v3206
  %v3405 = vadd.f32 %v2695, %v3211
  %v3406 = vadd.f32 %v2696, %v3216
  %v3407 = vadd.f32 %v2697, %v3221
  %v3408 = vadd.f32 %v2698, %v3226
  %v3409 = vadd.f32 %v2699, %v3231
  %v3410 = vadd.f32 %v2700, %v3236
  %v3411 = vadd.f32 %v2701, %v3241
  %v3412 = vadd.f32 %v2702, %v3246
  %v3413 = vadd.f32 %v2703, %v3251
  %v3414 = vadd.f32 %v2704, %v3256
  %v3415 = vadd.f32 %v2705, %v3261
  %v3416 = vadd.f32 %v2706, %v3266
  %v3417 = vadd.f32 %v2707, %v3271
  %v3418 = vadd.f32 %v2708, %v3276
  %v3419 = vadd.f32 %v2709, %v3281
  %v3420 = vadd.f32 %v2710, %v3286
  %v3421 = vadd.f32 %v2711, %v3291
  %v3422 = vadd.f32 %v2712, %v3296
  %v3423 = vadd.f32 %v2713, %v3301
  %v3424 = vadd.f32 %v2714, %v3306
  %v3425 = vadd.f32 %v2715, %v3311
  %v3426 = vadd.f32 %v2716, %v3316
  %v3427 = vadd.f32 %v2717, %v3321
  %v3428 = vadd.f32 %v2718, %v3326
  %v3429 = vadd.f32 %v2719, %v3331
  %v3430 = vadd.f32 %v2720, %v3336
  %v3431 = vadd.f32 %v2721, %v3341
  %v3432 = vadd.f32 %v2722, %v3346
  %v3433 = vadd.f32 %v2723, %v3351
  %v3434 = vadd.f32 %v2724, %v3356
  %v3435 = vadd.f32 %v2725, %v3361
  %v3436 = vadd.f32 %v2726, %v3366
  %v3437 = vadd.f32 %v2727, %v3371
  %v3438 = vld [vmem:[%s2017 + $0x2] sm:$0xff]
  %v3439 = vld [vmem:[%s2017 + $0xa] sm:$0xff]
  %v3440 = vld [vmem:[%s2017 + $0x1a] sm:$0xff]
  %v3441 = vld [vmem:[%s2017 + $0x22] sm:$0xff]
  %v3442 = vld [vmem:[%s2017 + $0x32] sm:$0xff]
  %v3443 = vld [vmem:[%s2017 + $0x3a] sm:$0xff]
  %v3444 = vld [vmem:[%s2017 + $0x4a] sm:$0xff]
  %v3445 = vld [vmem:[%s2017 + $0x52] sm:$0xff]
  %v3446 = vld [vmem:[%s2017 + $0x62] sm:$0xff]
  %v3447 = vld [vmem:[%s2017 + $0x6a] sm:$0xff]
  %v3448 = vld [vmem:[%s2017 + $0x7a] sm:$0xff]
  %v3449 = vld [vmem:[%s2017 + $0x82] sm:$0xff]
  %v3450 = vld [vmem:[%s2017 + $0x92] sm:$0xff]
  %v3451 = vld [vmem:[%s2017 + $0x9a] sm:$0xff]
  %v3452 = vld [vmem:[%s2017 + $0xaa] sm:$0xff]
  %v3453 = vld [vmem:[%s2017 + $0xb2] sm:$0xff]
  %v3454 = vld [vmem:[%s2017 + $0xc2] sm:$0xff]
  %v3455 = vld [vmem:[%s2017 + $0xca] sm:$0xff]
  %v3456 = vld [vmem:[%s2017 + $0xda] sm:$0xff]
  %v3457 = vld [vmem:[%s2017 + $0xe2] sm:$0xff]
  %v3458 = vld [vmem:[%s2017 + $0xf2] sm:$0xff]
  %v3459 = vld [vmem:[%s2017 + $0xfa] sm:$0xff]
  %v3460 = vld [vmem:[%s2017 + $0x10a] sm:$0xff]
  %v3461 = vld [vmem:[%s2017 + $0x112] sm:$0xff]
  %v3462 = vld [vmem:[%s2017 + $0x122] sm:$0xff]
  %v3463 = vld [vmem:[%s2017 + $0x12a] sm:$0xff]
  %v3464 = vld [vmem:[%s2017 + $0x13a] sm:$0xff]
  %v3465 = vld [vmem:[%s2017 + $0x142] sm:$0xff]
  %v3466 = vld [vmem:[%s2017 + $0x152] sm:$0xff]
  %v3467 = vld [vmem:[%s2017 + $0x15a] sm:$0xff]
  %v3468 = vld [vmem:[%s2017 + $0x16a] sm:$0xff]
  %v3469 = vld [vmem:[%s2017 + $0x172] sm:$0xff]
  %v3470 = vld [vmem:[%s2017 + $0x1b2] sm:$0xff]
  %v3471 = vld [vmem:[%s2017 + $0x1ba] sm:$0xff]
  %v3472 = vld [vmem:[%s2017 + $0x1ca] sm:$0xff]
  %v3473 = vld [vmem:[%s2017 + $0x1d2] sm:$0xff]
  %v3474 = vld [vmem:[%s2017 + $0x1e2] sm:$0xff]
  %v3475 = vld [vmem:[%s2017 + $0x1ea] sm:$0xff]
  %v3476 = vld [vmem:[%s2017 + $0x1fa] sm:$0xff]
  %v3477 = vld [vmem:[%s2017 + $0x202] sm:$0xff]
  %v3478 = vld [vmem:[%s2017 + $0x212] sm:$0xff]
  %v3479 = vld [vmem:[%s2017 + $0x21a] sm:$0xff]
  %v3480 = vld [vmem:[%s2017 + $0x22a] sm:$0xff]
  %v3481 = vld [vmem:[%s2017 + $0x232] sm:$0xff]
  %v3482 = vld [vmem:[%s2017 + $0x242] sm:$0xff]
  %v3483 = vld [vmem:[%s2017 + $0x24a] sm:$0xff]
  %v3484 = vld [vmem:[%s2017 + $0x25a] sm:$0xff]
  %v3485 = vld [vmem:[%s2017 + $0x262] sm:$0xff]
  %v3486 = vld [vmem:[%s2017 + $0x272] sm:$0xff]
  %v3487 = vld [vmem:[%s2017 + $0x27a] sm:$0xff]
  %v3488 = vld [vmem:[%s2017 + $0x28a] sm:$0xff]
  %v3489 = vld [vmem:[%s2017 + $0x292] sm:$0xff]
  %v3490 = vld [vmem:[%s2017 + $0x2a2] sm:$0xff]
  %v3491 = vld [vmem:[%s2017 + $0x2aa] sm:$0xff]
  %v3492 = vld [vmem:[%s2017 + $0x2ba] sm:$0xff]
  %v3493 = vld [vmem:[%s2017 + $0x2c2] sm:$0xff]
  %v3494 = vld [vmem:[%s2017 + $0x2d2] sm:$0xff]
  %v3495 = vld [vmem:[%s2017 + $0x2da] sm:$0xff]
  %v3496 = vld [vmem:[%s2017 + $0x2ea] sm:$0xff]
  %v3497 = vld [vmem:[%s2017 + $0x2f2] sm:$0xff]
  %v3498 = vld [vmem:[%s2017 + $0x302] sm:$0xff]
  %v3499 = vld [vmem:[%s2017 + $0x30a] sm:$0xff]
  %v3500 = vld [vmem:[%s2017 + $0x31a] sm:$0xff]
  %v3501 = vld [vmem:[%s2017 + $0x322] sm:$0xff]
  %s3502 = scalar_lea.vmem %s1, 20
  %v3503 = vld [vmem:[%s3502] sm:$0xf]
  %v3505 = vsel %vm145, %v3438, 0
  %v3508 = vsel %vm145, %v3439, 0
  %v3511 = vsel %vm145, %v3440, 0
  %v3514 = vsel %vm145, %v3441, 0
  %v3517 = vsel %vm145, %v3442, 0
  %v3520 = vsel %vm145, %v3443, 0
  %v3523 = vsel %vm145, %v3444, 0
  %v3526 = vsel %vm145, %v3445, 0
  %v3529 = vsel %vm145, %v3446, 0
  %v3532 = vsel %vm145, %v3447, 0
  %v3535 = vsel %vm145, %v3448, 0
  %v3538 = vsel %vm145, %v3449, 0
  %v3541 = vsel %vm145, %v3450, 0
  %v3544 = vsel %vm145, %v3451, 0
  %v3547 = vsel %vm145, %v3452, 0
  %v3550 = vsel %vm145, %v3453, 0
  %v3553 = vsel %vm145, %v3454, 0
  %v3556 = vsel %vm145, %v3455, 0
  %v3559 = vsel %vm145, %v3456, 0
  %v3562 = vsel %vm145, %v3457, 0
  %v3565 = vsel %vm145, %v3458, 0
  %v3568 = vsel %vm145, %v3459, 0
  %v3571 = vsel %vm145, %v3460, 0
  %v3574 = vsel %vm145, %v3461, 0
  %v3577 = vsel %vm145, %v3462, 0
  %v3580 = vsel %vm145, %v3463, 0
  %v3583 = vsel %vm145, %v3464, 0
  %v3586 = vsel %vm145, %v3465, 0
  %v3589 = vsel %vm145, %v3466, 0
  %v3592 = vsel %vm145, %v3467, 0
  %v3595 = vsel %vm145, %v3468, 0
  %v3598 = vsel %vm145, %v3469, 0
  %v3601 = vsel %vm145, %v3470, 0
  %v3604 = vsel %vm145, %v3471, 0
  %v3607 = vsel %vm145, %v3472, 0
  %v3610 = vsel %vm145, %v3473, 0
  %v3613 = vsel %vm145, %v3474, 0
  %v3616 = vsel %vm145, %v3475, 0
  %v3619 = vsel %vm145, %v3476, 0
  %v3622 = vsel %vm145, %v3477, 0
  %v3625 = vsel %vm145, %v3478, 0
  %v3628 = vsel %vm145, %v3479, 0
  %v3631 = vsel %vm145, %v3480, 0
  %v3634 = vsel %vm145, %v3481, 0
  %v3637 = vsel %vm145, %v3482, 0
  %v3640 = vsel %vm145, %v3483, 0
  %v3643 = vsel %vm145, %v3484, 0
  %v3646 = vsel %vm145, %v3485, 0
  %v3649 = vsel %vm145, %v3486, 0
  %v3652 = vsel %vm145, %v3487, 0
  %v3655 = vsel %vm145, %v3488, 0
  %v3658 = vsel %vm145, %v3489, 0
  %v3661 = vsel %vm145, %v3490, 0
  %v3664 = vsel %vm145, %v3491, 0
  %v3667 = vsel %vm145, %v3492, 0
  %v3670 = vsel %vm145, %v3493, 0
  %v3673 = vsel %vm145, %v3494, 0
  %v3676 = vsel %vm145, %v3495, 0
  %v3679 = vsel %vm145, %v3496, 0
  %v3682 = vsel %vm145, %v3497, 0
  %v3685 = vsel %vm145, %v3498, 0
  %v3688 = vsel %vm145, %v3499, 0
  %v3691 = vsel %vm145, %v3500, 0
  %v3694 = vsel %vm145, %v3501, 0
  %v3697 = vsel %vm338, %v3503, 0
  %3699 = vmatprep.subr.mxu0 0.0
  %3700 = vmatpush1.msra.mxu0 0.0
  %3701 = vmatprep.subr.mxu0 0.0
  %3702 = vmatpush1.msra.mxu0 0.0
  %3703 = vmatprep.subr.mxu0 0.0
  %3704 = vmatpush1.msra.mxu0 0.0
  %3705 = vmatprep.subr.mxu0 0.0
  %3706 = vmatpush1.msra.mxu0 0.0
  %3707 = vmatprep.subr.mxu0 0.0
  %3708 = vmatpush1.msra.mxu0 0.0
  %3709 = vmatprep.subr.mxu0 0.0
  %3710 = vmatpush1.msra.mxu0 0.0
  %3711 = vmatprep.subr.mxu0 0.0
  %3712 = vmatpush1.msra.mxu0 0.0
  %3713 = vmatprep.subr.mxu0 0.0
  %3714 = vmatpush1.msra.mxu0 0.0
  %3715 = vmatprep.subr.mxu0 0.0
  %3716 = vmatpush1.msra.mxu0 0.0
  %3717 = vmatprep.subr.mxu0 0.0
  %3718 = vmatpush1.msra.mxu0 0.0
  %3719 = vmatprep.subr.mxu0 0.0
  %3720 = vmatpush1.msra.mxu0 0.0
  %3721 = vmatprep.subr.mxu0 0.0
  %3722 = vmatpush1.msra.mxu0 0.0
  %3723 = vmatprep.subr.mxu0 0.0
  %3724 = vmatpush1.msra.mxu0 0.0
  %3725 = vmatprep.subr.mxu0 0.0
  %3726 = vmatpush1.msra.mxu0 0.0
  %3727 = vmatprep.subr.mxu0 0.0
  %3728 = vmatpush1.msra.mxu0 0.0
  %3729 = vmatprep.subr.mxu0 0.0
  %3730 = vmatpush1.msra.mxu0 %v3697
  %3731 = vmatprep.subr.mxu0 0.0
  %3732 = vmatpush2.msra.mxu0 0.0
  %3733 = vmatprep.subr.mxu0 0.0
  %3734 = vmatpush2.msra.mxu0 0.0
  %3735 = vmatprep.subr.mxu0 0.0
  %3736 = vmatpush2.msra.mxu0 0.0
  %3737 = vmatprep.subr.mxu0 0.0
  %3738 = vmatpush2.msra.mxu0 0.0
  %3739 = vmatprep.subr.mxu0 0.0
  %3740 = vmatpush2.msra.mxu0 0.0
  %3741 = vmatprep.subr.mxu0 0.0
  %3742 = vmatpush2.msra.mxu0 0.0
  %3743 = vmatprep.subr.mxu0 0.0
  %3744 = vmatpush2.msra.mxu0 0.0
  %3745 = vmatprep.subr.mxu0 0.0
  %3746 = vmatpush2.msra.mxu0 0.0
  %3747 = vmatprep.subr.mxu0 0.0
  %3748 = vmatpush2.msra.mxu0 0.0
  %3749 = vmatprep.subr.mxu0 0.0
  %3750 = vmatpush2.msra.mxu0 0.0
  %3751 = vmatprep.subr.mxu0 0.0
  %3752 = vmatpush2.msra.mxu0 0.0
  %3753 = vmatprep.subr.mxu0 0.0
  %3754 = vmatpush2.msra.mxu0 0.0
  %3755 = vmatprep.subr.mxu0 0.0
  %3756 = vmatpush2.msra.mxu0 0.0
  %3757 = vmatprep.subr.mxu0 0.0
  %3758 = vmatpush2.msra.mxu0 0.0
  %3759 = vmatprep.subr.mxu0 0.0
  %3760 = vmatpush2.msra.mxu0 0.0
  %3761 = vmatprep.subr.mxu0 0.0
  %3762 = vmatpush2.msra.mxu0 0.0
  %3763 = vmatprep.mubr.f32.mxu0 0.0
  %3764 = vmatmul.mubr.f32.gmra.mxu0 %v3505
  %v3765 = vpop.f32.mrf.mxu0
  %v3766 = vadd.f32 0.0, %v3765
  %v3767 = vpop.f32.mrf.mxu0
  %3768 = vmatprep.mubr.f32.mxu0 0.0
  %3769 = vmatmul.mubr.f32.gmra.mxu0 %v3508
  %v3770 = vpop.f32.mrf.mxu0
  %v3771 = vadd.f32 0.0, %v3770
  %v3772 = vpop.f32.mrf.mxu0
  %3773 = vmatprep.mubr.f32.mxu0 0.0
  %3774 = vmatmul.mubr.f32.gmra.mxu0 %v3511
  %v3775 = vpop.f32.mrf.mxu0
  %v3776 = vadd.f32 0.0, %v3775
  %v3777 = vpop.f32.mrf.mxu0
  %3778 = vmatprep.mubr.f32.mxu0 0.0
  %3779 = vmatmul.mubr.f32.gmra.mxu0 %v3514
  %v3780 = vpop.f32.mrf.mxu0
  %v3781 = vadd.f32 0.0, %v3780
  %v3782 = vpop.f32.mrf.mxu0
  %3783 = vmatprep.mubr.f32.mxu0 0.0
  %3784 = vmatmul.mubr.f32.gmra.mxu0 %v3517
  %v3785 = vpop.f32.mrf.mxu0
  %v3786 = vadd.f32 0.0, %v3785
  %v3787 = vpop.f32.mrf.mxu0
  %3788 = vmatprep.mubr.f32.mxu0 0.0
  %3789 = vmatmul.mubr.f32.gmra.mxu0 %v3520
  %v3790 = vpop.f32.mrf.mxu0
  %v3791 = vadd.f32 0.0, %v3790
  %v3792 = vpop.f32.mrf.mxu0
  %3793 = vmatprep.mubr.f32.mxu0 0.0
  %3794 = vmatmul.mubr.f32.gmra.mxu0 %v3523
  %v3795 = vpop.f32.mrf.mxu0
  %v3796 = vadd.f32 0.0, %v3795
  %v3797 = vpop.f32.mrf.mxu0
  %3798 = vmatprep.mubr.f32.mxu0 0.0
  %3799 = vmatmul.mubr.f32.gmra.mxu0 %v3526
  %v3800 = vpop.f32.mrf.mxu0
  %v3801 = vadd.f32 0.0, %v3800
  %v3802 = vpop.f32.mrf.mxu0
  %3803 = vmatprep.mubr.f32.mxu0 0.0
  %3804 = vmatmul.mubr.f32.gmra.mxu0 %v3529
  %v3805 = vpop.f32.mrf.mxu0
  %v3806 = vadd.f32 0.0, %v3805
  %v3807 = vpop.f32.mrf.mxu0
  %3808 = vmatprep.mubr.f32.mxu0 0.0
  %3809 = vmatmul.mubr.f32.gmra.mxu0 %v3532
  %v3810 = vpop.f32.mrf.mxu0
  %v3811 = vadd.f32 0.0, %v3810
  %v3812 = vpop.f32.mrf.mxu0
  %3813 = vmatprep.mubr.f32.mxu0 0.0
  %3814 = vmatmul.mubr.f32.gmra.mxu0 %v3535
  %v3815 = vpop.f32.mrf.mxu0
  %v3816 = vadd.f32 0.0, %v3815
  %v3817 = vpop.f32.mrf.mxu0
  %3818 = vmatprep.mubr.f32.mxu0 0.0
  %3819 = vmatmul.mubr.f32.gmra.mxu0 %v3538
  %v3820 = vpop.f32.mrf.mxu0
  %v3821 = vadd.f32 0.0, %v3820
  %v3822 = vpop.f32.mrf.mxu0
  %3823 = vmatprep.mubr.f32.mxu0 0.0
  %3824 = vmatmul.mubr.f32.gmra.mxu0 %v3541
  %v3825 = vpop.f32.mrf.mxu0
  %v3826 = vadd.f32 0.0, %v3825
  %v3827 = vpop.f32.mrf.mxu0
  %3828 = vmatprep.mubr.f32.mxu0 0.0
  %3829 = vmatmul.mubr.f32.gmra.mxu0 %v3544
  %v3830 = vpop.f32.mrf.mxu0
  %v3831 = vadd.f32 0.0, %v3830
  %v3832 = vpop.f32.mrf.mxu0
  %3833 = vmatprep.mubr.f32.mxu0 0.0
  %3834 = vmatmul.mubr.f32.gmra.mxu0 %v3547
  %v3835 = vpop.f32.mrf.mxu0
  %v3836 = vadd.f32 0.0, %v3835
  %v3837 = vpop.f32.mrf.mxu0
  %3838 = vmatprep.mubr.f32.mxu0 0.0
  %3839 = vmatmul.mubr.f32.gmra.mxu0 %v3550
  %v3840 = vpop.f32.mrf.mxu0
  %v3841 = vadd.f32 0.0, %v3840
  %v3842 = vpop.f32.mrf.mxu0
  %3843 = vmatprep.mubr.f32.mxu0 0.0
  %3844 = vmatmul.mubr.f32.gmra.mxu0 %v3553
  %v3845 = vpop.f32.mrf.mxu0
  %v3846 = vadd.f32 0.0, %v3845
  %v3847 = vpop.f32.mrf.mxu0
  %3848 = vmatprep.mubr.f32.mxu0 0.0
  %3849 = vmatmul.mubr.f32.gmra.mxu0 %v3556
  %v3850 = vpop.f32.mrf.mxu0
  %v3851 = vadd.f32 0.0, %v3850
  %v3852 = vpop.f32.mrf.mxu0
  %3853 = vmatprep.mubr.f32.mxu0 0.0
  %3854 = vmatmul.mubr.f32.gmra.mxu0 %v3559
  %v3855 = vpop.f32.mrf.mxu0
  %v3856 = vadd.f32 0.0, %v3855
  %v3857 = vpop.f32.mrf.mxu0
  %3858 = vmatprep.mubr.f32.mxu0 0.0
  %3859 = vmatmul.mubr.f32.gmra.mxu0 %v3562
  %v3860 = vpop.f32.mrf.mxu0
  %v3861 = vadd.f32 0.0, %v3860
  %v3862 = vpop.f32.mrf.mxu0
  %3863 = vmatprep.mubr.f32.mxu0 0.0
  %3864 = vmatmul.mubr.f32.gmra.mxu0 %v3565
  %v3865 = vpop.f32.mrf.mxu0
  %v3866 = vadd.f32 0.0, %v3865
  %v3867 = vpop.f32.mrf.mxu0
  %3868 = vmatprep.mubr.f32.mxu0 0.0
  %3869 = vmatmul.mubr.f32.gmra.mxu0 %v3568
  %v3870 = vpop.f32.mrf.mxu0
  %v3871 = vadd.f32 0.0, %v3870
  %v3872 = vpop.f32.mrf.mxu0
  %3873 = vmatprep.mubr.f32.mxu0 0.0
  %3874 = vmatmul.mubr.f32.gmra.mxu0 %v3571
  %v3875 = vpop.f32.mrf.mxu0
  %v3876 = vadd.f32 0.0, %v3875
  %v3877 = vpop.f32.mrf.mxu0
  %3878 = vmatprep.mubr.f32.mxu0 0.0
  %3879 = vmatmul.mubr.f32.gmra.mxu0 %v3574
  %v3880 = vpop.f32.mrf.mxu0
  %v3881 = vadd.f32 0.0, %v3880
  %v3882 = vpop.f32.mrf.mxu0
  %3883 = vmatprep.mubr.f32.mxu0 0.0
  %3884 = vmatmul.mubr.f32.gmra.mxu0 %v3577
  %v3885 = vpop.f32.mrf.mxu0
  %v3886 = vadd.f32 0.0, %v3885
  %v3887 = vpop.f32.mrf.mxu0
  %3888 = vmatprep.mubr.f32.mxu0 0.0
  %3889 = vmatmul.mubr.f32.gmra.mxu0 %v3580
  %v3890 = vpop.f32.mrf.mxu0
  %v3891 = vadd.f32 0.0, %v3890
  %v3892 = vpop.f32.mrf.mxu0
  %3893 = vmatprep.mubr.f32.mxu0 0.0
  %3894 = vmatmul.mubr.f32.gmra.mxu0 %v3583
  %v3895 = vpop.f32.mrf.mxu0
  %v3896 = vadd.f32 0.0, %v3895
  %v3897 = vpop.f32.mrf.mxu0
  %3898 = vmatprep.mubr.f32.mxu0 0.0
  %3899 = vmatmul.mubr.f32.gmra.mxu0 %v3586
  %v3900 = vpop.f32.mrf.mxu0
  %v3901 = vadd.f32 0.0, %v3900
  %v3902 = vpop.f32.mrf.mxu0
  %3903 = vmatprep.mubr.f32.mxu0 0.0
  %3904 = vmatmul.mubr.f32.gmra.mxu0 %v3589
  %v3905 = vpop.f32.mrf.mxu0
  %v3906 = vadd.f32 0.0, %v3905
  %v3907 = vpop.f32.mrf.mxu0
  %3908 = vmatprep.mubr.f32.mxu0 0.0
  %3909 = vmatmul.mubr.f32.gmra.mxu0 %v3592
  %v3910 = vpop.f32.mrf.mxu0
  %v3911 = vadd.f32 0.0, %v3910
  %v3912 = vpop.f32.mrf.mxu0
  %3913 = vmatprep.mubr.f32.mxu0 0.0
  %3914 = vmatmul.mubr.f32.gmra.mxu0 %v3595
  %v3915 = vpop.f32.mrf.mxu0
  %v3916 = vadd.f32 0.0, %v3915
  %v3917 = vpop.f32.mrf.mxu0
  %3918 = vmatprep.mubr.f32.mxu0 0.0
  %3919 = vmatmul.mubr.f32.gmra.mxu0 %v3598
  %v3920 = vpop.f32.mrf.mxu0
  %v3921 = vadd.f32 0.0, %v3920
  %v3922 = vpop.f32.mrf.mxu0
  %3923 = vmatprep.mubr.f32.mxu0 0.0
  %3924 = vmatmul.mubr.f32.gmra.mxu0 %v3601
  %v3925 = vpop.f32.mrf.mxu0
  %v3926 = vadd.f32 0.0, %v3925
  %v3927 = vpop.f32.mrf.mxu0
  %3928 = vmatprep.mubr.f32.mxu0 0.0
  %3929 = vmatmul.mubr.f32.gmra.mxu0 %v3604
  %v3930 = vpop.f32.mrf.mxu0
  %v3931 = vadd.f32 0.0, %v3930
  %v3932 = vpop.f32.mrf.mxu0
  %3933 = vmatprep.mubr.f32.mxu0 0.0
  %3934 = vmatmul.mubr.f32.gmra.mxu0 %v3607
  %v3935 = vpop.f32.mrf.mxu0
  %v3936 = vadd.f32 0.0, %v3935
  %v3937 = vpop.f32.mrf.mxu0
  %3938 = vmatprep.mubr.f32.mxu0 0.0
  %3939 = vmatmul.mubr.f32.gmra.mxu0 %v3610
  %v3940 = vpop.f32.mrf.mxu0
  %v3941 = vadd.f32 0.0, %v3940
  %v3942 = vpop.f32.mrf.mxu0
  %3943 = vmatprep.mubr.f32.mxu0 0.0
  %3944 = vmatmul.mubr.f32.gmra.mxu0 %v3613
  %v3945 = vpop.f32.mrf.mxu0
  %v3946 = vadd.f32 0.0, %v3945
  %v3947 = vpop.f32.mrf.mxu0
  %3948 = vmatprep.mubr.f32.mxu0 0.0
  %3949 = vmatmul.mubr.f32.gmra.mxu0 %v3616
  %v3950 = vpop.f32.mrf.mxu0
  %v3951 = vadd.f32 0.0, %v3950
  %v3952 = vpop.f32.mrf.mxu0
  %3953 = vmatprep.mubr.f32.mxu0 0.0
  %3954 = vmatmul.mubr.f32.gmra.mxu0 %v3619
  %v3955 = vpop.f32.mrf.mxu0
  %v3956 = vadd.f32 0.0, %v3955
  %v3957 = vpop.f32.mrf.mxu0
  %3958 = vmatprep.mubr.f32.mxu0 0.0
  %3959 = vmatmul.mubr.f32.gmra.mxu0 %v3622
  %v3960 = vpop.f32.mrf.mxu0
  %v3961 = vadd.f32 0.0, %v3960
  %v3962 = vpop.f32.mrf.mxu0
  %3963 = vmatprep.mubr.f32.mxu0 0.0
  %3964 = vmatmul.mubr.f32.gmra.mxu0 %v3625
  %v3965 = vpop.f32.mrf.mxu0
  %v3966 = vadd.f32 0.0, %v3965
  %v3967 = vpop.f32.mrf.mxu0
  %3968 = vmatprep.mubr.f32.mxu0 0.0
  %3969 = vmatmul.mubr.f32.gmra.mxu0 %v3628
  %v3970 = vpop.f32.mrf.mxu0
  %v3971 = vadd.f32 0.0, %v3970
  %v3972 = vpop.f32.mrf.mxu0
  %3973 = vmatprep.mubr.f32.mxu0 0.0
  %3974 = vmatmul.mubr.f32.gmra.mxu0 %v3631
  %v3975 = vpop.f32.mrf.mxu0
  %v3976 = vadd.f32 0.0, %v3975
  %v3977 = vpop.f32.mrf.mxu0
  %3978 = vmatprep.mubr.f32.mxu0 0.0
  %3979 = vmatmul.mubr.f32.gmra.mxu0 %v3634
  %v3980 = vpop.f32.mrf.mxu0
  %v3981 = vadd.f32 0.0, %v3980
  %v3982 = vpop.f32.mrf.mxu0
  %3983 = vmatprep.mubr.f32.mxu0 0.0
  %3984 = vmatmul.mubr.f32.gmra.mxu0 %v3637
  %v3985 = vpop.f32.mrf.mxu0
  %v3986 = vadd.f32 0.0, %v3985
  %v3987 = vpop.f32.mrf.mxu0
  %3988 = vmatprep.mubr.f32.mxu0 0.0
  %3989 = vmatmul.mubr.f32.gmra.mxu0 %v3640
  %v3990 = vpop.f32.mrf.mxu0
  %v3991 = vadd.f32 0.0, %v3990
  %v3992 = vpop.f32.mrf.mxu0
  %3993 = vmatprep.mubr.f32.mxu0 0.0
  %3994 = vmatmul.mubr.f32.gmra.mxu0 %v3643
  %v3995 = vpop.f32.mrf.mxu0
  %v3996 = vadd.f32 0.0, %v3995
  %v3997 = vpop.f32.mrf.mxu0
  %3998 = vmatprep.mubr.f32.mxu0 0.0
  %3999 = vmatmul.mubr.f32.gmra.mxu0 %v3646
  %v4000 = vpop.f32.mrf.mxu0
  %v4001 = vadd.f32 0.0, %v4000
  %v4002 = vpop.f32.mrf.mxu0
  %4003 = vmatprep.mubr.f32.mxu0 0.0
  %4004 = vmatmul.mubr.f32.gmra.mxu0 %v3649
  %v4005 = vpop.f32.mrf.mxu0
  %v4006 = vadd.f32 0.0, %v4005
  %v4007 = vpop.f32.mrf.mxu0
  %4008 = vmatprep.mubr.f32.mxu0 0.0
  %4009 = vmatmul.mubr.f32.gmra.mxu0 %v3652
  %v4010 = vpop.f32.mrf.mxu0
  %v4011 = vadd.f32 0.0, %v4010
  %v4012 = vpop.f32.mrf.mxu0
  %4013 = vmatprep.mubr.f32.mxu0 0.0
  %4014 = vmatmul.mubr.f32.gmra.mxu0 %v3655
  %v4015 = vpop.f32.mrf.mxu0
  %v4016 = vadd.f32 0.0, %v4015
  %v4017 = vpop.f32.mrf.mxu0
  %4018 = vmatprep.mubr.f32.mxu0 0.0
  %4019 = vmatmul.mubr.f32.gmra.mxu0 %v3658
  %v4020 = vpop.f32.mrf.mxu0
  %v4021 = vadd.f32 0.0, %v4020
  %v4022 = vpop.f32.mrf.mxu0
  %4023 = vmatprep.mubr.f32.mxu0 0.0
  %4024 = vmatmul.mubr.f32.gmra.mxu0 %v3661
  %v4025 = vpop.f32.mrf.mxu0
  %v4026 = vadd.f32 0.0, %v4025
  %v4027 = vpop.f32.mrf.mxu0
  %4028 = vmatprep.mubr.f32.mxu0 0.0
  %4029 = vmatmul.mubr.f32.gmra.mxu0 %v3664
  %v4030 = vpop.f32.mrf.mxu0
  %v4031 = vadd.f32 0.0, %v4030
  %v4032 = vpop.f32.mrf.mxu0
  %4033 = vmatprep.mubr.f32.mxu0 0.0
  %4034 = vmatmul.mubr.f32.gmra.mxu0 %v3667
  %v4035 = vpop.f32.mrf.mxu0
  %v4036 = vadd.f32 0.0, %v4035
  %v4037 = vpop.f32.mrf.mxu0
  %4038 = vmatprep.mubr.f32.mxu0 0.0
  %4039 = vmatmul.mubr.f32.gmra.mxu0 %v3670
  %v4040 = vpop.f32.mrf.mxu0
  %v4041 = vadd.f32 0.0, %v4040
  %v4042 = vpop.f32.mrf.mxu0
  %4043 = vmatprep.mubr.f32.mxu0 0.0
  %4044 = vmatmul.mubr.f32.gmra.mxu0 %v3673
  %v4045 = vpop.f32.mrf.mxu0
  %v4046 = vadd.f32 0.0, %v4045
  %v4047 = vpop.f32.mrf.mxu0
  %4048 = vmatprep.mubr.f32.mxu0 0.0
  %4049 = vmatmul.mubr.f32.gmra.mxu0 %v3676
  %v4050 = vpop.f32.mrf.mxu0
  %v4051 = vadd.f32 0.0, %v4050
  %v4052 = vpop.f32.mrf.mxu0
  %4053 = vmatprep.mubr.f32.mxu0 0.0
  %4054 = vmatmul.mubr.f32.gmra.mxu0 %v3679
  %v4055 = vpop.f32.mrf.mxu0
  %v4056 = vadd.f32 0.0, %v4055
  %v4057 = vpop.f32.mrf.mxu0
  %4058 = vmatprep.mubr.f32.mxu0 0.0
  %4059 = vmatmul.mubr.f32.gmra.mxu0 %v3682
  %v4060 = vpop.f32.mrf.mxu0
  %v4061 = vadd.f32 0.0, %v4060
  %v4062 = vpop.f32.mrf.mxu0
  %4063 = vmatprep.mubr.f32.mxu0 0.0
  %4064 = vmatmul.mubr.f32.gmra.mxu0 %v3685
  %v4065 = vpop.f32.mrf.mxu0
  %v4066 = vadd.f32 0.0, %v4065
  %v4067 = vpop.f32.mrf.mxu0
  %4068 = vmatprep.mubr.f32.mxu0 0.0
  %4069 = vmatmul.mubr.f32.gmra.mxu0 %v3688
  %v4070 = vpop.f32.mrf.mxu0
  %v4071 = vadd.f32 0.0, %v4070
  %v4072 = vpop.f32.mrf.mxu0
  %4073 = vmatprep.mubr.f32.mxu0 0.0
  %4074 = vmatmul.mubr.f32.gmra.mxu0 %v3691
  %v4075 = vpop.f32.mrf.mxu0
  %v4076 = vadd.f32 0.0, %v4075
  %v4077 = vpop.f32.mrf.mxu0
  %4078 = vmatprep.mubr.f32.mxu0 0.0
  %4079 = vmatmul.mubr.f32.gmra.mxu0 %v3694
  %v4080 = vpop.f32.mrf.mxu0
  %v4081 = vadd.f32 0.0, %v4080
  %v4082 = vpop.f32.mrf.mxu0
  %4083 = vdwg.mxu0
  %v4084 = vadd.f32 %v3374, %v3766
  %v4085 = vadd.f32 %v3375, %v3771
  %v4086 = vadd.f32 %v3376, %v3776
  %v4087 = vadd.f32 %v3377, %v3781
  %v4088 = vadd.f32 %v3378, %v3786
  %v4089 = vadd.f32 %v3379, %v3791
  %v4090 = vadd.f32 %v3380, %v3796
  %v4091 = vadd.f32 %v3381, %v3801
  %v4092 = vadd.f32 %v3382, %v3806
  %v4093 = vadd.f32 %v3383, %v3811
  %v4094 = vadd.f32 %v3384, %v3816
  %v4095 = vadd.f32 %v3385, %v3821
  %v4096 = vadd.f32 %v3386, %v3826
  %v4097 = vadd.f32 %v3387, %v3831
  %v4098 = vadd.f32 %v3388, %v3836
  %v4099 = vadd.f32 %v3389, %v3841
  %v4100 = vadd.f32 %v3390, %v3846
  %v4101 = vadd.f32 %v3391, %v3851
  %v4102 = vadd.f32 %v3392, %v3856
  %v4103 = vadd.f32 %v3393, %v3861
  %v4104 = vadd.f32 %v3394, %v3866
  %v4105 = vadd.f32 %v3395, %v3871
  %v4106 = vadd.f32 %v3396, %v3876
  %v4107 = vadd.f32 %v3397, %v3881
  %v4108 = vadd.f32 %v3398, %v3886
  %v4109 = vadd.f32 %v3399, %v3891
  %v4110 = vadd.f32 %v3400, %v3896
  %v4111 = vadd.f32 %v3401, %v3901
  %v4112 = vadd.f32 %v3402, %v3906
  %v4113 = vadd.f32 %v3403, %v3911
  %v4114 = vadd.f32 %v3404, %v3916
  %v4115 = vadd.f32 %v3405, %v3921
  %v4116 = vadd.f32 %v3406, %v3926
  %v4117 = vadd.f32 %v3407, %v3931
  %v4118 = vadd.f32 %v3408, %v3936
  %v4119 = vadd.f32 %v3409, %v3941
  %v4120 = vadd.f32 %v3410, %v3946
  %v4121 = vadd.f32 %v3411, %v3951
  %v4122 = vadd.f32 %v3412, %v3956
  %v4123 = vadd.f32 %v3413, %v3961
  %v4124 = vadd.f32 %v3414, %v3966
  %v4125 = vadd.f32 %v3415, %v3971
  %v4126 = vadd.f32 %v3416, %v3976
  %v4127 = vadd.f32 %v3417, %v3981
  %v4128 = vadd.f32 %v3418, %v3986
  %v4129 = vadd.f32 %v3419, %v3991
  %v4130 = vadd.f32 %v3420, %v3996
  %v4131 = vadd.f32 %v3421, %v4001
  %v4132 = vadd.f32 %v3422, %v4006
  %v4133 = vadd.f32 %v3423, %v4011
  %v4134 = vadd.f32 %v3424, %v4016
  %v4135 = vadd.f32 %v3425, %v4021
  %v4136 = vadd.f32 %v3426, %v4026
  %v4137 = vadd.f32 %v3427, %v4031
  %v4138 = vadd.f32 %v3428, %v4036
  %v4139 = vadd.f32 %v3429, %v4041
  %v4140 = vadd.f32 %v3430, %v4046
  %v4141 = vadd.f32 %v3431, %v4051
  %v4142 = vadd.f32 %v3432, %v4056
  %v4143 = vadd.f32 %v3433, %v4061
  %v4144 = vadd.f32 %v3434, %v4066
  %v4145 = vadd.f32 %v3435, %v4071
  %v4146 = vadd.f32 %v3436, %v4076
  %v4147 = vadd.f32 %v3437, %v4081
  %s4148 = scalar_lea.vmem %s0, 48
  %v4149 = vld [vmem:[%s4148] sm:$0xff]
  %v4150 = vld [vmem:[%s4148 + $0x8] sm:$0xff]
  %v4151 = vld [vmem:[%s4148 + $0x18] sm:$0xff]
  %v4152 = vld [vmem:[%s4148 + $0x20] sm:$0xff]
  %v4153 = vld [vmem:[%s4148 + $0x30] sm:$0xff]
  %v4154 = vld [vmem:[%s4148 + $0x38] sm:$0xff]
  %v4155 = vld [vmem:[%s4148 + $0x48] sm:$0xff]
  %v4156 = vld [vmem:[%s4148 + $0x50] sm:$0xff]
  %v4157 = vld [vmem:[%s4148 + $0x60] sm:$0xff]
  %v4158 = vld [vmem:[%s4148 + $0x68] sm:$0xff]
  %v4159 = vld [vmem:[%s4148 + $0x78] sm:$0xff]
  %v4160 = vld [vmem:[%s4148 + $0x80] sm:$0xff]
  %v4161 = vld [vmem:[%s4148 + $0x90] sm:$0xff]
  %v4162 = vld [vmem:[%s4148 + $0x98] sm:$0xff]
  %v4163 = vld [vmem:[%s4148 + $0xa8] sm:$0xff]
  %v4164 = vld [vmem:[%s4148 + $0xb0] sm:$0xff]
  %v4165 = vld [vmem:[%s4148 + $0xc0] sm:$0xff]
  %v4166 = vld [vmem:[%s4148 + $0xc8] sm:$0xff]
  %v4167 = vld [vmem:[%s4148 + $0xd8] sm:$0xff]
  %v4168 = vld [vmem:[%s4148 + $0xe0] sm:$0xff]
  %v4169 = vld [vmem:[%s4148 + $0xf0] sm:$0xff]
  %v4170 = vld [vmem:[%s4148 + $0xf8] sm:$0xff]
  %v4171 = vld [vmem:[%s4148 + $0x108] sm:$0xff]
  %v4172 = vld [vmem:[%s4148 + $0x110] sm:$0xff]
  %v4173 = vld [vmem:[%s4148 + $0x120] sm:$0xff]
  %v4174 = vld [vmem:[%s4148 + $0x128] sm:$0xff]
  %v4175 = vld [vmem:[%s4148 + $0x138] sm:$0xff]
  %v4176 = vld [vmem:[%s4148 + $0x140] sm:$0xff]
  %v4177 = vld [vmem:[%s4148 + $0x150] sm:$0xff]
  %v4178 = vld [vmem:[%s4148 + $0x158] sm:$0xff]
  %v4179 = vld [vmem:[%s4148 + $0x168] sm:$0xff]
  %v4180 = vld [vmem:[%s4148 + $0x170] sm:$0xff]
  %v4181 = vld [vmem:[%s4148 + $0x1b0] sm:$0xff]
  %v4182 = vld [vmem:[%s4148 + $0x1b8] sm:$0xff]
  %v4183 = vld [vmem:[%s4148 + $0x1c8] sm:$0xff]
  %v4184 = vld [vmem:[%s4148 + $0x1d0] sm:$0xff]
  %v4185 = vld [vmem:[%s4148 + $0x1e0] sm:$0xff]
  %v4186 = vld [vmem:[%s4148 + $0x1e8] sm:$0xff]
  %v4187 = vld [vmem:[%s4148 + $0x1f8] sm:$0xff]
  %v4188 = vld [vmem:[%s4148 + $0x200] sm:$0xff]
  %v4189 = vld [vmem:[%s4148 + $0x210] sm:$0xff]
  %v4190 = vld [vmem:[%s4148 + $0x218] sm:$0xff]
  %v4191 = vld [vmem:[%s4148 + $0x228] sm:$0xff]
  %v4192 = vld [vmem:[%s4148 + $0x230] sm:$0xff]
  %v4193 = vld [vmem:[%s4148 + $0x240] sm:$0xff]
  %v4194 = vld [vmem:[%s4148 + $0x248] sm:$0xff]
  %v4195 = vld [vmem:[%s4148 + $0x258] sm:$0xff]
  %v4196 = vld [vmem:[%s4148 + $0x260] sm:$0xff]
  %v4197 = vld [vmem:[%s4148 + $0x270] sm:$0xff]
  %v4198 = vld [vmem:[%s4148 + $0x278] sm:$0xff]
  %v4199 = vld [vmem:[%s4148 + $0x288] sm:$0xff]
  %v4200 = vld [vmem:[%s4148 + $0x290] sm:$0xff]
  %v4201 = vld [vmem:[%s4148 + $0x2a0] sm:$0xff]
  %v4202 = vld [vmem:[%s4148 + $0x2a8] sm:$0xff]
  %v4203 = vld [vmem:[%s4148 + $0x2b8] sm:$0xff]
  %v4204 = vld [vmem:[%s4148 + $0x2c0] sm:$0xff]
  %v4205 = vld [vmem:[%s4148 + $0x2d0] sm:$0xff]
  %v4206 = vld [vmem:[%s4148 + $0x2d8] sm:$0xff]
  %v4207 = vld [vmem:[%s4148 + $0x2e8] sm:$0xff]
  %v4208 = vld [vmem:[%s4148 + $0x2f0] sm:$0xff]
  %v4209 = vld [vmem:[%s4148 + $0x300] sm:$0xff]
  %v4210 = vld [vmem:[%s4148 + $0x308] sm:$0xff]
  %v4211 = vld [vmem:[%s4148 + $0x318] sm:$0xff]
  %v4212 = vld [vmem:[%s4148 + $0x320] sm:$0xff]
  %s4213 = scalar_lea.vmem %s1, 24
  %v4214 = vld [vmem:[%s4213] sm:$0xf]
  %v4216 = vsel %vm145, %v4149, 0
  %v4219 = vsel %vm145, %v4150, 0
  %v4222 = vsel %vm145, %v4151, 0
  %v4225 = vsel %vm145, %v4152, 0
  %v4228 = vsel %vm145, %v4153, 0
  %v4231 = vsel %vm145, %v4154, 0
  %v4234 = vsel %vm145, %v4155, 0
  %v4237 = vsel %vm145, %v4156, 0
  %v4240 = vsel %vm145, %v4157, 0
  %v4243 = vsel %vm145, %v4158, 0
  %v4246 = vsel %vm145, %v4159, 0
  %v4249 = vsel %vm145, %v4160, 0
  %v4252 = vsel %vm145, %v4161, 0
  %v4255 = vsel %vm145, %v4162, 0
  %v4258 = vsel %vm145, %v4163, 0
  %v4261 = vsel %vm145, %v4164, 0
  %v4264 = vsel %vm145, %v4165, 0
  %v4267 = vsel %vm145, %v4166, 0
  %v4270 = vsel %vm145, %v4167, 0
  %v4273 = vsel %vm145, %v4168, 0
  %v4276 = vsel %vm145, %v4169, 0
  %v4279 = vsel %vm145, %v4170, 0
  %v4282 = vsel %vm145, %v4171, 0
  %v4285 = vsel %vm145, %v4172, 0
  %v4288 = vsel %vm145, %v4173, 0
  %v4291 = vsel %vm145, %v4174, 0
  %v4294 = vsel %vm145, %v4175, 0
  %v4297 = vsel %vm145, %v4176, 0
  %v4300 = vsel %vm145, %v4177, 0
  %v4303 = vsel %vm145, %v4178, 0
  %v4306 = vsel %vm145, %v4179, 0
  %v4309 = vsel %vm145, %v4180, 0
  %v4312 = vsel %vm145, %v4181, 0
  %v4315 = vsel %vm145, %v4182, 0
  %v4318 = vsel %vm145, %v4183, 0
  %v4321 = vsel %vm145, %v4184, 0
  %v4324 = vsel %vm145, %v4185, 0
  %v4327 = vsel %vm145, %v4186, 0
  %v4330 = vsel %vm145, %v4187, 0
  %v4333 = vsel %vm145, %v4188, 0
  %v4336 = vsel %vm145, %v4189, 0
  %v4339 = vsel %vm145, %v4190, 0
  %v4342 = vsel %vm145, %v4191, 0
  %v4345 = vsel %vm145, %v4192, 0
  %v4348 = vsel %vm145, %v4193, 0
  %v4351 = vsel %vm145, %v4194, 0
  %v4354 = vsel %vm145, %v4195, 0
  %v4357 = vsel %vm145, %v4196, 0
  %v4360 = vsel %vm145, %v4197, 0
  %v4363 = vsel %vm145, %v4198, 0
  %v4366 = vsel %vm145, %v4199, 0
  %v4369 = vsel %vm145, %v4200, 0
  %v4372 = vsel %vm145, %v4201, 0
  %v4375 = vsel %vm145, %v4202, 0
  %v4378 = vsel %vm145, %v4203, 0
  %v4381 = vsel %vm145, %v4204, 0
  %v4384 = vsel %vm145, %v4205, 0
  %v4387 = vsel %vm145, %v4206, 0
  %v4390 = vsel %vm145, %v4207, 0
  %v4393 = vsel %vm145, %v4208, 0
  %v4396 = vsel %vm145, %v4209, 0
  %v4399 = vsel %vm145, %v4210, 0
  %v4402 = vsel %vm145, %v4211, 0
  %v4405 = vsel %vm145, %v4212, 0
  %v4408 = vsel %vm338, %v4214, 0
  %4410 = vmatprep.subr.mxu0 0.0
  %4411 = vmatpush1.msra.mxu0 0.0
  %4412 = vmatprep.subr.mxu0 0.0
  %4413 = vmatpush1.msra.mxu0 0.0
  %4414 = vmatprep.subr.mxu0 0.0
  %4415 = vmatpush1.msra.mxu0 0.0
  %4416 = vmatprep.subr.mxu0 0.0
  %4417 = vmatpush1.msra.mxu0 0.0
  %4418 = vmatprep.subr.mxu0 0.0
  %4419 = vmatpush1.msra.mxu0 0.0
  %4420 = vmatprep.subr.mxu0 0.0
  %4421 = vmatpush1.msra.mxu0 0.0
  %4422 = vmatprep.subr.mxu0 0.0
  %4423 = vmatpush1.msra.mxu0 0.0
  %4424 = vmatprep.subr.mxu0 0.0
  %4425 = vmatpush1.msra.mxu0 0.0
  %4426 = vmatprep.subr.mxu0 0.0
  %4427 = vmatpush1.msra.mxu0 0.0
  %4428 = vmatprep.subr.mxu0 0.0
  %4429 = vmatpush1.msra.mxu0 0.0
  %4430 = vmatprep.subr.mxu0 0.0
  %4431 = vmatpush1.msra.mxu0 0.0
  %4432 = vmatprep.subr.mxu0 0.0
  %4433 = vmatpush1.msra.mxu0 0.0
  %4434 = vmatprep.subr.mxu0 0.0
  %4435 = vmatpush1.msra.mxu0 0.0
  %4436 = vmatprep.subr.mxu0 0.0
  %4437 = vmatpush1.msra.mxu0 0.0
  %4438 = vmatprep.subr.mxu0 0.0
  %4439 = vmatpush1.msra.mxu0 0.0
  %4440 = vmatprep.subr.mxu0 0.0
  %4441 = vmatpush1.msra.mxu0 %v4408
  %4442 = vmatprep.subr.mxu0 0.0
  %4443 = vmatpush2.msra.mxu0 0.0
  %4444 = vmatprep.subr.mxu0 0.0
  %4445 = vmatpush2.msra.mxu0 0.0
  %4446 = vmatprep.subr.mxu0 0.0
  %4447 = vmatpush2.msra.mxu0 0.0
  %4448 = vmatprep.subr.mxu0 0.0
  %4449 = vmatpush2.msra.mxu0 0.0
  %4450 = vmatprep.subr.mxu0 0.0
  %4451 = vmatpush2.msra.mxu0 0.0
  %4452 = vmatprep.subr.mxu0 0.0
  %4453 = vmatpush2.msra.mxu0 0.0
  %4454 = vmatprep.subr.mxu0 0.0
  %4455 = vmatpush2.msra.mxu0 0.0
  %4456 = vmatprep.subr.mxu0 0.0
  %4457 = vmatpush2.msra.mxu0 0.0
  %4458 = vmatprep.subr.mxu0 0.0
  %4459 = vmatpush2.msra.mxu0 0.0
  %4460 = vmatprep.subr.mxu0 0.0
  %4461 = vmatpush2.msra.mxu0 0.0
  %4462 = vmatprep.subr.mxu0 0.0
  %4463 = vmatpush2.msra.mxu0 0.0
  %4464 = vmatprep.subr.mxu0 0.0
  %4465 = vmatpush2.msra.mxu0 0.0
  %4466 = vmatprep.subr.mxu0 0.0
  %4467 = vmatpush2.msra.mxu0 0.0
  %4468 = vmatprep.subr.mxu0 0.0
  %4469 = vmatpush2.msra.mxu0 0.0
  %4470 = vmatprep.subr.mxu0 0.0
  %4471 = vmatpush2.msra.mxu0 0.0
  %4472 = vmatprep.subr.mxu0 0.0
  %4473 = vmatpush2.msra.mxu0 0.0
  %4474 = vmatprep.mubr.f32.mxu0 0.0
  %4475 = vmatmul.mubr.f32.gmra.mxu0 %v4216
  %v4476 = vpop.f32.mrf.mxu0
  %v4477 = vadd.f32 0.0, %v4476
  %v4478 = vpop.f32.mrf.mxu0
  %4479 = vmatprep.mubr.f32.mxu0 0.0
  %4480 = vmatmul.mubr.f32.gmra.mxu0 %v4219
  %v4481 = vpop.f32.mrf.mxu0
  %v4482 = vadd.f32 0.0, %v4481
  %v4483 = vpop.f32.mrf.mxu0
  %4484 = vmatprep.mubr.f32.mxu0 0.0
  %4485 = vmatmul.mubr.f32.gmra.mxu0 %v4222
  %v4486 = vpop.f32.mrf.mxu0
  %v4487 = vadd.f32 0.0, %v4486
  %v4488 = vpop.f32.mrf.mxu0
  %4489 = vmatprep.mubr.f32.mxu0 0.0
  %4490 = vmatmul.mubr.f32.gmra.mxu0 %v4225
  %v4491 = vpop.f32.mrf.mxu0
  %v4492 = vadd.f32 0.0, %v4491
  %v4493 = vpop.f32.mrf.mxu0
  %4494 = vmatprep.mubr.f32.mxu0 0.0
  %4495 = vmatmul.mubr.f32.gmra.mxu0 %v4228
  %v4496 = vpop.f32.mrf.mxu0
  %v4497 = vadd.f32 0.0, %v4496
  %v4498 = vpop.f32.mrf.mxu0
  %4499 = vmatprep.mubr.f32.mxu0 0.0
  %4500 = vmatmul.mubr.f32.gmra.mxu0 %v4231
  %v4501 = vpop.f32.mrf.mxu0
  %v4502 = vadd.f32 0.0, %v4501
  %v4503 = vpop.f32.mrf.mxu0
  %4504 = vmatprep.mubr.f32.mxu0 0.0
  %4505 = vmatmul.mubr.f32.gmra.mxu0 %v4234
  %v4506 = vpop.f32.mrf.mxu0
  %v4507 = vadd.f32 0.0, %v4506
  %v4508 = vpop.f32.mrf.mxu0
  %4509 = vmatprep.mubr.f32.mxu0 0.0
  %4510 = vmatmul.mubr.f32.gmra.mxu0 %v4237
  %v4511 = vpop.f32.mrf.mxu0
  %v4512 = vadd.f32 0.0, %v4511
  %v4513 = vpop.f32.mrf.mxu0
  %4514 = vmatprep.mubr.f32.mxu0 0.0
  %4515 = vmatmul.mubr.f32.gmra.mxu0 %v4240
  %v4516 = vpop.f32.mrf.mxu0
  %v4517 = vadd.f32 0.0, %v4516
  %v4518 = vpop.f32.mrf.mxu0
  %4519 = vmatprep.mubr.f32.mxu0 0.0
  %4520 = vmatmul.mubr.f32.gmra.mxu0 %v4243
  %v4521 = vpop.f32.mrf.mxu0
  %v4522 = vadd.f32 0.0, %v4521
  %v4523 = vpop.f32.mrf.mxu0
  %4524 = vmatprep.mubr.f32.mxu0 0.0
  %4525 = vmatmul.mubr.f32.gmra.mxu0 %v4246
  %v4526 = vpop.f32.mrf.mxu0
  %v4527 = vadd.f32 0.0, %v4526
  %v4528 = vpop.f32.mrf.mxu0
  %4529 = vmatprep.mubr.f32.mxu0 0.0
  %4530 = vmatmul.mubr.f32.gmra.mxu0 %v4249
  %v4531 = vpop.f32.mrf.mxu0
  %v4532 = vadd.f32 0.0, %v4531
  %v4533 = vpop.f32.mrf.mxu0
  %4534 = vmatprep.mubr.f32.mxu0 0.0
  %4535 = vmatmul.mubr.f32.gmra.mxu0 %v4252
  %v4536 = vpop.f32.mrf.mxu0
  %v4537 = vadd.f32 0.0, %v4536
  %v4538 = vpop.f32.mrf.mxu0
  %4539 = vmatprep.mubr.f32.mxu0 0.0
  %4540 = vmatmul.mubr.f32.gmra.mxu0 %v4255
  %v4541 = vpop.f32.mrf.mxu0
  %v4542 = vadd.f32 0.0, %v4541
  %v4543 = vpop.f32.mrf.mxu0
  %4544 = vmatprep.mubr.f32.mxu0 0.0
  %4545 = vmatmul.mubr.f32.gmra.mxu0 %v4258
  %v4546 = vpop.f32.mrf.mxu0
  %v4547 = vadd.f32 0.0, %v4546
  %v4548 = vpop.f32.mrf.mxu0
  %4549 = vmatprep.mubr.f32.mxu0 0.0
  %4550 = vmatmul.mubr.f32.gmra.mxu0 %v4261
  %v4551 = vpop.f32.mrf.mxu0
  %v4552 = vadd.f32 0.0, %v4551
  %v4553 = vpop.f32.mrf.mxu0
  %4554 = vmatprep.mubr.f32.mxu0 0.0
  %4555 = vmatmul.mubr.f32.gmra.mxu0 %v4264
  %v4556 = vpop.f32.mrf.mxu0
  %v4557 = vadd.f32 0.0, %v4556
  %v4558 = vpop.f32.mrf.mxu0
  %4559 = vmatprep.mubr.f32.mxu0 0.0
  %4560 = vmatmul.mubr.f32.gmra.mxu0 %v4267
  %v4561 = vpop.f32.mrf.mxu0
  %v4562 = vadd.f32 0.0, %v4561
  %v4563 = vpop.f32.mrf.mxu0
  %4564 = vmatprep.mubr.f32.mxu0 0.0
  %4565 = vmatmul.mubr.f32.gmra.mxu0 %v4270
  %v4566 = vpop.f32.mrf.mxu0
  %v4567 = vadd.f32 0.0, %v4566
  %v4568 = vpop.f32.mrf.mxu0
  %4569 = vmatprep.mubr.f32.mxu0 0.0
  %4570 = vmatmul.mubr.f32.gmra.mxu0 %v4273
  %v4571 = vpop.f32.mrf.mxu0
  %v4572 = vadd.f32 0.0, %v4571
  %v4573 = vpop.f32.mrf.mxu0
  %4574 = vmatprep.mubr.f32.mxu0 0.0
  %4575 = vmatmul.mubr.f32.gmra.mxu0 %v4276
  %v4576 = vpop.f32.mrf.mxu0
  %v4577 = vadd.f32 0.0, %v4576
  %v4578 = vpop.f32.mrf.mxu0
  %4579 = vmatprep.mubr.f32.mxu0 0.0
  %4580 = vmatmul.mubr.f32.gmra.mxu0 %v4279
  %v4581 = vpop.f32.mrf.mxu0
  %v4582 = vadd.f32 0.0, %v4581
  %v4583 = vpop.f32.mrf.mxu0
  %4584 = vmatprep.mubr.f32.mxu0 0.0
  %4585 = vmatmul.mubr.f32.gmra.mxu0 %v4282
  %v4586 = vpop.f32.mrf.mxu0
  %v4587 = vadd.f32 0.0, %v4586
  %v4588 = vpop.f32.mrf.mxu0
  %4589 = vmatprep.mubr.f32.mxu0 0.0
  %4590 = vmatmul.mubr.f32.gmra.mxu0 %v4285
  %v4591 = vpop.f32.mrf.mxu0
  %v4592 = vadd.f32 0.0, %v4591
  %v4593 = vpop.f32.mrf.mxu0
  %4594 = vmatprep.mubr.f32.mxu0 0.0
  %4595 = vmatmul.mubr.f32.gmra.mxu0 %v4288
  %v4596 = vpop.f32.mrf.mxu0
  %v4597 = vadd.f32 0.0, %v4596
  %v4598 = vpop.f32.mrf.mxu0
  %4599 = vmatprep.mubr.f32.mxu0 0.0
  %4600 = vmatmul.mubr.f32.gmra.mxu0 %v4291
  %v4601 = vpop.f32.mrf.mxu0
  %v4602 = vadd.f32 0.0, %v4601
  %v4603 = vpop.f32.mrf.mxu0
  %4604 = vmatprep.mubr.f32.mxu0 0.0
  %4605 = vmatmul.mubr.f32.gmra.mxu0 %v4294
  %v4606 = vpop.f32.mrf.mxu0
  %v4607 = vadd.f32 0.0, %v4606
  %v4608 = vpop.f32.mrf.mxu0
  %4609 = vmatprep.mubr.f32.mxu0 0.0
  %4610 = vmatmul.mubr.f32.gmra.mxu0 %v4297
  %v4611 = vpop.f32.mrf.mxu0
  %v4612 = vadd.f32 0.0, %v4611
  %v4613 = vpop.f32.mrf.mxu0
  %4614 = vmatprep.mubr.f32.mxu0 0.0
  %4615 = vmatmul.mubr.f32.gmra.mxu0 %v4300
  %v4616 = vpop.f32.mrf.mxu0
  %v4617 = vadd.f32 0.0, %v4616
  %v4618 = vpop.f32.mrf.mxu0
  %4619 = vmatprep.mubr.f32.mxu0 0.0
  %4620 = vmatmul.mubr.f32.gmra.mxu0 %v4303
  %v4621 = vpop.f32.mrf.mxu0
  %v4622 = vadd.f32 0.0, %v4621
  %v4623 = vpop.f32.mrf.mxu0
  %4624 = vmatprep.mubr.f32.mxu0 0.0
  %4625 = vmatmul.mubr.f32.gmra.mxu0 %v4306
  %v4626 = vpop.f32.mrf.mxu0
  %v4627 = vadd.f32 0.0, %v4626
  %v4628 = vpop.f32.mrf.mxu0
  %4629 = vmatprep.mubr.f32.mxu0 0.0
  %4630 = vmatmul.mubr.f32.gmra.mxu0 %v4309
  %v4631 = vpop.f32.mrf.mxu0
  %v4632 = vadd.f32 0.0, %v4631
  %v4633 = vpop.f32.mrf.mxu0
  %4634 = vmatprep.mubr.f32.mxu0 0.0
  %4635 = vmatmul.mubr.f32.gmra.mxu0 %v4312
  %v4636 = vpop.f32.mrf.mxu0
  %v4637 = vadd.f32 0.0, %v4636
  %v4638 = vpop.f32.mrf.mxu0
  %4639 = vmatprep.mubr.f32.mxu0 0.0
  %4640 = vmatmul.mubr.f32.gmra.mxu0 %v4315
  %v4641 = vpop.f32.mrf.mxu0
  %v4642 = vadd.f32 0.0, %v4641
  %v4643 = vpop.f32.mrf.mxu0
  %4644 = vmatprep.mubr.f32.mxu0 0.0
  %4645 = vmatmul.mubr.f32.gmra.mxu0 %v4318
  %v4646 = vpop.f32.mrf.mxu0
  %v4647 = vadd.f32 0.0, %v4646
  %v4648 = vpop.f32.mrf.mxu0
  %4649 = vmatprep.mubr.f32.mxu0 0.0
  %4650 = vmatmul.mubr.f32.gmra.mxu0 %v4321
  %v4651 = vpop.f32.mrf.mxu0
  %v4652 = vadd.f32 0.0, %v4651
  %v4653 = vpop.f32.mrf.mxu0
  %4654 = vmatprep.mubr.f32.mxu0 0.0
  %4655 = vmatmul.mubr.f32.gmra.mxu0 %v4324
  %v4656 = vpop.f32.mrf.mxu0
  %v4657 = vadd.f32 0.0, %v4656
  %v4658 = vpop.f32.mrf.mxu0
  %4659 = vmatprep.mubr.f32.mxu0 0.0
  %4660 = vmatmul.mubr.f32.gmra.mxu0 %v4327
  %v4661 = vpop.f32.mrf.mxu0
  %v4662 = vadd.f32 0.0, %v4661
  %v4663 = vpop.f32.mrf.mxu0
  %4664 = vmatprep.mubr.f32.mxu0 0.0
  %4665 = vmatmul.mubr.f32.gmra.mxu0 %v4330
  %v4666 = vpop.f32.mrf.mxu0
  %v4667 = vadd.f32 0.0, %v4666
  %v4668 = vpop.f32.mrf.mxu0
  %4669 = vmatprep.mubr.f32.mxu0 0.0
  %4670 = vmatmul.mubr.f32.gmra.mxu0 %v4333
  %v4671 = vpop.f32.mrf.mxu0
  %v4672 = vadd.f32 0.0, %v4671
  %v4673 = vpop.f32.mrf.mxu0
  %4674 = vmatprep.mubr.f32.mxu0 0.0
  %4675 = vmatmul.mubr.f32.gmra.mxu0 %v4336
  %v4676 = vpop.f32.mrf.mxu0
  %v4677 = vadd.f32 0.0, %v4676
  %v4678 = vpop.f32.mrf.mxu0
  %4679 = vmatprep.mubr.f32.mxu0 0.0
  %4680 = vmatmul.mubr.f32.gmra.mxu0 %v4339
  %v4681 = vpop.f32.mrf.mxu0
  %v4682 = vadd.f32 0.0, %v4681
  %v4683 = vpop.f32.mrf.mxu0
  %4684 = vmatprep.mubr.f32.mxu0 0.0
  %4685 = vmatmul.mubr.f32.gmra.mxu0 %v4342
  %v4686 = vpop.f32.mrf.mxu0
  %v4687 = vadd.f32 0.0, %v4686
  %v4688 = vpop.f32.mrf.mxu0
  %4689 = vmatprep.mubr.f32.mxu0 0.0
  %4690 = vmatmul.mubr.f32.gmra.mxu0 %v4345
  %v4691 = vpop.f32.mrf.mxu0
  %v4692 = vadd.f32 0.0, %v4691
  %v4693 = vpop.f32.mrf.mxu0
  %4694 = vmatprep.mubr.f32.mxu0 0.0
  %4695 = vmatmul.mubr.f32.gmra.mxu0 %v4348
  %v4696 = vpop.f32.mrf.mxu0
  %v4697 = vadd.f32 0.0, %v4696
  %v4698 = vpop.f32.mrf.mxu0
  %4699 = vmatprep.mubr.f32.mxu0 0.0
  %4700 = vmatmul.mubr.f32.gmra.mxu0 %v4351
  %v4701 = vpop.f32.mrf.mxu0
  %v4702 = vadd.f32 0.0, %v4701
  %v4703 = vpop.f32.mrf.mxu0
  %4704 = vmatprep.mubr.f32.mxu0 0.0
  %4705 = vmatmul.mubr.f32.gmra.mxu0 %v4354
  %v4706 = vpop.f32.mrf.mxu0
  %v4707 = vadd.f32 0.0, %v4706
  %v4708 = vpop.f32.mrf.mxu0
  %4709 = vmatprep.mubr.f32.mxu0 0.0
  %4710 = vmatmul.mubr.f32.gmra.mxu0 %v4357
  %v4711 = vpop.f32.mrf.mxu0
  %v4712 = vadd.f32 0.0, %v4711
  %v4713 = vpop.f32.mrf.mxu0
  %4714 = vmatprep.mubr.f32.mxu0 0.0
  %4715 = vmatmul.mubr.f32.gmra.mxu0 %v4360
  %v4716 = vpop.f32.mrf.mxu0
  %v4717 = vadd.f32 0.0, %v4716
  %v4718 = vpop.f32.mrf.mxu0
  %4719 = vmatprep.mubr.f32.mxu0 0.0
  %4720 = vmatmul.mubr.f32.gmra.mxu0 %v4363
  %v4721 = vpop.f32.mrf.mxu0
  %v4722 = vadd.f32 0.0, %v4721
  %v4723 = vpop.f32.mrf.mxu0
  %4724 = vmatprep.mubr.f32.mxu0 0.0
  %4725 = vmatmul.mubr.f32.gmra.mxu0 %v4366
  %v4726 = vpop.f32.mrf.mxu0
  %v4727 = vadd.f32 0.0, %v4726
  %v4728 = vpop.f32.mrf.mxu0
  %4729 = vmatprep.mubr.f32.mxu0 0.0
  %4730 = vmatmul.mubr.f32.gmra.mxu0 %v4369
  %v4731 = vpop.f32.mrf.mxu0
  %v4732 = vadd.f32 0.0, %v4731
  %v4733 = vpop.f32.mrf.mxu0
  %4734 = vmatprep.mubr.f32.mxu0 0.0
  %4735 = vmatmul.mubr.f32.gmra.mxu0 %v4372
  %v4736 = vpop.f32.mrf.mxu0
  %v4737 = vadd.f32 0.0, %v4736
  %v4738 = vpop.f32.mrf.mxu0
  %4739 = vmatprep.mubr.f32.mxu0 0.0
  %4740 = vmatmul.mubr.f32.gmra.mxu0 %v4375
  %v4741 = vpop.f32.mrf.mxu0
  %v4742 = vadd.f32 0.0, %v4741
  %v4743 = vpop.f32.mrf.mxu0
  %4744 = vmatprep.mubr.f32.mxu0 0.0
  %4745 = vmatmul.mubr.f32.gmra.mxu0 %v4378
  %v4746 = vpop.f32.mrf.mxu0
  %v4747 = vadd.f32 0.0, %v4746
  %v4748 = vpop.f32.mrf.mxu0
  %4749 = vmatprep.mubr.f32.mxu0 0.0
  %4750 = vmatmul.mubr.f32.gmra.mxu0 %v4381
  %v4751 = vpop.f32.mrf.mxu0
  %v4752 = vadd.f32 0.0, %v4751
  %v4753 = vpop.f32.mrf.mxu0
  %4754 = vmatprep.mubr.f32.mxu0 0.0
  %4755 = vmatmul.mubr.f32.gmra.mxu0 %v4384
  %v4756 = vpop.f32.mrf.mxu0
  %v4757 = vadd.f32 0.0, %v4756
  %v4758 = vpop.f32.mrf.mxu0
  %4759 = vmatprep.mubr.f32.mxu0 0.0
  %4760 = vmatmul.mubr.f32.gmra.mxu0 %v4387
  %v4761 = vpop.f32.mrf.mxu0
  %v4762 = vadd.f32 0.0, %v4761
  %v4763 = vpop.f32.mrf.mxu0
  %4764 = vmatprep.mubr.f32.mxu0 0.0
  %4765 = vmatmul.mubr.f32.gmra.mxu0 %v4390
  %v4766 = vpop.f32.mrf.mxu0
  %v4767 = vadd.f32 0.0, %v4766
  %v4768 = vpop.f32.mrf.mxu0
  %4769 = vmatprep.mubr.f32.mxu0 0.0
  %4770 = vmatmul.mubr.f32.gmra.mxu0 %v4393
  %v4771 = vpop.f32.mrf.mxu0
  %v4772 = vadd.f32 0.0, %v4771
  %v4773 = vpop.f32.mrf.mxu0
  %4774 = vmatprep.mubr.f32.mxu0 0.0
  %4775 = vmatmul.mubr.f32.gmra.mxu0 %v4396
  %v4776 = vpop.f32.mrf.mxu0
  %v4777 = vadd.f32 0.0, %v4776
  %v4778 = vpop.f32.mrf.mxu0
  %4779 = vmatprep.mubr.f32.mxu0 0.0
  %4780 = vmatmul.mubr.f32.gmra.mxu0 %v4399
  %v4781 = vpop.f32.mrf.mxu0
  %v4782 = vadd.f32 0.0, %v4781
  %v4783 = vpop.f32.mrf.mxu0
  %4784 = vmatprep.mubr.f32.mxu0 0.0
  %4785 = vmatmul.mubr.f32.gmra.mxu0 %v4402
  %v4786 = vpop.f32.mrf.mxu0
  %v4787 = vadd.f32 0.0, %v4786
  %v4788 = vpop.f32.mrf.mxu0
  %4789 = vmatprep.mubr.f32.mxu0 0.0
  %4790 = vmatmul.mubr.f32.gmra.mxu0 %v4405
  %v4791 = vpop.f32.mrf.mxu0
  %v4792 = vadd.f32 0.0, %v4791
  %v4793 = vpop.f32.mrf.mxu0
  %4794 = vdwg.mxu0
  %v4795 = vadd.f32 %v4084, %v4477
  %v4796 = vadd.f32 %v4085, %v4482
  %v4797 = vadd.f32 %v4086, %v4487
  %v4798 = vadd.f32 %v4087, %v4492
  %v4799 = vadd.f32 %v4088, %v4497
  %v4800 = vadd.f32 %v4089, %v4502
  %v4801 = vadd.f32 %v4090, %v4507
  %v4802 = vadd.f32 %v4091, %v4512
  %v4803 = vadd.f32 %v4092, %v4517
  %v4804 = vadd.f32 %v4093, %v4522
  %v4805 = vadd.f32 %v4094, %v4527
  %v4806 = vadd.f32 %v4095, %v4532
  %v4807 = vadd.f32 %v4096, %v4537
  %v4808 = vadd.f32 %v4097, %v4542
  %v4809 = vadd.f32 %v4098, %v4547
  %v4810 = vadd.f32 %v4099, %v4552
  %v4811 = vadd.f32 %v4100, %v4557
  %v4812 = vadd.f32 %v4101, %v4562
  %v4813 = vadd.f32 %v4102, %v4567
  %v4814 = vadd.f32 %v4103, %v4572
  %v4815 = vadd.f32 %v4104, %v4577
  %v4816 = vadd.f32 %v4105, %v4582
  %v4817 = vadd.f32 %v4106, %v4587
  %v4818 = vadd.f32 %v4107, %v4592
  %v4819 = vadd.f32 %v4108, %v4597
  %v4820 = vadd.f32 %v4109, %v4602
  %v4821 = vadd.f32 %v4110, %v4607
  %v4822 = vadd.f32 %v4111, %v4612
  %v4823 = vadd.f32 %v4112, %v4617
  %v4824 = vadd.f32 %v4113, %v4622
  %v4825 = vadd.f32 %v4114, %v4627
  %v4826 = vadd.f32 %v4115, %v4632
  %v4827 = vadd.f32 %v4116, %v4637
  %v4828 = vadd.f32 %v4117, %v4642
  %v4829 = vadd.f32 %v4118, %v4647
  %v4830 = vadd.f32 %v4119, %v4652
  %v4831 = vadd.f32 %v4120, %v4657
  %v4832 = vadd.f32 %v4121, %v4662
  %v4833 = vadd.f32 %v4122, %v4667
  %v4834 = vadd.f32 %v4123, %v4672
  %v4835 = vadd.f32 %v4124, %v4677
  %v4836 = vadd.f32 %v4125, %v4682
  %v4837 = vadd.f32 %v4126, %v4687
  %v4838 = vadd.f32 %v4127, %v4692
  %v4839 = vadd.f32 %v4128, %v4697
  %v4840 = vadd.f32 %v4129, %v4702
  %v4841 = vadd.f32 %v4130, %v4707
  %v4842 = vadd.f32 %v4131, %v4712
  %v4843 = vadd.f32 %v4132, %v4717
  %v4844 = vadd.f32 %v4133, %v4722
  %v4845 = vadd.f32 %v4134, %v4727
  %v4846 = vadd.f32 %v4135, %v4732
  %v4847 = vadd.f32 %v4136, %v4737
  %v4848 = vadd.f32 %v4137, %v4742
  %v4849 = vadd.f32 %v4138, %v4747
  %v4850 = vadd.f32 %v4139, %v4752
  %v4851 = vadd.f32 %v4140, %v4757
  %v4852 = vadd.f32 %v4141, %v4762
  %v4853 = vadd.f32 %v4142, %v4767
  %v4854 = vadd.f32 %v4143, %v4772
  %v4855 = vadd.f32 %v4144, %v4777
  %v4856 = vadd.f32 %v4145, %v4782
  %v4857 = vadd.f32 %v4146, %v4787
  %v4858 = vadd.f32 %v4147, %v4792
  %v4859 = vld [vmem:[%s4148 + $0x1] sm:$0xff]
  %v4860 = vld [vmem:[%s4148 + $0x9] sm:$0xff]
  %v4861 = vld [vmem:[%s4148 + $0x19] sm:$0xff]
  %v4862 = vld [vmem:[%s4148 + $0x21] sm:$0xff]
  %v4863 = vld [vmem:[%s4148 + $0x31] sm:$0xff]
  %v4864 = vld [vmem:[%s4148 + $0x39] sm:$0xff]
  %v4865 = vld [vmem:[%s4148 + $0x49] sm:$0xff]
  %v4866 = vld [vmem:[%s4148 + $0x51] sm:$0xff]
  %v4867 = vld [vmem:[%s4148 + $0x61] sm:$0xff]
  %v4868 = vld [vmem:[%s4148 + $0x69] sm:$0xff]
  %v4869 = vld [vmem:[%s4148 + $0x79] sm:$0xff]
  %v4870 = vld [vmem:[%s4148 + $0x81] sm:$0xff]
  %v4871 = vld [vmem:[%s4148 + $0x91] sm:$0xff]
  %v4872 = vld [vmem:[%s4148 + $0x99] sm:$0xff]
  %v4873 = vld [vmem:[%s4148 + $0xa9] sm:$0xff]
  %v4874 = vld [vmem:[%s4148 + $0xb1] sm:$0xff]
  %v4875 = vld [vmem:[%s4148 + $0xc1] sm:$0xff]
  %v4876 = vld [vmem:[%s4148 + $0xc9] sm:$0xff]
  %v4877 = vld [vmem:[%s4148 + $0xd9] sm:$0xff]
  %v4878 = vld [vmem:[%s4148 + $0xe1] sm:$0xff]
  %v4879 = vld [vmem:[%s4148 + $0xf1] sm:$0xff]
  %v4880 = vld [vmem:[%s4148 + $0xf9] sm:$0xff]
  %v4881 = vld [vmem:[%s4148 + $0x109] sm:$0xff]
  %v4882 = vld [vmem:[%s4148 + $0x111] sm:$0xff]
  %v4883 = vld [vmem:[%s4148 + $0x121] sm:$0xff]
  %v4884 = vld [vmem:[%s4148 + $0x129] sm:$0xff]
  %v4885 = vld [vmem:[%s4148 + $0x139] sm:$0xff]
  %v4886 = vld [vmem:[%s4148 + $0x141] sm:$0xff]
  %v4887 = vld [vmem:[%s4148 + $0x151] sm:$0xff]
  %v4888 = vld [vmem:[%s4148 + $0x159] sm:$0xff]
  %v4889 = vld [vmem:[%s4148 + $0x169] sm:$0xff]
  %v4890 = vld [vmem:[%s4148 + $0x171] sm:$0xff]
  %v4891 = vld [vmem:[%s4148 + $0x1b1] sm:$0xff]
  %v4892 = vld [vmem:[%s4148 + $0x1b9] sm:$0xff]
  %v4893 = vld [vmem:[%s4148 + $0x1c9] sm:$0xff]
  %v4894 = vld [vmem:[%s4148 + $0x1d1] sm:$0xff]
  %v4895 = vld [vmem:[%s4148 + $0x1e1] sm:$0xff]
  %v4896 = vld [vmem:[%s4148 + $0x1e9] sm:$0xff]
  %v4897 = vld [vmem:[%s4148 + $0x1f9] sm:$0xff]
  %v4898 = vld [vmem:[%s4148 + $0x201] sm:$0xff]
  %v4899 = vld [vmem:[%s4148 + $0x211] sm:$0xff]
  %v4900 = vld [vmem:[%s4148 + $0x219] sm:$0xff]
  %v4901 = vld [vmem:[%s4148 + $0x229] sm:$0xff]
  %v4902 = vld [vmem:[%s4148 + $0x231] sm:$0xff]
  %v4903 = vld [vmem:[%s4148 + $0x241] sm:$0xff]
  %v4904 = vld [vmem:[%s4148 + $0x249] sm:$0xff]
  %v4905 = vld [vmem:[%s4148 + $0x259] sm:$0xff]
  %v4906 = vld [vmem:[%s4148 + $0x261] sm:$0xff]
  %v4907 = vld [vmem:[%s4148 + $0x271] sm:$0xff]
  %v4908 = vld [vmem:[%s4148 + $0x279] sm:$0xff]
  %v4909 = vld [vmem:[%s4148 + $0x289] sm:$0xff]
  %v4910 = vld [vmem:[%s4148 + $0x291] sm:$0xff]
  %v4911 = vld [vmem:[%s4148 + $0x2a1] sm:$0xff]
  %v4912 = vld [vmem:[%s4148 + $0x2a9] sm:$0xff]
  %v4913 = vld [vmem:[%s4148 + $0x2b9] sm:$0xff]
  %v4914 = vld [vmem:[%s4148 + $0x2c1] sm:$0xff]
  %v4915 = vld [vmem:[%s4148 + $0x2d1] sm:$0xff]
  %v4916 = vld [vmem:[%s4148 + $0x2d9] sm:$0xff]
  %v4917 = vld [vmem:[%s4148 + $0x2e9] sm:$0xff]
  %v4918 = vld [vmem:[%s4148 + $0x2f1] sm:$0xff]
  %v4919 = vld [vmem:[%s4148 + $0x301] sm:$0xff]
  %v4920 = vld [vmem:[%s4148 + $0x309] sm:$0xff]
  %v4921 = vld [vmem:[%s4148 + $0x319] sm:$0xff]
  %v4922 = vld [vmem:[%s4148 + $0x321] sm:$0xff]
  %s4923 = scalar_lea.vmem %s1, 28
  %v4924 = vld [vmem:[%s4923] sm:$0xf]
  %v4926 = vsel %vm145, %v4859, 0
  %v4929 = vsel %vm145, %v4860, 0
  %v4932 = vsel %vm145, %v4861, 0
  %v4935 = vsel %vm145, %v4862, 0
  %v4938 = vsel %vm145, %v4863, 0
  %v4941 = vsel %vm145, %v4864, 0
  %v4944 = vsel %vm145, %v4865, 0
  %v4947 = vsel %vm145, %v4866, 0
  %v4950 = vsel %vm145, %v4867, 0
  %v4953 = vsel %vm145, %v4868, 0
  %v4956 = vsel %vm145, %v4869, 0
  %v4959 = vsel %vm145, %v4870, 0
  %v4962 = vsel %vm145, %v4871, 0
  %v4965 = vsel %vm145, %v4872, 0
  %v4968 = vsel %vm145, %v4873, 0
  %v4971 = vsel %vm145, %v4874, 0
  %v4974 = vsel %vm145, %v4875, 0
  %v4977 = vsel %vm145, %v4876, 0
  %v4980 = vsel %vm145, %v4877, 0
  %v4983 = vsel %vm145, %v4878, 0
  %v4986 = vsel %vm145, %v4879, 0
  %v4989 = vsel %vm145, %v4880, 0
  %v4992 = vsel %vm145, %v4881, 0
  %v4995 = vsel %vm145, %v4882, 0
  %v4998 = vsel %vm145, %v4883, 0
  %v5001 = vsel %vm145, %v4884, 0
  %v5004 = vsel %vm145, %v4885, 0
  %v5007 = vsel %vm145, %v4886, 0
  %v5010 = vsel %vm145, %v4887, 0
  %v5013 = vsel %vm145, %v4888, 0
  %v5016 = vsel %vm145, %v4889, 0
  %v5019 = vsel %vm145, %v4890, 0
  %v5022 = vsel %vm145, %v4891, 0
  %v5025 = vsel %vm145, %v4892, 0
  %v5028 = vsel %vm145, %v4893, 0
  %v5031 = vsel %vm145, %v4894, 0
  %v5034 = vsel %vm145, %v4895, 0
  %v5037 = vsel %vm145, %v4896, 0
  %v5040 = vsel %vm145, %v4897, 0
  %v5043 = vsel %vm145, %v4898, 0
  %v5046 = vsel %vm145, %v4899, 0
  %v5049 = vsel %vm145, %v4900, 0
  %v5052 = vsel %vm145, %v4901, 0
  %v5055 = vsel %vm145, %v4902, 0
  %v5058 = vsel %vm145, %v4903, 0
  %v5061 = vsel %vm145, %v4904, 0
  %v5064 = vsel %vm145, %v4905, 0
  %v5067 = vsel %vm145, %v4906, 0
  %v5070 = vsel %vm145, %v4907, 0
  %v5073 = vsel %vm145, %v4908, 0
  %v5076 = vsel %vm145, %v4909, 0
  %v5079 = vsel %vm145, %v4910, 0
  %v5082 = vsel %vm145, %v4911, 0
  %v5085 = vsel %vm145, %v4912, 0
  %v5088 = vsel %vm145, %v4913, 0
  %v5091 = vsel %vm145, %v4914, 0
  %v5094 = vsel %vm145, %v4915, 0
  %v5097 = vsel %vm145, %v4916, 0
  %v5100 = vsel %vm145, %v4917, 0
  %v5103 = vsel %vm145, %v4918, 0
  %v5106 = vsel %vm145, %v4919, 0
  %v5109 = vsel %vm145, %v4920, 0
  %v5112 = vsel %vm145, %v4921, 0
  %v5115 = vsel %vm145, %v4922, 0
  %v5118 = vsel %vm338, %v4924, 0
  %5120 = vmatprep.subr.mxu0 0.0
  %5121 = vmatpush1.msra.mxu0 0.0
  %5122 = vmatprep.subr.mxu0 0.0
  %5123 = vmatpush1.msra.mxu0 0.0
  %5124 = vmatprep.subr.mxu0 0.0
  %5125 = vmatpush1.msra.mxu0 0.0
  %5126 = vmatprep.subr.mxu0 0.0
  %5127 = vmatpush1.msra.mxu0 0.0
  %5128 = vmatprep.subr.mxu0 0.0
  %5129 = vmatpush1.msra.mxu0 0.0
  %5130 = vmatprep.subr.mxu0 0.0
  %5131 = vmatpush1.msra.mxu0 0.0
  %5132 = vmatprep.subr.mxu0 0.0
  %5133 = vmatpush1.msra.mxu0 0.0
  %5134 = vmatprep.subr.mxu0 0.0
  %5135 = vmatpush1.msra.mxu0 0.0
  %5136 = vmatprep.subr.mxu0 0.0
  %5137 = vmatpush1.msra.mxu0 0.0
  %5138 = vmatprep.subr.mxu0 0.0
  %5139 = vmatpush1.msra.mxu0 0.0
  %5140 = vmatprep.subr.mxu0 0.0
  %5141 = vmatpush1.msra.mxu0 0.0
  %5142 = vmatprep.subr.mxu0 0.0
  %5143 = vmatpush1.msra.mxu0 0.0
  %5144 = vmatprep.subr.mxu0 0.0
  %5145 = vmatpush1.msra.mxu0 0.0
  %5146 = vmatprep.subr.mxu0 0.0
  %5147 = vmatpush1.msra.mxu0 0.0
  %5148 = vmatprep.subr.mxu0 0.0
  %5149 = vmatpush1.msra.mxu0 0.0
  %5150 = vmatprep.subr.mxu0 0.0
  %5151 = vmatpush1.msra.mxu0 %v5118
  %5152 = vmatprep.subr.mxu0 0.0
  %5153 = vmatpush2.msra.mxu0 0.0
  %5154 = vmatprep.subr.mxu0 0.0
  %5155 = vmatpush2.msra.mxu0 0.0
  %5156 = vmatprep.subr.mxu0 0.0
  %5157 = vmatpush2.msra.mxu0 0.0
  %5158 = vmatprep.subr.mxu0 0.0
  %5159 = vmatpush2.msra.mxu0 0.0
  %5160 = vmatprep.subr.mxu0 0.0
  %5161 = vmatpush2.msra.mxu0 0.0
  %5162 = vmatprep.subr.mxu0 0.0
  %5163 = vmatpush2.msra.mxu0 0.0
  %5164 = vmatprep.subr.mxu0 0.0
  %5165 = vmatpush2.msra.mxu0 0.0
  %5166 = vmatprep.subr.mxu0 0.0
  %5167 = vmatpush2.msra.mxu0 0.0
  %5168 = vmatprep.subr.mxu0 0.0
  %5169 = vmatpush2.msra.mxu0 0.0
  %5170 = vmatprep.subr.mxu0 0.0
  %5171 = vmatpush2.msra.mxu0 0.0
  %5172 = vmatprep.subr.mxu0 0.0
  %5173 = vmatpush2.msra.mxu0 0.0
  %5174 = vmatprep.subr.mxu0 0.0
  %5175 = vmatpush2.msra.mxu0 0.0
  %5176 = vmatprep.subr.mxu0 0.0
  %5177 = vmatpush2.msra.mxu0 0.0
  %5178 = vmatprep.subr.mxu0 0.0
  %5179 = vmatpush2.msra.mxu0 0.0
  %5180 = vmatprep.subr.mxu0 0.0
  %5181 = vmatpush2.msra.mxu0 0.0
  %5182 = vmatprep.subr.mxu0 0.0
  %5183 = vmatpush2.msra.mxu0 0.0
  %5184 = vmatprep.mubr.f32.mxu0 0.0
  %5185 = vmatmul.mubr.f32.gmra.mxu0 %v4926
  %v5186 = vpop.f32.mrf.mxu0
  %v5187 = vadd.f32 0.0, %v5186
  %v5188 = vpop.f32.mrf.mxu0
  %5189 = vmatprep.mubr.f32.mxu0 0.0
  %5190 = vmatmul.mubr.f32.gmra.mxu0 %v4929
  %v5191 = vpop.f32.mrf.mxu0
  %v5192 = vadd.f32 0.0, %v5191
  %v5193 = vpop.f32.mrf.mxu0
  %5194 = vmatprep.mubr.f32.mxu0 0.0
  %5195 = vmatmul.mubr.f32.gmra.mxu0 %v4932
  %v5196 = vpop.f32.mrf.mxu0
  %v5197 = vadd.f32 0.0, %v5196
  %v5198 = vpop.f32.mrf.mxu0
  %5199 = vmatprep.mubr.f32.mxu0 0.0
  %5200 = vmatmul.mubr.f32.gmra.mxu0 %v4935
  %v5201 = vpop.f32.mrf.mxu0
  %v5202 = vadd.f32 0.0, %v5201
  %v5203 = vpop.f32.mrf.mxu0
  %5204 = vmatprep.mubr.f32.mxu0 0.0
  %5205 = vmatmul.mubr.f32.gmra.mxu0 %v4938
  %v5206 = vpop.f32.mrf.mxu0
  %v5207 = vadd.f32 0.0, %v5206
  %v5208 = vpop.f32.mrf.mxu0
  %5209 = vmatprep.mubr.f32.mxu0 0.0
  %5210 = vmatmul.mubr.f32.gmra.mxu0 %v4941
  %v5211 = vpop.f32.mrf.mxu0
  %v5212 = vadd.f32 0.0, %v5211
  %v5213 = vpop.f32.mrf.mxu0
  %5214 = vmatprep.mubr.f32.mxu0 0.0
  %5215 = vmatmul.mubr.f32.gmra.mxu0 %v4944
  %v5216 = vpop.f32.mrf.mxu0
  %v5217 = vadd.f32 0.0, %v5216
  %v5218 = vpop.f32.mrf.mxu0
  %5219 = vmatprep.mubr.f32.mxu0 0.0
  %5220 = vmatmul.mubr.f32.gmra.mxu0 %v4947
  %v5221 = vpop.f32.mrf.mxu0
  %v5222 = vadd.f32 0.0, %v5221
  %v5223 = vpop.f32.mrf.mxu0
  %5224 = vmatprep.mubr.f32.mxu0 0.0
  %5225 = vmatmul.mubr.f32.gmra.mxu0 %v4950
  %v5226 = vpop.f32.mrf.mxu0
  %v5227 = vadd.f32 0.0, %v5226
  %v5228 = vpop.f32.mrf.mxu0
  %5229 = vmatprep.mubr.f32.mxu0 0.0
  %5230 = vmatmul.mubr.f32.gmra.mxu0 %v4953
  %v5231 = vpop.f32.mrf.mxu0
  %v5232 = vadd.f32 0.0, %v5231
  %v5233 = vpop.f32.mrf.mxu0
  %5234 = vmatprep.mubr.f32.mxu0 0.0
  %5235 = vmatmul.mubr.f32.gmra.mxu0 %v4956
  %v5236 = vpop.f32.mrf.mxu0
  %v5237 = vadd.f32 0.0, %v5236
  %v5238 = vpop.f32.mrf.mxu0
  %5239 = vmatprep.mubr.f32.mxu0 0.0
  %5240 = vmatmul.mubr.f32.gmra.mxu0 %v4959
  %v5241 = vpop.f32.mrf.mxu0
  %v5242 = vadd.f32 0.0, %v5241
  %v5243 = vpop.f32.mrf.mxu0
  %5244 = vmatprep.mubr.f32.mxu0 0.0
  %5245 = vmatmul.mubr.f32.gmra.mxu0 %v4962
  %v5246 = vpop.f32.mrf.mxu0
  %v5247 = vadd.f32 0.0, %v5246
  %v5248 = vpop.f32.mrf.mxu0
  %5249 = vmatprep.mubr.f32.mxu0 0.0
  %5250 = vmatmul.mubr.f32.gmra.mxu0 %v4965
  %v5251 = vpop.f32.mrf.mxu0
  %v5252 = vadd.f32 0.0, %v5251
  %v5253 = vpop.f32.mrf.mxu0
  %5254 = vmatprep.mubr.f32.mxu0 0.0
  %5255 = vmatmul.mubr.f32.gmra.mxu0 %v4968
  %v5256 = vpop.f32.mrf.mxu0
  %v5257 = vadd.f32 0.0, %v5256
  %v5258 = vpop.f32.mrf.mxu0
  %5259 = vmatprep.mubr.f32.mxu0 0.0
  %5260 = vmatmul.mubr.f32.gmra.mxu0 %v4971
  %v5261 = vpop.f32.mrf.mxu0
  %v5262 = vadd.f32 0.0, %v5261
  %v5263 = vpop.f32.mrf.mxu0
  %5264 = vmatprep.mubr.f32.mxu0 0.0
  %5265 = vmatmul.mubr.f32.gmra.mxu0 %v4974
  %v5266 = vpop.f32.mrf.mxu0
  %v5267 = vadd.f32 0.0, %v5266
  %v5268 = vpop.f32.mrf.mxu0
  %5269 = vmatprep.mubr.f32.mxu0 0.0
  %5270 = vmatmul.mubr.f32.gmra.mxu0 %v4977
  %v5271 = vpop.f32.mrf.mxu0
  %v5272 = vadd.f32 0.0, %v5271
  %v5273 = vpop.f32.mrf.mxu0
  %5274 = vmatprep.mubr.f32.mxu0 0.0
  %5275 = vmatmul.mubr.f32.gmra.mxu0 %v4980
  %v5276 = vpop.f32.mrf.mxu0
  %v5277 = vadd.f32 0.0, %v5276
  %v5278 = vpop.f32.mrf.mxu0
  %5279 = vmatprep.mubr.f32.mxu0 0.0
  %5280 = vmatmul.mubr.f32.gmra.mxu0 %v4983
  %v5281 = vpop.f32.mrf.mxu0
  %v5282 = vadd.f32 0.0, %v5281
  %v5283 = vpop.f32.mrf.mxu0
  %5284 = vmatprep.mubr.f32.mxu0 0.0
  %5285 = vmatmul.mubr.f32.gmra.mxu0 %v4986
  %v5286 = vpop.f32.mrf.mxu0
  %v5287 = vadd.f32 0.0, %v5286
  %v5288 = vpop.f32.mrf.mxu0
  %5289 = vmatprep.mubr.f32.mxu0 0.0
  %5290 = vmatmul.mubr.f32.gmra.mxu0 %v4989
  %v5291 = vpop.f32.mrf.mxu0
  %v5292 = vadd.f32 0.0, %v5291
  %v5293 = vpop.f32.mrf.mxu0
  %5294 = vmatprep.mubr.f32.mxu0 0.0
  %5295 = vmatmul.mubr.f32.gmra.mxu0 %v4992
  %v5296 = vpop.f32.mrf.mxu0
  %v5297 = vadd.f32 0.0, %v5296
  %v5298 = vpop.f32.mrf.mxu0
  %5299 = vmatprep.mubr.f32.mxu0 0.0
  %5300 = vmatmul.mubr.f32.gmra.mxu0 %v4995
  %v5301 = vpop.f32.mrf.mxu0
  %v5302 = vadd.f32 0.0, %v5301
  %v5303 = vpop.f32.mrf.mxu0
  %5304 = vmatprep.mubr.f32.mxu0 0.0
  %5305 = vmatmul.mubr.f32.gmra.mxu0 %v4998
  %v5306 = vpop.f32.mrf.mxu0
  %v5307 = vadd.f32 0.0, %v5306
  %v5308 = vpop.f32.mrf.mxu0
  %5309 = vmatprep.mubr.f32.mxu0 0.0
  %5310 = vmatmul.mubr.f32.gmra.mxu0 %v5001
  %v5311 = vpop.f32.mrf.mxu0
  %v5312 = vadd.f32 0.0, %v5311
  %v5313 = vpop.f32.mrf.mxu0
  %5314 = vmatprep.mubr.f32.mxu0 0.0
  %5315 = vmatmul.mubr.f32.gmra.mxu0 %v5004
  %v5316 = vpop.f32.mrf.mxu0
  %v5317 = vadd.f32 0.0, %v5316
  %v5318 = vpop.f32.mrf.mxu0
  %5319 = vmatprep.mubr.f32.mxu0 0.0
  %5320 = vmatmul.mubr.f32.gmra.mxu0 %v5007
  %v5321 = vpop.f32.mrf.mxu0
  %v5322 = vadd.f32 0.0, %v5321
  %v5323 = vpop.f32.mrf.mxu0
  %5324 = vmatprep.mubr.f32.mxu0 0.0
  %5325 = vmatmul.mubr.f32.gmra.mxu0 %v5010
  %v5326 = vpop.f32.mrf.mxu0
  %v5327 = vadd.f32 0.0, %v5326
  %v5328 = vpop.f32.mrf.mxu0
  %5329 = vmatprep.mubr.f32.mxu0 0.0
  %5330 = vmatmul.mubr.f32.gmra.mxu0 %v5013
  %v5331 = vpop.f32.mrf.mxu0
  %v5332 = vadd.f32 0.0, %v5331
  %v5333 = vpop.f32.mrf.mxu0
  %5334 = vmatprep.mubr.f32.mxu0 0.0
  %5335 = vmatmul.mubr.f32.gmra.mxu0 %v5016
  %v5336 = vpop.f32.mrf.mxu0
  %v5337 = vadd.f32 0.0, %v5336
  %v5338 = vpop.f32.mrf.mxu0
  %5339 = vmatprep.mubr.f32.mxu0 0.0
  %5340 = vmatmul.mubr.f32.gmra.mxu0 %v5019
  %v5341 = vpop.f32.mrf.mxu0
  %v5342 = vadd.f32 0.0, %v5341
  %v5343 = vpop.f32.mrf.mxu0
  %5344 = vmatprep.mubr.f32.mxu0 0.0
  %5345 = vmatmul.mubr.f32.gmra.mxu0 %v5022
  %v5346 = vpop.f32.mrf.mxu0
  %v5347 = vadd.f32 0.0, %v5346
  %v5348 = vpop.f32.mrf.mxu0
  %5349 = vmatprep.mubr.f32.mxu0 0.0
  %5350 = vmatmul.mubr.f32.gmra.mxu0 %v5025
  %v5351 = vpop.f32.mrf.mxu0
  %v5352 = vadd.f32 0.0, %v5351
  %v5353 = vpop.f32.mrf.mxu0
  %5354 = vmatprep.mubr.f32.mxu0 0.0
  %5355 = vmatmul.mubr.f32.gmra.mxu0 %v5028
  %v5356 = vpop.f32.mrf.mxu0
  %v5357 = vadd.f32 0.0, %v5356
  %v5358 = vpop.f32.mrf.mxu0
  %5359 = vmatprep.mubr.f32.mxu0 0.0
  %5360 = vmatmul.mubr.f32.gmra.mxu0 %v5031
  %v5361 = vpop.f32.mrf.mxu0
  %v5362 = vadd.f32 0.0, %v5361
  %v5363 = vpop.f32.mrf.mxu0
  %5364 = vmatprep.mubr.f32.mxu0 0.0
  %5365 = vmatmul.mubr.f32.gmra.mxu0 %v5034
  %v5366 = vpop.f32.mrf.mxu0
  %v5367 = vadd.f32 0.0, %v5366
  %v5368 = vpop.f32.mrf.mxu0
  %5369 = vmatprep.mubr.f32.mxu0 0.0
  %5370 = vmatmul.mubr.f32.gmra.mxu0 %v5037
  %v5371 = vpop.f32.mrf.mxu0
  %v5372 = vadd.f32 0.0, %v5371
  %v5373 = vpop.f32.mrf.mxu0
  %5374 = vmatprep.mubr.f32.mxu0 0.0
  %5375 = vmatmul.mubr.f32.gmra.mxu0 %v5040
  %v5376 = vpop.f32.mrf.mxu0
  %v5377 = vadd.f32 0.0, %v5376
  %v5378 = vpop.f32.mrf.mxu0
  %5379 = vmatprep.mubr.f32.mxu0 0.0
  %5380 = vmatmul.mubr.f32.gmra.mxu0 %v5043
  %v5381 = vpop.f32.mrf.mxu0
  %v5382 = vadd.f32 0.0, %v5381
  %v5383 = vpop.f32.mrf.mxu0
  %5384 = vmatprep.mubr.f32.mxu0 0.0
  %5385 = vmatmul.mubr.f32.gmra.mxu0 %v5046
  %v5386 = vpop.f32.mrf.mxu0
  %v5387 = vadd.f32 0.0, %v5386
  %v5388 = vpop.f32.mrf.mxu0
  %5389 = vmatprep.mubr.f32.mxu0 0.0
  %5390 = vmatmul.mubr.f32.gmra.mxu0 %v5049
  %v5391 = vpop.f32.mrf.mxu0
  %v5392 = vadd.f32 0.0, %v5391
  %v5393 = vpop.f32.mrf.mxu0
  %5394 = vmatprep.mubr.f32.mxu0 0.0
  %5395 = vmatmul.mubr.f32.gmra.mxu0 %v5052
  %v5396 = vpop.f32.mrf.mxu0
  %v5397 = vadd.f32 0.0, %v5396
  %v5398 = vpop.f32.mrf.mxu0
  %5399 = vmatprep.mubr.f32.mxu0 0.0
  %5400 = vmatmul.mubr.f32.gmra.mxu0 %v5055
  %v5401 = vpop.f32.mrf.mxu0
  %v5402 = vadd.f32 0.0, %v5401
  %v5403 = vpop.f32.mrf.mxu0
  %5404 = vmatprep.mubr.f32.mxu0 0.0
  %5405 = vmatmul.mubr.f32.gmra.mxu0 %v5058
  %v5406 = vpop.f32.mrf.mxu0
  %v5407 = vadd.f32 0.0, %v5406
  %v5408 = vpop.f32.mrf.mxu0
  %5409 = vmatprep.mubr.f32.mxu0 0.0
  %5410 = vmatmul.mubr.f32.gmra.mxu0 %v5061
  %v5411 = vpop.f32.mrf.mxu0
  %v5412 = vadd.f32 0.0, %v5411
  %v5413 = vpop.f32.mrf.mxu0
  %5414 = vmatprep.mubr.f32.mxu0 0.0
  %5415 = vmatmul.mubr.f32.gmra.mxu0 %v5064
  %v5416 = vpop.f32.mrf.mxu0
  %v5417 = vadd.f32 0.0, %v5416
  %v5418 = vpop.f32.mrf.mxu0
  %5419 = vmatprep.mubr.f32.mxu0 0.0
  %5420 = vmatmul.mubr.f32.gmra.mxu0 %v5067
  %v5421 = vpop.f32.mrf.mxu0
  %v5422 = vadd.f32 0.0, %v5421
  %v5423 = vpop.f32.mrf.mxu0
  %5424 = vmatprep.mubr.f32.mxu0 0.0
  %5425 = vmatmul.mubr.f32.gmra.mxu0 %v5070
  %v5426 = vpop.f32.mrf.mxu0
  %v5427 = vadd.f32 0.0, %v5426
  %v5428 = vpop.f32.mrf.mxu0
  %5429 = vmatprep.mubr.f32.mxu0 0.0
  %5430 = vmatmul.mubr.f32.gmra.mxu0 %v5073
  %v5431 = vpop.f32.mrf.mxu0
  %v5432 = vadd.f32 0.0, %v5431
  %v5433 = vpop.f32.mrf.mxu0
  %5434 = vmatprep.mubr.f32.mxu0 0.0
  %5435 = vmatmul.mubr.f32.gmra.mxu0 %v5076
  %v5436 = vpop.f32.mrf.mxu0
  %v5437 = vadd.f32 0.0, %v5436
  %v5438 = vpop.f32.mrf.mxu0
  %5439 = vmatprep.mubr.f32.mxu0 0.0
  %5440 = vmatmul.mubr.f32.gmra.mxu0 %v5079
  %v5441 = vpop.f32.mrf.mxu0
  %v5442 = vadd.f32 0.0, %v5441
  %v5443 = vpop.f32.mrf.mxu0
  %5444 = vmatprep.mubr.f32.mxu0 0.0
  %5445 = vmatmul.mubr.f32.gmra.mxu0 %v5082
  %v5446 = vpop.f32.mrf.mxu0
  %v5447 = vadd.f32 0.0, %v5446
  %v5448 = vpop.f32.mrf.mxu0
  %5449 = vmatprep.mubr.f32.mxu0 0.0
  %5450 = vmatmul.mubr.f32.gmra.mxu0 %v5085
  %v5451 = vpop.f32.mrf.mxu0
  %v5452 = vadd.f32 0.0, %v5451
  %v5453 = vpop.f32.mrf.mxu0
  %5454 = vmatprep.mubr.f32.mxu0 0.0
  %5455 = vmatmul.mubr.f32.gmra.mxu0 %v5088
  %v5456 = vpop.f32.mrf.mxu0
  %v5457 = vadd.f32 0.0, %v5456
  %v5458 = vpop.f32.mrf.mxu0
  %5459 = vmatprep.mubr.f32.mxu0 0.0
  %5460 = vmatmul.mubr.f32.gmra.mxu0 %v5091
  %v5461 = vpop.f32.mrf.mxu0
  %v5462 = vadd.f32 0.0, %v5461
  %v5463 = vpop.f32.mrf.mxu0
  %5464 = vmatprep.mubr.f32.mxu0 0.0
  %5465 = vmatmul.mubr.f32.gmra.mxu0 %v5094
  %v5466 = vpop.f32.mrf.mxu0
  %v5467 = vadd.f32 0.0, %v5466
  %v5468 = vpop.f32.mrf.mxu0
  %5469 = vmatprep.mubr.f32.mxu0 0.0
  %5470 = vmatmul.mubr.f32.gmra.mxu0 %v5097
  %v5471 = vpop.f32.mrf.mxu0
  %v5472 = vadd.f32 0.0, %v5471
  %v5473 = vpop.f32.mrf.mxu0
  %5474 = vmatprep.mubr.f32.mxu0 0.0
  %5475 = vmatmul.mubr.f32.gmra.mxu0 %v5100
  %v5476 = vpop.f32.mrf.mxu0
  %v5477 = vadd.f32 0.0, %v5476
  %v5478 = vpop.f32.mrf.mxu0
  %5479 = vmatprep.mubr.f32.mxu0 0.0
  %5480 = vmatmul.mubr.f32.gmra.mxu0 %v5103
  %v5481 = vpop.f32.mrf.mxu0
  %v5482 = vadd.f32 0.0, %v5481
  %v5483 = vpop.f32.mrf.mxu0
  %5484 = vmatprep.mubr.f32.mxu0 0.0
  %5485 = vmatmul.mubr.f32.gmra.mxu0 %v5106
  %v5486 = vpop.f32.mrf.mxu0
  %v5487 = vadd.f32 0.0, %v5486
  %v5488 = vpop.f32.mrf.mxu0
  %5489 = vmatprep.mubr.f32.mxu0 0.0
  %5490 = vmatmul.mubr.f32.gmra.mxu0 %v5109
  %v5491 = vpop.f32.mrf.mxu0
  %v5492 = vadd.f32 0.0, %v5491
  %v5493 = vpop.f32.mrf.mxu0
  %5494 = vmatprep.mubr.f32.mxu0 0.0
  %5495 = vmatmul.mubr.f32.gmra.mxu0 %v5112
  %v5496 = vpop.f32.mrf.mxu0
  %v5497 = vadd.f32 0.0, %v5496
  %v5498 = vpop.f32.mrf.mxu0
  %5499 = vmatprep.mubr.f32.mxu0 0.0
  %5500 = vmatmul.mubr.f32.gmra.mxu0 %v5115
  %v5501 = vpop.f32.mrf.mxu0
  %v5502 = vadd.f32 0.0, %v5501
  %v5503 = vpop.f32.mrf.mxu0
  %5504 = vdwg.mxu0
  %v5505 = vadd.f32 %v4795, %v5187
  %v5506 = vadd.f32 %v4796, %v5192
  %v5507 = vadd.f32 %v4797, %v5197
  %v5508 = vadd.f32 %v4798, %v5202
  %v5509 = vadd.f32 %v4799, %v5207
  %v5510 = vadd.f32 %v4800, %v5212
  %v5511 = vadd.f32 %v4801, %v5217
  %v5512 = vadd.f32 %v4802, %v5222
  %v5513 = vadd.f32 %v4803, %v5227
  %v5514 = vadd.f32 %v4804, %v5232
  %v5515 = vadd.f32 %v4805, %v5237
  %v5516 = vadd.f32 %v4806, %v5242
  %v5517 = vadd.f32 %v4807, %v5247
  %v5518 = vadd.f32 %v4808, %v5252
  %v5519 = vadd.f32 %v4809, %v5257
  %v5520 = vadd.f32 %v4810, %v5262
  %v5521 = vadd.f32 %v4811, %v5267
  %v5522 = vadd.f32 %v4812, %v5272
  %v5523 = vadd.f32 %v4813, %v5277
  %v5524 = vadd.f32 %v4814, %v5282
  %v5525 = vadd.f32 %v4815, %v5287
  %v5526 = vadd.f32 %v4816, %v5292
  %v5527 = vadd.f32 %v4817, %v5297
  %v5528 = vadd.f32 %v4818, %v5302
  %v5529 = vadd.f32 %v4819, %v5307
  %v5530 = vadd.f32 %v4820, %v5312
  %v5531 = vadd.f32 %v4821, %v5317
  %v5532 = vadd.f32 %v4822, %v5322
  %v5533 = vadd.f32 %v4823, %v5327
  %v5534 = vadd.f32 %v4824, %v5332
  %v5535 = vadd.f32 %v4825, %v5337
  %v5536 = vadd.f32 %v4826, %v5342
  %v5537 = vadd.f32 %v4827, %v5347
  %v5538 = vadd.f32 %v4828, %v5352
  %v5539 = vadd.f32 %v4829, %v5357
  %v5540 = vadd.f32 %v4830, %v5362
  %v5541 = vadd.f32 %v4831, %v5367
  %v5542 = vadd.f32 %v4832, %v5372
  %v5543 = vadd.f32 %v4833, %v5377
  %v5544 = vadd.f32 %v4834, %v5382
  %v5545 = vadd.f32 %v4835, %v5387
  %v5546 = vadd.f32 %v4836, %v5392
  %v5547 = vadd.f32 %v4837, %v5397
  %v5548 = vadd.f32 %v4838, %v5402
  %v5549 = vadd.f32 %v4839, %v5407
  %v5550 = vadd.f32 %v4840, %v5412
  %v5551 = vadd.f32 %v4841, %v5417
  %v5552 = vadd.f32 %v4842, %v5422
  %v5553 = vadd.f32 %v4843, %v5427
  %v5554 = vadd.f32 %v4844, %v5432
  %v5555 = vadd.f32 %v4845, %v5437
  %v5556 = vadd.f32 %v4846, %v5442
  %v5557 = vadd.f32 %v4847, %v5447
  %v5558 = vadd.f32 %v4848, %v5452
  %v5559 = vadd.f32 %v4849, %v5457
  %v5560 = vadd.f32 %v4850, %v5462
  %v5561 = vadd.f32 %v4851, %v5467
  %v5562 = vadd.f32 %v4852, %v5472
  %v5563 = vadd.f32 %v4853, %v5477
  %v5564 = vadd.f32 %v4854, %v5482
  %v5565 = vadd.f32 %v4855, %v5487
  %v5566 = vadd.f32 %v4856, %v5492
  %v5567 = vadd.f32 %v4857, %v5497
  %v5568 = vadd.f32 %v4858, %v5502
  %v5569 = vld [vmem:[%s4148 + $0x2] sm:$0xff]
  %v5570 = vld [vmem:[%s4148 + $0xa] sm:$0xff]
  %v5571 = vld [vmem:[%s4148 + $0x1a] sm:$0xff]
  %v5572 = vld [vmem:[%s4148 + $0x22] sm:$0xff]
  %v5573 = vld [vmem:[%s4148 + $0x32] sm:$0xff]
  %v5574 = vld [vmem:[%s4148 + $0x3a] sm:$0xff]
  %v5575 = vld [vmem:[%s4148 + $0x4a] sm:$0xff]
  %v5576 = vld [vmem:[%s4148 + $0x52] sm:$0xff]
  %v5577 = vld [vmem:[%s4148 + $0x62] sm:$0xff]
  %v5578 = vld [vmem:[%s4148 + $0x6a] sm:$0xff]
  %v5579 = vld [vmem:[%s4148 + $0x7a] sm:$0xff]
  %v5580 = vld [vmem:[%s4148 + $0x82] sm:$0xff]
  %v5581 = vld [vmem:[%s4148 + $0x92] sm:$0xff]
  %v5582 = vld [vmem:[%s4148 + $0x9a] sm:$0xff]
  %v5583 = vld [vmem:[%s4148 + $0xaa] sm:$0xff]
  %v5584 = vld [vmem:[%s4148 + $0xb2] sm:$0xff]
  %v5585 = vld [vmem:[%s4148 + $0xc2] sm:$0xff]
  %v5586 = vld [vmem:[%s4148 + $0xca] sm:$0xff]
  %v5587 = vld [vmem:[%s4148 + $0xda] sm:$0xff]
  %v5588 = vld [vmem:[%s4148 + $0xe2] sm:$0xff]
  %v5589 = vld [vmem:[%s4148 + $0xf2] sm:$0xff]
  %v5590 = vld [vmem:[%s4148 + $0xfa] sm:$0xff]
  %v5591 = vld [vmem:[%s4148 + $0x10a] sm:$0xff]
  %v5592 = vld [vmem:[%s4148 + $0x112] sm:$0xff]
  %v5593 = vld [vmem:[%s4148 + $0x122] sm:$0xff]
  %v5594 = vld [vmem:[%s4148 + $0x12a] sm:$0xff]
  %v5595 = vld [vmem:[%s4148 + $0x13a] sm:$0xff]
  %v5596 = vld [vmem:[%s4148 + $0x142] sm:$0xff]
  %v5597 = vld [vmem:[%s4148 + $0x152] sm:$0xff]
  %v5598 = vld [vmem:[%s4148 + $0x15a] sm:$0xff]
  %v5599 = vld [vmem:[%s4148 + $0x16a] sm:$0xff]
  %v5600 = vld [vmem:[%s4148 + $0x172] sm:$0xff]
  %v5601 = vld [vmem:[%s4148 + $0x1b2] sm:$0xff]
  %v5602 = vld [vmem:[%s4148 + $0x1ba] sm:$0xff]
  %v5603 = vld [vmem:[%s4148 + $0x1ca] sm:$0xff]
  %v5604 = vld [vmem:[%s4148 + $0x1d2] sm:$0xff]
  %v5605 = vld [vmem:[%s4148 + $0x1e2] sm:$0xff]
  %v5606 = vld [vmem:[%s4148 + $0x1ea] sm:$0xff]
  %v5607 = vld [vmem:[%s4148 + $0x1fa] sm:$0xff]
  %v5608 = vld [vmem:[%s4148 + $0x202] sm:$0xff]
  %v5609 = vld [vmem:[%s4148 + $0x212] sm:$0xff]
  %v5610 = vld [vmem:[%s4148 + $0x21a] sm:$0xff]
  %v5611 = vld [vmem:[%s4148 + $0x22a] sm:$0xff]
  %v5612 = vld [vmem:[%s4148 + $0x232] sm:$0xff]
  %v5613 = vld [vmem:[%s4148 + $0x242] sm:$0xff]
  %v5614 = vld [vmem:[%s4148 + $0x24a] sm:$0xff]
  %v5615 = vld [vmem:[%s4148 + $0x25a] sm:$0xff]
  %v5616 = vld [vmem:[%s4148 + $0x262] sm:$0xff]
  %v5617 = vld [vmem:[%s4148 + $0x272] sm:$0xff]
  %v5618 = vld [vmem:[%s4148 + $0x27a] sm:$0xff]
  %v5619 = vld [vmem:[%s4148 + $0x28a] sm:$0xff]
  %v5620 = vld [vmem:[%s4148 + $0x292] sm:$0xff]
  %v5621 = vld [vmem:[%s4148 + $0x2a2] sm:$0xff]
  %v5622 = vld [vmem:[%s4148 + $0x2aa] sm:$0xff]
  %v5623 = vld [vmem:[%s4148 + $0x2ba] sm:$0xff]
  %v5624 = vld [vmem:[%s4148 + $0x2c2] sm:$0xff]
  %v5625 = vld [vmem:[%s4148 + $0x2d2] sm:$0xff]
  %v5626 = vld [vmem:[%s4148 + $0x2da] sm:$0xff]
  %v5627 = vld [vmem:[%s4148 + $0x2ea] sm:$0xff]
  %v5628 = vld [vmem:[%s4148 + $0x2f2] sm:$0xff]
  %v5629 = vld [vmem:[%s4148 + $0x302] sm:$0xff]
  %v5630 = vld [vmem:[%s4148 + $0x30a] sm:$0xff]
  %v5631 = vld [vmem:[%s4148 + $0x31a] sm:$0xff]
  %v5632 = vld [vmem:[%s4148 + $0x322] sm:$0xff]
  %s5633 = scalar_lea.vmem %s1, 32
  %v5634 = vld [vmem:[%s5633] sm:$0xf]
  %v5636 = vsel %vm145, %v5569, 0
  %v5639 = vsel %vm145, %v5570, 0
  %v5642 = vsel %vm145, %v5571, 0
  %v5645 = vsel %vm145, %v5572, 0
  %v5648 = vsel %vm145, %v5573, 0
  %v5651 = vsel %vm145, %v5574, 0
  %v5654 = vsel %vm145, %v5575, 0
  %v5657 = vsel %vm145, %v5576, 0
  %v5660 = vsel %vm145, %v5577, 0
  %v5663 = vsel %vm145, %v5578, 0
  %v5666 = vsel %vm145, %v5579, 0
  %v5669 = vsel %vm145, %v5580, 0
  %v5672 = vsel %vm145, %v5581, 0
  %v5675 = vsel %vm145, %v5582, 0
  %v5678 = vsel %vm145, %v5583, 0
  %v5681 = vsel %vm145, %v5584, 0
  %v5684 = vsel %vm145, %v5585, 0
  %v5687 = vsel %vm145, %v5586, 0
  %v5690 = vsel %vm145, %v5587, 0
  %v5693 = vsel %vm145, %v5588, 0
  %v5696 = vsel %vm145, %v5589, 0
  %v5699 = vsel %vm145, %v5590, 0
  %v5702 = vsel %vm145, %v5591, 0
  %v5705 = vsel %vm145, %v5592, 0
  %v5708 = vsel %vm145, %v5593, 0
  %v5711 = vsel %vm145, %v5594, 0
  %v5714 = vsel %vm145, %v5595, 0
  %v5717 = vsel %vm145, %v5596, 0
  %v5720 = vsel %vm145, %v5597, 0
  %v5723 = vsel %vm145, %v5598, 0
  %v5726 = vsel %vm145, %v5599, 0
  %v5729 = vsel %vm145, %v5600, 0
  %v5732 = vsel %vm145, %v5601, 0
  %v5735 = vsel %vm145, %v5602, 0
  %v5738 = vsel %vm145, %v5603, 0
  %v5741 = vsel %vm145, %v5604, 0
  %v5744 = vsel %vm145, %v5605, 0
  %v5747 = vsel %vm145, %v5606, 0
  %v5750 = vsel %vm145, %v5607, 0
  %v5753 = vsel %vm145, %v5608, 0
  %v5756 = vsel %vm145, %v5609, 0
  %v5759 = vsel %vm145, %v5610, 0
  %v5762 = vsel %vm145, %v5611, 0
  %v5765 = vsel %vm145, %v5612, 0
  %v5768 = vsel %vm145, %v5613, 0
  %v5771 = vsel %vm145, %v5614, 0
  %v5774 = vsel %vm145, %v5615, 0
  %v5777 = vsel %vm145, %v5616, 0
  %v5780 = vsel %vm145, %v5617, 0
  %v5783 = vsel %vm145, %v5618, 0
  %v5786 = vsel %vm145, %v5619, 0
  %v5789 = vsel %vm145, %v5620, 0
  %v5792 = vsel %vm145, %v5621, 0
  %v5795 = vsel %vm145, %v5622, 0
  %v5798 = vsel %vm145, %v5623, 0
  %v5801 = vsel %vm145, %v5624, 0
  %v5804 = vsel %vm145, %v5625, 0
  %v5807 = vsel %vm145, %v5626, 0
  %v5810 = vsel %vm145, %v5627, 0
  %v5813 = vsel %vm145, %v5628, 0
  %v5816 = vsel %vm145, %v5629, 0
  %v5819 = vsel %vm145, %v5630, 0
  %v5822 = vsel %vm145, %v5631, 0
  %v5825 = vsel %vm145, %v5632, 0
  %v5828 = vsel %vm338, %v5634, 0
  %5830 = vmatprep.subr.mxu0 0.0
  %5831 = vmatpush1.msra.mxu0 0.0
  %5832 = vmatprep.subr.mxu0 0.0
  %5833 = vmatpush1.msra.mxu0 0.0
  %5834 = vmatprep.subr.mxu0 0.0
  %5835 = vmatpush1.msra.mxu0 0.0
  %5836 = vmatprep.subr.mxu0 0.0
  %5837 = vmatpush1.msra.mxu0 0.0
  %5838 = vmatprep.subr.mxu0 0.0
  %5839 = vmatpush1.msra.mxu0 0.0
  %5840 = vmatprep.subr.mxu0 0.0
  %5841 = vmatpush1.msra.mxu0 0.0
  %5842 = vmatprep.subr.mxu0 0.0
  %5843 = vmatpush1.msra.mxu0 0.0
  %5844 = vmatprep.subr.mxu0 0.0
  %5845 = vmatpush1.msra.mxu0 0.0
  %5846 = vmatprep.subr.mxu0 0.0
  %5847 = vmatpush1.msra.mxu0 0.0
  %5848 = vmatprep.subr.mxu0 0.0
  %5849 = vmatpush1.msra.mxu0 0.0
  %5850 = vmatprep.subr.mxu0 0.0
  %5851 = vmatpush1.msra.mxu0 0.0
  %5852 = vmatprep.subr.mxu0 0.0
  %5853 = vmatpush1.msra.mxu0 0.0
  %5854 = vmatprep.subr.mxu0 0.0
  %5855 = vmatpush1.msra.mxu0 0.0
  %5856 = vmatprep.subr.mxu0 0.0
  %5857 = vmatpush1.msra.mxu0 0.0
  %5858 = vmatprep.subr.mxu0 0.0
  %5859 = vmatpush1.msra.mxu0 0.0
  %5860 = vmatprep.subr.mxu0 0.0
  %5861 = vmatpush1.msra.mxu0 %v5828
  %5862 = vmatprep.subr.mxu0 0.0
  %5863 = vmatpush2.msra.mxu0 0.0
  %5864 = vmatprep.subr.mxu0 0.0
  %5865 = vmatpush2.msra.mxu0 0.0
  %5866 = vmatprep.subr.mxu0 0.0
  %5867 = vmatpush2.msra.mxu0 0.0
  %5868 = vmatprep.subr.mxu0 0.0
  %5869 = vmatpush2.msra.mxu0 0.0
  %5870 = vmatprep.subr.mxu0 0.0
  %5871 = vmatpush2.msra.mxu0 0.0
  %5872 = vmatprep.subr.mxu0 0.0
  %5873 = vmatpush2.msra.mxu0 0.0
  %5874 = vmatprep.subr.mxu0 0.0
  %5875 = vmatpush2.msra.mxu0 0.0
  %5876 = vmatprep.subr.mxu0 0.0
  %5877 = vmatpush2.msra.mxu0 0.0
  %5878 = vmatprep.subr.mxu0 0.0
  %5879 = vmatpush2.msra.mxu0 0.0
  %5880 = vmatprep.subr.mxu0 0.0
  %5881 = vmatpush2.msra.mxu0 0.0
  %5882 = vmatprep.subr.mxu0 0.0
  %5883 = vmatpush2.msra.mxu0 0.0
  %5884 = vmatprep.subr.mxu0 0.0
  %5885 = vmatpush2.msra.mxu0 0.0
  %5886 = vmatprep.subr.mxu0 0.0
  %5887 = vmatpush2.msra.mxu0 0.0
  %5888 = vmatprep.subr.mxu0 0.0
  %5889 = vmatpush2.msra.mxu0 0.0
  %5890 = vmatprep.subr.mxu0 0.0
  %5891 = vmatpush2.msra.mxu0 0.0
  %5892 = vmatprep.subr.mxu0 0.0
  %5893 = vmatpush2.msra.mxu0 0.0
  %5894 = vmatprep.mubr.f32.mxu0 0.0
  %5895 = vmatmul.mubr.f32.gmra.mxu0 %v5636
  %v5896 = vpop.f32.mrf.mxu0
  %v5897 = vadd.f32 0.0, %v5896
  %v5898 = vpop.f32.mrf.mxu0
  %5899 = vmatprep.mubr.f32.mxu0 0.0
  %5900 = vmatmul.mubr.f32.gmra.mxu0 %v5639
  %v5901 = vpop.f32.mrf.mxu0
  %v5902 = vadd.f32 0.0, %v5901
  %v5903 = vpop.f32.mrf.mxu0
  %5904 = vmatprep.mubr.f32.mxu0 0.0
  %5905 = vmatmul.mubr.f32.gmra.mxu0 %v5642
  %v5906 = vpop.f32.mrf.mxu0
  %v5907 = vadd.f32 0.0, %v5906
  %v5908 = vpop.f32.mrf.mxu0
  %5909 = vmatprep.mubr.f32.mxu0 0.0
  %5910 = vmatmul.mubr.f32.gmra.mxu0 %v5645
  %v5911 = vpop.f32.mrf.mxu0
  %v5912 = vadd.f32 0.0, %v5911
  %v5913 = vpop.f32.mrf.mxu0
  %5914 = vmatprep.mubr.f32.mxu0 0.0
  %5915 = vmatmul.mubr.f32.gmra.mxu0 %v5648
  %v5916 = vpop.f32.mrf.mxu0
  %v5917 = vadd.f32 0.0, %v5916
  %v5918 = vpop.f32.mrf.mxu0
  %5919 = vmatprep.mubr.f32.mxu0 0.0
  %5920 = vmatmul.mubr.f32.gmra.mxu0 %v5651
  %v5921 = vpop.f32.mrf.mxu0
  %v5922 = vadd.f32 0.0, %v5921
  %v5923 = vpop.f32.mrf.mxu0
  %5924 = vmatprep.mubr.f32.mxu0 0.0
  %5925 = vmatmul.mubr.f32.gmra.mxu0 %v5654
  %v5926 = vpop.f32.mrf.mxu0
  %v5927 = vadd.f32 0.0, %v5926
  %v5928 = vpop.f32.mrf.mxu0
  %5929 = vmatprep.mubr.f32.mxu0 0.0
  %5930 = vmatmul.mubr.f32.gmra.mxu0 %v5657
  %v5931 = vpop.f32.mrf.mxu0
  %v5932 = vadd.f32 0.0, %v5931
  %v5933 = vpop.f32.mrf.mxu0
  %5934 = vmatprep.mubr.f32.mxu0 0.0
  %5935 = vmatmul.mubr.f32.gmra.mxu0 %v5660
  %v5936 = vpop.f32.mrf.mxu0
  %v5937 = vadd.f32 0.0, %v5936
  %v5938 = vpop.f32.mrf.mxu0
  %5939 = vmatprep.mubr.f32.mxu0 0.0
  %5940 = vmatmul.mubr.f32.gmra.mxu0 %v5663
  %v5941 = vpop.f32.mrf.mxu0
  %v5942 = vadd.f32 0.0, %v5941
  %v5943 = vpop.f32.mrf.mxu0
  %5944 = vmatprep.mubr.f32.mxu0 0.0
  %5945 = vmatmul.mubr.f32.gmra.mxu0 %v5666
  %v5946 = vpop.f32.mrf.mxu0
  %v5947 = vadd.f32 0.0, %v5946
  %v5948 = vpop.f32.mrf.mxu0
  %5949 = vmatprep.mubr.f32.mxu0 0.0
  %5950 = vmatmul.mubr.f32.gmra.mxu0 %v5669
  %v5951 = vpop.f32.mrf.mxu0
  %v5952 = vadd.f32 0.0, %v5951
  %v5953 = vpop.f32.mrf.mxu0
  %5954 = vmatprep.mubr.f32.mxu0 0.0
  %5955 = vmatmul.mubr.f32.gmra.mxu0 %v5672
  %v5956 = vpop.f32.mrf.mxu0
  %v5957 = vadd.f32 0.0, %v5956
  %v5958 = vpop.f32.mrf.mxu0
  %5959 = vmatprep.mubr.f32.mxu0 0.0
  %5960 = vmatmul.mubr.f32.gmra.mxu0 %v5675
  %v5961 = vpop.f32.mrf.mxu0
  %v5962 = vadd.f32 0.0, %v5961
  %v5963 = vpop.f32.mrf.mxu0
  %5964 = vmatprep.mubr.f32.mxu0 0.0
  %5965 = vmatmul.mubr.f32.gmra.mxu0 %v5678
  %v5966 = vpop.f32.mrf.mxu0
  %v5967 = vadd.f32 0.0, %v5966
  %v5968 = vpop.f32.mrf.mxu0
  %5969 = vmatprep.mubr.f32.mxu0 0.0
  %5970 = vmatmul.mubr.f32.gmra.mxu0 %v5681
  %v5971 = vpop.f32.mrf.mxu0
  %v5972 = vadd.f32 0.0, %v5971
  %v5973 = vpop.f32.mrf.mxu0
  %5974 = vmatprep.mubr.f32.mxu0 0.0
  %5975 = vmatmul.mubr.f32.gmra.mxu0 %v5684
  %v5976 = vpop.f32.mrf.mxu0
  %v5977 = vadd.f32 0.0, %v5976
  %v5978 = vpop.f32.mrf.mxu0
  %5979 = vmatprep.mubr.f32.mxu0 0.0
  %5980 = vmatmul.mubr.f32.gmra.mxu0 %v5687
  %v5981 = vpop.f32.mrf.mxu0
  %v5982 = vadd.f32 0.0, %v5981
  %v5983 = vpop.f32.mrf.mxu0
  %5984 = vmatprep.mubr.f32.mxu0 0.0
  %5985 = vmatmul.mubr.f32.gmra.mxu0 %v5690
  %v5986 = vpop.f32.mrf.mxu0
  %v5987 = vadd.f32 0.0, %v5986
  %v5988 = vpop.f32.mrf.mxu0
  %5989 = vmatprep.mubr.f32.mxu0 0.0
  %5990 = vmatmul.mubr.f32.gmra.mxu0 %v5693
  %v5991 = vpop.f32.mrf.mxu0
  %v5992 = vadd.f32 0.0, %v5991
  %v5993 = vpop.f32.mrf.mxu0
  %5994 = vmatprep.mubr.f32.mxu0 0.0
  %5995 = vmatmul.mubr.f32.gmra.mxu0 %v5696
  %v5996 = vpop.f32.mrf.mxu0
  %v5997 = vadd.f32 0.0, %v5996
  %v5998 = vpop.f32.mrf.mxu0
  %5999 = vmatprep.mubr.f32.mxu0 0.0
  %6000 = vmatmul.mubr.f32.gmra.mxu0 %v5699
  %v6001 = vpop.f32.mrf.mxu0
  %v6002 = vadd.f32 0.0, %v6001
  %v6003 = vpop.f32.mrf.mxu0
  %6004 = vmatprep.mubr.f32.mxu0 0.0
  %6005 = vmatmul.mubr.f32.gmra.mxu0 %v5702
  %v6006 = vpop.f32.mrf.mxu0
  %v6007 = vadd.f32 0.0, %v6006
  %v6008 = vpop.f32.mrf.mxu0
  %6009 = vmatprep.mubr.f32.mxu0 0.0
  %6010 = vmatmul.mubr.f32.gmra.mxu0 %v5705
  %v6011 = vpop.f32.mrf.mxu0
  %v6012 = vadd.f32 0.0, %v6011
  %v6013 = vpop.f32.mrf.mxu0
  %6014 = vmatprep.mubr.f32.mxu0 0.0
  %6015 = vmatmul.mubr.f32.gmra.mxu0 %v5708
  %v6016 = vpop.f32.mrf.mxu0
  %v6017 = vadd.f32 0.0, %v6016
  %v6018 = vpop.f32.mrf.mxu0
  %6019 = vmatprep.mubr.f32.mxu0 0.0
  %6020 = vmatmul.mubr.f32.gmra.mxu0 %v5711
  %v6021 = vpop.f32.mrf.mxu0
  %v6022 = vadd.f32 0.0, %v6021
  %v6023 = vpop.f32.mrf.mxu0
  %6024 = vmatprep.mubr.f32.mxu0 0.0
  %6025 = vmatmul.mubr.f32.gmra.mxu0 %v5714
  %v6026 = vpop.f32.mrf.mxu0
  %v6027 = vadd.f32 0.0, %v6026
  %v6028 = vpop.f32.mrf.mxu0
  %6029 = vmatprep.mubr.f32.mxu0 0.0
  %6030 = vmatmul.mubr.f32.gmra.mxu0 %v5717
  %v6031 = vpop.f32.mrf.mxu0
  %v6032 = vadd.f32 0.0, %v6031
  %v6033 = vpop.f32.mrf.mxu0
  %6034 = vmatprep.mubr.f32.mxu0 0.0
  %6035 = vmatmul.mubr.f32.gmra.mxu0 %v5720
  %v6036 = vpop.f32.mrf.mxu0
  %v6037 = vadd.f32 0.0, %v6036
  %v6038 = vpop.f32.mrf.mxu0
  %6039 = vmatprep.mubr.f32.mxu0 0.0
  %6040 = vmatmul.mubr.f32.gmra.mxu0 %v5723
  %v6041 = vpop.f32.mrf.mxu0
  %v6042 = vadd.f32 0.0, %v6041
  %v6043 = vpop.f32.mrf.mxu0
  %6044 = vmatprep.mubr.f32.mxu0 0.0
  %6045 = vmatmul.mubr.f32.gmra.mxu0 %v5726
  %v6046 = vpop.f32.mrf.mxu0
  %v6047 = vadd.f32 0.0, %v6046
  %v6048 = vpop.f32.mrf.mxu0
  %6049 = vmatprep.mubr.f32.mxu0 0.0
  %6050 = vmatmul.mubr.f32.gmra.mxu0 %v5729
  %v6051 = vpop.f32.mrf.mxu0
  %v6052 = vadd.f32 0.0, %v6051
  %v6053 = vpop.f32.mrf.mxu0
  %6054 = vmatprep.mubr.f32.mxu0 0.0
  %6055 = vmatmul.mubr.f32.gmra.mxu0 %v5732
  %v6056 = vpop.f32.mrf.mxu0
  %v6057 = vadd.f32 0.0, %v6056
  %v6058 = vpop.f32.mrf.mxu0
  %6059 = vmatprep.mubr.f32.mxu0 0.0
  %6060 = vmatmul.mubr.f32.gmra.mxu0 %v5735
  %v6061 = vpop.f32.mrf.mxu0
  %v6062 = vadd.f32 0.0, %v6061
  %v6063 = vpop.f32.mrf.mxu0
  %6064 = vmatprep.mubr.f32.mxu0 0.0
  %6065 = vmatmul.mubr.f32.gmra.mxu0 %v5738
  %v6066 = vpop.f32.mrf.mxu0
  %v6067 = vadd.f32 0.0, %v6066
  %v6068 = vpop.f32.mrf.mxu0
  %6069 = vmatprep.mubr.f32.mxu0 0.0
  %6070 = vmatmul.mubr.f32.gmra.mxu0 %v5741
  %v6071 = vpop.f32.mrf.mxu0
  %v6072 = vadd.f32 0.0, %v6071
  %v6073 = vpop.f32.mrf.mxu0
  %6074 = vmatprep.mubr.f32.mxu0 0.0
  %6075 = vmatmul.mubr.f32.gmra.mxu0 %v5744
  %v6076 = vpop.f32.mrf.mxu0
  %v6077 = vadd.f32 0.0, %v6076
  %v6078 = vpop.f32.mrf.mxu0
  %6079 = vmatprep.mubr.f32.mxu0 0.0
  %6080 = vmatmul.mubr.f32.gmra.mxu0 %v5747
  %v6081 = vpop.f32.mrf.mxu0
  %v6082 = vadd.f32 0.0, %v6081
  %v6083 = vpop.f32.mrf.mxu0
  %6084 = vmatprep.mubr.f32.mxu0 0.0
  %6085 = vmatmul.mubr.f32.gmra.mxu0 %v5750
  %v6086 = vpop.f32.mrf.mxu0
  %v6087 = vadd.f32 0.0, %v6086
  %v6088 = vpop.f32.mrf.mxu0
  %6089 = vmatprep.mubr.f32.mxu0 0.0
  %6090 = vmatmul.mubr.f32.gmra.mxu0 %v5753
  %v6091 = vpop.f32.mrf.mxu0
  %v6092 = vadd.f32 0.0, %v6091
  %v6093 = vpop.f32.mrf.mxu0
  %6094 = vmatprep.mubr.f32.mxu0 0.0
  %6095 = vmatmul.mubr.f32.gmra.mxu0 %v5756
  %v6096 = vpop.f32.mrf.mxu0
  %v6097 = vadd.f32 0.0, %v6096
  %v6098 = vpop.f32.mrf.mxu0
  %6099 = vmatprep.mubr.f32.mxu0 0.0
  %6100 = vmatmul.mubr.f32.gmra.mxu0 %v5759
  %v6101 = vpop.f32.mrf.mxu0
  %v6102 = vadd.f32 0.0, %v6101
  %v6103 = vpop.f32.mrf.mxu0
  %6104 = vmatprep.mubr.f32.mxu0 0.0
  %6105 = vmatmul.mubr.f32.gmra.mxu0 %v5762
  %v6106 = vpop.f32.mrf.mxu0
  %v6107 = vadd.f32 0.0, %v6106
  %v6108 = vpop.f32.mrf.mxu0
  %6109 = vmatprep.mubr.f32.mxu0 0.0
  %6110 = vmatmul.mubr.f32.gmra.mxu0 %v5765
  %v6111 = vpop.f32.mrf.mxu0
  %v6112 = vadd.f32 0.0, %v6111
  %v6113 = vpop.f32.mrf.mxu0
  %6114 = vmatprep.mubr.f32.mxu0 0.0
  %6115 = vmatmul.mubr.f32.gmra.mxu0 %v5768
  %v6116 = vpop.f32.mrf.mxu0
  %v6117 = vadd.f32 0.0, %v6116
  %v6118 = vpop.f32.mrf.mxu0
  %6119 = vmatprep.mubr.f32.mxu0 0.0
  %6120 = vmatmul.mubr.f32.gmra.mxu0 %v5771
  %v6121 = vpop.f32.mrf.mxu0
  %v6122 = vadd.f32 0.0, %v6121
  %v6123 = vpop.f32.mrf.mxu0
  %6124 = vmatprep.mubr.f32.mxu0 0.0
  %6125 = vmatmul.mubr.f32.gmra.mxu0 %v5774
  %v6126 = vpop.f32.mrf.mxu0
  %v6127 = vadd.f32 0.0, %v6126
  %v6128 = vpop.f32.mrf.mxu0
  %6129 = vmatprep.mubr.f32.mxu0 0.0
  %6130 = vmatmul.mubr.f32.gmra.mxu0 %v5777
  %v6131 = vpop.f32.mrf.mxu0
  %v6132 = vadd.f32 0.0, %v6131
  %v6133 = vpop.f32.mrf.mxu0
  %6134 = vmatprep.mubr.f32.mxu0 0.0
  %6135 = vmatmul.mubr.f32.gmra.mxu0 %v5780
  %v6136 = vpop.f32.mrf.mxu0
  %v6137 = vadd.f32 0.0, %v6136
  %v6138 = vpop.f32.mrf.mxu0
  %6139 = vmatprep.mubr.f32.mxu0 0.0
  %6140 = vmatmul.mubr.f32.gmra.mxu0 %v5783
  %v6141 = vpop.f32.mrf.mxu0
  %v6142 = vadd.f32 0.0, %v6141
  %v6143 = vpop.f32.mrf.mxu0
  %6144 = vmatprep.mubr.f32.mxu0 0.0
  %6145 = vmatmul.mubr.f32.gmra.mxu0 %v5786
  %v6146 = vpop.f32.mrf.mxu0
  %v6147 = vadd.f32 0.0, %v6146
  %v6148 = vpop.f32.mrf.mxu0
  %6149 = vmatprep.mubr.f32.mxu0 0.0
  %6150 = vmatmul.mubr.f32.gmra.mxu0 %v5789
  %v6151 = vpop.f32.mrf.mxu0
  %v6152 = vadd.f32 0.0, %v6151
  %v6153 = vpop.f32.mrf.mxu0
  %6154 = vmatprep.mubr.f32.mxu0 0.0
  %6155 = vmatmul.mubr.f32.gmra.mxu0 %v5792
  %v6156 = vpop.f32.mrf.mxu0
  %v6157 = vadd.f32 0.0, %v6156
  %v6158 = vpop.f32.mrf.mxu0
  %6159 = vmatprep.mubr.f32.mxu0 0.0
  %6160 = vmatmul.mubr.f32.gmra.mxu0 %v5795
  %v6161 = vpop.f32.mrf.mxu0
  %v6162 = vadd.f32 0.0, %v6161
  %v6163 = vpop.f32.mrf.mxu0
  %6164 = vmatprep.mubr.f32.mxu0 0.0
  %6165 = vmatmul.mubr.f32.gmra.mxu0 %v5798
  %v6166 = vpop.f32.mrf.mxu0
  %v6167 = vadd.f32 0.0, %v6166
  %v6168 = vpop.f32.mrf.mxu0
  %6169 = vmatprep.mubr.f32.mxu0 0.0
  %6170 = vmatmul.mubr.f32.gmra.mxu0 %v5801
  %v6171 = vpop.f32.mrf.mxu0
  %v6172 = vadd.f32 0.0, %v6171
  %v6173 = vpop.f32.mrf.mxu0
  %6174 = vmatprep.mubr.f32.mxu0 0.0
  %6175 = vmatmul.mubr.f32.gmra.mxu0 %v5804
  %v6176 = vpop.f32.mrf.mxu0
  %v6177 = vadd.f32 0.0, %v6176
  %v6178 = vpop.f32.mrf.mxu0
  %6179 = vmatprep.mubr.f32.mxu0 0.0
  %6180 = vmatmul.mubr.f32.gmra.mxu0 %v5807
  %v6181 = vpop.f32.mrf.mxu0
  %v6182 = vadd.f32 0.0, %v6181
  %v6183 = vpop.f32.mrf.mxu0
  %6184 = vmatprep.mubr.f32.mxu0 0.0
  %6185 = vmatmul.mubr.f32.gmra.mxu0 %v5810
  %v6186 = vpop.f32.mrf.mxu0
  %v6187 = vadd.f32 0.0, %v6186
  %v6188 = vpop.f32.mrf.mxu0
  %6189 = vmatprep.mubr.f32.mxu0 0.0
  %6190 = vmatmul.mubr.f32.gmra.mxu0 %v5813
  %v6191 = vpop.f32.mrf.mxu0
  %v6192 = vadd.f32 0.0, %v6191
  %v6193 = vpop.f32.mrf.mxu0
  %6194 = vmatprep.mubr.f32.mxu0 0.0
  %6195 = vmatmul.mubr.f32.gmra.mxu0 %v5816
  %v6196 = vpop.f32.mrf.mxu0
  %v6197 = vadd.f32 0.0, %v6196
  %v6198 = vpop.f32.mrf.mxu0
  %6199 = vmatprep.mubr.f32.mxu0 0.0
  %6200 = vmatmul.mubr.f32.gmra.mxu0 %v5819
  %v6201 = vpop.f32.mrf.mxu0
  %v6202 = vadd.f32 0.0, %v6201
  %v6203 = vpop.f32.mrf.mxu0
  %6204 = vmatprep.mubr.f32.mxu0 0.0
  %6205 = vmatmul.mubr.f32.gmra.mxu0 %v5822
  %v6206 = vpop.f32.mrf.mxu0
  %v6207 = vadd.f32 0.0, %v6206
  %v6208 = vpop.f32.mrf.mxu0
  %6209 = vmatprep.mubr.f32.mxu0 0.0
  %6210 = vmatmul.mubr.f32.gmra.mxu0 %v5825
  %v6211 = vpop.f32.mrf.mxu0
  %v6212 = vadd.f32 0.0, %v6211
  %v6213 = vpop.f32.mrf.mxu0
  %6214 = vdwg.mxu0
  %v6215 = vadd.f32 %v5505, %v5897
  %v6216 = vadd.f32 %v5506, %v5902
  %v6217 = vadd.f32 %v5507, %v5907
  %v6218 = vadd.f32 %v5508, %v5912
  %v6219 = vadd.f32 %v5509, %v5917
  %v6220 = vadd.f32 %v5510, %v5922
  %v6221 = vadd.f32 %v5511, %v5927
  %v6222 = vadd.f32 %v5512, %v5932
  %v6223 = vadd.f32 %v5513, %v5937
  %v6224 = vadd.f32 %v5514, %v5942
  %v6225 = vadd.f32 %v5515, %v5947
  %v6226 = vadd.f32 %v5516, %v5952
  %v6227 = vadd.f32 %v5517, %v5957
  %v6228 = vadd.f32 %v5518, %v5962
  %v6229 = vadd.f32 %v5519, %v5967
  %v6230 = vadd.f32 %v5520, %v5972
  %v6231 = vadd.f32 %v5521, %v5977
  %v6232 = vadd.f32 %v5522, %v5982
  %v6233 = vadd.f32 %v5523, %v5987
  %v6234 = vadd.f32 %v5524, %v5992
  %v6235 = vadd.f32 %v5525, %v5997
  %v6236 = vadd.f32 %v5526, %v6002
  %v6237 = vadd.f32 %v5527, %v6007
  %v6238 = vadd.f32 %v5528, %v6012
  %v6239 = vadd.f32 %v5529, %v6017
  %v6240 = vadd.f32 %v5530, %v6022
  %v6241 = vadd.f32 %v5531, %v6027
  %v6242 = vadd.f32 %v5532, %v6032
  %v6243 = vadd.f32 %v5533, %v6037
  %v6244 = vadd.f32 %v5534, %v6042
  %v6245 = vadd.f32 %v5535, %v6047
  %v6246 = vadd.f32 %v5536, %v6052
  %v6247 = vadd.f32 %v5537, %v6057
  %v6248 = vadd.f32 %v5538, %v6062
  %v6249 = vadd.f32 %v5539, %v6067
  %v6250 = vadd.f32 %v5540, %v6072
  %v6251 = vadd.f32 %v5541, %v6077
  %v6252 = vadd.f32 %v5542, %v6082
  %v6253 = vadd.f32 %v5543, %v6087
  %v6254 = vadd.f32 %v5544, %v6092
  %v6255 = vadd.f32 %v5545, %v6097
  %v6256 = vadd.f32 %v5546, %v6102
  %v6257 = vadd.f32 %v5547, %v6107
  %v6258 = vadd.f32 %v5548, %v6112
  %v6259 = vadd.f32 %v5549, %v6117
  %v6260 = vadd.f32 %v5550, %v6122
  %v6261 = vadd.f32 %v5551, %v6127
  %v6262 = vadd.f32 %v5552, %v6132
  %v6263 = vadd.f32 %v5553, %v6137
  %v6264 = vadd.f32 %v5554, %v6142
  %v6265 = vadd.f32 %v5555, %v6147
  %v6266 = vadd.f32 %v5556, %v6152
  %v6267 = vadd.f32 %v5557, %v6157
  %v6268 = vadd.f32 %v5558, %v6162
  %v6269 = vadd.f32 %v5559, %v6167
  %v6270 = vadd.f32 %v5560, %v6172
  %v6271 = vadd.f32 %v5561, %v6177
  %v6272 = vadd.f32 %v5562, %v6182
  %v6273 = vadd.f32 %v5563, %v6187
  %v6274 = vadd.f32 %v5564, %v6192
  %v6275 = vadd.f32 %v5565, %v6197
  %v6276 = vadd.f32 %v5566, %v6202
  %v6277 = vadd.f32 %v5567, %v6207
  %v6278 = vadd.f32 %v5568, %v6212
  %v6279 = vld [vmem:[%s2] sm:$0x1]
  %v6281 = vlaneseq
  %v6282 = vshrl.u32 %v6281, 7
  %v6283 = vsub.s32 0, %v6282
  %v6284 = vrot.slane %v6279, %v6283
  %v6286 = vadd.f32 %v6215, %v6284
  %v6287 = vadd.f32 %v6216, %v6284
  %v6288 = vadd.f32 %v6217, %v6284
  %v6289 = vadd.f32 %v6218, %v6284
  %v6290 = vadd.f32 %v6219, %v6284
  %v6291 = vadd.f32 %v6220, %v6284
  %v6292 = vadd.f32 %v6221, %v6284
  %v6293 = vadd.f32 %v6222, %v6284
  %v6294 = vadd.f32 %v6223, %v6284
  %v6295 = vadd.f32 %v6224, %v6284
  %v6296 = vadd.f32 %v6225, %v6284
  %v6297 = vadd.f32 %v6226, %v6284
  %v6298 = vadd.f32 %v6227, %v6284
  %v6299 = vadd.f32 %v6228, %v6284
  %v6300 = vadd.f32 %v6229, %v6284
  %v6301 = vadd.f32 %v6230, %v6284
  %v6302 = vadd.f32 %v6231, %v6284
  %v6303 = vadd.f32 %v6232, %v6284
  %v6304 = vadd.f32 %v6233, %v6284
  %v6305 = vadd.f32 %v6234, %v6284
  %v6306 = vadd.f32 %v6235, %v6284
  %v6307 = vadd.f32 %v6236, %v6284
  %v6308 = vadd.f32 %v6237, %v6284
  %v6309 = vadd.f32 %v6238, %v6284
  %v6310 = vadd.f32 %v6239, %v6284
  %v6311 = vadd.f32 %v6240, %v6284
  %v6312 = vadd.f32 %v6241, %v6284
  %v6313 = vadd.f32 %v6242, %v6284
  %v6314 = vadd.f32 %v6243, %v6284
  %v6315 = vadd.f32 %v6244, %v6284
  %v6316 = vadd.f32 %v6245, %v6284
  %v6317 = vadd.f32 %v6246, %v6284
  %v6318 = vadd.f32 %v6247, %v6284
  %v6319 = vadd.f32 %v6248, %v6284
  %v6320 = vadd.f32 %v6249, %v6284
  %v6321 = vadd.f32 %v6250, %v6284
  %v6322 = vadd.f32 %v6251, %v6284
  %v6323 = vadd.f32 %v6252, %v6284
  %v6324 = vadd.f32 %v6253, %v6284
  %v6325 = vadd.f32 %v6254, %v6284
  %v6326 = vadd.f32 %v6255, %v6284
  %v6327 = vadd.f32 %v6256, %v6284
  %v6328 = vadd.f32 %v6257, %v6284
  %v6329 = vadd.f32 %v6258, %v6284
  %v6330 = vadd.f32 %v6259, %v6284
  %v6331 = vadd.f32 %v6260, %v6284
  %v6332 = vadd.f32 %v6261, %v6284
  %v6333 = vadd.f32 %v6262, %v6284
  %v6334 = vadd.f32 %v6263, %v6284
  %v6335 = vadd.f32 %v6264, %v6284
  %v6336 = vadd.f32 %v6265, %v6284
  %v6337 = vadd.f32 %v6266, %v6284
  %v6338 = vadd.f32 %v6267, %v6284
  %v6339 = vadd.f32 %v6268, %v6284
  %v6340 = vadd.f32 %v6269, %v6284
  %v6341 = vadd.f32 %v6270, %v6284
  %v6342 = vadd.f32 %v6271, %v6284
  %v6343 = vadd.f32 %v6272, %v6284
  %v6344 = vadd.f32 %v6273, %v6284
  %v6345 = vadd.f32 %v6274, %v6284
  %v6346 = vadd.f32 %v6275, %v6284
  %v6347 = vadd.f32 %v6276, %v6284
  %v6348 = vadd.f32 %v6277, %v6284
  %v6349 = vadd.f32 %v6278, %v6284
  %v6350 = vmax.f32 %v6286, 0.0
  %v6351 = vmax.f32 %v6287, 0.0
  %v6352 = vmax.f32 %v6288, 0.0
  %v6353 = vmax.f32 %v6289, 0.0
  %v6354 = vmax.f32 %v6290, 0.0
  %v6355 = vmax.f32 %v6291, 0.0
  %v6356 = vmax.f32 %v6292, 0.0
  %v6357 = vmax.f32 %v6293, 0.0
  %v6358 = vmax.f32 %v6294, 0.0
  %v6359 = vmax.f32 %v6295, 0.0
  %v6360 = vmax.f32 %v6296, 0.0
  %v6361 = vmax.f32 %v6297, 0.0
  %v6362 = vmax.f32 %v6298, 0.0
  %v6363 = vmax.f32 %v6299, 0.0
  %v6364 = vmax.f32 %v6300, 0.0
  %v6365 = vmax.f32 %v6301, 0.0
  %v6366 = vmax.f32 %v6302, 0.0
  %v6367 = vmax.f32 %v6303, 0.0
  %v6368 = vmax.f32 %v6304, 0.0
  %v6369 = vmax.f32 %v6305, 0.0
  %v6370 = vmax.f32 %v6306, 0.0
  %v6371 = vmax.f32 %v6307, 0.0
  %v6372 = vmax.f32 %v6308, 0.0
  %v6373 = vmax.f32 %v6309, 0.0
  %v6374 = vmax.f32 %v6310, 0.0
  %v6375 = vmax.f32 %v6311, 0.0
  %v6376 = vmax.f32 %v6312, 0.0
  %v6377 = vmax.f32 %v6313, 0.0
  %v6378 = vmax.f32 %v6314, 0.0
  %v6379 = vmax.f32 %v6315, 0.0
  %v6380 = vmax.f32 %v6316, 0.0
  %v6381 = vmax.f32 %v6317, 0.0
  %v6382 = vmax.f32 %v6318, 0.0
  %v6383 = vmax.f32 %v6319, 0.0
  %v6384 = vmax.f32 %v6320, 0.0
  %v6385 = vmax.f32 %v6321, 0.0
  %v6386 = vmax.f32 %v6322, 0.0
  %v6387 = vmax.f32 %v6323, 0.0
  %v6388 = vmax.f32 %v6324, 0.0
  %v6389 = vmax.f32 %v6325, 0.0
  %v6390 = vmax.f32 %v6326, 0.0
  %v6391 = vmax.f32 %v6327, 0.0
  %v6392 = vmax.f32 %v6328, 0.0
  %v6393 = vmax.f32 %v6329, 0.0
  %v6394 = vmax.f32 %v6330, 0.0
  %v6395 = vmax.f32 %v6331, 0.0
  %v6396 = vmax.f32 %v6332, 0.0
  %v6397 = vmax.f32 %v6333, 0.0
  %v6398 = vmax.f32 %v6334, 0.0
  %v6399 = vmax.f32 %v6335, 0.0
  %v6400 = vmax.f32 %v6336, 0.0
  %v6401 = vmax.f32 %v6337, 0.0
  %v6402 = vmax.f32 %v6338, 0.0
  %v6403 = vmax.f32 %v6339, 0.0
  %v6404 = vmax.f32 %v6340, 0.0
  %v6405 = vmax.f32 %v6341, 0.0
  %v6406 = vmax.f32 %v6342, 0.0
  %v6407 = vmax.f32 %v6343, 0.0
  %v6408 = vmax.f32 %v6344, 0.0
  %v6409 = vmax.f32 %v6345, 0.0
  %v6410 = vmax.f32 %v6346, 0.0
  %v6411 = vmax.f32 %v6347, 0.0
  %v6412 = vmax.f32 %v6348, 0.0
  %v6413 = vmax.f32 %v6349, 0.0
  %vm6414 = vcmask 64512
  %6415 = vst.msk [vmem:[%s3] sm:$0xff] %vm6414, %v6350
  %6416 = vst.msk [vmem:[%s3 + $0x8] sm:$0xff] %vm6414, %v6351
  %6417 = vst.msk [vmem:[%s3 + $0x10] sm:$0xff] %vm6414, %v6352
  %6418 = vst.msk [vmem:[%s3 + $0x18] sm:$0xff] %vm6414, %v6353
  %6419 = vst.msk [vmem:[%s3 + $0x20] sm:$0xff] %vm6414, %v6354
  %6420 = vst.msk [vmem:[%s3 + $0x28] sm:$0xff] %vm6414, %v6355
  %6421 = vst.msk [vmem:[%s3 + $0x30] sm:$0xff] %vm6414, %v6356
  %6422 = vst.msk [vmem:[%s3 + $0x38] sm:$0xff] %vm6414, %v6357
  %6423 = vst.msk [vmem:[%s3 + $0x40] sm:$0xff] %vm6414, %v6358
  %6424 = vst.msk [vmem:[%s3 + $0x48] sm:$0xff] %vm6414, %v6359
  %6425 = vst.msk [vmem:[%s3 + $0x50] sm:$0xff] %vm6414, %v6360
  %6426 = vst.msk [vmem:[%s3 + $0x58] sm:$0xff] %vm6414, %v6361
  %6427 = vst.msk [vmem:[%s3 + $0x60] sm:$0xff] %vm6414, %v6362
  %6428 = vst.msk [vmem:[%s3 + $0x68] sm:$0xff] %vm6414, %v6363
  %6429 = vst.msk [vmem:[%s3 + $0x70] sm:$0xff] %vm6414, %v6364
  %6430 = vst.msk [vmem:[%s3 + $0x78] sm:$0xff] %vm6414, %v6365
  %6431 = vst.msk [vmem:[%s3 + $0x80] sm:$0xff] %vm6414, %v6366
  %6432 = vst.msk [vmem:[%s3 + $0x88] sm:$0xff] %vm6414, %v6367
  %6433 = vst.msk [vmem:[%s3 + $0x90] sm:$0xff] %vm6414, %v6368
  %6434 = vst.msk [vmem:[%s3 + $0x98] sm:$0xff] %vm6414, %v6369
  %6435 = vst.msk [vmem:[%s3 + $0xa0] sm:$0xff] %vm6414, %v6370
  %6436 = vst.msk [vmem:[%s3 + $0xa8] sm:$0xff] %vm6414, %v6371
  %6437 = vst.msk [vmem:[%s3 + $0xb0] sm:$0xff] %vm6414, %v6372
  %6438 = vst.msk [vmem:[%s3 + $0xb8] sm:$0xff] %vm6414, %v6373
  %6439 = vst.msk [vmem:[%s3 + $0xc0] sm:$0xff] %vm6414, %v6374
  %6440 = vst.msk [vmem:[%s3 + $0xc8] sm:$0xff] %vm6414, %v6375
  %6441 = vst.msk [vmem:[%s3 + $0xd0] sm:$0xff] %vm6414, %v6376
  %6442 = vst.msk [vmem:[%s3 + $0xd8] sm:$0xff] %vm6414, %v6377
  %6443 = vst.msk [vmem:[%s3 + $0xe0] sm:$0xff] %vm6414, %v6378
  %6444 = vst.msk [vmem:[%s3 + $0xe8] sm:$0xff] %vm6414, %v6379
  %6445 = vst.msk [vmem:[%s3 + $0xf0] sm:$0xff] %vm6414, %v6380
  %6446 = vst.msk [vmem:[%s3 + $0xf8] sm:$0xff] %vm6414, %v6381
  %6447 = vst.msk [vmem:[%s3 + $0x100] sm:$0xff] %vm6414, %v6382
  %6448 = vst.msk [vmem:[%s3 + $0x108] sm:$0xff] %vm6414, %v6383
  %6449 = vst.msk [vmem:[%s3 + $0x110] sm:$0xff] %vm6414, %v6384
  %6450 = vst.msk [vmem:[%s3 + $0x118] sm:$0xff] %vm6414, %v6385
  %6451 = vst.msk [vmem:[%s3 + $0x120] sm:$0xff] %vm6414, %v6386
  %6452 = vst.msk [vmem:[%s3 + $0x128] sm:$0xff] %vm6414, %v6387
  %6453 = vst.msk [vmem:[%s3 + $0x130] sm:$0xff] %vm6414, %v6388
  %6454 = vst.msk [vmem:[%s3 + $0x138] sm:$0xff] %vm6414, %v6389
  %6455 = vst.msk [vmem:[%s3 + $0x140] sm:$0xff] %vm6414, %v6390
  %6456 = vst.msk [vmem:[%s3 + $0x148] sm:$0xff] %vm6414, %v6391
  %6457 = vst.msk [vmem:[%s3 + $0x150] sm:$0xff] %vm6414, %v6392
  %6458 = vst.msk [vmem:[%s3 + $0x158] sm:$0xff] %vm6414, %v6393
  %6459 = vst.msk [vmem:[%s3 + $0x160] sm:$0xff] %vm6414, %v6394
  %6460 = vst.msk [vmem:[%s3 + $0x168] sm:$0xff] %vm6414, %v6395
  %6461 = vst.msk [vmem:[%s3 + $0x170] sm:$0xff] %vm6414, %v6396
  %6462 = vst.msk [vmem:[%s3 + $0x178] sm:$0xff] %vm6414, %v6397
  %6463 = vst.msk [vmem:[%s3 + $0x180] sm:$0xff] %vm6414, %v6398
  %6464 = vst.msk [vmem:[%s3 + $0x188] sm:$0xff] %vm6414, %v6399
  %6465 = vst.msk [vmem:[%s3 + $0x190] sm:$0xff] %vm6414, %v6400
  %6466 = vst.msk [vmem:[%s3 + $0x198] sm:$0xff] %vm6414, %v6401
  %6467 = vst.msk [vmem:[%s3 + $0x1a0] sm:$0xff] %vm6414, %v6402
  %6468 = vst.msk [vmem:[%s3 + $0x1a8] sm:$0xff] %vm6414, %v6403
  %6469 = vst.msk [vmem:[%s3 + $0x1b0] sm:$0xff] %vm6414, %v6404
  %6470 = vst.msk [vmem:[%s3 + $0x1b8] sm:$0xff] %vm6414, %v6405
  %6471 = vst.msk [vmem:[%s3 + $0x1c0] sm:$0xff] %vm6414, %v6406
  %6472 = vst.msk [vmem:[%s3 + $0x1c8] sm:$0xff] %vm6414, %v6407
  %6473 = vst.msk [vmem:[%s3 + $0x1d0] sm:$0xff] %vm6414, %v6408
  %6474 = vst.msk [vmem:[%s3 + $0x1d8] sm:$0xff] %vm6414, %v6409
  %6475 = vst.msk [vmem:[%s3 + $0x1e0] sm:$0xff] %vm6414, %v6410
  %6476 = vst.msk [vmem:[%s3 + $0x1e8] sm:$0xff] %vm6414, %v6411
  %6477 = vst.msk [vmem:[%s3 + $0x1f0] sm:$0xff] %vm6414, %v6412
  %6478 = vst.msk [vmem:[%s3 + $0x1f8] sm:$0xff] %vm6414, %v6413
  // Predicated region
  $region14: #{classifier_feature_forward.2} parent=0 // pred_check
    _
  $region15: #{classifier_feature_forward.2} parent=0 // pred_check_branch
    %6480 = sbr.rel (0) target = $region17
  $region16: #{classifier_feature_forward.2} parent=0 // pred_region
    _
  $region17: #{classifier_feature_forward.2} parent=0 // pred_fallthru
    _
  // Predicated region
  $region18: #{classifier_feature_forward.2} parent=0 // pred_check
    _
  $region19: #{classifier_feature_forward.2} parent=0 // pred_check_branch
    %6482 = sbr.rel (0) target = $region21
  $region20: #{classifier_feature_forward.2} parent=0 // pred_region
    _
  $region21: #{classifier_feature_forward.2} parent=0 // pred_fallthru
    _

</llo_original>
